<compile_context>
chip_gen: v6e
topology: v6e:2x2x1
jax: 0.10.0
libtpu: 0.0.40
codegen_flags: <defaults>
</compile_context>

<pallas_src>
import math
import functools
import numpy as np

import jax
import jax.numpy as jnp
from jax.experimental import pallas as pl
from jax.experimental.pallas import tpu as pltpu

NUM_HEADS = 12


# ------------------------------ Pallas kernel ------------------------------- #

def _fused_is_attention_kernel(intent_ref, slot_ref, bias_ref,
                               wi_ref, bi_ref, ws_ref, bs_ref,
                               cos_ref, sin_ref,
                               ctx_slot_ref, ctx_intent_ref, *, hd, hdv):
    """One grid step = one batch element.

    intent_ref/slot_ref : (1, S, Din)
    bias_ref            : (1, 1, S)        additive attention mask (already *-10000)
    wi_ref/ws_ref       : (H, Din, 2*hd+hdv)  fused per-head projection weights
    bi_ref/bs_ref       : (H, 1, 2*hd+hdv)    fused per-head projection biases
    cos_ref/sin_ref     : (1, S, hd)        half-rotation RoPE multipliers
    ctx_*_ref           : (1, H, S, hdv)    per-head context outputs
    """
    H, din, _ = wi_ref.shape
    S = intent_ref.shape[1]
    half = hd // 2

    # Broadcast activations over the head (batch) axis of the fused per-head matmul.
    x_i = jnp.broadcast_to(intent_ref[...], (H, S, din))   # (H, S, Din)
    x_s = jnp.broadcast_to(slot_ref[...], (H, S, din))

    # Fused projections: (H,S,Din) x (H,Din,E) -> (H,S,E), E = 2*hd + hdv.
    dn_proj = (((2,), (1,)), ((0,), (0,)))
    p_i = jax.lax.dot_general(x_i, wi_ref[...], dn_proj,
                              preferred_element_type=jnp.float32) + bi_ref[...]
    p_s = jax.lax.dot_general(x_s, ws_ref[...], dn_proj,
                              preferred_element_type=jnp.float32) + bs_ref[...]

    # intent input -> [ query | key_slot | value_slot ]
    q_i = p_i[..., :hd]            # query(intent)      (scale + RoPE-perm folded)
    k_s = p_i[..., hd:2 * hd]      # key_slot(intent)   (RoPE-perm folded)
    v_s = p_i[..., 2 * hd:]        # value_slot(intent)
    # slot input -> [ key | query_slot | value ]
    k_i = p_s[..., :hd]            # key(slot)          (RoPE-perm folded)
    q_s = p_s[..., hd:2 * hd]      # query_slot(slot)   (scale + RoPE-perm folded)
    v_i = p_s[..., 2 * hd:]        # value(slot)

    cos = cos_ref[...]             # (1, S, hd) -> broadcasts over heads
    sin = sin_ref[...]

    def rope(x):                   # x: (H, S, hd) with per-head [x1 | x2] halves
        x_rot = jnp.concatenate([x[..., half:], x[..., :half]], axis=-1)
        return x * cos + x_rot * sin

    q_i, k_i = rope(q_i), rope(k_i)
    q_s, k_s = rope(q_s), rope(k_s)

    bias = bias_ref[...]           # (1, 1, S) -> broadcasts over (H, S, S)

    dn_qk = (((2,), (2,)), ((0,), (0,)))   # (H,S,hd) x (H,S,hd)  -> (H,S,S)
    dn_pv = (((2,), (1,)), ((0,), (0,)))   # (H,S,S)  x (H,S,hdv) -> (H,S,hdv)

    def attend(q, k, v):
        s = jax.lax.dot_general(q, k, dn_qk,
                                preferred_element_type=jnp.float32) + bias
        m = jnp.max(s, axis=-1, keepdims=True)
        p = jnp.exp(s - m)
        denom = jnp.sum(p, axis=-1, keepdims=True)
        p = p * pl.reciprocal(denom, approx=False)
        return jax.lax.dot_general(p, v, dn_pv, preferred_element_type=jnp.float32)

    # TODO(synk): attention_dropout is an eval-mode identity here (no dropout applied).
    ctx_slot_ref[0] = attend(q_s, k_s, v_s).astype(ctx_slot_ref.dtype)
    ctx_intent_ref[0] = attend(q_i, k_i, v_i).astype(ctx_intent_ref.dtype)


# ------------------------------- JAX wrapper -------------------------------- #

def roformer_sinusoidal_table(n_pos, dim):
    position_enc = np.array(
        [[pos / np.power(10000, 2 * (j // 2) / dim) for j in range(dim)]
         for pos in range(n_pos)], dtype=np.float64)
    out = np.zeros((n_pos, dim), dtype=np.float32)
    sentinel = dim // 2 if dim % 2 == 0 else dim // 2 + 1
    out[:, 0:sentinel] = np.sin(position_enc[:, 0::2])
    out[:, sentinel:] = np.cos(position_enc[:, 1::2])
    return jnp.asarray(out)


def ro_emb(x, sin, cos):
    # Reference-path RoPE (torch layout): x: (B,H,S,hd); sin/cos: (S, hd//2)
    x1 = x[..., 0::2]
    x2 = x[..., 1::2]
    s = sin[None, None, :, :]
    c = cos[None, None, :, :]
    return jnp.concatenate([x1 * c - x2 * s, x2 * c + x1 * s], axis=-1)


class ISSelfAttentionPallas:
    def __init__(self, input_size, hidden_size, out_size, max_seq_len, key):
        assert hidden_size % NUM_HEADS == 0 and out_size % NUM_HEADS == 0
        self.num_heads = NUM_HEADS
        self.head_size = hidden_size // NUM_HEADS
        self.v_head_size = out_size // NUM_HEADS
        assert self.head_size % 2 == 0, "RoPE requires an even head size"
        self.all_head_size = self.num_heads * self.head_size
        self.out_size = out_size
        self.input_size = input_size
        self.max_seq_len = max_seq_len

        keys = jax.random.split(key, 12)

        def init_lin(kw, kb, dout, din):
            bound = 1.0 / math.sqrt(din)
            w = jax.random.uniform(kw, (dout, din), jnp.float32, -bound, bound)
            b = jax.random.uniform(kb, (dout,), jnp.float32, -bound, bound)
            return w, b

        # Original (torch-equivalent) parameters — kept for the pure-JAX reference.
        self.q_w, self.q_b = init_lin(keys[0], keys[1], self.all_head_size, input_size)
        self.qs_w, self.qs_b = init_lin(keys[2], keys[3], self.all_head_size, input_size)
        self.k_w, self.k_b = init_lin(keys[4], keys[5], self.all_head_size, input_size)
        self.ks_w, self.ks_b = init_lin(keys[6], keys[7], self.all_head_size, input_size)
        self.v_w, self.v_b = init_lin(keys[8], keys[9], out_size, input_size)
        self.vs_w, self.vs_b = init_lin(keys[10], keys[11], out_size, input_size)

        table = roformer_sinusoidal_table(max_seq_len, self.head_size)
        self.sin = table[:, : self.head_size // 2]
        self.cos = table[:, self.head_size // 2:]

        # ---------- init-time folds for the fused kernel ----------
        H, hd, hdv = self.num_heads, self.head_size, self.v_head_size
        scale = 1.0 / math.sqrt(hd)
        # Per-head permutation: even channels first, then odd -> RoPE halves [x1 | x2].
        perm = np.concatenate(
            [h * hd + np.concatenate([np.arange(0, hd, 2), np.arange(1, hd, 2)])
             for h in range(H)])

        def per_head(w, b, dh, permute, scale_by=1.0):
            if permute:
                w = w[perm]
                b = b[perm]
            w = (w * scale_by).reshape(H, dh, input_size).transpose(0, 2, 1)  # (H,Din,dh)
            b = (b * scale_by).reshape(H, 1, dh)                              # (H,1,dh)
            return w, b

        wq_h, bq_h = per_head(self.q_w, self.q_b, hd, True, scale)      # query (scaled)
        wks_h, bks_h = per_head(self.ks_w, self.ks_b, hd, True)         # key_slot
        wvs_h, bvs_h = per_head(self.vs_w, self.vs_b, hdv, False)       # value_slot
        wk_h, bk_h = per_head(self.k_w, self.k_b, hd, True)             # key
        wqs_h, bqs_h = per_head(self.qs_w, self.qs_b, hd, True, scale)  # query_slot (scaled)
        wv_h, bv_h = per_head(self.v_w, self.v_b, hdv, False)           # value

        # Fused weights: intent input -> [query | key_slot | value_slot],
        #                slot input   -> [key | query_slot | value].
        self.w_intent = jnp.concatenate([wq_h, wks_h, wvs_h], axis=-1)  # (H, Din, 2hd+hdv)
        self.b_intent = jnp.concatenate([bq_h, bks_h, bvs_h], axis=-1)  # (H, 1, 2hd+hdv)
        self.w_slot = jnp.concatenate([wk_h, wqs_h, wv_h], axis=-1)
        self.b_slot = jnp.concatenate([bk_h, bqs_h, bv_h], axis=-1)

        # Half-rotation RoPE multipliers in the [x1 | x2] layout.
        self.cos_half = jnp.concatenate([self.cos, self.cos], axis=-1)   # (max_seq, hd)
        self.sin_half = jnp.concatenate([-self.sin, self.sin], axis=-1)  # (max_seq, hd)

        self._fwd = jax.jit(self._forward)

    def _forward(self, intent, slot, mask):
        B, S, Din = intent.shape
        H, hd, hdv = self.num_heads, self.head_size, self.v_head_size
        E = 2 * hd + hdv

        bias = ((1.0 - mask) * -10000.0).astype(jnp.float32).reshape(B, 1, S)
        cosf = self.cos_half[:S][None]   # (1, S, hd)
        sinf = self.sin_half[:S][None]

        kernel = functools.partial(_fused_is_attention_kernel, hd=hd, hdv=hdv)

        ctx_slot_h, ctx_intent_h = pl.pallas_call(
            kernel,
            out_shape=(jax.ShapeDtypeStruct((B, H, S, hdv), jnp.float32),
                       jax.ShapeDtypeStruct((B, H, S, hdv), jnp.float32)),
            grid=(B,),
            in_specs=[
                pl.BlockSpec((1, S, Din), lambda b: (b, 0, 0)),     # intent
                pl.BlockSpec((1, S, Din), lambda b: (b, 0, 0)),     # slot
                pl.BlockSpec((1, 1, S), lambda b: (b, 0, 0)),       # bias
                pl.BlockSpec((H, Din, E), lambda b: (0, 0, 0)),     # w_intent
                pl.BlockSpec((H, 1, E), lambda b: (0, 0, 0)),       # b_intent
                pl.BlockSpec((H, Din, E), lambda b: (0, 0, 0)),     # w_slot
                pl.BlockSpec((H, 1, E), lambda b: (0, 0, 0)),       # b_slot
                pl.BlockSpec((1, S, hd), lambda b: (0, 0, 0)),      # cos
                pl.BlockSpec((1, S, hd), lambda b: (0, 0, 0)),      # sin
            ],
            out_specs=(
                pl.BlockSpec((1, H, S, hdv), lambda b: (b, 0, 0, 0)),
                pl.BlockSpec((1, H, S, hdv), lambda b: (b, 0, 0, 0)),
            ),
            compiler_params=pltpu.CompilerParams(
                dimension_semantics=("parallel",)),
        )(intent, slot, bias, self.w_intent, self.b_intent,
          self.w_slot, self.b_slot, cosf, sinf)

        def merge(ctx):   # (B,H,S,hdv) -> (B,S,out_size); tiny XLA transpose + free reshape
            return jnp.transpose(ctx, (0, 2, 1, 3)).reshape(B, S, self.out_size)

        return merge(ctx_slot_h), merge(ctx_intent_h)

    def __call__(self, intent, slot, mask):
        return self._fwd(intent, slot, mask)


# --------------------------- pure-JAX reference ----------------------------- #

def _reference(mod, intent, slot, mask):
    def lin(x, w, b):
        return x @ w.T + b

    def heads(x):
        B, S, D = x.shape
        return x.reshape(B, S, NUM_HEADS, D // NUM_HEADS).transpose(0, 2, 1, 3)

    bias = ((1.0 - mask) * -10000.0)[:, None, None, :]
    q_i = ro_emb(heads(lin(intent, mod.q_w, mod.q_b)), mod.sin, mod.cos)
    k_i = ro_emb(heads(lin(slot, mod.k_w, mod.k_b)), mod.sin, mod.cos)
    v_i = heads(lin(slot, mod.v_w, mod.v_b))
    q_s = ro_emb(heads(lin(slot, mod.qs_w, mod.qs_b)), mod.sin, mod.cos)
    k_s = ro_emb(heads(lin(intent, mod.ks_w, mod.ks_b)), mod.sin, mod.cos)
    v_s = heads(lin(intent, mod.vs_w, mod.vs_b))
    scale = 1.0 / math.sqrt(mod.head_size)

    def attn(q, k, v):
        s = jnp.einsum("bhqd,bhkd->bhqk", q, k) * scale + bias
        p = jax.nn.softmax(s, axis=-1)
        c = jnp.einsum("bhqk,bhkd->bhqd", p, v)
        B, H, S, hd = c.shape
        return c.transpose(0, 2, 1, 3).reshape(B, S, mod.out_size)

    return attn(q_s, k_s, v_s), attn(q_i, k_i, v_i)


# ---------------------------------- main ------------------------------------ #

if __name__ == "__main__":
    B, S = 2, 8
    INPUT_SIZE, HIDDEN_SIZE, OUT_SIZE = 32, 48, 48   # head_size = 4 (even, for RoPE)
    MAX_SEQ_LEN = S                                   # torch module requires S == max_seq_len

    key = jax.random.PRNGKey(0)
    k_params, k_intent, k_slot = jax.random.split(key, 3)

    mod = ISSelfAttentionPallas(INPUT_SIZE, HIDDEN_SIZE, OUT_SIZE, MAX_SEQ_LEN, k_params)

    intent = jax.random.normal(k_intent, (B, S, INPUT_SIZE), jnp.float32)
    slot = jax.random.normal(k_slot, (B, S, INPUT_SIZE), jnp.float32)
    mask = jnp.ones((B, S), jnp.float32).at[0, 6:].set(0.0).at[1, 7:].set(0.0)

    ctx_slot, ctx_intent = mod(intent, slot, mask)
    jax.block_until_ready((ctx_slot, ctx_intent))

    ref_slot, ref_intent = _reference(mod, intent, slot, mask)
    np.testing.assert_allclose(np.asarray(ctx_slot), np.asarray(ref_slot), atol=1e-4, rtol=1e-4)
    np.testing.assert_allclose(np.asarray(ctx_intent), np.asarray(ref_intent), atol=1e-4, rtol=1e-4)

    print("KERNEL_OK")
</pallas_src>

<mosaic_0001>
module attributes {stable_mosaic.version = 11 : i64} {
  func.func @_fused_is_attention_kernel(%arg0: i32, %arg1: memref<1x8x32xf32, #tpu.memory_space<vmem>>, %arg2: memref<1x8x32xf32, #tpu.memory_space<vmem>>, %arg3: memref<1x1x8xf32, #tpu.memory_space<vmem>>, %arg4: memref<12x32x12xf32, #tpu.memory_space<vmem>>, %arg5: memref<12x1x12xf32, #tpu.memory_space<vmem>>, %arg6: memref<12x32x12xf32, #tpu.memory_space<vmem>>, %arg7: memref<12x1x12xf32, #tpu.memory_space<vmem>>, %arg8: memref<1x8x4xf32, #tpu.memory_space<vmem>>, %arg9: memref<1x8x4xf32, #tpu.memory_space<vmem>>, %arg10: memref<1x12x8x4xf32, #tpu.memory_space<vmem>>, %arg11: memref<1x12x8x4xf32, #tpu.memory_space<vmem>>) attributes {dimension_semantics = [#tpu.dimension_semantics<parallel>], iteration_bounds = array<i64: 2>, scalar_prefetch = 0 : i64, scratch_operands = 0 : i64, tpu.core_type = #tpu.core_type<tc>, window_params = [{transform_indices = @transform_0, window_bounds = array<i64: 1, 8, 32>}, {transform_indices = @transform_1, window_bounds = array<i64: 1, 8, 32>}, {transform_indices = @transform_2, window_bounds = array<i64: 1, 1, 8>}, {pipeline_mode = #tpu.pipeline_mode<synchronous>, transform_indices = @transform_3, window_bounds = array<i64: 12, 32, 12>}, {pipeline_mode = #tpu.pipeline_mode<synchronous>, transform_indices = @transform_4, window_bounds = array<i64: 12, 1, 12>}, {pipeline_mode = #tpu.pipeline_mode<synchronous>, transform_indices = @transform_5, window_bounds = array<i64: 12, 32, 12>}, {pipeline_mode = #tpu.pipeline_mode<synchronous>, transform_indices = @transform_6, window_bounds = array<i64: 12, 1, 12>}, {pipeline_mode = #tpu.pipeline_mode<synchronous>, transform_indices = @transform_7, window_bounds = array<i64: 1, 8, 4>}, {pipeline_mode = #tpu.pipeline_mode<synchronous>, transform_indices = @transform_8, window_bounds = array<i64: 1, 8, 4>}, {transform_indices = @transform_9, window_bounds = array<i64: 1, 12, 8, 4>}, {transform_indices = @transform_10, window_bounds = array<i64: 1, 12, 8, 4>}]} {
    %c0 = arith.constant 0 : index
    %c0_0 = arith.constant 0 : index
    %c0_1 = arith.constant 0 : index
    %0 = vector.load %arg1[%c0, %c0_0, %c0_1] : memref<1x8x32xf32, #tpu.memory_space<vmem>>, vector<1x8x32xf32>
    %1 = vector.shape_cast %0 : vector<1x8x32xf32> to vector<1x8x32xf32>
    %2 = vector.broadcast %1 : vector<1x8x32xf32> to vector<12x8x32xf32>
    %c0_2 = arith.constant 0 : index
    %c0_3 = arith.constant 0 : index
    %c0_4 = arith.constant 0 : index
    %3 = vector.load %arg2[%c0_2, %c0_3, %c0_4] : memref<1x8x32xf32, #tpu.memory_space<vmem>>, vector<1x8x32xf32>
    %4 = vector.shape_cast %3 : vector<1x8x32xf32> to vector<1x8x32xf32>
    %5 = vector.broadcast %4 : vector<1x8x32xf32> to vector<12x8x32xf32>
    %c0_5 = arith.constant 0 : index
    %c0_6 = arith.constant 0 : index
    %c0_7 = arith.constant 0 : index
    %6 = vector.load %arg4[%c0_5, %c0_6, %c0_7] : memref<12x32x12xf32, #tpu.memory_space<vmem>>, vector<12x32x12xf32>
    %cst = arith.constant dense<0.000000e+00> : vector<12x8x12xf32>
    %7 = tpu.matmul %2, %6, %cst {dimension_numbers = #tpu.dot_dimension_numbers<[2], [1], [1], [2], [0, 0, 0, 1, 1, 2], [0], [0]>} : vector<12x8x32xf32>, vector<12x32x12xf32>, vector<12x8x12xf32> -> vector<12x8x12xf32>
    %c0_8 = arith.constant 0 : index
    %c0_9 = arith.constant 0 : index
    %c0_10 = arith.constant 0 : index
    %8 = vector.load %arg5[%c0_8, %c0_9, %c0_10] : memref<12x1x12xf32, #tpu.memory_space<vmem>>, vector<12x1x12xf32>
    %9 = vector.broadcast %8 : vector<12x1x12xf32> to vector<12x8x12xf32>
    %10 = arith.addf %7, %9 : vector<12x8x12xf32>
    %c0_11 = arith.constant 0 : index
    %c0_12 = arith.constant 0 : index
    %c0_13 = arith.constant 0 : index
    %11 = vector.load %arg6[%c0_11, %c0_12, %c0_13] : memref<12x32x12xf32, #tpu.memory_space<vmem>>, vector<12x32x12xf32>
    %cst_14 = arith.constant dense<0.000000e+00> : vector<12x8x12xf32>
    %12 = tpu.matmul %5, %11, %cst_14 {dimension_numbers = #tpu.dot_dimension_numbers<[2], [1], [1], [2], [0, 0, 0, 1, 1, 2], [0], [0]>} : vector<12x8x32xf32>, vector<12x32x12xf32>, vector<12x8x12xf32> -> vector<12x8x12xf32>
    %c0_15 = arith.constant 0 : index
    %c0_16 = arith.constant 0 : index
    %c0_17 = arith.constant 0 : index
    %13 = vector.load %arg7[%c0_15, %c0_16, %c0_17] : memref<12x1x12xf32, #tpu.memory_space<vmem>>, vector<12x1x12xf32>
    %14 = vector.broadcast %13 : vector<12x1x12xf32> to vector<12x8x12xf32>
    %15 = arith.addf %12, %14 : vector<12x8x12xf32>
    %16 = vector.extract_strided_slice %10 {offsets = [0, 0, 0], sizes = [12, 8, 4], strides = [1, 1, 1]} : vector<12x8x12xf32> to vector<12x8x4xf32>
    %17 = vector.extract_strided_slice %10 {offsets = [0, 0, 4], sizes = [12, 8, 4], strides = [1, 1, 1]} : vector<12x8x12xf32> to vector<12x8x4xf32>
    %18 = vector.extract_strided_slice %10 {offsets = [0, 0, 8], sizes = [12, 8, 4], strides = [1, 1, 1]} : vector<12x8x12xf32> to vector<12x8x4xf32>
    %19 = vector.extract_strided_slice %15 {offsets = [0, 0, 0], sizes = [12, 8, 4], strides = [1, 1, 1]} : vector<12x8x12xf32> to vector<12x8x4xf32>
    %20 = vector.extract_strided_slice %15 {offsets = [0, 0, 4], sizes = [12, 8, 4], strides = [1, 1, 1]} : vector<12x8x12xf32> to vector<12x8x4xf32>
    %21 = vector.extract_strided_slice %15 {offsets = [0, 0, 8], sizes = [12, 8, 4], strides = [1, 1, 1]} : vector<12x8x12xf32> to vector<12x8x4xf32>
    %c0_18 = arith.constant 0 : index
    %c0_19 = arith.constant 0 : index
    %c0_20 = arith.constant 0 : index
    %22 = vector.load %arg8[%c0_18, %c0_19, %c0_20] : memref<1x8x4xf32, #tpu.memory_space<vmem>>, vector<1x8x4xf32>
    %c0_21 = arith.constant 0 : index
    %c0_22 = arith.constant 0 : index
    %c0_23 = arith.constant 0 : index
    %23 = vector.load %arg9[%c0_21, %c0_22, %c0_23] : memref<1x8x4xf32, #tpu.memory_space<vmem>>, vector<1x8x4xf32>
    %24 = vector.extract_strided_slice %16 {offsets = [0, 0, 2], sizes = [12, 8, 2], strides = [1, 1, 1]} : vector<12x8x4xf32> to vector<12x8x2xf32>
    %25 = vector.extract_strided_slice %16 {offsets = [0, 0, 0], sizes = [12, 8, 2], strides = [1, 1, 1]} : vector<12x8x4xf32> to vector<12x8x2xf32>
    %26 = tpu.concatenate %24, %25 in 2 : vector<12x8x2xf32>, vector<12x8x2xf32> -> vector<12x8x4xf32>
    %27 = vector.broadcast %22 : vector<1x8x4xf32> to vector<12x8x4xf32>
    %28 = arith.mulf %16, %27 : vector<12x8x4xf32>
    %29 = vector.broadcast %23 : vector<1x8x4xf32> to vector<12x8x4xf32>
    %30 = arith.mulf %26, %29 : vector<12x8x4xf32>
    %31 = arith.addf %28, %30 : vector<12x8x4xf32>
    %32 = vector.extract_strided_slice %19 {offsets = [0, 0, 2], sizes = [12, 8, 2], strides = [1, 1, 1]} : vector<12x8x4xf32> to vector<12x8x2xf32>
    %33 = vector.extract_strided_slice %19 {offsets = [0, 0, 0], sizes = [12, 8, 2], strides = [1, 1, 1]} : vector<12x8x4xf32> to vector<12x8x2xf32>
    %34 = tpu.concatenate %32, %33 in 2 : vector<12x8x2xf32>, vector<12x8x2xf32> -> vector<12x8x4xf32>
    %35 = vector.broadcast %22 : vector<1x8x4xf32> to vector<12x8x4xf32>
    %36 = arith.mulf %19, %35 : vector<12x8x4xf32>
    %37 = vector.broadcast %23 : vector<1x8x4xf32> to vector<12x8x4xf32>
    %38 = arith.mulf %34, %37 : vector<12x8x4xf32>
    %39 = arith.addf %36, %38 : vector<12x8x4xf32>
    %40 = vector.extract_strided_slice %20 {offsets = [0, 0, 2], sizes = [12, 8, 2], strides = [1, 1, 1]} : vector<12x8x4xf32> to vector<12x8x2xf32>
    %41 = vector.extract_strided_slice %20 {offsets = [0, 0, 0], sizes = [12, 8, 2], strides = [1, 1, 1]} : vector<12x8x4xf32> to vector<12x8x2xf32>
    %42 = tpu.concatenate %40, %41 in 2 : vector<12x8x2xf32>, vector<12x8x2xf32> -> vector<12x8x4xf32>
    %43 = vector.broadcast %22 : vector<1x8x4xf32> to vector<12x8x4xf32>
    %44 = arith.mulf %20, %43 : vector<12x8x4xf32>
    %45 = vector.broadcast %23 : vector<1x8x4xf32> to vector<12x8x4xf32>
    %46 = arith.mulf %42, %45 : vector<12x8x4xf32>
    %47 = arith.addf %44, %46 : vector<12x8x4xf32>
    %48 = vector.extract_strided_slice %17 {offsets = [0, 0, 2], sizes = [12, 8, 2], strides = [1, 1, 1]} : vector<12x8x4xf32> to vector<12x8x2xf32>
    %49 = vector.extract_strided_slice %17 {offsets = [0, 0, 0], sizes = [12, 8, 2], strides = [1, 1, 1]} : vector<12x8x4xf32> to vector<12x8x2xf32>
    %50 = tpu.concatenate %48, %49 in 2 : vector<12x8x2xf32>, vector<12x8x2xf32> -> vector<12x8x4xf32>
    %51 = vector.broadcast %22 : vector<1x8x4xf32> to vector<12x8x4xf32>
    %52 = arith.mulf %17, %51 : vector<12x8x4xf32>
    %53 = vector.broadcast %23 : vector<1x8x4xf32> to vector<12x8x4xf32>
    %54 = arith.mulf %50, %53 : vector<12x8x4xf32>
    %55 = arith.addf %52, %54 : vector<12x8x4xf32>
    %c0_24 = arith.constant 0 : index
    %c0_25 = arith.constant 0 : index
    %c0_26 = arith.constant 0 : index
    %56 = vector.load %arg3[%c0_24, %c0_25, %c0_26] : memref<1x1x8xf32, #tpu.memory_space<vmem>>, vector<1x1x8xf32>
    %cst_27 = arith.constant dense<0.000000e+00> : vector<12x8x8xf32>
    %57 = tpu.matmul %47, %55, %cst_27 {dimension_numbers = #tpu.dot_dimension_numbers<[2], [2], [1], [1], [0, 0, 0, 1, 1, 1], [0], [0]>} : vector<12x8x4xf32>, vector<12x8x4xf32>, vector<12x8x8xf32> -> vector<12x8x8xf32>
    %58 = vector.broadcast %56 : vector<1x1x8xf32> to vector<12x8x8xf32>
    %59 = arith.addf %57, %58 : vector<12x8x8xf32>
    %cst_28 = arith.constant dense<0xFF800000> : vector<12x8xf32>
    %60 = vector.multi_reduction <maximumf>, %59, %cst_28 [2] : vector<12x8x8xf32> to vector<12x8xf32>
    %61 = vector.shape_cast %60 : vector<12x8xf32> to vector<12x8x1xf32>
    %62 = vector.broadcast %61 : vector<12x8x1xf32> to vector<12x8x8xf32>
    %63 = arith.subf %59, %62 : vector<12x8x8xf32>
    %64 = math.exp %63 : vector<12x8x8xf32>
    %cst_29 = arith.constant dense<0.000000e+00> : vector<12x8xf32>
    %65 = vector.multi_reduction <add>, %64, %cst_29 [2] : vector<12x8x8xf32> to vector<12x8xf32>
    %66 = vector.shape_cast %65 : vector<12x8xf32> to vector<12x8x1xf32>
    %67 = tpu.reciprocal %66 : vector<12x8x1xf32> -> vector<12x8x1xf32>
    %68 = vector.broadcast %67 : vector<12x8x1xf32> to vector<12x8x8xf32>
    %69 = arith.mulf %64, %68 : vector<12x8x8xf32>
    %cst_30 = arith.constant dense<0.000000e+00> : vector<12x8x4xf32>
    %70 = tpu.matmul %69, %18, %cst_30 {dimension_numbers = #tpu.dot_dimension_numbers<[2], [1], [1], [2], [0, 0, 0, 1, 1, 2], [0], [0]>} : vector<12x8x8xf32>, vector<12x8x4xf32>, vector<12x8x4xf32> -> vector<12x8x4xf32>
    %c0_31 = arith.constant 0 : index
    %c0_32 = arith.constant 0 : index
    %c0_33 = arith.constant 0 : index
    %c0_34 = arith.constant 0 : index
    %71 = vector.load %arg10[%c0_31, %c0_32, %c0_33, %c0_34] : memref<1x12x8x4xf32, #tpu.memory_space<vmem>>, vector<1x12x8x4xf32>
    %72 = vector.shape_cast %71 : vector<1x12x8x4xf32> to vector<12x8x4xf32>
    %73 = vector.shape_cast %70 : vector<12x8x4xf32> to vector<1x12x8x4xf32>
    tpu.vector_store %arg10[%c0_31, %c0_32, %c0_33, %c0_34], %73 {strides = array<i32>} : memref<1x12x8x4xf32, #tpu.memory_space<vmem>>, vector<1x12x8x4xf32>,
    %cst_35 = arith.constant dense<0.000000e+00> : vector<12x8x8xf32>
    %74 = tpu.matmul %31, %39, %cst_35 {dimension_numbers = #tpu.dot_dimension_numbers<[2], [2], [1], [1], [0, 0, 0, 1, 1, 1], [0], [0]>} : vector<12x8x4xf32>, vector<12x8x4xf32>, vector<12x8x8xf32> -> vector<12x8x8xf32>
    %75 = vector.broadcast %56 : vector<1x1x8xf32> to vector<12x8x8xf32>
    %76 = arith.addf %74, %75 : vector<12x8x8xf32>
    %cst_36 = arith.constant dense<0xFF800000> : vector<12x8xf32>
    %77 = vector.multi_reduction <maximumf>, %76, %cst_36 [2] : vector<12x8x8xf32> to vector<12x8xf32>
    %78 = vector.shape_cast %77 : vector<12x8xf32> to vector<12x8x1xf32>
    %79 = vector.broadcast %78 : vector<12x8x1xf32> to vector<12x8x8xf32>
    %80 = arith.subf %76, %79 : vector<12x8x8xf32>
    %81 = math.exp %80 : vector<12x8x8xf32>
    %cst_37 = arith.constant dense<0.000000e+00> : vector<12x8xf32>
    %82 = vector.multi_reduction <add>, %81, %cst_37 [2] : vector<12x8x8xf32> to vector<12x8xf32>
    %83 = vector.shape_cast %82 : vector<12x8xf32> to vector<12x8x1xf32>
    %84 = tpu.reciprocal %83 : vector<12x8x1xf32> -> vector<12x8x1xf32>
    %85 = vector.broadcast %84 : vector<12x8x1xf32> to vector<12x8x8xf32>
    %86 = arith.mulf %81, %85 : vector<12x8x8xf32>
    %cst_38 = arith.constant dense<0.000000e+00> : vector<12x8x4xf32>
    %87 = tpu.matmul %86, %21, %cst_38 {dimension_numbers = #tpu.dot_dimension_numbers<[2], [1], [1], [2], [0, 0, 0, 1, 1, 2], [0], [0]>} : vector<12x8x8xf32>, vector<12x8x4xf32>, vector<12x8x4xf32> -> vector<12x8x4xf32>
    %c0_39 = arith.constant 0 : index
    %c0_40 = arith.constant 0 : index
    %c0_41 = arith.constant 0 : index
    %c0_42 = arith.constant 0 : index
    %88 = vector.load %arg11[%c0_39, %c0_40, %c0_41, %c0_42] : memref<1x12x8x4xf32, #tpu.memory_space<vmem>>, vector<1x12x8x4xf32>
    %89 = vector.shape_cast %88 : vector<1x12x8x4xf32> to vector<12x8x4xf32>
    %90 = vector.shape_cast %87 : vector<12x8x4xf32> to vector<1x12x8x4xf32>
    tpu.vector_store %arg11[%c0_39, %c0_40, %c0_41, %c0_42], %90 {strides = array<i32>} : memref<1x12x8x4xf32, #tpu.memory_space<vmem>>, vector<1x12x8x4xf32>,
    return
  }
  func.func @transform_0(%arg0: i32) -> (i32, i32, i32) {
    %c0_i32 = arith.constant 0 : i32
    %c0_i32_0 = arith.constant 0 : i32
    %c0_i32_1 = arith.constant 0 : i32
    return %arg0, %c0_i32, %c0_i32_0 : i32, i32, i32
  }
  func.func @transform_1(%arg0: i32) -> (i32, i32, i32) {
    %c0_i32 = arith.constant 0 : i32
    %c0_i32_0 = arith.constant 0 : i32
    %c0_i32_1 = arith.constant 0 : i32
    return %arg0, %c0_i32, %c0_i32_0 : i32, i32, i32
  }
  func.func @transform_2(%arg0: i32) -> (i32, i32, i32) {
    %c0_i32 = arith.constant 0 : i32
    %c0_i32_0 = arith.constant 0 : i32
    %c0_i32_1 = arith.constant 0 : i32
    return %arg0, %c0_i32, %c0_i32_0 : i32, i32, i32
  }
  func.func @transform_3(%arg0: i32) -> (i32, i32, i32) {
    %c0_i32 = arith.constant 0 : i32
    %c0_i32_0 = arith.constant 0 : i32
    %c0_i32_1 = arith.constant 0 : i32
    %c0_i32_2 = arith.constant 0 : i32
    return %c0_i32, %c0_i32_0, %c0_i32_1 : i32, i32, i32
  }
  func.func @transform_4(%arg0: i32) -> (i32, i32, i32) {
    %c0_i32 = arith.constant 0 : i32
    %c0_i32_0 = arith.constant 0 : i32
    %c0_i32_1 = arith.constant 0 : i32
    %c0_i32_2 = arith.constant 0 : i32
    return %c0_i32, %c0_i32_0, %c0_i32_1 : i32, i32, i32
  }
  func.func @transform_5(%arg0: i32) -> (i32, i32, i32) {
    %c0_i32 = arith.constant 0 : i32
    %c0_i32_0 = arith.constant 0 : i32
    %c0_i32_1 = arith.constant 0 : i32
    %c0_i32_2 = arith.constant 0 : i32
    return %c0_i32, %c0_i32_0, %c0_i32_1 : i32, i32, i32
  }
  func.func @transform_6(%arg0: i32) -> (i32, i32, i32) {
    %c0_i32 = arith.constant 0 : i32
    %c0_i32_0 = arith.constant 0 : i32
    %c0_i32_1 = arith.constant 0 : i32
    %c0_i32_2 = arith.constant 0 : i32
    return %c0_i32, %c0_i32_0, %c0_i32_1 : i32, i32, i32
  }
  func.func @transform_7(%arg0: i32) -> (i32, i32, i32) {
    %c0_i32 = arith.constant 0 : i32
    %c0_i32_0 = arith.constant 0 : i32
    %c0_i32_1 = arith.constant 0 : i32
    %c0_i32_2 = arith.constant 0 : i32
    return %c0_i32, %c0_i32_0, %c0_i32_1 : i32, i32, i32
  }
  func.func @transform_8(%arg0: i32) -> (i32, i32, i32) {
    %c0_i32 = arith.constant 0 : i32
    %c0_i32_0 = arith.constant 0 : i32
    %c0_i32_1 = arith.constant 0 : i32
    %c0_i32_2 = arith.constant 0 : i32
    return %c0_i32, %c0_i32_0, %c0_i32_1 : i32, i32, i32
  }
  func.func @transform_9(%arg0: i32) -> (i32, i32, i32, i32) {
    %c0_i32 = arith.constant 0 : i32
    %c0_i32_0 = arith.constant 0 : i32
    %c0_i32_1 = arith.constant 0 : i32
    %c0_i32_2 = arith.constant 0 : i32
    return %arg0, %c0_i32, %c0_i32_0, %c0_i32_1 : i32, i32, i32, i32
  }
  func.func @transform_10(%arg0: i32) -> (i32, i32, i32, i32) {
    %c0_i32 = arith.constant 0 : i32
    %c0_i32_0 = arith.constant 0 : i32
    %c0_i32_1 = arith.constant 0 : i32
    %c0_i32_2 = arith.constant 0 : i32
    return %arg0, %c0_i32, %c0_i32_0, %c0_i32_1 : i32, i32, i32, i32
  }
}

</mosaic_0001>

<llo_original>
// kernel: _forward.1
$region0: #{_forward.1}
  #allocation0 [shape = 'u32[]', space=smem, size = 0x4, offset = 0x4, fixed_abs, tag = 'smem constant byte address 0x4 - core index']
  #allocation1 [shape = 'u32[144,128]{1,0:T(1,128)}', space=vmem, size = 0x12000, scoped, tag = 'internal scratch']
  %s0 = inlined_call_operand.hbm [shape: f32[2,8,32], index: 0, kind: input, shape index: {}]
  %s1 = inlined_call_operand.hbm [shape: f32[2,8,32], index: 1, kind: input, shape index: {}]
  %s2 = inlined_call_operand.vmem [shape: f32[2,1,8], index: 2, kind: input, shape index: {}]
  %s3 = inlined_call_operand.hbm [shape: f32[12,32,12], index: 3, kind: input, shape index: {}]
  %s4 = inlined_call_operand.hbm [shape: f32[12,1,12], index: 4, kind: input, shape index: {}]
  %s5 = inlined_call_operand.hbm [shape: f32[12,32,12], index: 5, kind: input, shape index: {}]
  %s6 = inlined_call_operand.vmem [shape: f32[12,1,12], index: 6, kind: input, shape index: {}]
  %s7 = inlined_call_operand.vmem [shape: f32[1,8,4], index: 7, kind: input, shape index: {}]
  %s8 = inlined_call_operand.hbm [shape: f32[1,8,4], index: 8, kind: input, shape index: {}]
  %s9 = inlined_call_operand.vmem [shape: f32[2,12,8,4], index: 9, kind: output, shape index: {0}]
  %s10 = inlined_call_operand.vmem [shape: f32[2,12,8,4], index: 10, kind: output, shape index: {1}]
  %11 = xla_tuple %s9, %s10
  %s12 = sld [smem:[#allocation0]]
  $region101: #{_forward.1} parent=0
    _
  %s14 = ssub.s32 1, %s12
  %s15 = scalar_select 0, %s14, %s12
  $region1: #{_forward.1} parent=0
    #allocation2 [shape = 'u8[8192]{0}', space=vmem, size = 0x2000, scoped, tag = 'input window, operand 0']
    #allocation3 [shape = 's32[2]{0}', space=sflag, size = 0x8, scoped, tag = 'scoped memory for _forward.1']
    #allocation4 [shape = 'u8[8192]{0}', space=vmem, size = 0x2000, scoped, tag = 'input window, operand 1']
    #allocation5 [shape = 's32[2]{0}', space=sflag, size = 0x8, scoped, tag = 'scoped memory for _forward.1']
    #allocation6 [shape = 'u8[196608]{0}', space=vmem, size = 0x30000, scoped, tag = 'input window, operand 3, single buffered']
    #allocation7 [shape = 'u8[6144]{0}', space=vmem, size = 0x1800, scoped, tag = 'input window, operand 4, single buffered']
    #allocation8 [shape = 's32[1]{0}', space=sflag, size = 0x4, scoped, tag = 'scoped memory for _forward.1']
    #allocation9 [shape = 'u8[196608]{0}', space=vmem, size = 0x30000, scoped, tag = 'input window, operand 5, single buffered']
    #allocation10 [shape = 'u8[4096]{0}', space=vmem, size = 0x1000, scoped, tag = 'input window, operand 8, single buffered']
    #allocation11 [shape = 's32[1]{0}', space=sflag, size = 0x4, scoped, tag = 'scoped memory for _forward.1']
    %16 = vsyncpa [#allocation3], 0
    %s17 = scalar_lea.sflag [#allocation3], 1
    %18 = vsyncpa %s17, 0
    %19 = vsyncpa [#allocation5], 0
    %s20 = scalar_lea.sflag [#allocation5], 1
    %21 = vsyncpa %s20, 0
    %22 = vsyncpa [#allocation8], 0
    %23 = vsyncpa [#allocation11], 0
    loop: start=0, step=1, limit=4
    $region2: #{_forward.1} parent=1 // loop_pre_header
      _
    $region3: #{_forward.1} parent=1 // loop_header
      %s25 = sphi 0, %s29
      %p26 = scmp.ge.s32.totalorder %s25, 4
      %s35 = sphi 0, %s37
      %s38 = sphi 0, %s35
      %s39 = sphi 0, %s38
      %s55 = sphi 0, %s39
      %s61 = sphi 0, %s63
      %s64 = sphi 0, %s61
      %s65 = sphi 0, %s64
      %s81 = sphi 0, %s65
      %s87 = sphi 0, %s89
      %s90 = sphi 0, %s87
      %s91 = sphi 0, %s90
      %s107 = sphi 0, %s91
      %s111 = sphi 0, %s111
      %s113 = sphi 0, %s111
      %s114 = sphi 0, %s113
      %s128 = sphi 0, %s114
      %s132 = sphi 0, %s132
      %s134 = sphi 0, %s132
      %s135 = sphi 0, %s134
      %s149 = sphi 0, %s135
      %s153 = sphi 0, %s153
      %s155 = sphi 0, %s153
      %s156 = sphi 0, %s155
      %s170 = sphi 0, %s156
      %s174 = sphi 0, %s174
      %s176 = sphi 0, %s174
      %s177 = sphi 0, %s176
      %s191 = sphi 0, %s177
      %s195 = sphi 0, %s195
      %s197 = sphi 0, %s195
      %s198 = sphi 0, %s197
      %s212 = sphi 0, %s198
      %s216 = sphi 0, %s216
      %s218 = sphi 0, %s216
      %s219 = sphi 0, %s218
      %s233 = sphi 0, %s219
      %s239 = sphi 0, %s241
      %s242 = sphi 0, %s239
      %s243 = sphi 0, %s242
      %s259 = sphi 0, %s243
      %s265 = sphi 0, %s267
      %s268 = sphi 0, %s265
      %s269 = sphi 0, %s268
      %s285 = sphi 0, %s269
    $region4: #{_forward.1} parent=1 // loop_header_branch
      %28 = sbr.rel (%p26) target = $region8
    $region5: #{_forward.1} parent=1 // loop_body
      %s30 = ssub.s32 %s25, 1
      %s31 = ssub.s32 %s25, 2
      %s32 = sadd.s32 %s25, 1
      %s33 = ssub.s32 %s25, %s32
      %p34 = scmp.eq.s32.totalorder %s33, 0
      %s36 = sadd.s32 %s35, 1
      %s37 = scalar_select %p34, %s35, %s36
      %p40 = pneg %p34
      %p41 = scmp.eq.s32.totalorder %s25, 1
      %p42 = por %p40, %p41
      %p43 = scmp.ne.s32.totalorder %s35, %s38
      %p44 = scmp.eq.s32.totalorder %s25, 0
      %p45 = por %p43, %p44
      %p46 = scmp.ne.s32.totalorder %s35, %s38
      %p47 = scmp.eq.s32.totalorder %s30, 1
      %p48 = por %p46, %p47
      %p49 = scmp.ne.s32.totalorder %s38, %s39
      %p50 = scmp.eq.s32.totalorder %s30, 0
      %p51 = por %p49, %p50
      %p52 = scmp.ne.s32.totalorder %s38, %s39
      %p53 = scmp.eq.s32.totalorder %s31, 1
      %p54 = por %p52, %p53
      %p56 = scmp.ne.s32.totalorder %s39, %s55
      %p57 = scmp.eq.s32.totalorder %s31, 0
      %p58 = por %p56, %p57
      %s59 = ssub.s32 %s25, %s32
      %p60 = scmp.eq.s32.totalorder %s59, 0
      %s62 = sadd.s32 %s61, 1
      %s63 = scalar_select %p60, %s61, %s62
      %p66 = pneg %p60
      %p67 = scmp.eq.s32.totalorder %s25, 1
      %p68 = por %p66, %p67
      %p69 = scmp.ne.s32.totalorder %s61, %s64
      %p70 = scmp.eq.s32.totalorder %s25, 0
      %p71 = por %p69, %p70
      %p72 = scmp.ne.s32.totalorder %s61, %s64
      %p73 = scmp.eq.s32.totalorder %s30, 1
      %p74 = por %p72, %p73
      %p75 = scmp.ne.s32.totalorder %s64, %s65
      %p76 = scmp.eq.s32.totalorder %s30, 0
      %p77 = por %p75, %p76
      %p78 = scmp.ne.s32.totalorder %s64, %s65
      %p79 = scmp.eq.s32.totalorder %s31, 1
      %p80 = por %p78, %p79
      %p82 = scmp.ne.s32.totalorder %s65, %s81
      %p83 = scmp.eq.s32.totalorder %s31, 0
      %p84 = por %p82, %p83
      %s85 = ssub.s32 %s25, %s32
      %p86 = scmp.eq.s32.totalorder %s85, 0
      %s88 = sadd.s32 %s87, 1
      %s89 = scalar_select %p86, %s87, %s88
      %p92 = pneg %p86
      %p93 = scmp.eq.s32.totalorder %s25, 1
      %p94 = por %p92, %p93
      %p95 = scmp.ne.s32.totalorder %s87, %s90
      %p96 = scmp.eq.s32.totalorder %s25, 0
      %p97 = por %p95, %p96
      %p98 = scmp.ne.s32.totalorder %s87, %s90
      %p99 = scmp.eq.s32.totalorder %s30, 1
      %p100 = por %p98, %p99
      %p101 = scmp.ne.s32.totalorder %s90, %s91
      %p102 = scmp.eq.s32.totalorder %s30, 0
      %p103 = por %p101, %p102
      %p104 = scmp.ne.s32.totalorder %s90, %s91
      %p105 = scmp.eq.s32.totalorder %s31, 1
      %p106 = por %p104, %p105
      %p108 = scmp.ne.s32.totalorder %s91, %s107
      %p109 = scmp.eq.s32.totalorder %s31, 0
      %p110 = por %p108, %p109
      %s112 = sadd.s32 %s111, 1
      %p115 = scmp.eq.s32.totalorder %s25, 1
      %p116 = scmp.ne.s32.totalorder %s111, %s113
      %p117 = scmp.eq.s32.totalorder %s25, 0
      %p118 = por %p116, %p117
      %p119 = scmp.ne.s32.totalorder %s111, %s113
      %p120 = scmp.eq.s32.totalorder %s30, 1
      %p121 = por %p119, %p120
      %p122 = scmp.ne.s32.totalorder %s113, %s114
      %p123 = scmp.eq.s32.totalorder %s30, 0
      %p124 = por %p122, %p123
      %p125 = scmp.ne.s32.totalorder %s113, %s114
      %p126 = scmp.eq.s32.totalorder %s31, 1
      %p127 = por %p125, %p126
      %p129 = scmp.ne.s32.totalorder %s114, %s128
      %p130 = scmp.eq.s32.totalorder %s31, 0
      %p131 = por %p129, %p130
      %s133 = sadd.s32 %s132, 1
      %p136 = scmp.eq.s32.totalorder %s25, 1
      %p137 = scmp.ne.s32.totalorder %s132, %s134
      %p138 = scmp.eq.s32.totalorder %s25, 0
      %p139 = por %p137, %p138
      %p140 = scmp.ne.s32.totalorder %s132, %s134
      %p141 = scmp.eq.s32.totalorder %s30, 1
      %p142 = por %p140, %p141
      %p143 = scmp.ne.s32.totalorder %s134, %s135
      %p144 = scmp.eq.s32.totalorder %s30, 0
      %p145 = por %p143, %p144
      %p146 = scmp.ne.s32.totalorder %s134, %s135
      %p147 = scmp.eq.s32.totalorder %s31, 1
      %p148 = por %p146, %p147
      %p150 = scmp.ne.s32.totalorder %s135, %s149
      %p151 = scmp.eq.s32.totalorder %s31, 0
      %p152 = por %p150, %p151
      %s154 = sadd.s32 %s153, 1
      %p157 = scmp.eq.s32.totalorder %s25, 1
      %p158 = scmp.ne.s32.totalorder %s153, %s155
      %p159 = scmp.eq.s32.totalorder %s25, 0
      %p160 = por %p158, %p159
      %p161 = scmp.ne.s32.totalorder %s153, %s155
      %p162 = scmp.eq.s32.totalorder %s30, 1
      %p163 = por %p161, %p162
      %p164 = scmp.ne.s32.totalorder %s155, %s156
      %p165 = scmp.eq.s32.totalorder %s30, 0
      %p166 = por %p164, %p165
      %p167 = scmp.ne.s32.totalorder %s155, %s156
      %p168 = scmp.eq.s32.totalorder %s31, 1
      %p169 = por %p167, %p168
      %p171 = scmp.ne.s32.totalorder %s156, %s170
      %p172 = scmp.eq.s32.totalorder %s31, 0
      %p173 = por %p171, %p172
      %s175 = sadd.s32 %s174, 1
      %p178 = scmp.eq.s32.totalorder %s25, 1
      %p179 = scmp.ne.s32.totalorder %s174, %s176
      %p180 = scmp.eq.s32.totalorder %s25, 0
      %p181 = por %p179, %p180
      %p182 = scmp.ne.s32.totalorder %s174, %s176
      %p183 = scmp.eq.s32.totalorder %s30, 1
      %p184 = por %p182, %p183
      %p185 = scmp.ne.s32.totalorder %s176, %s177
      %p186 = scmp.eq.s32.totalorder %s30, 0
      %p187 = por %p185, %p186
      %p188 = scmp.ne.s32.totalorder %s176, %s177
      %p189 = scmp.eq.s32.totalorder %s31, 1
      %p190 = por %p188, %p189
      %p192 = scmp.ne.s32.totalorder %s177, %s191
      %p193 = scmp.eq.s32.totalorder %s31, 0
      %p194 = por %p192, %p193
      %s196 = sadd.s32 %s195, 1
      %p199 = scmp.eq.s32.totalorder %s25, 1
      %p200 = scmp.ne.s32.totalorder %s195, %s197
      %p201 = scmp.eq.s32.totalorder %s25, 0
      %p202 = por %p200, %p201
      %p203 = scmp.ne.s32.totalorder %s195, %s197
      %p204 = scmp.eq.s32.totalorder %s30, 1
      %p205 = por %p203, %p204
      %p206 = scmp.ne.s32.totalorder %s197, %s198
      %p207 = scmp.eq.s32.totalorder %s30, 0
      %p208 = por %p206, %p207
      %p209 = scmp.ne.s32.totalorder %s197, %s198
      %p210 = scmp.eq.s32.totalorder %s31, 1
      %p211 = por %p209, %p210
      %p213 = scmp.ne.s32.totalorder %s198, %s212
      %p214 = scmp.eq.s32.totalorder %s31, 0
      %p215 = por %p213, %p214
      %s217 = sadd.s32 %s216, 1
      %p220 = scmp.eq.s32.totalorder %s25, 1
      %p221 = scmp.ne.s32.totalorder %s216, %s218
      %p222 = scmp.eq.s32.totalorder %s25, 0
      %p223 = por %p221, %p222
      %p224 = scmp.ne.s32.totalorder %s216, %s218
      %p225 = scmp.eq.s32.totalorder %s30, 1
      %p226 = por %p224, %p225
      %p227 = scmp.ne.s32.totalorder %s218, %s219
      %p228 = scmp.eq.s32.totalorder %s30, 0
      %p229 = por %p227, %p228
      %p230 = scmp.ne.s32.totalorder %s218, %s219
      %p231 = scmp.eq.s32.totalorder %s31, 1
      %p232 = por %p230, %p231
      %p234 = scmp.ne.s32.totalorder %s219, %s233
      %p235 = scmp.eq.s32.totalorder %s31, 0
      %p236 = por %p234, %p235
      %s237 = ssub.s32 %s25, %s32
      %p238 = scmp.eq.s32.totalorder %s237, 0
      %s240 = sadd.s32 %s239, 1
      %s241 = scalar_select %p238, %s239, %s240
      %p244 = pneg %p238
      %p245 = scmp.eq.s32.totalorder %s25, 1
      %p246 = por %p244, %p245
      %p247 = scmp.ne.s32.totalorder %s239, %s242
      %p248 = scmp.eq.s32.totalorder %s25, 0
      %p249 = por %p247, %p248
      %p250 = scmp.ne.s32.totalorder %s239, %s242
      %p251 = scmp.eq.s32.totalorder %s30, 1
      %p252 = por %p250, %p251
      %p253 = scmp.ne.s32.totalorder %s242, %s243
      %p254 = scmp.eq.s32.totalorder %s30, 0
      %p255 = por %p253, %p254
      %p256 = scmp.ne.s32.totalorder %s242, %s243
      %p257 = scmp.eq.s32.totalorder %s31, 1
      %p258 = por %p256, %p257
      %p260 = scmp.ne.s32.totalorder %s243, %s259
      %p261 = scmp.eq.s32.totalorder %s31, 0
      %p262 = por %p260, %p261
      %s263 = ssub.s32 %s25, %s32
      %p264 = scmp.eq.s32.totalorder %s263, 0
      %s266 = sadd.s32 %s265, 1
      %s267 = scalar_select %p264, %s265, %s266
      %p270 = pneg %p264
      %p271 = scmp.eq.s32.totalorder %s25, 1
      %p272 = por %p270, %p271
      %p273 = scmp.ne.s32.totalorder %s265, %s268
      %p274 = scmp.eq.s32.totalorder %s25, 0
      %p275 = por %p273, %p274
      %p276 = scmp.ne.s32.totalorder %s265, %s268
      %p277 = scmp.eq.s32.totalorder %s30, 1
      %p278 = por %p276, %p277
      %p279 = scmp.ne.s32.totalorder %s268, %s269
      %p280 = scmp.eq.s32.totalorder %s30, 0
      %p281 = por %p279, %p280
      %p282 = scmp.ne.s32.totalorder %s268, %s269
      %p283 = scmp.eq.s32.totalorder %s31, 1
      %p284 = por %p282, %p283
      %p286 = scmp.ne.s32.totalorder %s269, %s285
      %p287 = scmp.eq.s32.totalorder %s31, 0
      %p288 = por %p286, %p287
      %p289 = scmp.le.s32.totalorder 1, %s25
      %p290 = scmp.lt.s32.totalorder %s25, 3
      %p291 = pnand %p289, %p290
      %p292 = pneg %p291
      // Predicated region
      $region9: #{_forward.1} parent=5 // pred_check
        _
      $region10: #{_forward.1} parent=5 // pred_check_branch
        %294 = sbr.rel (%p291) target = $region12
      $region11: #{_forward.1} parent=5 // pred_region
        %s295 = ssub.s32 %s25, 1
        // Predicated region
        $region13: #{_forward.1} parent=11 // pred_check
          %p296 = pneg %p124
        $region14: #{_forward.1} parent=11 // pred_check_branch
          %298 = sbr.rel (%p296) target = $region16
        $region15: #{_forward.1} parent=11 // pred_region
          %s300 = ssub.s32 6144, 6144
          %301 = vsyncadd [#allocation5], %s300
          %s302 = sshll.u32 [#allocation6], 4
          %s303 = int_to_ptr.vmem [resolvable:$true] %s302
          %308 = dma.hbm_to_vmem [thread:$0]  %s3, 6144, %s303, [#allocation5], 128, 128, 8
        $region16: #{_forward.1} parent=11 // pred_fallthru
          _
        // Predicated region
        $region17: #{_forward.1} parent=11 // pred_check
          %p309 = pneg %p145
        $region18: #{_forward.1} parent=11 // pred_check_branch
          %311 = sbr.rel (%p309) target = $region20
        $region19: #{_forward.1} parent=11 // pred_region
          %s313 = ssub.s32 192, 192
          %314 = vsyncadd [#allocation8], %s313
          %s315 = sshll.u32 [#allocation7], 4
          %s316 = int_to_ptr.vmem [resolvable:$true] %s315
          %321 = dma.hbm_to_vmem [thread:$0]  %s4, 192, %s316, [#allocation8], 16, 16, 1
        $region20: #{_forward.1} parent=11 // pred_fallthru
          _
        // Predicated region
        $region21: #{_forward.1} parent=11 // pred_check
          %p322 = pneg %p166
        $region22: #{_forward.1} parent=11 // pred_check_branch
          %324 = sbr.rel (%p322) target = $region24
        $region23: #{_forward.1} parent=11 // pred_region
          %s326 = ssub.s32 6144, 6144
          %327 = vsyncadd [#allocation8], %s326
          %s328 = sshll.u32 [#allocation9], 4
          %s329 = int_to_ptr.vmem [resolvable:$true] %s328
          %334 = dma.hbm_to_vmem [thread:$0]  %s5, 6144, %s329, [#allocation8], 128, 128, 8
        $region24: #{_forward.1} parent=11 // pred_fallthru
          _
        // Predicated region
        $region25: #{_forward.1} parent=11 // pred_check
          %p335 = pneg %p187
        $region26: #{_forward.1} parent=11 // pred_check_branch
          %337 = sbr.rel (%p335) target = $region28
        $region27: #{_forward.1} parent=11 // pred_region
          _
        $region28: #{_forward.1} parent=11 // pred_fallthru
          _
        // Predicated region
        $region29: #{_forward.1} parent=11 // pred_check
          %p338 = pneg %p208
        $region30: #{_forward.1} parent=11 // pred_check_branch
          %340 = sbr.rel (%p338) target = $region32
        $region31: #{_forward.1} parent=11 // pred_region
          _
        $region32: #{_forward.1} parent=11 // pred_fallthru
          _
        // Predicated region
        $region33: #{_forward.1} parent=11 // pred_check
          %p341 = pneg %p229
        $region34: #{_forward.1} parent=11 // pred_check_branch
          %343 = sbr.rel (%p341) target = $region36
        $region35: #{_forward.1} parent=11 // pred_region
          %s345 = ssub.s32 128, 128
          %346 = vsyncadd [#allocation11], %s345
          %s348 = sshll.u32 [#allocation10], 4
          %s349 = int_to_ptr.vmem [resolvable:$true] %s348
          %351 = dma.hbm_to_vmem [thread:$0]  %s8, 128, %s349, [#allocation11]
        $region36: #{_forward.1} parent=11 // pred_fallthru
          _
      $region12: #{_forward.1} parent=5 // pred_fallthru
        _
      %p352 = scmp.lt.s32.totalorder %s25, 2
      // Predicated region
      $region37: #{_forward.1} parent=5 // pred_check
        %p353 = pneg %p352
      $region38: #{_forward.1} parent=5 // pred_check_branch
        %355 = sbr.rel (%p353) target = $region40
      $region39: #{_forward.1} parent=5 // pred_region
        // Predicated region
        $region41: #{_forward.1} parent=39 // pred_check
          %p356 = pneg %p45
        $region42: #{_forward.1} parent=39 // pred_check_branch
          %358 = sbr.rel (%p356) target = $region44
        $region43: #{_forward.1} parent=39 // pred_region
          %s359 = sand.u32 %s35, 1
          %s360 = scalar_lea.sflag [#allocation3], %s359
          %s361 = sand.u32 %s35, 1
          %s362 = smul.addr %s361, 8
          %s363 = scalar_lea.vmem [#allocation2], %s362
          %s365 = ssub.s32 128, 128
          %366 = vsyncadd %s360, %s365
          %s367 = smul.addr %s25, 128
          %s368 = scalar_lea.hbm %s0, %s367
          %s370 = sshll.u32 %s363, 4
          %s371 = int_to_ptr.vmem [resolvable:$true] %s370
          %373 = dma.hbm_to_vmem [thread:$0]  %s368, 128, %s371, %s360
        $region44: #{_forward.1} parent=39 // pred_fallthru
          _
        // Predicated region
        $region45: #{_forward.1} parent=39 // pred_check
          %p374 = pneg %p71
        $region46: #{_forward.1} parent=39 // pred_check_branch
          %376 = sbr.rel (%p374) target = $region48
        $region47: #{_forward.1} parent=39 // pred_region
          %s377 = sand.u32 %s25, 1
          %s378 = scalar_lea.sflag [#allocation5], %s377
          %s379 = sand.u32 %s61, 1
          %s380 = smul.addr %s379, 8
          %s381 = scalar_lea.vmem [#allocation4], %s380
          %s383 = ssub.s32 128, 128
          %384 = vsyncadd %s378, %s383
          %s385 = smul.addr %s25, 128
          %s386 = scalar_lea.hbm %s1, %s385
          %s388 = sshll.u32 %s381, 4
          %s389 = int_to_ptr.vmem [resolvable:$true] %s388
          %391 = dma.hbm_to_vmem [thread:$0]  %s386, 128, %s389, %s378
        $region48: #{_forward.1} parent=39 // pred_fallthru
          _
        // Predicated region
        $region49: #{_forward.1} parent=39 // pred_check
          %p392 = pneg %p97
        $region50: #{_forward.1} parent=39 // pred_check_branch
          %394 = sbr.rel (%p392) target = $region52
        $region51: #{_forward.1} parent=39 // pred_region
          %p395 = scmp.lt.s32.totalorder %s25, 1
          %s396 = scalar_select %p395, %s25, 1
          %s397 = scalar_lea.vmem %s2, %s396
        $region52: #{_forward.1} parent=39 // pred_fallthru
          _
      $region40: #{_forward.1} parent=5 // pred_fallthru
        _
      %p398 = scmp.le.s32.totalorder 1, %s25
      %p399 = scmp.lt.s32.totalorder %s25, 3
      %p400 = pnand %p398, %p399
      %p401 = pneg %p400
      // Predicated region
      $region53: #{_forward.1} parent=5 // pred_check
        _
      $region54: #{_forward.1} parent=5 // pred_check_branch
        %403 = sbr.rel (%p400) target = $region56
      $region55: #{_forward.1} parent=5 // pred_region
        %s404 = ssub.s32 %s25, 1
        %s405 = sand.u32 %s38, 1
        %s406 = scalar_lea.sflag [#allocation3], %s405
        %s407 = sand.u32 %s38, 1
        %s408 = smul.addr %s407, 8
        %s409 = scalar_lea.vmem [#allocation2], %s408
        // Predicated region
        $region57: #{_forward.1} parent=55 // pred_check
          %p410 = pneg %p51
        $region58: #{_forward.1} parent=55 // pred_check_branch
          %412 = sbr.rel (%p410) target = $region60
        $region59: #{_forward.1} parent=55 // pred_region
          %413 = dma.done %s406, 128
        $region60: #{_forward.1} parent=55 // pred_fallthru
          _
        %s414 = sand.u32 %s30, 1
        %s415 = scalar_lea.sflag [#allocation5], %s414
        %s416 = sand.u32 %s64, 1
        %s417 = smul.addr %s416, 8
        %s418 = scalar_lea.vmem [#allocation4], %s417
        // Predicated region
        $region61: #{_forward.1} parent=55 // pred_check
          %p419 = pneg %p77
        $region62: #{_forward.1} parent=55 // pred_check_branch
          %421 = sbr.rel (%p419) target = $region64
        $region63: #{_forward.1} parent=55 // pred_region
          %422 = dma.done %s415, 128
        $region64: #{_forward.1} parent=55 // pred_fallthru
          _
        // Predicated region
        $region65: #{_forward.1} parent=55 // pred_check
          %p423 = pneg %p124
        $region66: #{_forward.1} parent=55 // pred_check_branch
          %425 = sbr.rel (%p423) target = $region68
        $region67: #{_forward.1} parent=55 // pred_region
          %426 = dma.done [#allocation5], 6144
        $region68: #{_forward.1} parent=55 // pred_fallthru
          _
        // Predicated region
        $region69: #{_forward.1} parent=55 // pred_check
          %p427 = pneg %p145
        $region70: #{_forward.1} parent=55 // pred_check_branch
          %429 = sbr.rel (%p427) target = $region72
        $region71: #{_forward.1} parent=55 // pred_region
          %430 = dma.done [#allocation8], 192
        $region72: #{_forward.1} parent=55 // pred_fallthru
          _
        // Predicated region
        $region73: #{_forward.1} parent=55 // pred_check
          %p431 = pneg %p166
        $region74: #{_forward.1} parent=55 // pred_check_branch
          %433 = sbr.rel (%p431) target = $region76
        $region75: #{_forward.1} parent=55 // pred_region
          %434 = dma.done [#allocation8], 6144
        $region76: #{_forward.1} parent=55 // pred_fallthru
          _
        // Predicated region
        $region77: #{_forward.1} parent=55 // pred_check
          %p435 = pneg %p229
        $region78: #{_forward.1} parent=55 // pred_check_branch
          %437 = sbr.rel (%p435) target = $region80
        $region79: #{_forward.1} parent=55 // pred_region
          %438 = dma.done [#allocation11], 128
        $region80: #{_forward.1} parent=55 // pred_fallthru
          _
        %s439 = sand.u32 %s38, 1
        %s440 = scalar_lea.sflag [#allocation3], %s439
        %s441 = sand.u32 %s38, 1
        %s442 = smul.addr %s441, 8
        %s443 = scalar_lea.vmem [#allocation2], %s442
        %p444 = pneg %p51
        %p445 = pneg %p48
        %s446 = sand.u32 %s30, 1
        %s447 = scalar_lea.sflag [#allocation5], %s446
        %s448 = sand.u32 %s64, 1
        %s449 = smul.addr %s448, 8
        %s450 = scalar_lea.vmem [#allocation4], %s449
        %p451 = pneg %p77
        %p452 = pneg %p74
        %p453 = scmp.lt.s32.totalorder %s30, 1
        %s454 = scalar_select %p453, %s30, 1
        %s455 = scalar_lea.vmem %s2, %s454
        %p456 = pneg %p103
        %p457 = pneg %p100
        %p458 = pneg %p124
        %p459 = pneg %p121
        %p460 = pneg %p145
        %p461 = pneg %p142
        %p462 = pneg %p166
        %p463 = pneg %p163
        %p464 = pneg %p187
        %p465 = pneg %p184
        %p466 = pneg %p208
        %p467 = pneg %p205
        %p468 = pneg %p229
        %p469 = pneg %p226
        %p470 = pneg %p255
        %p471 = pneg %p252
        %p472 = scmp.lt.s32.totalorder %s30, 1
        %s473 = scalar_select %p472, %s30, 1
        %s474 = smul.addr %s473, 12
        %s475 = smul.addr %s474, 8
        %s476 = scalar_lea.vmem %s9, %s475
        %p477 = pneg %p281
        %p478 = pneg %p278
        %p479 = scmp.lt.s32.totalorder %s30, 1
        %s480 = scalar_select %p479, %s30, 1
        %s481 = smul.addr %s480, 12
        %s482 = smul.addr %s481, 8
        %s483 = scalar_lea.vmem %s10, %s482
        %p484 = scmp.lt.s32.totalorder %s30, 1
        %s485 = scalar_select %p484, %s30, 1
        %s486 = scalar_lea.vmem %s2, %s485
        %p487 = scmp.lt.s32.totalorder %s30, 1
        %s488 = scalar_select %p487, %s30, 1
        %s489 = smul.addr %s488, 12
        %s490 = smul.addr %s489, 8
        %s491 = scalar_lea.vmem %s9, %s490
        %p492 = scmp.lt.s32.totalorder %s30, 1
        %s493 = scalar_select %p492, %s30, 1
        %s494 = smul.addr %s493, 12
        %s495 = smul.addr %s494, 8
        %s496 = scalar_lea.vmem %s10, %s495
        %v497 = vld [vmem:[%s409] sm:$0xff]
        %v498 = vld [vmem:[%s418] sm:$0xff]
        %v499 = vld [vmem:[#allocation6] sm:$0xff]
        %v500 = vld [vmem:[#allocation6 + $0x8] sm:$0xff]
        %v501 = vld [vmem:[#allocation6 + $0x10] sm:$0xff]
        %v502 = vld [vmem:[#allocation6 + $0x18] sm:$0xff]
        %v503 = vld [vmem:[#allocation6 + $0x20] sm:$0xff]
        %v504 = vld [vmem:[#allocation6 + $0x28] sm:$0xff]
        %v505 = vld [vmem:[#allocation6 + $0x30] sm:$0xff]
        %v506 = vld [vmem:[#allocation6 + $0x38] sm:$0xff]
        %v507 = vld [vmem:[#allocation6 + $0x40] sm:$0xff]
        %v508 = vld [vmem:[#allocation6 + $0x48] sm:$0xff]
        %v509 = vld [vmem:[#allocation6 + $0x50] sm:$0xff]
        %v510 = vld [vmem:[#allocation6 + $0x58] sm:$0xff]
        %v511 = vld [vmem:[#allocation6 + $0x60] sm:$0xff]
        %v512 = vld [vmem:[#allocation6 + $0x68] sm:$0xff]
        %v513 = vld [vmem:[#allocation6 + $0x70] sm:$0xff]
        %v514 = vld [vmem:[#allocation6 + $0x78] sm:$0xff]
        %v515 = vld [vmem:[#allocation6 + $0x80] sm:$0xff]
        %v516 = vld [vmem:[#allocation6 + $0x88] sm:$0xff]
        %v517 = vld [vmem:[#allocation6 + $0x90] sm:$0xff]
        %v518 = vld [vmem:[#allocation6 + $0x98] sm:$0xff]
        %v519 = vld [vmem:[#allocation6 + $0xa0] sm:$0xff]
        %v520 = vld [vmem:[#allocation6 + $0xa8] sm:$0xff]
        %v521 = vld [vmem:[#allocation6 + $0xb0] sm:$0xff]
        %v522 = vld [vmem:[#allocation6 + $0xb8] sm:$0xff]
        %v523 = vld [vmem:[#allocation6 + $0xc0] sm:$0xff]
        %v524 = vld [vmem:[#allocation6 + $0xc8] sm:$0xff]
        %v525 = vld [vmem:[#allocation6 + $0xd0] sm:$0xff]
        %v526 = vld [vmem:[#allocation6 + $0xd8] sm:$0xff]
        %v527 = vld [vmem:[#allocation6 + $0xe0] sm:$0xff]
        %v528 = vld [vmem:[#allocation6 + $0xe8] sm:$0xff]
        %v529 = vld [vmem:[#allocation6 + $0xf0] sm:$0xff]
        %v530 = vld [vmem:[#allocation6 + $0xf8] sm:$0xff]
        %v531 = vld [vmem:[#allocation6 + $0x100] sm:$0xff]
        %v532 = vld [vmem:[#allocation6 + $0x108] sm:$0xff]
        %v533 = vld [vmem:[#allocation6 + $0x110] sm:$0xff]
        %v534 = vld [vmem:[#allocation6 + $0x118] sm:$0xff]
        %v535 = vld [vmem:[#allocation6 + $0x120] sm:$0xff]
        %v536 = vld [vmem:[#allocation6 + $0x128] sm:$0xff]
        %v537 = vld [vmem:[#allocation6 + $0x130] sm:$0xff]
        %v538 = vld [vmem:[#allocation6 + $0x138] sm:$0xff]
        %v539 = vld [vmem:[#allocation6 + $0x140] sm:$0xff]
        %v540 = vld [vmem:[#allocation6 + $0x148] sm:$0xff]
        %v541 = vld [vmem:[#allocation6 + $0x150] sm:$0xff]
        %v542 = vld [vmem:[#allocation6 + $0x158] sm:$0xff]
        %v543 = vld [vmem:[#allocation6 + $0x160] sm:$0xff]
        %v544 = vld [vmem:[#allocation6 + $0x168] sm:$0xff]
        %v545 = vld [vmem:[#allocation6 + $0x170] sm:$0xff]
        %v546 = vld [vmem:[#allocation6 + $0x178] sm:$0xff]
        %v547 = vld [vmem:[#allocation7] sm:$0x1]
        %v548 = vld [vmem:[#allocation7 + $0x1] sm:$0x1]
        %v549 = vld [vmem:[#allocation7 + $0x2] sm:$0x1]
        %v550 = vld [vmem:[#allocation7 + $0x3] sm:$0x1]
        %v551 = vld [vmem:[#allocation7 + $0x4] sm:$0x1]
        %v552 = vld [vmem:[#allocation7 + $0x5] sm:$0x1]
        %v553 = vld [vmem:[#allocation7 + $0x6] sm:$0x1]
        %v554 = vld [vmem:[#allocation7 + $0x7] sm:$0x1]
        %v555 = vld [vmem:[#allocation7 + $0x8] sm:$0x1]
        %v556 = vld [vmem:[#allocation7 + $0x9] sm:$0x1]
        %v557 = vld [vmem:[#allocation7 + $0xa] sm:$0x1]
        %v558 = vld [vmem:[#allocation7 + $0xb] sm:$0x1]
        %v571 = vlaneseq
        %v572 = vshrl.u32 %v571, 7
        %v573 = vsub.s32 0, %v572
        %v574 = vrot.slane %v547, %v573
        %v575 = vlaneseq
        %v576 = vshrl.u32 %v575, 7
        %v577 = vsub.s32 0, %v576
        %v578 = vrot.slane %v548, %v577
        %v579 = vlaneseq
        %v580 = vshrl.u32 %v579, 7
        %v581 = vsub.s32 0, %v580
        %v582 = vrot.slane %v549, %v581
        %v583 = vlaneseq
        %v584 = vshrl.u32 %v583, 7
        %v585 = vsub.s32 0, %v584
        %v586 = vrot.slane %v550, %v585
        %v587 = vlaneseq
        %v588 = vshrl.u32 %v587, 7
        %v589 = vsub.s32 0, %v588
        %v590 = vrot.slane %v551, %v589
        %v591 = vlaneseq
        %v592 = vshrl.u32 %v591, 7
        %v593 = vsub.s32 0, %v592
        %v594 = vrot.slane %v552, %v593
        %v595 = vlaneseq
        %v596 = vshrl.u32 %v595, 7
        %v597 = vsub.s32 0, %v596
        %v598 = vrot.slane %v553, %v597
        %v599 = vlaneseq
        %v600 = vshrl.u32 %v599, 7
        %v601 = vsub.s32 0, %v600
        %v602 = vrot.slane %v554, %v601
        %v603 = vlaneseq
        %v604 = vshrl.u32 %v603, 7
        %v605 = vsub.s32 0, %v604
        %v606 = vrot.slane %v555, %v605
        %v607 = vlaneseq
        %v608 = vshrl.u32 %v607, 7
        %v609 = vsub.s32 0, %v608
        %v610 = vrot.slane %v556, %v609
        %v611 = vlaneseq
        %v612 = vshrl.u32 %v611, 7
        %v613 = vsub.s32 0, %v612
        %v614 = vrot.slane %v557, %v613
        %v615 = vlaneseq
        %v616 = vshrl.u32 %v615, 7
        %v617 = vsub.s32 0, %v616
        %v618 = vrot.slane %v558, %v617
        %vm631 = vcmask 261120
        %v633 = vsel %vm631, %v497, 0
        %635 = vmatprep.subr.mxu0 0.0
        %636 = vmatpush1.msra.mxu0 0.0
        %637 = vmatprep.subr.mxu0 0.0
        %638 = vmatpush1.msra.mxu0 0.0
        %639 = vmatprep.subr.mxu0 0.0
        %640 = vmatpush1.msra.mxu0 0.0
        %641 = vmatprep.subr.mxu0 0.0
        %642 = vmatpush1.msra.mxu0 0.0
        %643 = vmatprep.subr.mxu0 0.0
        %644 = vmatpush1.msra.mxu0 0.0
        %645 = vmatprep.subr.mxu0 0.0
        %646 = vmatpush1.msra.mxu0 0.0
        %647 = vmatprep.subr.mxu0 0.0
        %648 = vmatpush1.msra.mxu0 0.0
        %649 = vmatprep.subr.mxu0 0.0
        %650 = vmatpush1.msra.mxu0 0.0
        %651 = vmatprep.subr.mxu0 0.0
        %652 = vmatpush1.msra.mxu0 0.0
        %653 = vmatprep.subr.mxu0 0.0
        %654 = vmatpush1.msra.mxu0 0.0
        %655 = vmatprep.subr.mxu0 0.0
        %656 = vmatpush1.msra.mxu0 0.0
        %657 = vmatprep.subr.mxu0 0.0
        %658 = vmatpush1.msra.mxu0 0.0
        %659 = vmatprep.subr.mxu0 0.0
        %660 = vmatpush1.msra.mxu0 %v502
        %661 = vmatprep.subr.mxu0 0.0
        %662 = vmatpush1.msra.mxu0 %v501
        %663 = vmatprep.subr.mxu0 0.0
        %664 = vmatpush1.msra.mxu0 %v500
        %665 = vmatprep.subr.mxu0 0.0
        %666 = vmatpush1.msra.mxu0 %v499
        %667 = vmatprep.subr.mxu0 0.0
        %668 = vmatpush2.msra.mxu0 0.0
        %669 = vmatprep.subr.mxu0 0.0
        %670 = vmatpush2.msra.mxu0 0.0
        %671 = vmatprep.subr.mxu0 0.0
        %672 = vmatpush2.msra.mxu0 0.0
        %673 = vmatprep.subr.mxu0 0.0
        %674 = vmatpush2.msra.mxu0 0.0
        %675 = vmatprep.subr.mxu0 0.0
        %676 = vmatpush2.msra.mxu0 0.0
        %677 = vmatprep.subr.mxu0 0.0
        %678 = vmatpush2.msra.mxu0 0.0
        %679 = vmatprep.subr.mxu0 0.0
        %680 = vmatpush2.msra.mxu0 0.0
        %681 = vmatprep.subr.mxu0 0.0
        %682 = vmatpush2.msra.mxu0 0.0
        %683 = vmatprep.subr.mxu0 0.0
        %684 = vmatpush2.msra.mxu0 0.0
        %685 = vmatprep.subr.mxu0 0.0
        %686 = vmatpush2.msra.mxu0 0.0
        %687 = vmatprep.subr.mxu0 0.0
        %688 = vmatpush2.msra.mxu0 0.0
        %689 = vmatprep.subr.mxu0 0.0
        %690 = vmatpush2.msra.mxu0 0.0
        %691 = vmatprep.subr.mxu0 0.0
        %692 = vmatpush2.msra.mxu0 0.0
        %693 = vmatprep.subr.mxu0 0.0
        %694 = vmatpush2.msra.mxu0 0.0
        %695 = vmatprep.subr.mxu0 0.0
        %696 = vmatpush2.msra.mxu0 0.0
        %697 = vmatprep.subr.mxu0 0.0
        %698 = vmatpush2.msra.mxu0 0.0
        %699 = vmatprep.mubr.f32.mxu0 0.0
        %700 = vmatmul.mubr.f32.gmra.mxu0 %v633
        %v701 = vpop.f32.mrf.mxu0
        %v702 = vadd.f32 %v574, %v701
        %v703 = vpop.f32.mrf.mxu0
        %704 = vdwg.mxu0
        %705 = vmatprep.subr.mxu0 0.0
        %706 = vmatpush1.msra.mxu0 0.0
        %707 = vmatprep.subr.mxu0 0.0
        %708 = vmatpush1.msra.mxu0 0.0
        %709 = vmatprep.subr.mxu0 0.0
        %710 = vmatpush1.msra.mxu0 0.0
        %711 = vmatprep.subr.mxu0 0.0
        %712 = vmatpush1.msra.mxu0 0.0
        %713 = vmatprep.subr.mxu0 0.0
        %714 = vmatpush1.msra.mxu0 0.0
        %715 = vmatprep.subr.mxu0 0.0
        %716 = vmatpush1.msra.mxu0 0.0
        %717 = vmatprep.subr.mxu0 0.0
        %718 = vmatpush1.msra.mxu0 0.0
        %719 = vmatprep.subr.mxu0 0.0
        %720 = vmatpush1.msra.mxu0 0.0
        %721 = vmatprep.subr.mxu0 0.0
        %722 = vmatpush1.msra.mxu0 0.0
        %723 = vmatprep.subr.mxu0 0.0
        %724 = vmatpush1.msra.mxu0 0.0
        %725 = vmatprep.subr.mxu0 0.0
        %726 = vmatpush1.msra.mxu0 0.0
        %727 = vmatprep.subr.mxu0 0.0
        %728 = vmatpush1.msra.mxu0 0.0
        %729 = vmatprep.subr.mxu0 0.0
        %730 = vmatpush1.msra.mxu0 %v506
        %731 = vmatprep.subr.mxu0 0.0
        %732 = vmatpush1.msra.mxu0 %v505
        %733 = vmatprep.subr.mxu0 0.0
        %734 = vmatpush1.msra.mxu0 %v504
        %735 = vmatprep.subr.mxu0 0.0
        %736 = vmatpush1.msra.mxu0 %v503
        %737 = vmatprep.subr.mxu0 0.0
        %738 = vmatpush2.msra.mxu0 0.0
        %739 = vmatprep.subr.mxu0 0.0
        %740 = vmatpush2.msra.mxu0 0.0
        %741 = vmatprep.subr.mxu0 0.0
        %742 = vmatpush2.msra.mxu0 0.0
        %743 = vmatprep.subr.mxu0 0.0
        %744 = vmatpush2.msra.mxu0 0.0
        %745 = vmatprep.subr.mxu0 0.0
        %746 = vmatpush2.msra.mxu0 0.0
        %747 = vmatprep.subr.mxu0 0.0
        %748 = vmatpush2.msra.mxu0 0.0
        %749 = vmatprep.subr.mxu0 0.0
        %750 = vmatpush2.msra.mxu0 0.0
        %751 = vmatprep.subr.mxu0 0.0
        %752 = vmatpush2.msra.mxu0 0.0
        %753 = vmatprep.subr.mxu0 0.0
        %754 = vmatpush2.msra.mxu0 0.0
        %755 = vmatprep.subr.mxu0 0.0
        %756 = vmatpush2.msra.mxu0 0.0
        %757 = vmatprep.subr.mxu0 0.0
        %758 = vmatpush2.msra.mxu0 0.0
        %759 = vmatprep.subr.mxu0 0.0
        %760 = vmatpush2.msra.mxu0 0.0
        %761 = vmatprep.subr.mxu0 0.0
        %762 = vmatpush2.msra.mxu0 0.0
        %763 = vmatprep.subr.mxu0 0.0
        %764 = vmatpush2.msra.mxu0 0.0
        %765 = vmatprep.subr.mxu0 0.0
        %766 = vmatpush2.msra.mxu0 0.0
        %767 = vmatprep.subr.mxu0 0.0
        %768 = vmatpush2.msra.mxu0 0.0
        %769 = vmatprep.mubr.f32.mxu0 0.0
        %770 = vmatmul.mubr.f32.gmra.mxu0 %v633
        %v771 = vpop.f32.mrf.mxu0
        %v772 = vadd.f32 %v578, %v771
        %v773 = vpop.f32.mrf.mxu0
        %774 = vdwg.mxu0
        %775 = vmatprep.subr.mxu0 0.0
        %776 = vmatpush1.msra.mxu0 0.0
        %777 = vmatprep.subr.mxu0 0.0
        %778 = vmatpush1.msra.mxu0 0.0
        %779 = vmatprep.subr.mxu0 0.0
        %780 = vmatpush1.msra.mxu0 0.0
        %781 = vmatprep.subr.mxu0 0.0
        %782 = vmatpush1.msra.mxu0 0.0
        %783 = vmatprep.subr.mxu0 0.0
        %784 = vmatpush1.msra.mxu0 0.0
        %785 = vmatprep.subr.mxu0 0.0
        %786 = vmatpush1.msra.mxu0 0.0
        %787 = vmatprep.subr.mxu0 0.0
        %788 = vmatpush1.msra.mxu0 0.0
        %789 = vmatprep.subr.mxu0 0.0
        %790 = vmatpush1.msra.mxu0 0.0
        %791 = vmatprep.subr.mxu0 0.0
        %792 = vmatpush1.msra.mxu0 0.0
        %793 = vmatprep.subr.mxu0 0.0
        %794 = vmatpush1.msra.mxu0 0.0
        %795 = vmatprep.subr.mxu0 0.0
        %796 = vmatpush1.msra.mxu0 0.0
        %797 = vmatprep.subr.mxu0 0.0
        %798 = vmatpush1.msra.mxu0 0.0
        %799 = vmatprep.subr.mxu0 0.0
        %800 = vmatpush1.msra.mxu0 %v510
        %801 = vmatprep.subr.mxu0 0.0
        %802 = vmatpush1.msra.mxu0 %v509
        %803 = vmatprep.subr.mxu0 0.0
        %804 = vmatpush1.msra.mxu0 %v508
        %805 = vmatprep.subr.mxu0 0.0
        %806 = vmatpush1.msra.mxu0 %v507
        %807 = vmatprep.subr.mxu0 0.0
        %808 = vmatpush2.msra.mxu0 0.0
        %809 = vmatprep.subr.mxu0 0.0
        %810 = vmatpush2.msra.mxu0 0.0
        %811 = vmatprep.subr.mxu0 0.0
        %812 = vmatpush2.msra.mxu0 0.0
        %813 = vmatprep.subr.mxu0 0.0
        %814 = vmatpush2.msra.mxu0 0.0
        %815 = vmatprep.subr.mxu0 0.0
        %816 = vmatpush2.msra.mxu0 0.0
        %817 = vmatprep.subr.mxu0 0.0
        %818 = vmatpush2.msra.mxu0 0.0
        %819 = vmatprep.subr.mxu0 0.0
        %820 = vmatpush2.msra.mxu0 0.0
        %821 = vmatprep.subr.mxu0 0.0
        %822 = vmatpush2.msra.mxu0 0.0
        %823 = vmatprep.subr.mxu0 0.0
        %824 = vmatpush2.msra.mxu0 0.0
        %825 = vmatprep.subr.mxu0 0.0
        %826 = vmatpush2.msra.mxu0 0.0
        %827 = vmatprep.subr.mxu0 0.0
        %828 = vmatpush2.msra.mxu0 0.0
        %829 = vmatprep.subr.mxu0 0.0
        %830 = vmatpush2.msra.mxu0 0.0
        %831 = vmatprep.subr.mxu0 0.0
        %832 = vmatpush2.msra.mxu0 0.0
        %833 = vmatprep.subr.mxu0 0.0
        %834 = vmatpush2.msra.mxu0 0.0
        %835 = vmatprep.subr.mxu0 0.0
        %836 = vmatpush2.msra.mxu0 0.0
        %837 = vmatprep.subr.mxu0 0.0
        %838 = vmatpush2.msra.mxu0 0.0
        %839 = vmatprep.mubr.f32.mxu0 0.0
        %840 = vmatmul.mubr.f32.gmra.mxu0 %v633
        %v841 = vpop.f32.mrf.mxu0
        %v842 = vadd.f32 %v582, %v841
        %v843 = vpop.f32.mrf.mxu0
        %844 = vdwg.mxu0
        %845 = vmatprep.subr.mxu0 0.0
        %846 = vmatpush1.msra.mxu0 0.0
        %847 = vmatprep.subr.mxu0 0.0
        %848 = vmatpush1.msra.mxu0 0.0
        %849 = vmatprep.subr.mxu0 0.0
        %850 = vmatpush1.msra.mxu0 0.0
        %851 = vmatprep.subr.mxu0 0.0
        %852 = vmatpush1.msra.mxu0 0.0
        %853 = vmatprep.subr.mxu0 0.0
        %854 = vmatpush1.msra.mxu0 0.0
        %855 = vmatprep.subr.mxu0 0.0
        %856 = vmatpush1.msra.mxu0 0.0
        %857 = vmatprep.subr.mxu0 0.0
        %858 = vmatpush1.msra.mxu0 0.0
        %859 = vmatprep.subr.mxu0 0.0
        %860 = vmatpush1.msra.mxu0 0.0
        %861 = vmatprep.subr.mxu0 0.0
        %862 = vmatpush1.msra.mxu0 0.0
        %863 = vmatprep.subr.mxu0 0.0
        %864 = vmatpush1.msra.mxu0 0.0
        %865 = vmatprep.subr.mxu0 0.0
        %866 = vmatpush1.msra.mxu0 0.0
        %867 = vmatprep.subr.mxu0 0.0
        %868 = vmatpush1.msra.mxu0 0.0
        %869 = vmatprep.subr.mxu0 0.0
        %870 = vmatpush1.msra.mxu0 %v514
        %871 = vmatprep.subr.mxu0 0.0
        %872 = vmatpush1.msra.mxu0 %v513
        %873 = vmatprep.subr.mxu0 0.0
        %874 = vmatpush1.msra.mxu0 %v512
        %875 = vmatprep.subr.mxu0 0.0
        %876 = vmatpush1.msra.mxu0 %v511
        %877 = vmatprep.subr.mxu0 0.0
        %878 = vmatpush2.msra.mxu0 0.0
        %879 = vmatprep.subr.mxu0 0.0
        %880 = vmatpush2.msra.mxu0 0.0
        %881 = vmatprep.subr.mxu0 0.0
        %882 = vmatpush2.msra.mxu0 0.0
        %883 = vmatprep.subr.mxu0 0.0
        %884 = vmatpush2.msra.mxu0 0.0
        %885 = vmatprep.subr.mxu0 0.0
        %886 = vmatpush2.msra.mxu0 0.0
        %887 = vmatprep.subr.mxu0 0.0
        %888 = vmatpush2.msra.mxu0 0.0
        %889 = vmatprep.subr.mxu0 0.0
        %890 = vmatpush2.msra.mxu0 0.0
        %891 = vmatprep.subr.mxu0 0.0
        %892 = vmatpush2.msra.mxu0 0.0
        %893 = vmatprep.subr.mxu0 0.0
        %894 = vmatpush2.msra.mxu0 0.0
        %895 = vmatprep.subr.mxu0 0.0
        %896 = vmatpush2.msra.mxu0 0.0
        %897 = vmatprep.subr.mxu0 0.0
        %898 = vmatpush2.msra.mxu0 0.0
        %899 = vmatprep.subr.mxu0 0.0
        %900 = vmatpush2.msra.mxu0 0.0
        %901 = vmatprep.subr.mxu0 0.0
        %902 = vmatpush2.msra.mxu0 0.0
        %903 = vmatprep.subr.mxu0 0.0
        %904 = vmatpush2.msra.mxu0 0.0
        %905 = vmatprep.subr.mxu0 0.0
        %906 = vmatpush2.msra.mxu0 0.0
        %907 = vmatprep.subr.mxu0 0.0
        %908 = vmatpush2.msra.mxu0 0.0
        %909 = vmatprep.mubr.f32.mxu0 0.0
        %910 = vmatmul.mubr.f32.gmra.mxu0 %v633
        %v911 = vpop.f32.mrf.mxu0
        %v912 = vadd.f32 %v586, %v911
        %v913 = vpop.f32.mrf.mxu0
        %914 = vdwg.mxu0
        %915 = vmatprep.subr.mxu0 0.0
        %916 = vmatpush1.msra.mxu0 0.0
        %917 = vmatprep.subr.mxu0 0.0
        %918 = vmatpush1.msra.mxu0 0.0
        %919 = vmatprep.subr.mxu0 0.0
        %920 = vmatpush1.msra.mxu0 0.0
        %921 = vmatprep.subr.mxu0 0.0
        %922 = vmatpush1.msra.mxu0 0.0
        %923 = vmatprep.subr.mxu0 0.0
        %924 = vmatpush1.msra.mxu0 0.0
        %925 = vmatprep.subr.mxu0 0.0
        %926 = vmatpush1.msra.mxu0 0.0
        %927 = vmatprep.subr.mxu0 0.0
        %928 = vmatpush1.msra.mxu0 0.0
        %929 = vmatprep.subr.mxu0 0.0
        %930 = vmatpush1.msra.mxu0 0.0
        %931 = vmatprep.subr.mxu0 0.0
        %932 = vmatpush1.msra.mxu0 0.0
        %933 = vmatprep.subr.mxu0 0.0
        %934 = vmatpush1.msra.mxu0 0.0
        %935 = vmatprep.subr.mxu0 0.0
        %936 = vmatpush1.msra.mxu0 0.0
        %937 = vmatprep.subr.mxu0 0.0
        %938 = vmatpush1.msra.mxu0 0.0
        %939 = vmatprep.subr.mxu0 0.0
        %940 = vmatpush1.msra.mxu0 %v518
        %941 = vmatprep.subr.mxu0 0.0
        %942 = vmatpush1.msra.mxu0 %v517
        %943 = vmatprep.subr.mxu0 0.0
        %944 = vmatpush1.msra.mxu0 %v516
        %945 = vmatprep.subr.mxu0 0.0
        %946 = vmatpush1.msra.mxu0 %v515
        %947 = vmatprep.subr.mxu0 0.0
        %948 = vmatpush2.msra.mxu0 0.0
        %949 = vmatprep.subr.mxu0 0.0
        %950 = vmatpush2.msra.mxu0 0.0
        %951 = vmatprep.subr.mxu0 0.0
        %952 = vmatpush2.msra.mxu0 0.0
        %953 = vmatprep.subr.mxu0 0.0
        %954 = vmatpush2.msra.mxu0 0.0
        %955 = vmatprep.subr.mxu0 0.0
        %956 = vmatpush2.msra.mxu0 0.0
        %957 = vmatprep.subr.mxu0 0.0
        %958 = vmatpush2.msra.mxu0 0.0
        %959 = vmatprep.subr.mxu0 0.0
        %960 = vmatpush2.msra.mxu0 0.0
        %961 = vmatprep.subr.mxu0 0.0
        %962 = vmatpush2.msra.mxu0 0.0
        %963 = vmatprep.subr.mxu0 0.0
        %964 = vmatpush2.msra.mxu0 0.0
        %965 = vmatprep.subr.mxu0 0.0
        %966 = vmatpush2.msra.mxu0 0.0
        %967 = vmatprep.subr.mxu0 0.0
        %968 = vmatpush2.msra.mxu0 0.0
        %969 = vmatprep.subr.mxu0 0.0
        %970 = vmatpush2.msra.mxu0 0.0
        %971 = vmatprep.subr.mxu0 0.0
        %972 = vmatpush2.msra.mxu0 0.0
        %973 = vmatprep.subr.mxu0 0.0
        %974 = vmatpush2.msra.mxu0 0.0
        %975 = vmatprep.subr.mxu0 0.0
        %976 = vmatpush2.msra.mxu0 0.0
        %977 = vmatprep.subr.mxu0 0.0
        %978 = vmatpush2.msra.mxu0 0.0
        %979 = vmatprep.mubr.f32.mxu0 0.0
        %980 = vmatmul.mubr.f32.gmra.mxu0 %v633
        %v981 = vpop.f32.mrf.mxu0
        %v982 = vadd.f32 %v590, %v981
        %v983 = vpop.f32.mrf.mxu0
        %984 = vdwg.mxu0
        %985 = vmatprep.subr.mxu0 0.0
        %986 = vmatpush1.msra.mxu0 0.0
        %987 = vmatprep.subr.mxu0 0.0
        %988 = vmatpush1.msra.mxu0 0.0
        %989 = vmatprep.subr.mxu0 0.0
        %990 = vmatpush1.msra.mxu0 0.0
        %991 = vmatprep.subr.mxu0 0.0
        %992 = vmatpush1.msra.mxu0 0.0
        %993 = vmatprep.subr.mxu0 0.0
        %994 = vmatpush1.msra.mxu0 0.0
        %995 = vmatprep.subr.mxu0 0.0
        %996 = vmatpush1.msra.mxu0 0.0
        %997 = vmatprep.subr.mxu0 0.0
        %998 = vmatpush1.msra.mxu0 0.0
        %999 = vmatprep.subr.mxu0 0.0
        %1000 = vmatpush1.msra.mxu0 0.0
        %1001 = vmatprep.subr.mxu0 0.0
        %1002 = vmatpush1.msra.mxu0 0.0
        %1003 = vmatprep.subr.mxu0 0.0
        %1004 = vmatpush1.msra.mxu0 0.0
        %1005 = vmatprep.subr.mxu0 0.0
        %1006 = vmatpush1.msra.mxu0 0.0
        %1007 = vmatprep.subr.mxu0 0.0
        %1008 = vmatpush1.msra.mxu0 0.0
        %1009 = vmatprep.subr.mxu0 0.0
        %1010 = vmatpush1.msra.mxu0 %v522
        %1011 = vmatprep.subr.mxu0 0.0
        %1012 = vmatpush1.msra.mxu0 %v521
        %1013 = vmatprep.subr.mxu0 0.0
        %1014 = vmatpush1.msra.mxu0 %v520
        %1015 = vmatprep.subr.mxu0 0.0
        %1016 = vmatpush1.msra.mxu0 %v519
        %1017 = vmatprep.subr.mxu0 0.0
        %1018 = vmatpush2.msra.mxu0 0.0
        %1019 = vmatprep.subr.mxu0 0.0
        %1020 = vmatpush2.msra.mxu0 0.0
        %1021 = vmatprep.subr.mxu0 0.0
        %1022 = vmatpush2.msra.mxu0 0.0
        %1023 = vmatprep.subr.mxu0 0.0
        %1024 = vmatpush2.msra.mxu0 0.0
        %1025 = vmatprep.subr.mxu0 0.0
        %1026 = vmatpush2.msra.mxu0 0.0
        %1027 = vmatprep.subr.mxu0 0.0
        %1028 = vmatpush2.msra.mxu0 0.0
        %1029 = vmatprep.subr.mxu0 0.0
        %1030 = vmatpush2.msra.mxu0 0.0
        %1031 = vmatprep.subr.mxu0 0.0
        %1032 = vmatpush2.msra.mxu0 0.0
        %1033 = vmatprep.subr.mxu0 0.0
        %1034 = vmatpush2.msra.mxu0 0.0
        %1035 = vmatprep.subr.mxu0 0.0
        %1036 = vmatpush2.msra.mxu0 0.0
        %1037 = vmatprep.subr.mxu0 0.0
        %1038 = vmatpush2.msra.mxu0 0.0
        %1039 = vmatprep.subr.mxu0 0.0
        %1040 = vmatpush2.msra.mxu0 0.0
        %1041 = vmatprep.subr.mxu0 0.0
        %1042 = vmatpush2.msra.mxu0 0.0
        %1043 = vmatprep.subr.mxu0 0.0
        %1044 = vmatpush2.msra.mxu0 0.0
        %1045 = vmatprep.subr.mxu0 0.0
        %1046 = vmatpush2.msra.mxu0 0.0
        %1047 = vmatprep.subr.mxu0 0.0
        %1048 = vmatpush2.msra.mxu0 0.0
        %1049 = vmatprep.mubr.f32.mxu0 0.0
        %1050 = vmatmul.mubr.f32.gmra.mxu0 %v633
        %v1051 = vpop.f32.mrf.mxu0
        %v1052 = vadd.f32 %v594, %v1051
        %v1053 = vpop.f32.mrf.mxu0
        %1054 = vdwg.mxu0
        %1055 = vmatprep.subr.mxu0 0.0
        %1056 = vmatpush1.msra.mxu0 0.0
        %1057 = vmatprep.subr.mxu0 0.0
        %1058 = vmatpush1.msra.mxu0 0.0
        %1059 = vmatprep.subr.mxu0 0.0
        %1060 = vmatpush1.msra.mxu0 0.0
        %1061 = vmatprep.subr.mxu0 0.0
        %1062 = vmatpush1.msra.mxu0 0.0
        %1063 = vmatprep.subr.mxu0 0.0
        %1064 = vmatpush1.msra.mxu0 0.0
        %1065 = vmatprep.subr.mxu0 0.0
        %1066 = vmatpush1.msra.mxu0 0.0
        %1067 = vmatprep.subr.mxu0 0.0
        %1068 = vmatpush1.msra.mxu0 0.0
        %1069 = vmatprep.subr.mxu0 0.0
        %1070 = vmatpush1.msra.mxu0 0.0
        %1071 = vmatprep.subr.mxu0 0.0
        %1072 = vmatpush1.msra.mxu0 0.0
        %1073 = vmatprep.subr.mxu0 0.0
        %1074 = vmatpush1.msra.mxu0 0.0
        %1075 = vmatprep.subr.mxu0 0.0
        %1076 = vmatpush1.msra.mxu0 0.0
        %1077 = vmatprep.subr.mxu0 0.0
        %1078 = vmatpush1.msra.mxu0 0.0
        %1079 = vmatprep.subr.mxu0 0.0
        %1080 = vmatpush1.msra.mxu0 %v526
        %1081 = vmatprep.subr.mxu0 0.0
        %1082 = vmatpush1.msra.mxu0 %v525
        %1083 = vmatprep.subr.mxu0 0.0
        %1084 = vmatpush1.msra.mxu0 %v524
        %1085 = vmatprep.subr.mxu0 0.0
        %1086 = vmatpush1.msra.mxu0 %v523
        %1087 = vmatprep.subr.mxu0 0.0
        %1088 = vmatpush2.msra.mxu0 0.0
        %1089 = vmatprep.subr.mxu0 0.0
        %1090 = vmatpush2.msra.mxu0 0.0
        %1091 = vmatprep.subr.mxu0 0.0
        %1092 = vmatpush2.msra.mxu0 0.0
        %1093 = vmatprep.subr.mxu0 0.0
        %1094 = vmatpush2.msra.mxu0 0.0
        %1095 = vmatprep.subr.mxu0 0.0
        %1096 = vmatpush2.msra.mxu0 0.0
        %1097 = vmatprep.subr.mxu0 0.0
        %1098 = vmatpush2.msra.mxu0 0.0
        %1099 = vmatprep.subr.mxu0 0.0
        %1100 = vmatpush2.msra.mxu0 0.0
        %1101 = vmatprep.subr.mxu0 0.0
        %1102 = vmatpush2.msra.mxu0 0.0
        %1103 = vmatprep.subr.mxu0 0.0
        %1104 = vmatpush2.msra.mxu0 0.0
        %1105 = vmatprep.subr.mxu0 0.0
        %1106 = vmatpush2.msra.mxu0 0.0
        %1107 = vmatprep.subr.mxu0 0.0
        %1108 = vmatpush2.msra.mxu0 0.0
        %1109 = vmatprep.subr.mxu0 0.0
        %1110 = vmatpush2.msra.mxu0 0.0
        %1111 = vmatprep.subr.mxu0 0.0
        %1112 = vmatpush2.msra.mxu0 0.0
        %1113 = vmatprep.subr.mxu0 0.0
        %1114 = vmatpush2.msra.mxu0 0.0
        %1115 = vmatprep.subr.mxu0 0.0
        %1116 = vmatpush2.msra.mxu0 0.0
        %1117 = vmatprep.subr.mxu0 0.0
        %1118 = vmatpush2.msra.mxu0 0.0
        %1119 = vmatprep.mubr.f32.mxu0 0.0
        %1120 = vmatmul.mubr.f32.gmra.mxu0 %v633
        %v1121 = vpop.f32.mrf.mxu0
        %v1122 = vadd.f32 %v598, %v1121
        %v1123 = vpop.f32.mrf.mxu0
        %1124 = vdwg.mxu0
        %1125 = vmatprep.subr.mxu0 0.0
        %1126 = vmatpush1.msra.mxu0 0.0
        %1127 = vmatprep.subr.mxu0 0.0
        %1128 = vmatpush1.msra.mxu0 0.0
        %1129 = vmatprep.subr.mxu0 0.0
        %1130 = vmatpush1.msra.mxu0 0.0
        %1131 = vmatprep.subr.mxu0 0.0
        %1132 = vmatpush1.msra.mxu0 0.0
        %1133 = vmatprep.subr.mxu0 0.0
        %1134 = vmatpush1.msra.mxu0 0.0
        %1135 = vmatprep.subr.mxu0 0.0
        %1136 = vmatpush1.msra.mxu0 0.0
        %1137 = vmatprep.subr.mxu0 0.0
        %1138 = vmatpush1.msra.mxu0 0.0
        %1139 = vmatprep.subr.mxu0 0.0
        %1140 = vmatpush1.msra.mxu0 0.0
        %1141 = vmatprep.subr.mxu0 0.0
        %1142 = vmatpush1.msra.mxu0 0.0
        %1143 = vmatprep.subr.mxu0 0.0
        %1144 = vmatpush1.msra.mxu0 0.0
        %1145 = vmatprep.subr.mxu0 0.0
        %1146 = vmatpush1.msra.mxu0 0.0
        %1147 = vmatprep.subr.mxu0 0.0
        %1148 = vmatpush1.msra.mxu0 0.0
        %1149 = vmatprep.subr.mxu0 0.0
        %1150 = vmatpush1.msra.mxu0 %v530
        %1151 = vmatprep.subr.mxu0 0.0
        %1152 = vmatpush1.msra.mxu0 %v529
        %1153 = vmatprep.subr.mxu0 0.0
        %1154 = vmatpush1.msra.mxu0 %v528
        %1155 = vmatprep.subr.mxu0 0.0
        %1156 = vmatpush1.msra.mxu0 %v527
        %1157 = vmatprep.subr.mxu0 0.0
        %1158 = vmatpush2.msra.mxu0 0.0
        %1159 = vmatprep.subr.mxu0 0.0
        %1160 = vmatpush2.msra.mxu0 0.0
        %1161 = vmatprep.subr.mxu0 0.0
        %1162 = vmatpush2.msra.mxu0 0.0
        %1163 = vmatprep.subr.mxu0 0.0
        %1164 = vmatpush2.msra.mxu0 0.0
        %1165 = vmatprep.subr.mxu0 0.0
        %1166 = vmatpush2.msra.mxu0 0.0
        %1167 = vmatprep.subr.mxu0 0.0
        %1168 = vmatpush2.msra.mxu0 0.0
        %1169 = vmatprep.subr.mxu0 0.0
        %1170 = vmatpush2.msra.mxu0 0.0
        %1171 = vmatprep.subr.mxu0 0.0
        %1172 = vmatpush2.msra.mxu0 0.0
        %1173 = vmatprep.subr.mxu0 0.0
        %1174 = vmatpush2.msra.mxu0 0.0
        %1175 = vmatprep.subr.mxu0 0.0
        %1176 = vmatpush2.msra.mxu0 0.0
        %1177 = vmatprep.subr.mxu0 0.0
        %1178 = vmatpush2.msra.mxu0 0.0
        %1179 = vmatprep.subr.mxu0 0.0
        %1180 = vmatpush2.msra.mxu0 0.0
        %1181 = vmatprep.subr.mxu0 0.0
        %1182 = vmatpush2.msra.mxu0 0.0
        %1183 = vmatprep.subr.mxu0 0.0
        %1184 = vmatpush2.msra.mxu0 0.0
        %1185 = vmatprep.subr.mxu0 0.0
        %1186 = vmatpush2.msra.mxu0 0.0
        %1187 = vmatprep.subr.mxu0 0.0
        %1188 = vmatpush2.msra.mxu0 0.0
        %1189 = vmatprep.mubr.f32.mxu0 0.0
        %1190 = vmatmul.mubr.f32.gmra.mxu0 %v633
        %v1191 = vpop.f32.mrf.mxu0
        %v1192 = vadd.f32 %v602, %v1191
        %v1193 = vpop.f32.mrf.mxu0
        %1194 = vdwg.mxu0
        %1195 = vmatprep.subr.mxu0 0.0
        %1196 = vmatpush1.msra.mxu0 0.0
        %1197 = vmatprep.subr.mxu0 0.0
        %1198 = vmatpush1.msra.mxu0 0.0
        %1199 = vmatprep.subr.mxu0 0.0
        %1200 = vmatpush1.msra.mxu0 0.0
        %1201 = vmatprep.subr.mxu0 0.0
        %1202 = vmatpush1.msra.mxu0 0.0
        %1203 = vmatprep.subr.mxu0 0.0
        %1204 = vmatpush1.msra.mxu0 0.0
        %1205 = vmatprep.subr.mxu0 0.0
        %1206 = vmatpush1.msra.mxu0 0.0
        %1207 = vmatprep.subr.mxu0 0.0
        %1208 = vmatpush1.msra.mxu0 0.0
        %1209 = vmatprep.subr.mxu0 0.0
        %1210 = vmatpush1.msra.mxu0 0.0
        %1211 = vmatprep.subr.mxu0 0.0
        %1212 = vmatpush1.msra.mxu0 0.0
        %1213 = vmatprep.subr.mxu0 0.0
        %1214 = vmatpush1.msra.mxu0 0.0
        %1215 = vmatprep.subr.mxu0 0.0
        %1216 = vmatpush1.msra.mxu0 0.0
        %1217 = vmatprep.subr.mxu0 0.0
        %1218 = vmatpush1.msra.mxu0 0.0
        %1219 = vmatprep.subr.mxu0 0.0
        %1220 = vmatpush1.msra.mxu0 %v534
        %1221 = vmatprep.subr.mxu0 0.0
        %1222 = vmatpush1.msra.mxu0 %v533
        %1223 = vmatprep.subr.mxu0 0.0
        %1224 = vmatpush1.msra.mxu0 %v532
        %1225 = vmatprep.subr.mxu0 0.0
        %1226 = vmatpush1.msra.mxu0 %v531
        %1227 = vmatprep.subr.mxu0 0.0
        %1228 = vmatpush2.msra.mxu0 0.0
        %1229 = vmatprep.subr.mxu0 0.0
        %1230 = vmatpush2.msra.mxu0 0.0
        %1231 = vmatprep.subr.mxu0 0.0
        %1232 = vmatpush2.msra.mxu0 0.0
        %1233 = vmatprep.subr.mxu0 0.0
        %1234 = vmatpush2.msra.mxu0 0.0
        %1235 = vmatprep.subr.mxu0 0.0
        %1236 = vmatpush2.msra.mxu0 0.0
        %1237 = vmatprep.subr.mxu0 0.0
        %1238 = vmatpush2.msra.mxu0 0.0
        %1239 = vmatprep.subr.mxu0 0.0
        %1240 = vmatpush2.msra.mxu0 0.0
        %1241 = vmatprep.subr.mxu0 0.0
        %1242 = vmatpush2.msra.mxu0 0.0
        %1243 = vmatprep.subr.mxu0 0.0
        %1244 = vmatpush2.msra.mxu0 0.0
        %1245 = vmatprep.subr.mxu0 0.0
        %1246 = vmatpush2.msra.mxu0 0.0
        %1247 = vmatprep.subr.mxu0 0.0
        %1248 = vmatpush2.msra.mxu0 0.0
        %1249 = vmatprep.subr.mxu0 0.0
        %1250 = vmatpush2.msra.mxu0 0.0
        %1251 = vmatprep.subr.mxu0 0.0
        %1252 = vmatpush2.msra.mxu0 0.0
        %1253 = vmatprep.subr.mxu0 0.0
        %1254 = vmatpush2.msra.mxu0 0.0
        %1255 = vmatprep.subr.mxu0 0.0
        %1256 = vmatpush2.msra.mxu0 0.0
        %1257 = vmatprep.subr.mxu0 0.0
        %1258 = vmatpush2.msra.mxu0 0.0
        %1259 = vmatprep.mubr.f32.mxu0 0.0
        %1260 = vmatmul.mubr.f32.gmra.mxu0 %v633
        %v1261 = vpop.f32.mrf.mxu0
        %v1262 = vadd.f32 %v606, %v1261
        %v1263 = vpop.f32.mrf.mxu0
        %1264 = vdwg.mxu0
        %1265 = vmatprep.subr.mxu0 0.0
        %1266 = vmatpush1.msra.mxu0 0.0
        %1267 = vmatprep.subr.mxu0 0.0
        %1268 = vmatpush1.msra.mxu0 0.0
        %1269 = vmatprep.subr.mxu0 0.0
        %1270 = vmatpush1.msra.mxu0 0.0
        %1271 = vmatprep.subr.mxu0 0.0
        %1272 = vmatpush1.msra.mxu0 0.0
        %1273 = vmatprep.subr.mxu0 0.0
        %1274 = vmatpush1.msra.mxu0 0.0
        %1275 = vmatprep.subr.mxu0 0.0
        %1276 = vmatpush1.msra.mxu0 0.0
        %1277 = vmatprep.subr.mxu0 0.0
        %1278 = vmatpush1.msra.mxu0 0.0
        %1279 = vmatprep.subr.mxu0 0.0
        %1280 = vmatpush1.msra.mxu0 0.0
        %1281 = vmatprep.subr.mxu0 0.0
        %1282 = vmatpush1.msra.mxu0 0.0
        %1283 = vmatprep.subr.mxu0 0.0
        %1284 = vmatpush1.msra.mxu0 0.0
        %1285 = vmatprep.subr.mxu0 0.0
        %1286 = vmatpush1.msra.mxu0 0.0
        %1287 = vmatprep.subr.mxu0 0.0
        %1288 = vmatpush1.msra.mxu0 0.0
        %1289 = vmatprep.subr.mxu0 0.0
        %1290 = vmatpush1.msra.mxu0 %v538
        %1291 = vmatprep.subr.mxu0 0.0
        %1292 = vmatpush1.msra.mxu0 %v537
        %1293 = vmatprep.subr.mxu0 0.0
        %1294 = vmatpush1.msra.mxu0 %v536
        %1295 = vmatprep.subr.mxu0 0.0
        %1296 = vmatpush1.msra.mxu0 %v535
        %1297 = vmatprep.subr.mxu0 0.0
        %1298 = vmatpush2.msra.mxu0 0.0
        %1299 = vmatprep.subr.mxu0 0.0
        %1300 = vmatpush2.msra.mxu0 0.0
        %1301 = vmatprep.subr.mxu0 0.0
        %1302 = vmatpush2.msra.mxu0 0.0
        %1303 = vmatprep.subr.mxu0 0.0
        %1304 = vmatpush2.msra.mxu0 0.0
        %1305 = vmatprep.subr.mxu0 0.0
        %1306 = vmatpush2.msra.mxu0 0.0
        %1307 = vmatprep.subr.mxu0 0.0
        %1308 = vmatpush2.msra.mxu0 0.0
        %1309 = vmatprep.subr.mxu0 0.0
        %1310 = vmatpush2.msra.mxu0 0.0
        %1311 = vmatprep.subr.mxu0 0.0
        %1312 = vmatpush2.msra.mxu0 0.0
        %1313 = vmatprep.subr.mxu0 0.0
        %1314 = vmatpush2.msra.mxu0 0.0
        %1315 = vmatprep.subr.mxu0 0.0
        %1316 = vmatpush2.msra.mxu0 0.0
        %1317 = vmatprep.subr.mxu0 0.0
        %1318 = vmatpush2.msra.mxu0 0.0
        %1319 = vmatprep.subr.mxu0 0.0
        %1320 = vmatpush2.msra.mxu0 0.0
        %1321 = vmatprep.subr.mxu0 0.0
        %1322 = vmatpush2.msra.mxu0 0.0
        %1323 = vmatprep.subr.mxu0 0.0
        %1324 = vmatpush2.msra.mxu0 0.0
        %1325 = vmatprep.subr.mxu0 0.0
        %1326 = vmatpush2.msra.mxu0 0.0
        %1327 = vmatprep.subr.mxu0 0.0
        %1328 = vmatpush2.msra.mxu0 0.0
        %1329 = vmatprep.mubr.f32.mxu0 0.0
        %1330 = vmatmul.mubr.f32.gmra.mxu0 %v633
        %v1331 = vpop.f32.mrf.mxu0
        %v1332 = vadd.f32 %v610, %v1331
        %v1333 = vpop.f32.mrf.mxu0
        %1334 = vdwg.mxu0
        %1335 = vmatprep.subr.mxu0 0.0
        %1336 = vmatpush1.msra.mxu0 0.0
        %1337 = vmatprep.subr.mxu0 0.0
        %1338 = vmatpush1.msra.mxu0 0.0
        %1339 = vmatprep.subr.mxu0 0.0
        %1340 = vmatpush1.msra.mxu0 0.0
        %1341 = vmatprep.subr.mxu0 0.0
        %1342 = vmatpush1.msra.mxu0 0.0
        %1343 = vmatprep.subr.mxu0 0.0
        %1344 = vmatpush1.msra.mxu0 0.0
        %1345 = vmatprep.subr.mxu0 0.0
        %1346 = vmatpush1.msra.mxu0 0.0
        %1347 = vmatprep.subr.mxu0 0.0
        %1348 = vmatpush1.msra.mxu0 0.0
        %1349 = vmatprep.subr.mxu0 0.0
        %1350 = vmatpush1.msra.mxu0 0.0
        %1351 = vmatprep.subr.mxu0 0.0
        %1352 = vmatpush1.msra.mxu0 0.0
        %1353 = vmatprep.subr.mxu0 0.0
        %1354 = vmatpush1.msra.mxu0 0.0
        %1355 = vmatprep.subr.mxu0 0.0
        %1356 = vmatpush1.msra.mxu0 0.0
        %1357 = vmatprep.subr.mxu0 0.0
        %1358 = vmatpush1.msra.mxu0 0.0
        %1359 = vmatprep.subr.mxu0 0.0
        %1360 = vmatpush1.msra.mxu0 %v542
        %1361 = vmatprep.subr.mxu0 0.0
        %1362 = vmatpush1.msra.mxu0 %v541
        %1363 = vmatprep.subr.mxu0 0.0
        %1364 = vmatpush1.msra.mxu0 %v540
        %1365 = vmatprep.subr.mxu0 0.0
        %1366 = vmatpush1.msra.mxu0 %v539
        %1367 = vmatprep.subr.mxu0 0.0
        %1368 = vmatpush2.msra.mxu0 0.0
        %1369 = vmatprep.subr.mxu0 0.0
        %1370 = vmatpush2.msra.mxu0 0.0
        %1371 = vmatprep.subr.mxu0 0.0
        %1372 = vmatpush2.msra.mxu0 0.0
        %1373 = vmatprep.subr.mxu0 0.0
        %1374 = vmatpush2.msra.mxu0 0.0
        %1375 = vmatprep.subr.mxu0 0.0
        %1376 = vmatpush2.msra.mxu0 0.0
        %1377 = vmatprep.subr.mxu0 0.0
        %1378 = vmatpush2.msra.mxu0 0.0
        %1379 = vmatprep.subr.mxu0 0.0
        %1380 = vmatpush2.msra.mxu0 0.0
        %1381 = vmatprep.subr.mxu0 0.0
        %1382 = vmatpush2.msra.mxu0 0.0
        %1383 = vmatprep.subr.mxu0 0.0
        %1384 = vmatpush2.msra.mxu0 0.0
        %1385 = vmatprep.subr.mxu0 0.0
        %1386 = vmatpush2.msra.mxu0 0.0
        %1387 = vmatprep.subr.mxu0 0.0
        %1388 = vmatpush2.msra.mxu0 0.0
        %1389 = vmatprep.subr.mxu0 0.0
        %1390 = vmatpush2.msra.mxu0 0.0
        %1391 = vmatprep.subr.mxu0 0.0
        %1392 = vmatpush2.msra.mxu0 0.0
        %1393 = vmatprep.subr.mxu0 0.0
        %1394 = vmatpush2.msra.mxu0 0.0
        %1395 = vmatprep.subr.mxu0 0.0
        %1396 = vmatpush2.msra.mxu0 0.0
        %1397 = vmatprep.subr.mxu0 0.0
        %1398 = vmatpush2.msra.mxu0 0.0
        %1399 = vmatprep.mubr.f32.mxu0 0.0
        %1400 = vmatmul.mubr.f32.gmra.mxu0 %v633
        %v1401 = vpop.f32.mrf.mxu0
        %v1402 = vadd.f32 %v614, %v1401
        %v1403 = vpop.f32.mrf.mxu0
        %1404 = vdwg.mxu0
        %1405 = vmatprep.subr.mxu0 0.0
        %1406 = vmatpush1.msra.mxu0 0.0
        %1407 = vmatprep.subr.mxu0 0.0
        %1408 = vmatpush1.msra.mxu0 0.0
        %1409 = vmatprep.subr.mxu0 0.0
        %1410 = vmatpush1.msra.mxu0 0.0
        %1411 = vmatprep.subr.mxu0 0.0
        %1412 = vmatpush1.msra.mxu0 0.0
        %1413 = vmatprep.subr.mxu0 0.0
        %1414 = vmatpush1.msra.mxu0 0.0
        %1415 = vmatprep.subr.mxu0 0.0
        %1416 = vmatpush1.msra.mxu0 0.0
        %1417 = vmatprep.subr.mxu0 0.0
        %1418 = vmatpush1.msra.mxu0 0.0
        %1419 = vmatprep.subr.mxu0 0.0
        %1420 = vmatpush1.msra.mxu0 0.0
        %1421 = vmatprep.subr.mxu0 0.0
        %1422 = vmatpush1.msra.mxu0 0.0
        %1423 = vmatprep.subr.mxu0 0.0
        %1424 = vmatpush1.msra.mxu0 0.0
        %1425 = vmatprep.subr.mxu0 0.0
        %1426 = vmatpush1.msra.mxu0 0.0
        %1427 = vmatprep.subr.mxu0 0.0
        %1428 = vmatpush1.msra.mxu0 0.0
        %1429 = vmatprep.subr.mxu0 0.0
        %1430 = vmatpush1.msra.mxu0 %v546
        %1431 = vmatprep.subr.mxu0 0.0
        %1432 = vmatpush1.msra.mxu0 %v545
        %1433 = vmatprep.subr.mxu0 0.0
        %1434 = vmatpush1.msra.mxu0 %v544
        %1435 = vmatprep.subr.mxu0 0.0
        %1436 = vmatpush1.msra.mxu0 %v543
        %1437 = vmatprep.subr.mxu0 0.0
        %1438 = vmatpush2.msra.mxu0 0.0
        %1439 = vmatprep.subr.mxu0 0.0
        %1440 = vmatpush2.msra.mxu0 0.0
        %1441 = vmatprep.subr.mxu0 0.0
        %1442 = vmatpush2.msra.mxu0 0.0
        %1443 = vmatprep.subr.mxu0 0.0
        %1444 = vmatpush2.msra.mxu0 0.0
        %1445 = vmatprep.subr.mxu0 0.0
        %1446 = vmatpush2.msra.mxu0 0.0
        %1447 = vmatprep.subr.mxu0 0.0
        %1448 = vmatpush2.msra.mxu0 0.0
        %1449 = vmatprep.subr.mxu0 0.0
        %1450 = vmatpush2.msra.mxu0 0.0
        %1451 = vmatprep.subr.mxu0 0.0
        %1452 = vmatpush2.msra.mxu0 0.0
        %1453 = vmatprep.subr.mxu0 0.0
        %1454 = vmatpush2.msra.mxu0 0.0
        %1455 = vmatprep.subr.mxu0 0.0
        %1456 = vmatpush2.msra.mxu0 0.0
        %1457 = vmatprep.subr.mxu0 0.0
        %1458 = vmatpush2.msra.mxu0 0.0
        %1459 = vmatprep.subr.mxu0 0.0
        %1460 = vmatpush2.msra.mxu0 0.0
        %1461 = vmatprep.subr.mxu0 0.0
        %1462 = vmatpush2.msra.mxu0 0.0
        %1463 = vmatprep.subr.mxu0 0.0
        %1464 = vmatpush2.msra.mxu0 0.0
        %1465 = vmatprep.subr.mxu0 0.0
        %1466 = vmatpush2.msra.mxu0 0.0
        %1467 = vmatprep.subr.mxu0 0.0
        %1468 = vmatpush2.msra.mxu0 0.0
        %1469 = vmatprep.mubr.f32.mxu0 0.0
        %1470 = vmatmul.mubr.f32.gmra.mxu0 %v633
        %v1471 = vpop.f32.mrf.mxu0
        %v1472 = vadd.f32 %v618, %v1471
        %v1473 = vpop.f32.mrf.mxu0
        %1474 = vdwg.mxu0
        %v1475 = vld [vmem:[#allocation9] sm:$0xff]
        %v1476 = vld [vmem:[#allocation9 + $0x8] sm:$0xff]
        %v1477 = vld [vmem:[#allocation9 + $0x10] sm:$0xff]
        %v1478 = vld [vmem:[#allocation9 + $0x18] sm:$0xff]
        %v1479 = vld [vmem:[#allocation9 + $0x20] sm:$0xff]
        %v1480 = vld [vmem:[#allocation9 + $0x28] sm:$0xff]
        %v1481 = vld [vmem:[#allocation9 + $0x30] sm:$0xff]
        %v1482 = vld [vmem:[#allocation9 + $0x38] sm:$0xff]
        %v1483 = vld [vmem:[#allocation9 + $0x40] sm:$0xff]
        %v1484 = vld [vmem:[#allocation9 + $0x48] sm:$0xff]
        %v1485 = vld [vmem:[#allocation9 + $0x50] sm:$0xff]
        %v1486 = vld [vmem:[#allocation9 + $0x58] sm:$0xff]
        %v1487 = vld [vmem:[#allocation9 + $0x60] sm:$0xff]
        %v1488 = vld [vmem:[#allocation9 + $0x68] sm:$0xff]
        %v1489 = vld [vmem:[#allocation9 + $0x70] sm:$0xff]
        %v1490 = vld [vmem:[#allocation9 + $0x78] sm:$0xff]
        %v1491 = vld [vmem:[#allocation9 + $0x80] sm:$0xff]
        %v1492 = vld [vmem:[#allocation9 + $0x88] sm:$0xff]
        %v1493 = vld [vmem:[#allocation9 + $0x90] sm:$0xff]
        %v1494 = vld [vmem:[#allocation9 + $0x98] sm:$0xff]
        %v1495 = vld [vmem:[#allocation9 + $0xa0] sm:$0xff]
        %v1496 = vld [vmem:[#allocation9 + $0xa8] sm:$0xff]
        %v1497 = vld [vmem:[#allocation9 + $0xb0] sm:$0xff]
        %v1498 = vld [vmem:[#allocation9 + $0xb8] sm:$0xff]
        %v1499 = vld [vmem:[#allocation9 + $0xc0] sm:$0xff]
        %v1500 = vld [vmem:[#allocation9 + $0xc8] sm:$0xff]
        %v1501 = vld [vmem:[#allocation9 + $0xd0] sm:$0xff]
        %v1502 = vld [vmem:[#allocation9 + $0xd8] sm:$0xff]
        %v1503 = vld [vmem:[#allocation9 + $0xe0] sm:$0xff]
        %v1504 = vld [vmem:[#allocation9 + $0xe8] sm:$0xff]
        %v1505 = vld [vmem:[#allocation9 + $0xf0] sm:$0xff]
        %v1506 = vld [vmem:[#allocation9 + $0xf8] sm:$0xff]
        %v1507 = vld [vmem:[#allocation9 + $0x100] sm:$0xff]
        %v1508 = vld [vmem:[#allocation9 + $0x108] sm:$0xff]
        %v1509 = vld [vmem:[#allocation9 + $0x110] sm:$0xff]
        %v1510 = vld [vmem:[#allocation9 + $0x118] sm:$0xff]
        %v1511 = vld [vmem:[#allocation9 + $0x120] sm:$0xff]
        %v1512 = vld [vmem:[#allocation9 + $0x128] sm:$0xff]
        %v1513 = vld [vmem:[#allocation9 + $0x130] sm:$0xff]
        %v1514 = vld [vmem:[#allocation9 + $0x138] sm:$0xff]
        %v1515 = vld [vmem:[#allocation9 + $0x140] sm:$0xff]
        %v1516 = vld [vmem:[#allocation9 + $0x148] sm:$0xff]
        %v1517 = vld [vmem:[#allocation9 + $0x150] sm:$0xff]
        %v1518 = vld [vmem:[#allocation9 + $0x158] sm:$0xff]
        %v1519 = vld [vmem:[#allocation9 + $0x160] sm:$0xff]
        %v1520 = vld [vmem:[#allocation9 + $0x168] sm:$0xff]
        %v1521 = vld [vmem:[#allocation9 + $0x170] sm:$0xff]
        %v1522 = vld [vmem:[#allocation9 + $0x178] sm:$0xff]
        %v1523 = vld [vmem:[%s6] sm:$0x1]
        %v1524 = vld [vmem:[%s6 + $0x1] sm:$0x1]
        %v1525 = vld [vmem:[%s6 + $0x2] sm:$0x1]
        %v1526 = vld [vmem:[%s6 + $0x3] sm:$0x1]
        %v1527 = vld [vmem:[%s6 + $0x4] sm:$0x1]
        %v1528 = vld [vmem:[%s6 + $0x5] sm:$0x1]
        %v1529 = vld [vmem:[%s6 + $0x6] sm:$0x1]
        %v1530 = vld [vmem:[%s6 + $0x7] sm:$0x1]
        %v1531 = vld [vmem:[%s6 + $0x8] sm:$0x1]
        %v1532 = vld [vmem:[%s6 + $0x9] sm:$0x1]
        %v1533 = vld [vmem:[%s6 + $0xa] sm:$0x1]
        %v1534 = vld [vmem:[%s6 + $0xb] sm:$0x1]
        %v1547 = vlaneseq
        %v1548 = vshrl.u32 %v1547, 7
        %v1549 = vsub.s32 0, %v1548
        %v1550 = vrot.slane %v1523, %v1549
        %v1551 = vlaneseq
        %v1552 = vshrl.u32 %v1551, 7
        %v1553 = vsub.s32 0, %v1552
        %v1554 = vrot.slane %v1524, %v1553
        %v1555 = vlaneseq
        %v1556 = vshrl.u32 %v1555, 7
        %v1557 = vsub.s32 0, %v1556
        %v1558 = vrot.slane %v1525, %v1557
        %v1559 = vlaneseq
        %v1560 = vshrl.u32 %v1559, 7
        %v1561 = vsub.s32 0, %v1560
        %v1562 = vrot.slane %v1526, %v1561
        %v1563 = vlaneseq
        %v1564 = vshrl.u32 %v1563, 7
        %v1565 = vsub.s32 0, %v1564
        %v1566 = vrot.slane %v1527, %v1565
        %v1567 = vlaneseq
        %v1568 = vshrl.u32 %v1567, 7
        %v1569 = vsub.s32 0, %v1568
        %v1570 = vrot.slane %v1528, %v1569
        %v1571 = vlaneseq
        %v1572 = vshrl.u32 %v1571, 7
        %v1573 = vsub.s32 0, %v1572
        %v1574 = vrot.slane %v1529, %v1573
        %v1575 = vlaneseq
        %v1576 = vshrl.u32 %v1575, 7
        %v1577 = vsub.s32 0, %v1576
        %v1578 = vrot.slane %v1530, %v1577
        %v1579 = vlaneseq
        %v1580 = vshrl.u32 %v1579, 7
        %v1581 = vsub.s32 0, %v1580
        %v1582 = vrot.slane %v1531, %v1581
        %v1583 = vlaneseq
        %v1584 = vshrl.u32 %v1583, 7
        %v1585 = vsub.s32 0, %v1584
        %v1586 = vrot.slane %v1532, %v1585
        %v1587 = vlaneseq
        %v1588 = vshrl.u32 %v1587, 7
        %v1589 = vsub.s32 0, %v1588
        %v1590 = vrot.slane %v1533, %v1589
        %v1591 = vlaneseq
        %v1592 = vshrl.u32 %v1591, 7
        %v1593 = vsub.s32 0, %v1592
        %v1594 = vrot.slane %v1534, %v1593
        %v1608 = vsel %vm631, %v498, 0
        %1610 = vmatprep.subr.mxu0 0.0
        %1611 = vmatpush1.msra.mxu0 0.0
        %1612 = vmatprep.subr.mxu0 0.0
        %1613 = vmatpush1.msra.mxu0 0.0
        %1614 = vmatprep.subr.mxu0 0.0
        %1615 = vmatpush1.msra.mxu0 0.0
        %1616 = vmatprep.subr.mxu0 0.0
        %1617 = vmatpush1.msra.mxu0 0.0
        %1618 = vmatprep.subr.mxu0 0.0
        %1619 = vmatpush1.msra.mxu0 0.0
        %1620 = vmatprep.subr.mxu0 0.0
        %1621 = vmatpush1.msra.mxu0 0.0
        %1622 = vmatprep.subr.mxu0 0.0
        %1623 = vmatpush1.msra.mxu0 0.0
        %1624 = vmatprep.subr.mxu0 0.0
        %1625 = vmatpush1.msra.mxu0 0.0
        %1626 = vmatprep.subr.mxu0 0.0
        %1627 = vmatpush1.msra.mxu0 0.0
        %1628 = vmatprep.subr.mxu0 0.0
        %1629 = vmatpush1.msra.mxu0 0.0
        %1630 = vmatprep.subr.mxu0 0.0
        %1631 = vmatpush1.msra.mxu0 0.0
        %1632 = vmatprep.subr.mxu0 0.0
        %1633 = vmatpush1.msra.mxu0 0.0
        %1634 = vmatprep.subr.mxu0 0.0
        %1635 = vmatpush1.msra.mxu0 %v1478
        %1636 = vmatprep.subr.mxu0 0.0
        %1637 = vmatpush1.msra.mxu0 %v1477
        %1638 = vmatprep.subr.mxu0 0.0
        %1639 = vmatpush1.msra.mxu0 %v1476
        %1640 = vmatprep.subr.mxu0 0.0
        %1641 = vmatpush1.msra.mxu0 %v1475
        %1642 = vmatprep.subr.mxu0 0.0
        %1643 = vmatpush2.msra.mxu0 0.0
        %1644 = vmatprep.subr.mxu0 0.0
        %1645 = vmatpush2.msra.mxu0 0.0
        %1646 = vmatprep.subr.mxu0 0.0
        %1647 = vmatpush2.msra.mxu0 0.0
        %1648 = vmatprep.subr.mxu0 0.0
        %1649 = vmatpush2.msra.mxu0 0.0
        %1650 = vmatprep.subr.mxu0 0.0
        %1651 = vmatpush2.msra.mxu0 0.0
        %1652 = vmatprep.subr.mxu0 0.0
        %1653 = vmatpush2.msra.mxu0 0.0
        %1654 = vmatprep.subr.mxu0 0.0
        %1655 = vmatpush2.msra.mxu0 0.0
        %1656 = vmatprep.subr.mxu0 0.0
        %1657 = vmatpush2.msra.mxu0 0.0
        %1658 = vmatprep.subr.mxu0 0.0
        %1659 = vmatpush2.msra.mxu0 0.0
        %1660 = vmatprep.subr.mxu0 0.0
        %1661 = vmatpush2.msra.mxu0 0.0
        %1662 = vmatprep.subr.mxu0 0.0
        %1663 = vmatpush2.msra.mxu0 0.0
        %1664 = vmatprep.subr.mxu0 0.0
        %1665 = vmatpush2.msra.mxu0 0.0
        %1666 = vmatprep.subr.mxu0 0.0
        %1667 = vmatpush2.msra.mxu0 0.0
        %1668 = vmatprep.subr.mxu0 0.0
        %1669 = vmatpush2.msra.mxu0 0.0
        %1670 = vmatprep.subr.mxu0 0.0
        %1671 = vmatpush2.msra.mxu0 0.0
        %1672 = vmatprep.subr.mxu0 0.0
        %1673 = vmatpush2.msra.mxu0 0.0
        %1674 = vmatprep.mubr.f32.mxu0 0.0
        %1675 = vmatmul.mubr.f32.gmra.mxu0 %v1608
        %v1676 = vpop.f32.mrf.mxu0
        %v1677 = vadd.f32 %v1550, %v1676
        %v1678 = vpop.f32.mrf.mxu0
        %1679 = vdwg.mxu0
        %1680 = vmatprep.subr.mxu0 0.0
        %1681 = vmatpush1.msra.mxu0 0.0
        %1682 = vmatprep.subr.mxu0 0.0
        %1683 = vmatpush1.msra.mxu0 0.0
        %1684 = vmatprep.subr.mxu0 0.0
        %1685 = vmatpush1.msra.mxu0 0.0
        %1686 = vmatprep.subr.mxu0 0.0
        %1687 = vmatpush1.msra.mxu0 0.0
        %1688 = vmatprep.subr.mxu0 0.0
        %1689 = vmatpush1.msra.mxu0 0.0
        %1690 = vmatprep.subr.mxu0 0.0
        %1691 = vmatpush1.msra.mxu0 0.0
        %1692 = vmatprep.subr.mxu0 0.0
        %1693 = vmatpush1.msra.mxu0 0.0
        %1694 = vmatprep.subr.mxu0 0.0
        %1695 = vmatpush1.msra.mxu0 0.0
        %1696 = vmatprep.subr.mxu0 0.0
        %1697 = vmatpush1.msra.mxu0 0.0
        %1698 = vmatprep.subr.mxu0 0.0
        %1699 = vmatpush1.msra.mxu0 0.0
        %1700 = vmatprep.subr.mxu0 0.0
        %1701 = vmatpush1.msra.mxu0 0.0
        %1702 = vmatprep.subr.mxu0 0.0
        %1703 = vmatpush1.msra.mxu0 0.0
        %1704 = vmatprep.subr.mxu0 0.0
        %1705 = vmatpush1.msra.mxu0 %v1482
        %1706 = vmatprep.subr.mxu0 0.0
        %1707 = vmatpush1.msra.mxu0 %v1481
        %1708 = vmatprep.subr.mxu0 0.0
        %1709 = vmatpush1.msra.mxu0 %v1480
        %1710 = vmatprep.subr.mxu0 0.0
        %1711 = vmatpush1.msra.mxu0 %v1479
        %1712 = vmatprep.subr.mxu0 0.0
        %1713 = vmatpush2.msra.mxu0 0.0
        %1714 = vmatprep.subr.mxu0 0.0
        %1715 = vmatpush2.msra.mxu0 0.0
        %1716 = vmatprep.subr.mxu0 0.0
        %1717 = vmatpush2.msra.mxu0 0.0
        %1718 = vmatprep.subr.mxu0 0.0
        %1719 = vmatpush2.msra.mxu0 0.0
        %1720 = vmatprep.subr.mxu0 0.0
        %1721 = vmatpush2.msra.mxu0 0.0
        %1722 = vmatprep.subr.mxu0 0.0
        %1723 = vmatpush2.msra.mxu0 0.0
        %1724 = vmatprep.subr.mxu0 0.0
        %1725 = vmatpush2.msra.mxu0 0.0
        %1726 = vmatprep.subr.mxu0 0.0
        %1727 = vmatpush2.msra.mxu0 0.0
        %1728 = vmatprep.subr.mxu0 0.0
        %1729 = vmatpush2.msra.mxu0 0.0
        %1730 = vmatprep.subr.mxu0 0.0
        %1731 = vmatpush2.msra.mxu0 0.0
        %1732 = vmatprep.subr.mxu0 0.0
        %1733 = vmatpush2.msra.mxu0 0.0
        %1734 = vmatprep.subr.mxu0 0.0
        %1735 = vmatpush2.msra.mxu0 0.0
        %1736 = vmatprep.subr.mxu0 0.0
        %1737 = vmatpush2.msra.mxu0 0.0
        %1738 = vmatprep.subr.mxu0 0.0
        %1739 = vmatpush2.msra.mxu0 0.0
        %1740 = vmatprep.subr.mxu0 0.0
        %1741 = vmatpush2.msra.mxu0 0.0
        %1742 = vmatprep.subr.mxu0 0.0
        %1743 = vmatpush2.msra.mxu0 0.0
        %1744 = vmatprep.mubr.f32.mxu0 0.0
        %1745 = vmatmul.mubr.f32.gmra.mxu0 %v1608
        %v1746 = vpop.f32.mrf.mxu0
        %v1747 = vadd.f32 %v1554, %v1746
        %v1748 = vpop.f32.mrf.mxu0
        %1749 = vdwg.mxu0
        %1750 = vmatprep.subr.mxu0 0.0
        %1751 = vmatpush1.msra.mxu0 0.0
        %1752 = vmatprep.subr.mxu0 0.0
        %1753 = vmatpush1.msra.mxu0 0.0
        %1754 = vmatprep.subr.mxu0 0.0
        %1755 = vmatpush1.msra.mxu0 0.0
        %1756 = vmatprep.subr.mxu0 0.0
        %1757 = vmatpush1.msra.mxu0 0.0
        %1758 = vmatprep.subr.mxu0 0.0
        %1759 = vmatpush1.msra.mxu0 0.0
        %1760 = vmatprep.subr.mxu0 0.0
        %1761 = vmatpush1.msra.mxu0 0.0
        %1762 = vmatprep.subr.mxu0 0.0
        %1763 = vmatpush1.msra.mxu0 0.0
        %1764 = vmatprep.subr.mxu0 0.0
        %1765 = vmatpush1.msra.mxu0 0.0
        %1766 = vmatprep.subr.mxu0 0.0
        %1767 = vmatpush1.msra.mxu0 0.0
        %1768 = vmatprep.subr.mxu0 0.0
        %1769 = vmatpush1.msra.mxu0 0.0
        %1770 = vmatprep.subr.mxu0 0.0
        %1771 = vmatpush1.msra.mxu0 0.0
        %1772 = vmatprep.subr.mxu0 0.0
        %1773 = vmatpush1.msra.mxu0 0.0
        %1774 = vmatprep.subr.mxu0 0.0
        %1775 = vmatpush1.msra.mxu0 %v1486
        %1776 = vmatprep.subr.mxu0 0.0
        %1777 = vmatpush1.msra.mxu0 %v1485
        %1778 = vmatprep.subr.mxu0 0.0
        %1779 = vmatpush1.msra.mxu0 %v1484
        %1780 = vmatprep.subr.mxu0 0.0
        %1781 = vmatpush1.msra.mxu0 %v1483
        %1782 = vmatprep.subr.mxu0 0.0
        %1783 = vmatpush2.msra.mxu0 0.0
        %1784 = vmatprep.subr.mxu0 0.0
        %1785 = vmatpush2.msra.mxu0 0.0
        %1786 = vmatprep.subr.mxu0 0.0
        %1787 = vmatpush2.msra.mxu0 0.0
        %1788 = vmatprep.subr.mxu0 0.0
        %1789 = vmatpush2.msra.mxu0 0.0
        %1790 = vmatprep.subr.mxu0 0.0
        %1791 = vmatpush2.msra.mxu0 0.0
        %1792 = vmatprep.subr.mxu0 0.0
        %1793 = vmatpush2.msra.mxu0 0.0
        %1794 = vmatprep.subr.mxu0 0.0
        %1795 = vmatpush2.msra.mxu0 0.0
        %1796 = vmatprep.subr.mxu0 0.0
        %1797 = vmatpush2.msra.mxu0 0.0
        %1798 = vmatprep.subr.mxu0 0.0
        %1799 = vmatpush2.msra.mxu0 0.0
        %1800 = vmatprep.subr.mxu0 0.0
        %1801 = vmatpush2.msra.mxu0 0.0
        %1802 = vmatprep.subr.mxu0 0.0
        %1803 = vmatpush2.msra.mxu0 0.0
        %1804 = vmatprep.subr.mxu0 0.0
        %1805 = vmatpush2.msra.mxu0 0.0
        %1806 = vmatprep.subr.mxu0 0.0
        %1807 = vmatpush2.msra.mxu0 0.0
        %1808 = vmatprep.subr.mxu0 0.0
        %1809 = vmatpush2.msra.mxu0 0.0
        %1810 = vmatprep.subr.mxu0 0.0
        %1811 = vmatpush2.msra.mxu0 0.0
        %1812 = vmatprep.subr.mxu0 0.0
        %1813 = vmatpush2.msra.mxu0 0.0
        %1814 = vmatprep.mubr.f32.mxu0 0.0
        %1815 = vmatmul.mubr.f32.gmra.mxu0 %v1608
        %v1816 = vpop.f32.mrf.mxu0
        %v1817 = vadd.f32 %v1558, %v1816
        %v1818 = vpop.f32.mrf.mxu0
        %1819 = vdwg.mxu0
        %1820 = vmatprep.subr.mxu0 0.0
        %1821 = vmatpush1.msra.mxu0 0.0
        %1822 = vmatprep.subr.mxu0 0.0
        %1823 = vmatpush1.msra.mxu0 0.0
        %1824 = vmatprep.subr.mxu0 0.0
        %1825 = vmatpush1.msra.mxu0 0.0
        %1826 = vmatprep.subr.mxu0 0.0
        %1827 = vmatpush1.msra.mxu0 0.0
        %1828 = vmatprep.subr.mxu0 0.0
        %1829 = vmatpush1.msra.mxu0 0.0
        %1830 = vmatprep.subr.mxu0 0.0
        %1831 = vmatpush1.msra.mxu0 0.0
        %1832 = vmatprep.subr.mxu0 0.0
        %1833 = vmatpush1.msra.mxu0 0.0
        %1834 = vmatprep.subr.mxu0 0.0
        %1835 = vmatpush1.msra.mxu0 0.0
        %1836 = vmatprep.subr.mxu0 0.0
        %1837 = vmatpush1.msra.mxu0 0.0
        %1838 = vmatprep.subr.mxu0 0.0
        %1839 = vmatpush1.msra.mxu0 0.0
        %1840 = vmatprep.subr.mxu0 0.0
        %1841 = vmatpush1.msra.mxu0 0.0
        %1842 = vmatprep.subr.mxu0 0.0
        %1843 = vmatpush1.msra.mxu0 0.0
        %1844 = vmatprep.subr.mxu0 0.0
        %1845 = vmatpush1.msra.mxu0 %v1490
        %1846 = vmatprep.subr.mxu0 0.0
        %1847 = vmatpush1.msra.mxu0 %v1489
        %1848 = vmatprep.subr.mxu0 0.0
        %1849 = vmatpush1.msra.mxu0 %v1488
        %1850 = vmatprep.subr.mxu0 0.0
        %1851 = vmatpush1.msra.mxu0 %v1487
        %1852 = vmatprep.subr.mxu0 0.0
        %1853 = vmatpush2.msra.mxu0 0.0
        %1854 = vmatprep.subr.mxu0 0.0
        %1855 = vmatpush2.msra.mxu0 0.0
        %1856 = vmatprep.subr.mxu0 0.0
        %1857 = vmatpush2.msra.mxu0 0.0
        %1858 = vmatprep.subr.mxu0 0.0
        %1859 = vmatpush2.msra.mxu0 0.0
        %1860 = vmatprep.subr.mxu0 0.0
        %1861 = vmatpush2.msra.mxu0 0.0
        %1862 = vmatprep.subr.mxu0 0.0
        %1863 = vmatpush2.msra.mxu0 0.0
        %1864 = vmatprep.subr.mxu0 0.0
        %1865 = vmatpush2.msra.mxu0 0.0
        %1866 = vmatprep.subr.mxu0 0.0
        %1867 = vmatpush2.msra.mxu0 0.0
        %1868 = vmatprep.subr.mxu0 0.0
        %1869 = vmatpush2.msra.mxu0 0.0
        %1870 = vmatprep.subr.mxu0 0.0
        %1871 = vmatpush2.msra.mxu0 0.0
        %1872 = vmatprep.subr.mxu0 0.0
        %1873 = vmatpush2.msra.mxu0 0.0
        %1874 = vmatprep.subr.mxu0 0.0
        %1875 = vmatpush2.msra.mxu0 0.0
        %1876 = vmatprep.subr.mxu0 0.0
        %1877 = vmatpush2.msra.mxu0 0.0
        %1878 = vmatprep.subr.mxu0 0.0
        %1879 = vmatpush2.msra.mxu0 0.0
        %1880 = vmatprep.subr.mxu0 0.0
        %1881 = vmatpush2.msra.mxu0 0.0
        %1882 = vmatprep.subr.mxu0 0.0
        %1883 = vmatpush2.msra.mxu0 0.0
        %1884 = vmatprep.mubr.f32.mxu0 0.0
        %1885 = vmatmul.mubr.f32.gmra.mxu0 %v1608
        %v1886 = vpop.f32.mrf.mxu0
        %v1887 = vadd.f32 %v1562, %v1886
        %v1888 = vpop.f32.mrf.mxu0
        %1889 = vdwg.mxu0
        %1890 = vmatprep.subr.mxu0 0.0
        %1891 = vmatpush1.msra.mxu0 0.0
        %1892 = vmatprep.subr.mxu0 0.0
        %1893 = vmatpush1.msra.mxu0 0.0
        %1894 = vmatprep.subr.mxu0 0.0
        %1895 = vmatpush1.msra.mxu0 0.0
        %1896 = vmatprep.subr.mxu0 0.0
        %1897 = vmatpush1.msra.mxu0 0.0
        %1898 = vmatprep.subr.mxu0 0.0
        %1899 = vmatpush1.msra.mxu0 0.0
        %1900 = vmatprep.subr.mxu0 0.0
        %1901 = vmatpush1.msra.mxu0 0.0
        %1902 = vmatprep.subr.mxu0 0.0
        %1903 = vmatpush1.msra.mxu0 0.0
        %1904 = vmatprep.subr.mxu0 0.0
        %1905 = vmatpush1.msra.mxu0 0.0
        %1906 = vmatprep.subr.mxu0 0.0
        %1907 = vmatpush1.msra.mxu0 0.0
        %1908 = vmatprep.subr.mxu0 0.0
        %1909 = vmatpush1.msra.mxu0 0.0
        %1910 = vmatprep.subr.mxu0 0.0
        %1911 = vmatpush1.msra.mxu0 0.0
        %1912 = vmatprep.subr.mxu0 0.0
        %1913 = vmatpush1.msra.mxu0 0.0
        %1914 = vmatprep.subr.mxu0 0.0
        %1915 = vmatpush1.msra.mxu0 %v1494
        %1916 = vmatprep.subr.mxu0 0.0
        %1917 = vmatpush1.msra.mxu0 %v1493
        %1918 = vmatprep.subr.mxu0 0.0
        %1919 = vmatpush1.msra.mxu0 %v1492
        %1920 = vmatprep.subr.mxu0 0.0
        %1921 = vmatpush1.msra.mxu0 %v1491
        %1922 = vmatprep.subr.mxu0 0.0
        %1923 = vmatpush2.msra.mxu0 0.0
        %1924 = vmatprep.subr.mxu0 0.0
        %1925 = vmatpush2.msra.mxu0 0.0
        %1926 = vmatprep.subr.mxu0 0.0
        %1927 = vmatpush2.msra.mxu0 0.0
        %1928 = vmatprep.subr.mxu0 0.0
        %1929 = vmatpush2.msra.mxu0 0.0
        %1930 = vmatprep.subr.mxu0 0.0
        %1931 = vmatpush2.msra.mxu0 0.0
        %1932 = vmatprep.subr.mxu0 0.0
        %1933 = vmatpush2.msra.mxu0 0.0
        %1934 = vmatprep.subr.mxu0 0.0
        %1935 = vmatpush2.msra.mxu0 0.0
        %1936 = vmatprep.subr.mxu0 0.0
        %1937 = vmatpush2.msra.mxu0 0.0
        %1938 = vmatprep.subr.mxu0 0.0
        %1939 = vmatpush2.msra.mxu0 0.0
        %1940 = vmatprep.subr.mxu0 0.0
        %1941 = vmatpush2.msra.mxu0 0.0
        %1942 = vmatprep.subr.mxu0 0.0
        %1943 = vmatpush2.msra.mxu0 0.0
        %1944 = vmatprep.subr.mxu0 0.0
        %1945 = vmatpush2.msra.mxu0 0.0
        %1946 = vmatprep.subr.mxu0 0.0
        %1947 = vmatpush2.msra.mxu0 0.0
        %1948 = vmatprep.subr.mxu0 0.0
        %1949 = vmatpush2.msra.mxu0 0.0
        %1950 = vmatprep.subr.mxu0 0.0
        %1951 = vmatpush2.msra.mxu0 0.0
        %1952 = vmatprep.subr.mxu0 0.0
        %1953 = vmatpush2.msra.mxu0 0.0
        %1954 = vmatprep.mubr.f32.mxu0 0.0
        %1955 = vmatmul.mubr.f32.gmra.mxu0 %v1608
        %v1956 = vpop.f32.mrf.mxu0
        %v1957 = vadd.f32 %v1566, %v1956
        %v1958 = vpop.f32.mrf.mxu0
        %1959 = vdwg.mxu0
        %1960 = vmatprep.subr.mxu0 0.0
        %1961 = vmatpush1.msra.mxu0 0.0
        %1962 = vmatprep.subr.mxu0 0.0
        %1963 = vmatpush1.msra.mxu0 0.0
        %1964 = vmatprep.subr.mxu0 0.0
        %1965 = vmatpush1.msra.mxu0 0.0
        %1966 = vmatprep.subr.mxu0 0.0
        %1967 = vmatpush1.msra.mxu0 0.0
        %1968 = vmatprep.subr.mxu0 0.0
        %1969 = vmatpush1.msra.mxu0 0.0
        %1970 = vmatprep.subr.mxu0 0.0
        %1971 = vmatpush1.msra.mxu0 0.0
        %1972 = vmatprep.subr.mxu0 0.0
        %1973 = vmatpush1.msra.mxu0 0.0
        %1974 = vmatprep.subr.mxu0 0.0
        %1975 = vmatpush1.msra.mxu0 0.0
        %1976 = vmatprep.subr.mxu0 0.0
        %1977 = vmatpush1.msra.mxu0 0.0
        %1978 = vmatprep.subr.mxu0 0.0
        %1979 = vmatpush1.msra.mxu0 0.0
        %1980 = vmatprep.subr.mxu0 0.0
        %1981 = vmatpush1.msra.mxu0 0.0
        %1982 = vmatprep.subr.mxu0 0.0
        %1983 = vmatpush1.msra.mxu0 0.0
        %1984 = vmatprep.subr.mxu0 0.0
        %1985 = vmatpush1.msra.mxu0 %v1498
        %1986 = vmatprep.subr.mxu0 0.0
        %1987 = vmatpush1.msra.mxu0 %v1497
        %1988 = vmatprep.subr.mxu0 0.0
        %1989 = vmatpush1.msra.mxu0 %v1496
        %1990 = vmatprep.subr.mxu0 0.0
        %1991 = vmatpush1.msra.mxu0 %v1495
        %1992 = vmatprep.subr.mxu0 0.0
        %1993 = vmatpush2.msra.mxu0 0.0
        %1994 = vmatprep.subr.mxu0 0.0
        %1995 = vmatpush2.msra.mxu0 0.0
        %1996 = vmatprep.subr.mxu0 0.0
        %1997 = vmatpush2.msra.mxu0 0.0
        %1998 = vmatprep.subr.mxu0 0.0
        %1999 = vmatpush2.msra.mxu0 0.0
        %2000 = vmatprep.subr.mxu0 0.0
        %2001 = vmatpush2.msra.mxu0 0.0
        %2002 = vmatprep.subr.mxu0 0.0
        %2003 = vmatpush2.msra.mxu0 0.0
        %2004 = vmatprep.subr.mxu0 0.0
        %2005 = vmatpush2.msra.mxu0 0.0
        %2006 = vmatprep.subr.mxu0 0.0
        %2007 = vmatpush2.msra.mxu0 0.0
        %2008 = vmatprep.subr.mxu0 0.0
        %2009 = vmatpush2.msra.mxu0 0.0
        %2010 = vmatprep.subr.mxu0 0.0
        %2011 = vmatpush2.msra.mxu0 0.0
        %2012 = vmatprep.subr.mxu0 0.0
        %2013 = vmatpush2.msra.mxu0 0.0
        %2014 = vmatprep.subr.mxu0 0.0
        %2015 = vmatpush2.msra.mxu0 0.0
        %2016 = vmatprep.subr.mxu0 0.0
        %2017 = vmatpush2.msra.mxu0 0.0
        %2018 = vmatprep.subr.mxu0 0.0
        %2019 = vmatpush2.msra.mxu0 0.0
        %2020 = vmatprep.subr.mxu0 0.0
        %2021 = vmatpush2.msra.mxu0 0.0
        %2022 = vmatprep.subr.mxu0 0.0
        %2023 = vmatpush2.msra.mxu0 0.0
        %2024 = vmatprep.mubr.f32.mxu0 0.0
        %2025 = vmatmul.mubr.f32.gmra.mxu0 %v1608
        %v2026 = vpop.f32.mrf.mxu0
        %v2027 = vadd.f32 %v1570, %v2026
        %v2028 = vpop.f32.mrf.mxu0
        %2029 = vdwg.mxu0
        %2030 = vmatprep.subr.mxu0 0.0
        %2031 = vmatpush1.msra.mxu0 0.0
        %2032 = vmatprep.subr.mxu0 0.0
        %2033 = vmatpush1.msra.mxu0 0.0
        %2034 = vmatprep.subr.mxu0 0.0
        %2035 = vmatpush1.msra.mxu0 0.0
        %2036 = vmatprep.subr.mxu0 0.0
        %2037 = vmatpush1.msra.mxu0 0.0
        %2038 = vmatprep.subr.mxu0 0.0
        %2039 = vmatpush1.msra.mxu0 0.0
        %2040 = vmatprep.subr.mxu0 0.0
        %2041 = vmatpush1.msra.mxu0 0.0
        %2042 = vmatprep.subr.mxu0 0.0
        %2043 = vmatpush1.msra.mxu0 0.0
        %2044 = vmatprep.subr.mxu0 0.0
        %2045 = vmatpush1.msra.mxu0 0.0
        %2046 = vmatprep.subr.mxu0 0.0
        %2047 = vmatpush1.msra.mxu0 0.0
        %2048 = vmatprep.subr.mxu0 0.0
        %2049 = vmatpush1.msra.mxu0 0.0
        %2050 = vmatprep.subr.mxu0 0.0
        %2051 = vmatpush1.msra.mxu0 0.0
        %2052 = vmatprep.subr.mxu0 0.0
        %2053 = vmatpush1.msra.mxu0 0.0
        %2054 = vmatprep.subr.mxu0 0.0
        %2055 = vmatpush1.msra.mxu0 %v1502
        %2056 = vmatprep.subr.mxu0 0.0
        %2057 = vmatpush1.msra.mxu0 %v1501
        %2058 = vmatprep.subr.mxu0 0.0
        %2059 = vmatpush1.msra.mxu0 %v1500
        %2060 = vmatprep.subr.mxu0 0.0
        %2061 = vmatpush1.msra.mxu0 %v1499
        %2062 = vmatprep.subr.mxu0 0.0
        %2063 = vmatpush2.msra.mxu0 0.0
        %2064 = vmatprep.subr.mxu0 0.0
        %2065 = vmatpush2.msra.mxu0 0.0
        %2066 = vmatprep.subr.mxu0 0.0
        %2067 = vmatpush2.msra.mxu0 0.0
        %2068 = vmatprep.subr.mxu0 0.0
        %2069 = vmatpush2.msra.mxu0 0.0
        %2070 = vmatprep.subr.mxu0 0.0
        %2071 = vmatpush2.msra.mxu0 0.0
        %2072 = vmatprep.subr.mxu0 0.0
        %2073 = vmatpush2.msra.mxu0 0.0
        %2074 = vmatprep.subr.mxu0 0.0
        %2075 = vmatpush2.msra.mxu0 0.0
        %2076 = vmatprep.subr.mxu0 0.0
        %2077 = vmatpush2.msra.mxu0 0.0
        %2078 = vmatprep.subr.mxu0 0.0
        %2079 = vmatpush2.msra.mxu0 0.0
        %2080 = vmatprep.subr.mxu0 0.0
        %2081 = vmatpush2.msra.mxu0 0.0
        %2082 = vmatprep.subr.mxu0 0.0
        %2083 = vmatpush2.msra.mxu0 0.0
        %2084 = vmatprep.subr.mxu0 0.0
        %2085 = vmatpush2.msra.mxu0 0.0
        %2086 = vmatprep.subr.mxu0 0.0
        %2087 = vmatpush2.msra.mxu0 0.0
        %2088 = vmatprep.subr.mxu0 0.0
        %2089 = vmatpush2.msra.mxu0 0.0
        %2090 = vmatprep.subr.mxu0 0.0
        %2091 = vmatpush2.msra.mxu0 0.0
        %2092 = vmatprep.subr.mxu0 0.0
        %2093 = vmatpush2.msra.mxu0 0.0
        %2094 = vmatprep.mubr.f32.mxu0 0.0
        %2095 = vmatmul.mubr.f32.gmra.mxu0 %v1608
        %v2096 = vpop.f32.mrf.mxu0
        %v2097 = vadd.f32 %v1574, %v2096
        %v2098 = vpop.f32.mrf.mxu0
        %2099 = vdwg.mxu0
        %2100 = vmatprep.subr.mxu0 0.0
        %2101 = vmatpush1.msra.mxu0 0.0
        %2102 = vmatprep.subr.mxu0 0.0
        %2103 = vmatpush1.msra.mxu0 0.0
        %2104 = vmatprep.subr.mxu0 0.0
        %2105 = vmatpush1.msra.mxu0 0.0
        %2106 = vmatprep.subr.mxu0 0.0
        %2107 = vmatpush1.msra.mxu0 0.0
        %2108 = vmatprep.subr.mxu0 0.0
        %2109 = vmatpush1.msra.mxu0 0.0
        %2110 = vmatprep.subr.mxu0 0.0
        %2111 = vmatpush1.msra.mxu0 0.0
        %2112 = vmatprep.subr.mxu0 0.0
        %2113 = vmatpush1.msra.mxu0 0.0
        %2114 = vmatprep.subr.mxu0 0.0
        %2115 = vmatpush1.msra.mxu0 0.0
        %2116 = vmatprep.subr.mxu0 0.0
        %2117 = vmatpush1.msra.mxu0 0.0
        %2118 = vmatprep.subr.mxu0 0.0
        %2119 = vmatpush1.msra.mxu0 0.0
        %2120 = vmatprep.subr.mxu0 0.0
        %2121 = vmatpush1.msra.mxu0 0.0
        %2122 = vmatprep.subr.mxu0 0.0
        %2123 = vmatpush1.msra.mxu0 0.0
        %2124 = vmatprep.subr.mxu0 0.0
        %2125 = vmatpush1.msra.mxu0 %v1506
        %2126 = vmatprep.subr.mxu0 0.0
        %2127 = vmatpush1.msra.mxu0 %v1505
        %2128 = vmatprep.subr.mxu0 0.0
        %2129 = vmatpush1.msra.mxu0 %v1504
        %2130 = vmatprep.subr.mxu0 0.0
        %2131 = vmatpush1.msra.mxu0 %v1503
        %2132 = vmatprep.subr.mxu0 0.0
        %2133 = vmatpush2.msra.mxu0 0.0
        %2134 = vmatprep.subr.mxu0 0.0
        %2135 = vmatpush2.msra.mxu0 0.0
        %2136 = vmatprep.subr.mxu0 0.0
        %2137 = vmatpush2.msra.mxu0 0.0
        %2138 = vmatprep.subr.mxu0 0.0
        %2139 = vmatpush2.msra.mxu0 0.0
        %2140 = vmatprep.subr.mxu0 0.0
        %2141 = vmatpush2.msra.mxu0 0.0
        %2142 = vmatprep.subr.mxu0 0.0
        %2143 = vmatpush2.msra.mxu0 0.0
        %2144 = vmatprep.subr.mxu0 0.0
        %2145 = vmatpush2.msra.mxu0 0.0
        %2146 = vmatprep.subr.mxu0 0.0
        %2147 = vmatpush2.msra.mxu0 0.0
        %2148 = vmatprep.subr.mxu0 0.0
        %2149 = vmatpush2.msra.mxu0 0.0
        %2150 = vmatprep.subr.mxu0 0.0
        %2151 = vmatpush2.msra.mxu0 0.0
        %2152 = vmatprep.subr.mxu0 0.0
        %2153 = vmatpush2.msra.mxu0 0.0
        %2154 = vmatprep.subr.mxu0 0.0
        %2155 = vmatpush2.msra.mxu0 0.0
        %2156 = vmatprep.subr.mxu0 0.0
        %2157 = vmatpush2.msra.mxu0 0.0
        %2158 = vmatprep.subr.mxu0 0.0
        %2159 = vmatpush2.msra.mxu0 0.0
        %2160 = vmatprep.subr.mxu0 0.0
        %2161 = vmatpush2.msra.mxu0 0.0
        %2162 = vmatprep.subr.mxu0 0.0
        %2163 = vmatpush2.msra.mxu0 0.0
        %2164 = vmatprep.mubr.f32.mxu0 0.0
        %2165 = vmatmul.mubr.f32.gmra.mxu0 %v1608
        %v2166 = vpop.f32.mrf.mxu0
        %v2167 = vadd.f32 %v1578, %v2166
        %v2168 = vpop.f32.mrf.mxu0
        %2169 = vdwg.mxu0
        %2170 = vmatprep.subr.mxu0 0.0
        %2171 = vmatpush1.msra.mxu0 0.0
        %2172 = vmatprep.subr.mxu0 0.0
        %2173 = vmatpush1.msra.mxu0 0.0
        %2174 = vmatprep.subr.mxu0 0.0
        %2175 = vmatpush1.msra.mxu0 0.0
        %2176 = vmatprep.subr.mxu0 0.0
        %2177 = vmatpush1.msra.mxu0 0.0
        %2178 = vmatprep.subr.mxu0 0.0
        %2179 = vmatpush1.msra.mxu0 0.0
        %2180 = vmatprep.subr.mxu0 0.0
        %2181 = vmatpush1.msra.mxu0 0.0
        %2182 = vmatprep.subr.mxu0 0.0
        %2183 = vmatpush1.msra.mxu0 0.0
        %2184 = vmatprep.subr.mxu0 0.0
        %2185 = vmatpush1.msra.mxu0 0.0
        %2186 = vmatprep.subr.mxu0 0.0
        %2187 = vmatpush1.msra.mxu0 0.0
        %2188 = vmatprep.subr.mxu0 0.0
        %2189 = vmatpush1.msra.mxu0 0.0
        %2190 = vmatprep.subr.mxu0 0.0
        %2191 = vmatpush1.msra.mxu0 0.0
        %2192 = vmatprep.subr.mxu0 0.0
        %2193 = vmatpush1.msra.mxu0 0.0
        %2194 = vmatprep.subr.mxu0 0.0
        %2195 = vmatpush1.msra.mxu0 %v1510
        %2196 = vmatprep.subr.mxu0 0.0
        %2197 = vmatpush1.msra.mxu0 %v1509
        %2198 = vmatprep.subr.mxu0 0.0
        %2199 = vmatpush1.msra.mxu0 %v1508
        %2200 = vmatprep.subr.mxu0 0.0
        %2201 = vmatpush1.msra.mxu0 %v1507
        %2202 = vmatprep.subr.mxu0 0.0
        %2203 = vmatpush2.msra.mxu0 0.0
        %2204 = vmatprep.subr.mxu0 0.0
        %2205 = vmatpush2.msra.mxu0 0.0
        %2206 = vmatprep.subr.mxu0 0.0
        %2207 = vmatpush2.msra.mxu0 0.0
        %2208 = vmatprep.subr.mxu0 0.0
        %2209 = vmatpush2.msra.mxu0 0.0
        %2210 = vmatprep.subr.mxu0 0.0
        %2211 = vmatpush2.msra.mxu0 0.0
        %2212 = vmatprep.subr.mxu0 0.0
        %2213 = vmatpush2.msra.mxu0 0.0
        %2214 = vmatprep.subr.mxu0 0.0
        %2215 = vmatpush2.msra.mxu0 0.0
        %2216 = vmatprep.subr.mxu0 0.0
        %2217 = vmatpush2.msra.mxu0 0.0
        %2218 = vmatprep.subr.mxu0 0.0
        %2219 = vmatpush2.msra.mxu0 0.0
        %2220 = vmatprep.subr.mxu0 0.0
        %2221 = vmatpush2.msra.mxu0 0.0
        %2222 = vmatprep.subr.mxu0 0.0
        %2223 = vmatpush2.msra.mxu0 0.0
        %2224 = vmatprep.subr.mxu0 0.0
        %2225 = vmatpush2.msra.mxu0 0.0
        %2226 = vmatprep.subr.mxu0 0.0
        %2227 = vmatpush2.msra.mxu0 0.0
        %2228 = vmatprep.subr.mxu0 0.0
        %2229 = vmatpush2.msra.mxu0 0.0
        %2230 = vmatprep.subr.mxu0 0.0
        %2231 = vmatpush2.msra.mxu0 0.0
        %2232 = vmatprep.subr.mxu0 0.0
        %2233 = vmatpush2.msra.mxu0 0.0
        %2234 = vmatprep.mubr.f32.mxu0 0.0
        %2235 = vmatmul.mubr.f32.gmra.mxu0 %v1608
        %v2236 = vpop.f32.mrf.mxu0
        %v2237 = vadd.f32 %v1582, %v2236
        %v2238 = vpop.f32.mrf.mxu0
        %2239 = vdwg.mxu0
        %2240 = vmatprep.subr.mxu0 0.0
        %2241 = vmatpush1.msra.mxu0 0.0
        %2242 = vmatprep.subr.mxu0 0.0
        %2243 = vmatpush1.msra.mxu0 0.0
        %2244 = vmatprep.subr.mxu0 0.0
        %2245 = vmatpush1.msra.mxu0 0.0
        %2246 = vmatprep.subr.mxu0 0.0
        %2247 = vmatpush1.msra.mxu0 0.0
        %2248 = vmatprep.subr.mxu0 0.0
        %2249 = vmatpush1.msra.mxu0 0.0
        %2250 = vmatprep.subr.mxu0 0.0
        %2251 = vmatpush1.msra.mxu0 0.0
        %2252 = vmatprep.subr.mxu0 0.0
        %2253 = vmatpush1.msra.mxu0 0.0
        %2254 = vmatprep.subr.mxu0 0.0
        %2255 = vmatpush1.msra.mxu0 0.0
        %2256 = vmatprep.subr.mxu0 0.0
        %2257 = vmatpush1.msra.mxu0 0.0
        %2258 = vmatprep.subr.mxu0 0.0
        %2259 = vmatpush1.msra.mxu0 0.0
        %2260 = vmatprep.subr.mxu0 0.0
        %2261 = vmatpush1.msra.mxu0 0.0
        %2262 = vmatprep.subr.mxu0 0.0
        %2263 = vmatpush1.msra.mxu0 0.0
        %2264 = vmatprep.subr.mxu0 0.0
        %2265 = vmatpush1.msra.mxu0 %v1514
        %2266 = vmatprep.subr.mxu0 0.0
        %2267 = vmatpush1.msra.mxu0 %v1513
        %2268 = vmatprep.subr.mxu0 0.0
        %2269 = vmatpush1.msra.mxu0 %v1512
        %2270 = vmatprep.subr.mxu0 0.0
        %2271 = vmatpush1.msra.mxu0 %v1511
        %2272 = vmatprep.subr.mxu0 0.0
        %2273 = vmatpush2.msra.mxu0 0.0
        %2274 = vmatprep.subr.mxu0 0.0
        %2275 = vmatpush2.msra.mxu0 0.0
        %2276 = vmatprep.subr.mxu0 0.0
        %2277 = vmatpush2.msra.mxu0 0.0
        %2278 = vmatprep.subr.mxu0 0.0
        %2279 = vmatpush2.msra.mxu0 0.0
        %2280 = vmatprep.subr.mxu0 0.0
        %2281 = vmatpush2.msra.mxu0 0.0
        %2282 = vmatprep.subr.mxu0 0.0
        %2283 = vmatpush2.msra.mxu0 0.0
        %2284 = vmatprep.subr.mxu0 0.0
        %2285 = vmatpush2.msra.mxu0 0.0
        %2286 = vmatprep.subr.mxu0 0.0
        %2287 = vmatpush2.msra.mxu0 0.0
        %2288 = vmatprep.subr.mxu0 0.0
        %2289 = vmatpush2.msra.mxu0 0.0
        %2290 = vmatprep.subr.mxu0 0.0
        %2291 = vmatpush2.msra.mxu0 0.0
        %2292 = vmatprep.subr.mxu0 0.0
        %2293 = vmatpush2.msra.mxu0 0.0
        %2294 = vmatprep.subr.mxu0 0.0
        %2295 = vmatpush2.msra.mxu0 0.0
        %2296 = vmatprep.subr.mxu0 0.0
        %2297 = vmatpush2.msra.mxu0 0.0
        %2298 = vmatprep.subr.mxu0 0.0
        %2299 = vmatpush2.msra.mxu0 0.0
        %2300 = vmatprep.subr.mxu0 0.0
        %2301 = vmatpush2.msra.mxu0 0.0
        %2302 = vmatprep.subr.mxu0 0.0
        %2303 = vmatpush2.msra.mxu0 0.0
        %2304 = vmatprep.mubr.f32.mxu0 0.0
        %2305 = vmatmul.mubr.f32.gmra.mxu0 %v1608
        %v2306 = vpop.f32.mrf.mxu0
        %v2307 = vadd.f32 %v1586, %v2306
        %v2308 = vpop.f32.mrf.mxu0
        %2309 = vdwg.mxu0
        %2310 = vmatprep.subr.mxu0 0.0
        %2311 = vmatpush1.msra.mxu0 0.0
        %2312 = vmatprep.subr.mxu0 0.0
        %2313 = vmatpush1.msra.mxu0 0.0
        %2314 = vmatprep.subr.mxu0 0.0
        %2315 = vmatpush1.msra.mxu0 0.0
        %2316 = vmatprep.subr.mxu0 0.0
        %2317 = vmatpush1.msra.mxu0 0.0
        %2318 = vmatprep.subr.mxu0 0.0
        %2319 = vmatpush1.msra.mxu0 0.0
        %2320 = vmatprep.subr.mxu0 0.0
        %2321 = vmatpush1.msra.mxu0 0.0
        %2322 = vmatprep.subr.mxu0 0.0
        %2323 = vmatpush1.msra.mxu0 0.0
        %2324 = vmatprep.subr.mxu0 0.0
        %2325 = vmatpush1.msra.mxu0 0.0
        %2326 = vmatprep.subr.mxu0 0.0
        %2327 = vmatpush1.msra.mxu0 0.0
        %2328 = vmatprep.subr.mxu0 0.0
        %2329 = vmatpush1.msra.mxu0 0.0
        %2330 = vmatprep.subr.mxu0 0.0
        %2331 = vmatpush1.msra.mxu0 0.0
        %2332 = vmatprep.subr.mxu0 0.0
        %2333 = vmatpush1.msra.mxu0 0.0
        %2334 = vmatprep.subr.mxu0 0.0
        %2335 = vmatpush1.msra.mxu0 %v1518
        %2336 = vmatprep.subr.mxu0 0.0
        %2337 = vmatpush1.msra.mxu0 %v1517
        %2338 = vmatprep.subr.mxu0 0.0
        %2339 = vmatpush1.msra.mxu0 %v1516
        %2340 = vmatprep.subr.mxu0 0.0
        %2341 = vmatpush1.msra.mxu0 %v1515
        %2342 = vmatprep.subr.mxu0 0.0
        %2343 = vmatpush2.msra.mxu0 0.0
        %2344 = vmatprep.subr.mxu0 0.0
        %2345 = vmatpush2.msra.mxu0 0.0
        %2346 = vmatprep.subr.mxu0 0.0
        %2347 = vmatpush2.msra.mxu0 0.0
        %2348 = vmatprep.subr.mxu0 0.0
        %2349 = vmatpush2.msra.mxu0 0.0
        %2350 = vmatprep.subr.mxu0 0.0
        %2351 = vmatpush2.msra.mxu0 0.0
        %2352 = vmatprep.subr.mxu0 0.0
        %2353 = vmatpush2.msra.mxu0 0.0
        %2354 = vmatprep.subr.mxu0 0.0
        %2355 = vmatpush2.msra.mxu0 0.0
        %2356 = vmatprep.subr.mxu0 0.0
        %2357 = vmatpush2.msra.mxu0 0.0
        %2358 = vmatprep.subr.mxu0 0.0
        %2359 = vmatpush2.msra.mxu0 0.0
        %2360 = vmatprep.subr.mxu0 0.0
        %2361 = vmatpush2.msra.mxu0 0.0
        %2362 = vmatprep.subr.mxu0 0.0
        %2363 = vmatpush2.msra.mxu0 0.0
        %2364 = vmatprep.subr.mxu0 0.0
        %2365 = vmatpush2.msra.mxu0 0.0
        %2366 = vmatprep.subr.mxu0 0.0
        %2367 = vmatpush2.msra.mxu0 0.0
        %2368 = vmatprep.subr.mxu0 0.0
        %2369 = vmatpush2.msra.mxu0 0.0
        %2370 = vmatprep.subr.mxu0 0.0
        %2371 = vmatpush2.msra.mxu0 0.0
        %2372 = vmatprep.subr.mxu0 0.0
        %2373 = vmatpush2.msra.mxu0 0.0
        %2374 = vmatprep.mubr.f32.mxu0 0.0
        %2375 = vmatmul.mubr.f32.gmra.mxu0 %v1608
        %v2376 = vpop.f32.mrf.mxu0
        %v2377 = vadd.f32 %v1590, %v2376
        %v2378 = vpop.f32.mrf.mxu0
        %2379 = vdwg.mxu0
        %2380 = vmatprep.subr.mxu0 0.0
        %2381 = vmatpush1.msra.mxu0 0.0
        %2382 = vmatprep.subr.mxu0 0.0
        %2383 = vmatpush1.msra.mxu0 0.0
        %2384 = vmatprep.subr.mxu0 0.0
        %2385 = vmatpush1.msra.mxu0 0.0
        %2386 = vmatprep.subr.mxu0 0.0
        %2387 = vmatpush1.msra.mxu0 0.0
        %2388 = vmatprep.subr.mxu0 0.0
        %2389 = vmatpush1.msra.mxu0 0.0
        %2390 = vmatprep.subr.mxu0 0.0
        %2391 = vmatpush1.msra.mxu0 0.0
        %2392 = vmatprep.subr.mxu0 0.0
        %2393 = vmatpush1.msra.mxu0 0.0
        %2394 = vmatprep.subr.mxu0 0.0
        %2395 = vmatpush1.msra.mxu0 0.0
        %2396 = vmatprep.subr.mxu0 0.0
        %2397 = vmatpush1.msra.mxu0 0.0
        %2398 = vmatprep.subr.mxu0 0.0
        %2399 = vmatpush1.msra.mxu0 0.0
        %2400 = vmatprep.subr.mxu0 0.0
        %2401 = vmatpush1.msra.mxu0 0.0
        %2402 = vmatprep.subr.mxu0 0.0
        %2403 = vmatpush1.msra.mxu0 0.0
        %2404 = vmatprep.subr.mxu0 0.0
        %2405 = vmatpush1.msra.mxu0 %v1522
        %2406 = vmatprep.subr.mxu0 0.0
        %2407 = vmatpush1.msra.mxu0 %v1521
        %2408 = vmatprep.subr.mxu0 0.0
        %2409 = vmatpush1.msra.mxu0 %v1520
        %2410 = vmatprep.subr.mxu0 0.0
        %2411 = vmatpush1.msra.mxu0 %v1519
        %2412 = vmatprep.subr.mxu0 0.0
        %2413 = vmatpush2.msra.mxu0 0.0
        %2414 = vmatprep.subr.mxu0 0.0
        %2415 = vmatpush2.msra.mxu0 0.0
        %2416 = vmatprep.subr.mxu0 0.0
        %2417 = vmatpush2.msra.mxu0 0.0
        %2418 = vmatprep.subr.mxu0 0.0
        %2419 = vmatpush2.msra.mxu0 0.0
        %2420 = vmatprep.subr.mxu0 0.0
        %2421 = vmatpush2.msra.mxu0 0.0
        %2422 = vmatprep.subr.mxu0 0.0
        %2423 = vmatpush2.msra.mxu0 0.0
        %2424 = vmatprep.subr.mxu0 0.0
        %2425 = vmatpush2.msra.mxu0 0.0
        %2426 = vmatprep.subr.mxu0 0.0
        %2427 = vmatpush2.msra.mxu0 0.0
        %2428 = vmatprep.subr.mxu0 0.0
        %2429 = vmatpush2.msra.mxu0 0.0
        %2430 = vmatprep.subr.mxu0 0.0
        %2431 = vmatpush2.msra.mxu0 0.0
        %2432 = vmatprep.subr.mxu0 0.0
        %2433 = vmatpush2.msra.mxu0 0.0
        %2434 = vmatprep.subr.mxu0 0.0
        %2435 = vmatpush2.msra.mxu0 0.0
        %2436 = vmatprep.subr.mxu0 0.0
        %2437 = vmatpush2.msra.mxu0 0.0
        %2438 = vmatprep.subr.mxu0 0.0
        %2439 = vmatpush2.msra.mxu0 0.0
        %2440 = vmatprep.subr.mxu0 0.0
        %2441 = vmatpush2.msra.mxu0 0.0
        %2442 = vmatprep.subr.mxu0 0.0
        %2443 = vmatpush2.msra.mxu0 0.0
        %2444 = vmatprep.mubr.f32.mxu0 0.0
        %2445 = vmatmul.mubr.f32.gmra.mxu0 %v1608
        %v2446 = vpop.f32.mrf.mxu0
        %v2447 = vadd.f32 %v1594, %v2446
        %v2448 = vpop.f32.mrf.mxu0
        %2449 = vdwg.mxu0
        %v2450 = vld [vmem:[%s7] sm:$0xff]
        %v2451 = vld [vmem:[#allocation10] sm:$0xff]
        %2464 = vrot.lane.b32.xlu0 %v702, 126
        %v2465 = vpop.permute.xlu0 %2464
        %2466 = vrot.lane.b32.xlu0 %v772, 126
        %v2467 = vpop.permute.xlu0 %2466
        %2468 = vrot.lane.b32.xlu0 %v842, 126
        %v2469 = vpop.permute.xlu0 %2468
        %2470 = vrot.lane.b32.xlu0 %v912, 126
        %v2471 = vpop.permute.xlu0 %2470
        %2472 = vrot.lane.b32.xlu0 %v982, 126
        %v2473 = vpop.permute.xlu0 %2472
        %2474 = vrot.lane.b32.xlu0 %v1052, 126
        %v2475 = vpop.permute.xlu0 %2474
        %2476 = vrot.lane.b32.xlu0 %v1122, 126
        %v2477 = vpop.permute.xlu0 %2476
        %2478 = vrot.lane.b32.xlu0 %v1192, 126
        %v2479 = vpop.permute.xlu0 %2478
        %2480 = vrot.lane.b32.xlu0 %v1262, 126
        %v2481 = vpop.permute.xlu0 %2480
        %2482 = vrot.lane.b32.xlu0 %v1332, 126
        %v2483 = vpop.permute.xlu0 %2482
        %2484 = vrot.lane.b32.xlu0 %v1402, 126
        %v2485 = vpop.permute.xlu0 %2484
        %2486 = vrot.lane.b32.xlu0 %v1472, 126
        %v2487 = vpop.permute.xlu0 %2486
        %2500 = vrot.lane.b32.xlu0 %v702, 2
        %v2501 = vpop.permute.xlu0 %2500
        %2502 = vrot.lane.b32.xlu0 %v772, 2
        %v2503 = vpop.permute.xlu0 %2502
        %2504 = vrot.lane.b32.xlu0 %v842, 2
        %v2505 = vpop.permute.xlu0 %2504
        %2506 = vrot.lane.b32.xlu0 %v912, 2
        %v2507 = vpop.permute.xlu0 %2506
        %2508 = vrot.lane.b32.xlu0 %v982, 2
        %v2509 = vpop.permute.xlu0 %2508
        %2510 = vrot.lane.b32.xlu0 %v1052, 2
        %v2511 = vpop.permute.xlu0 %2510
        %2512 = vrot.lane.b32.xlu0 %v1122, 2
        %v2513 = vpop.permute.xlu0 %2512
        %2514 = vrot.lane.b32.xlu0 %v1192, 2
        %v2515 = vpop.permute.xlu0 %2514
        %2516 = vrot.lane.b32.xlu0 %v1262, 2
        %v2517 = vpop.permute.xlu0 %2516
        %2518 = vrot.lane.b32.xlu0 %v1332, 2
        %v2519 = vpop.permute.xlu0 %2518
        %2520 = vrot.lane.b32.xlu0 %v1402, 2
        %v2521 = vpop.permute.xlu0 %2520
        %2522 = vrot.lane.b32.xlu0 %v1472, 2
        %v2523 = vpop.permute.xlu0 %2522
        %vm2536 = vcmask 15360
        %v2537 = vsel %vm2536, %v2465, %v2501
        %v2538 = vsel %vm2536, %v2467, %v2503
        %v2539 = vsel %vm2536, %v2469, %v2505
        %v2540 = vsel %vm2536, %v2471, %v2507
        %v2541 = vsel %vm2536, %v2473, %v2509
        %v2542 = vsel %vm2536, %v2475, %v2511
        %v2543 = vsel %vm2536, %v2477, %v2513
        %v2544 = vsel %vm2536, %v2479, %v2515
        %v2545 = vsel %vm2536, %v2481, %v2517
        %v2546 = vsel %vm2536, %v2483, %v2519
        %v2547 = vsel %vm2536, %v2485, %v2521
        %v2548 = vsel %vm2536, %v2487, %v2523
        %v2549 = vmul.f32 %v702, %v2450
        %v2550 = vmul.f32 %v772, %v2450
        %v2551 = vmul.f32 %v842, %v2450
        %v2552 = vmul.f32 %v912, %v2450
        %v2553 = vmul.f32 %v982, %v2450
        %v2554 = vmul.f32 %v1052, %v2450
        %v2555 = vmul.f32 %v1122, %v2450
        %v2556 = vmul.f32 %v1192, %v2450
        %v2557 = vmul.f32 %v1262, %v2450
        %v2558 = vmul.f32 %v1332, %v2450
        %v2559 = vmul.f32 %v1402, %v2450
        %v2560 = vmul.f32 %v1472, %v2450
        %v2561 = vmul.f32 %v2537, %v2451
        %v2562 = vmul.f32 %v2538, %v2451
        %v2563 = vmul.f32 %v2539, %v2451
        %v2564 = vmul.f32 %v2540, %v2451
        %v2565 = vmul.f32 %v2541, %v2451
        %v2566 = vmul.f32 %v2542, %v2451
        %v2567 = vmul.f32 %v2543, %v2451
        %v2568 = vmul.f32 %v2544, %v2451
        %v2569 = vmul.f32 %v2545, %v2451
        %v2570 = vmul.f32 %v2546, %v2451
        %v2571 = vmul.f32 %v2547, %v2451
        %v2572 = vmul.f32 %v2548, %v2451
        %v2573 = vadd.f32 %v2549, %v2561
        %v2574 = vadd.f32 %v2550, %v2562
        %v2575 = vadd.f32 %v2551, %v2563
        %v2576 = vadd.f32 %v2552, %v2564
        %v2577 = vadd.f32 %v2553, %v2565
        %v2578 = vadd.f32 %v2554, %v2566
        %v2579 = vadd.f32 %v2555, %v2567
        %v2580 = vadd.f32 %v2556, %v2568
        %v2581 = vadd.f32 %v2557, %v2569
        %v2582 = vadd.f32 %v2558, %v2570
        %v2583 = vadd.f32 %v2559, %v2571
        %v2584 = vadd.f32 %v2560, %v2572
        %2597 = vrot.lane.b32.xlu0 %v1677, 126
        %v2598 = vpop.permute.xlu0 %2597
        %2599 = vrot.lane.b32.xlu0 %v1747, 126
        %v2600 = vpop.permute.xlu0 %2599
        %2601 = vrot.lane.b32.xlu0 %v1817, 126
        %v2602 = vpop.permute.xlu0 %2601
        %2603 = vrot.lane.b32.xlu0 %v1887, 126
        %v2604 = vpop.permute.xlu0 %2603
        %2605 = vrot.lane.b32.xlu0 %v1957, 126
        %v2606 = vpop.permute.xlu0 %2605
        %2607 = vrot.lane.b32.xlu0 %v2027, 126
        %v2608 = vpop.permute.xlu0 %2607
        %2609 = vrot.lane.b32.xlu0 %v2097, 126
        %v2610 = vpop.permute.xlu0 %2609
        %2611 = vrot.lane.b32.xlu0 %v2167, 126
        %v2612 = vpop.permute.xlu0 %2611
        %2613 = vrot.lane.b32.xlu0 %v2237, 126
        %v2614 = vpop.permute.xlu0 %2613
        %2615 = vrot.lane.b32.xlu0 %v2307, 126
        %v2616 = vpop.permute.xlu0 %2615
        %2617 = vrot.lane.b32.xlu0 %v2377, 126
        %v2618 = vpop.permute.xlu0 %2617
        %2619 = vrot.lane.b32.xlu0 %v2447, 126
        %v2620 = vpop.permute.xlu0 %2619
        %2633 = vrot.lane.b32.xlu0 %v1677, 2
        %v2634 = vpop.permute.xlu0 %2633
        %2635 = vrot.lane.b32.xlu0 %v1747, 2
        %v2636 = vpop.permute.xlu0 %2635
        %2637 = vrot.lane.b32.xlu0 %v1817, 2
        %v2638 = vpop.permute.xlu0 %2637
        %2639 = vrot.lane.b32.xlu0 %v1887, 2
        %v2640 = vpop.permute.xlu0 %2639
        %2641 = vrot.lane.b32.xlu0 %v1957, 2
        %v2642 = vpop.permute.xlu0 %2641
        %2643 = vrot.lane.b32.xlu0 %v2027, 2
        %v2644 = vpop.permute.xlu0 %2643
        %2645 = vrot.lane.b32.xlu0 %v2097, 2
        %v2646 = vpop.permute.xlu0 %2645
        %2647 = vrot.lane.b32.xlu0 %v2167, 2
        %v2648 = vpop.permute.xlu0 %2647
        %2649 = vrot.lane.b32.xlu0 %v2237, 2
        %v2650 = vpop.permute.xlu0 %2649
        %2651 = vrot.lane.b32.xlu0 %v2307, 2
        %v2652 = vpop.permute.xlu0 %2651
        %2653 = vrot.lane.b32.xlu0 %v2377, 2
        %v2654 = vpop.permute.xlu0 %2653
        %2655 = vrot.lane.b32.xlu0 %v2447, 2
        %v2656 = vpop.permute.xlu0 %2655
        %v2669 = vsel %vm2536, %v2598, %v2634
        %v2670 = vsel %vm2536, %v2600, %v2636
        %v2671 = vsel %vm2536, %v2602, %v2638
        %v2672 = vsel %vm2536, %v2604, %v2640
        %v2673 = vsel %vm2536, %v2606, %v2642
        %v2674 = vsel %vm2536, %v2608, %v2644
        %v2675 = vsel %vm2536, %v2610, %v2646
        %v2676 = vsel %vm2536, %v2612, %v2648
        %v2677 = vsel %vm2536, %v2614, %v2650
        %v2678 = vsel %vm2536, %v2616, %v2652
        %v2679 = vsel %vm2536, %v2618, %v2654
        %v2680 = vsel %vm2536, %v2620, %v2656
        %v2681 = vmul.f32 %v1677, %v2450
        %v2682 = vmul.f32 %v1747, %v2450
        %v2683 = vmul.f32 %v1817, %v2450
        %v2684 = vmul.f32 %v1887, %v2450
        %v2685 = vmul.f32 %v1957, %v2450
        %v2686 = vmul.f32 %v2027, %v2450
        %v2687 = vmul.f32 %v2097, %v2450
        %v2688 = vmul.f32 %v2167, %v2450
        %v2689 = vmul.f32 %v2237, %v2450
        %v2690 = vmul.f32 %v2307, %v2450
        %v2691 = vmul.f32 %v2377, %v2450
        %v2692 = vmul.f32 %v2447, %v2450
        %v2693 = vmul.f32 %v2669, %v2451
        %v2694 = vmul.f32 %v2670, %v2451
        %v2695 = vmul.f32 %v2671, %v2451
        %v2696 = vmul.f32 %v2672, %v2451
        %v2697 = vmul.f32 %v2673, %v2451
        %v2698 = vmul.f32 %v2674, %v2451
        %v2699 = vmul.f32 %v2675, %v2451
        %v2700 = vmul.f32 %v2676, %v2451
        %v2701 = vmul.f32 %v2677, %v2451
        %v2702 = vmul.f32 %v2678, %v2451
        %v2703 = vmul.f32 %v2679, %v2451
        %v2704 = vmul.f32 %v2680, %v2451
        %v2705 = vadd.f32 %v2681, %v2693
        %v2706 = vadd.f32 %v2682, %v2694
        %v2707 = vadd.f32 %v2683, %v2695
        %v2708 = vadd.f32 %v2684, %v2696
        %v2709 = vadd.f32 %v2685, %v2697
        %v2710 = vadd.f32 %v2686, %v2698
        %v2711 = vadd.f32 %v2687, %v2699
        %v2712 = vadd.f32 %v2688, %v2700
        %v2713 = vadd.f32 %v2689, %v2701
        %v2714 = vadd.f32 %v2690, %v2702
        %v2715 = vadd.f32 %v2691, %v2703
        %v2716 = vadd.f32 %v2692, %v2704
        %2717 = vrot.lane.b32.xlu0 %v1677, 122
        %v2718 = vpop.permute.xlu0 %2717
        %2719 = vrot.lane.b32.xlu0 %v1747, 122
        %v2720 = vpop.permute.xlu0 %2719
        %2721 = vrot.lane.b32.xlu0 %v1817, 122
        %v2722 = vpop.permute.xlu0 %2721
        %2723 = vrot.lane.b32.xlu0 %v1887, 122
        %v2724 = vpop.permute.xlu0 %2723
        %2725 = vrot.lane.b32.xlu0 %v1957, 122
        %v2726 = vpop.permute.xlu0 %2725
        %2727 = vrot.lane.b32.xlu0 %v2027, 122
        %v2728 = vpop.permute.xlu0 %2727
        %2729 = vrot.lane.b32.xlu0 %v2097, 122
        %v2730 = vpop.permute.xlu0 %2729
        %2731 = vrot.lane.b32.xlu0 %v2167, 122
        %v2732 = vpop.permute.xlu0 %2731
        %2733 = vrot.lane.b32.xlu0 %v2237, 122
        %v2734 = vpop.permute.xlu0 %2733
        %2735 = vrot.lane.b32.xlu0 %v2307, 122
        %v2736 = vpop.permute.xlu0 %2735
        %2737 = vrot.lane.b32.xlu0 %v2377, 122
        %v2738 = vpop.permute.xlu0 %2737
        %2739 = vrot.lane.b32.xlu0 %v2447, 122
        %v2740 = vpop.permute.xlu0 %2739
        %v2753 = vsel %vm2536, %v2718, %v2598
        %v2754 = vsel %vm2536, %v2720, %v2600
        %v2755 = vsel %vm2536, %v2722, %v2602
        %v2756 = vsel %vm2536, %v2724, %v2604
        %v2757 = vsel %vm2536, %v2726, %v2606
        %v2758 = vsel %vm2536, %v2728, %v2608
        %v2759 = vsel %vm2536, %v2730, %v2610
        %v2760 = vsel %vm2536, %v2732, %v2612
        %v2761 = vsel %vm2536, %v2734, %v2614
        %v2762 = vsel %vm2536, %v2736, %v2616
        %v2763 = vsel %vm2536, %v2738, %v2618
        %v2764 = vsel %vm2536, %v2740, %v2620
        %2766 = vrot.lane.b32.xlu0 %v2450, 4
        %v2767 = vpop.permute.xlu0 %2766
        %v2769 = vmul.f32 %v1677, %v2767
        %v2770 = vmul.f32 %v1747, %v2767
        %v2771 = vmul.f32 %v1817, %v2767
        %v2772 = vmul.f32 %v1887, %v2767
        %v2773 = vmul.f32 %v1957, %v2767
        %v2774 = vmul.f32 %v2027, %v2767
        %v2775 = vmul.f32 %v2097, %v2767
        %v2776 = vmul.f32 %v2167, %v2767
        %v2777 = vmul.f32 %v2237, %v2767
        %v2778 = vmul.f32 %v2307, %v2767
        %v2779 = vmul.f32 %v2377, %v2767
        %v2780 = vmul.f32 %v2447, %v2767
        %v2781 = vmul.f32 %v2753, %v2451
        %v2782 = vmul.f32 %v2754, %v2451
        %v2783 = vmul.f32 %v2755, %v2451
        %v2784 = vmul.f32 %v2756, %v2451
        %v2785 = vmul.f32 %v2757, %v2451
        %v2786 = vmul.f32 %v2758, %v2451
        %v2787 = vmul.f32 %v2759, %v2451
        %v2788 = vmul.f32 %v2760, %v2451
        %v2789 = vmul.f32 %v2761, %v2451
        %v2790 = vmul.f32 %v2762, %v2451
        %v2791 = vmul.f32 %v2763, %v2451
        %v2792 = vmul.f32 %v2764, %v2451
        %2805 = vrot.lane.b32.xlu0 %v2781, 4
        %v2806 = vpop.permute.xlu0 %2805
        %2807 = vrot.lane.b32.xlu0 %v2782, 4
        %v2808 = vpop.permute.xlu0 %2807
        %2809 = vrot.lane.b32.xlu0 %v2783, 4
        %v2810 = vpop.permute.xlu0 %2809
        %2811 = vrot.lane.b32.xlu0 %v2784, 4
        %v2812 = vpop.permute.xlu0 %2811
        %2813 = vrot.lane.b32.xlu0 %v2785, 4
        %v2814 = vpop.permute.xlu0 %2813
        %2815 = vrot.lane.b32.xlu0 %v2786, 4
        %v2816 = vpop.permute.xlu0 %2815
        %2817 = vrot.lane.b32.xlu0 %v2787, 4
        %v2818 = vpop.permute.xlu0 %2817
        %2819 = vrot.lane.b32.xlu0 %v2788, 4
        %v2820 = vpop.permute.xlu0 %2819
        %2821 = vrot.lane.b32.xlu0 %v2789, 4
        %v2822 = vpop.permute.xlu0 %2821
        %2823 = vrot.lane.b32.xlu0 %v2790, 4
        %v2824 = vpop.permute.xlu0 %2823
        %2825 = vrot.lane.b32.xlu0 %v2791, 4
        %v2826 = vpop.permute.xlu0 %2825
        %2827 = vrot.lane.b32.xlu0 %v2792, 4
        %v2828 = vpop.permute.xlu0 %2827
        %v2841 = vadd.f32 %v2769, %v2806
        %v2842 = vadd.f32 %v2770, %v2808
        %v2843 = vadd.f32 %v2771, %v2810
        %v2844 = vadd.f32 %v2772, %v2812
        %v2845 = vadd.f32 %v2773, %v2814
        %v2846 = vadd.f32 %v2774, %v2816
        %v2847 = vadd.f32 %v2775, %v2818
        %v2848 = vadd.f32 %v2776, %v2820
        %v2849 = vadd.f32 %v2777, %v2822
        %v2850 = vadd.f32 %v2778, %v2824
        %v2851 = vadd.f32 %v2779, %v2826
        %v2852 = vadd.f32 %v2780, %v2828
        %2853 = vrot.lane.b32.xlu0 %v702, 122
        %v2854 = vpop.permute.xlu0 %2853
        %2855 = vrot.lane.b32.xlu0 %v772, 122
        %v2856 = vpop.permute.xlu0 %2855
        %2857 = vrot.lane.b32.xlu0 %v842, 122
        %v2858 = vpop.permute.xlu0 %2857
        %2859 = vrot.lane.b32.xlu0 %v912, 122
        %v2860 = vpop.permute.xlu0 %2859
        %2861 = vrot.lane.b32.xlu0 %v982, 122
        %v2862 = vpop.permute.xlu0 %2861
        %2863 = vrot.lane.b32.xlu0 %v1052, 122
        %v2864 = vpop.permute.xlu0 %2863
        %2865 = vrot.lane.b32.xlu0 %v1122, 122
        %v2866 = vpop.permute.xlu0 %2865
        %2867 = vrot.lane.b32.xlu0 %v1192, 122
        %v2868 = vpop.permute.xlu0 %2867
        %2869 = vrot.lane.b32.xlu0 %v1262, 122
        %v2870 = vpop.permute.xlu0 %2869
        %2871 = vrot.lane.b32.xlu0 %v1332, 122
        %v2872 = vpop.permute.xlu0 %2871
        %2873 = vrot.lane.b32.xlu0 %v1402, 122
        %v2874 = vpop.permute.xlu0 %2873
        %2875 = vrot.lane.b32.xlu0 %v1472, 122
        %v2876 = vpop.permute.xlu0 %2875
        %v2889 = vsel %vm2536, %v2854, %v2465
        %v2890 = vsel %vm2536, %v2856, %v2467
        %v2891 = vsel %vm2536, %v2858, %v2469
        %v2892 = vsel %vm2536, %v2860, %v2471
        %v2893 = vsel %vm2536, %v2862, %v2473
        %v2894 = vsel %vm2536, %v2864, %v2475
        %v2895 = vsel %vm2536, %v2866, %v2477
        %v2896 = vsel %vm2536, %v2868, %v2479
        %v2897 = vsel %vm2536, %v2870, %v2481
        %v2898 = vsel %vm2536, %v2872, %v2483
        %v2899 = vsel %vm2536, %v2874, %v2485
        %v2900 = vsel %vm2536, %v2876, %v2487
        %v2901 = vmul.f32 %v702, %v2767
        %v2902 = vmul.f32 %v772, %v2767
        %v2903 = vmul.f32 %v842, %v2767
        %v2904 = vmul.f32 %v912, %v2767
        %v2905 = vmul.f32 %v982, %v2767
        %v2906 = vmul.f32 %v1052, %v2767
        %v2907 = vmul.f32 %v1122, %v2767
        %v2908 = vmul.f32 %v1192, %v2767
        %v2909 = vmul.f32 %v1262, %v2767
        %v2910 = vmul.f32 %v1332, %v2767
        %v2911 = vmul.f32 %v1402, %v2767
        %v2912 = vmul.f32 %v1472, %v2767
        %v2913 = vmul.f32 %v2889, %v2451
        %v2914 = vmul.f32 %v2890, %v2451
        %v2915 = vmul.f32 %v2891, %v2451
        %v2916 = vmul.f32 %v2892, %v2451
        %v2917 = vmul.f32 %v2893, %v2451
        %v2918 = vmul.f32 %v2894, %v2451
        %v2919 = vmul.f32 %v2895, %v2451
        %v2920 = vmul.f32 %v2896, %v2451
        %v2921 = vmul.f32 %v2897, %v2451
        %v2922 = vmul.f32 %v2898, %v2451
        %v2923 = vmul.f32 %v2899, %v2451
        %v2924 = vmul.f32 %v2900, %v2451
        %2937 = vrot.lane.b32.xlu0 %v2913, 4
        %v2938 = vpop.permute.xlu0 %2937
        %2939 = vrot.lane.b32.xlu0 %v2914, 4
        %v2940 = vpop.permute.xlu0 %2939
        %2941 = vrot.lane.b32.xlu0 %v2915, 4
        %v2942 = vpop.permute.xlu0 %2941
        %2943 = vrot.lane.b32.xlu0 %v2916, 4
        %v2944 = vpop.permute.xlu0 %2943
        %2945 = vrot.lane.b32.xlu0 %v2917, 4
        %v2946 = vpop.permute.xlu0 %2945
        %2947 = vrot.lane.b32.xlu0 %v2918, 4
        %v2948 = vpop.permute.xlu0 %2947
        %2949 = vrot.lane.b32.xlu0 %v2919, 4
        %v2950 = vpop.permute.xlu0 %2949
        %2951 = vrot.lane.b32.xlu0 %v2920, 4
        %v2952 = vpop.permute.xlu0 %2951
        %2953 = vrot.lane.b32.xlu0 %v2921, 4
        %v2954 = vpop.permute.xlu0 %2953
        %2955 = vrot.lane.b32.xlu0 %v2922, 4
        %v2956 = vpop.permute.xlu0 %2955
        %2957 = vrot.lane.b32.xlu0 %v2923, 4
        %v2958 = vpop.permute.xlu0 %2957
        %2959 = vrot.lane.b32.xlu0 %v2924, 4
        %v2960 = vpop.permute.xlu0 %2959
        %v2973 = vadd.f32 %v2901, %v2938
        %v2974 = vadd.f32 %v2902, %v2940
        %v2975 = vadd.f32 %v2903, %v2942
        %v2976 = vadd.f32 %v2904, %v2944
        %v2977 = vadd.f32 %v2905, %v2946
        %v2978 = vadd.f32 %v2906, %v2948
        %v2979 = vadd.f32 %v2907, %v2950
        %v2980 = vadd.f32 %v2908, %v2952
        %v2981 = vadd.f32 %v2909, %v2954
        %v2982 = vadd.f32 %v2910, %v2956
        %v2983 = vadd.f32 %v2911, %v2958
        %v2984 = vadd.f32 %v2912, %v2960
        %v2985 = vld [vmem:[%s486] sm:$0x1]
        %v2987 = vlaneseq
        %v2988 = vshrl.u32 %v2987, 7
        %v2989 = vsub.s32 0, %v2988
        %v2990 = vrot.slane %v2985, %v2989
        %2993 = vrot.lane.b32.xlu0 %v2841, 124
        %v2994 = vpop.permute.xlu0 %2993
        %2996 = vrot.lane.b32.xlu0 %v2973, 124
        %v2997 = vpop.permute.xlu0 %2996
        %vm2998 = vcmask 31744
        %v2999 = vsel %vm2998, %v2994, 0
        %v3001 = vsel %vm2998, %v2997, 0
        %3003 = vmatprep.subr.mxu0 0.0
        %3004 = vmatpush1.xpose.msra.mxu0 0.0
        %3005 = vmatprep.subr.mxu0 0.0
        %3006 = vmatpush1.xpose.msra.mxu0 0.0
        %3007 = vmatprep.subr.mxu0 0.0
        %3008 = vmatpush1.xpose.msra.mxu0 0.0
        %3009 = vmatprep.subr.mxu0 0.0
        %3010 = vmatpush1.xpose.msra.mxu0 0.0
        %3011 = vmatprep.subr.mxu0 0.0
        %3012 = vmatpush1.xpose.msra.mxu0 0.0
        %3013 = vmatprep.subr.mxu0 0.0
        %3014 = vmatpush1.xpose.msra.mxu0 0.0
        %3015 = vmatprep.subr.mxu0 0.0
        %3016 = vmatpush1.xpose.msra.mxu0 0.0
        %3017 = vmatprep.subr.mxu0 0.0
        %3018 = vmatpush1.xpose.msra.mxu0 0.0
        %3019 = vmatprep.subr.mxu0 0.0
        %3020 = vmatpush1.xpose.msra.mxu0 0.0
        %3021 = vmatprep.subr.mxu0 0.0
        %3022 = vmatpush1.xpose.msra.mxu0 0.0
        %3023 = vmatprep.subr.mxu0 0.0
        %3024 = vmatpush1.xpose.msra.mxu0 0.0
        %3025 = vmatprep.subr.mxu0 0.0
        %3026 = vmatpush1.xpose.msra.mxu0 0.0
        %3027 = vmatprep.subr.mxu0 0.0
        %3028 = vmatpush1.xpose.msra.mxu0 0.0
        %3029 = vmatprep.subr.mxu0 0.0
        %3030 = vmatpush1.xpose.msra.mxu0 0.0
        %3031 = vmatprep.subr.mxu0 0.0
        %3032 = vmatpush1.xpose.msra.mxu0 0.0
        %3033 = vmatprep.subr.mxu0 0.0
        %3034 = vmatpush1.xpose.msra.mxu0 %v3001
        %3035 = vmatprep.subr.mxu0 0.0
        %3036 = vmatpush2.xpose.msra.mxu0 0.0
        %3037 = vmatprep.subr.mxu0 0.0
        %3038 = vmatpush2.xpose.msra.mxu0 0.0
        %3039 = vmatprep.subr.mxu0 0.0
        %3040 = vmatpush2.xpose.msra.mxu0 0.0
        %3041 = vmatprep.subr.mxu0 0.0
        %3042 = vmatpush2.xpose.msra.mxu0 0.0
        %3043 = vmatprep.subr.mxu0 0.0
        %3044 = vmatpush2.xpose.msra.mxu0 0.0
        %3045 = vmatprep.subr.mxu0 0.0
        %3046 = vmatpush2.xpose.msra.mxu0 0.0
        %3047 = vmatprep.subr.mxu0 0.0
        %3048 = vmatpush2.xpose.msra.mxu0 0.0
        %3049 = vmatprep.subr.mxu0 0.0
        %3050 = vmatpush2.xpose.msra.mxu0 0.0
        %3051 = vmatprep.subr.mxu0 0.0
        %3052 = vmatpush2.xpose.msra.mxu0 0.0
        %3053 = vmatprep.subr.mxu0 0.0
        %3054 = vmatpush2.xpose.msra.mxu0 0.0
        %3055 = vmatprep.subr.mxu0 0.0
        %3056 = vmatpush2.xpose.msra.mxu0 0.0
        %3057 = vmatprep.subr.mxu0 0.0
        %3058 = vmatpush2.xpose.msra.mxu0 0.0
        %3059 = vmatprep.subr.mxu0 0.0
        %3060 = vmatpush2.xpose.msra.mxu0 0.0
        %3061 = vmatprep.subr.mxu0 0.0
        %3062 = vmatpush2.xpose.msra.mxu0 0.0
        %3063 = vmatprep.subr.mxu0 0.0
        %3064 = vmatpush2.xpose.msra.mxu0 0.0
        %3065 = vmatprep.subr.mxu0 0.0
        %3066 = vmatpush2.xpose.msra.mxu0 0.0
        %3067 = vmatprep.mubr.f32.mxu0 0.0
        %3068 = vmatmul.mubr.f32.gmra.mxu0 %v2999
        %v3069 = vpop.f32.mrf.mxu0
        %v3070 = vadd.f32 %v2990, %v3069
        %v3071 = vpop.f32.mrf.mxu0
        %3072 = vdwg.mxu0
        %3074 = vrot.lane.b32.xlu0 %v2842, 124
        %v3075 = vpop.permute.xlu0 %3074
        %3077 = vrot.lane.b32.xlu0 %v2974, 124
        %v3078 = vpop.permute.xlu0 %3077
        %v3079 = vsel %vm2998, %v3075, 0
        %v3081 = vsel %vm2998, %v3078, 0
        %3083 = vmatprep.subr.mxu0 0.0
        %3084 = vmatpush1.xpose.msra.mxu0 0.0
        %3085 = vmatprep.subr.mxu0 0.0
        %3086 = vmatpush1.xpose.msra.mxu0 0.0
        %3087 = vmatprep.subr.mxu0 0.0
        %3088 = vmatpush1.xpose.msra.mxu0 0.0
        %3089 = vmatprep.subr.mxu0 0.0
        %3090 = vmatpush1.xpose.msra.mxu0 0.0
        %3091 = vmatprep.subr.mxu0 0.0
        %3092 = vmatpush1.xpose.msra.mxu0 0.0
        %3093 = vmatprep.subr.mxu0 0.0
        %3094 = vmatpush1.xpose.msra.mxu0 0.0
        %3095 = vmatprep.subr.mxu0 0.0
        %3096 = vmatpush1.xpose.msra.mxu0 0.0
        %3097 = vmatprep.subr.mxu0 0.0
        %3098 = vmatpush1.xpose.msra.mxu0 0.0
        %3099 = vmatprep.subr.mxu0 0.0
        %3100 = vmatpush1.xpose.msra.mxu0 0.0
        %3101 = vmatprep.subr.mxu0 0.0
        %3102 = vmatpush1.xpose.msra.mxu0 0.0
        %3103 = vmatprep.subr.mxu0 0.0
        %3104 = vmatpush1.xpose.msra.mxu0 0.0
        %3105 = vmatprep.subr.mxu0 0.0
        %3106 = vmatpush1.xpose.msra.mxu0 0.0
        %3107 = vmatprep.subr.mxu0 0.0
        %3108 = vmatpush1.xpose.msra.mxu0 0.0
        %3109 = vmatprep.subr.mxu0 0.0
        %3110 = vmatpush1.xpose.msra.mxu0 0.0
        %3111 = vmatprep.subr.mxu0 0.0
        %3112 = vmatpush1.xpose.msra.mxu0 0.0
        %3113 = vmatprep.subr.mxu0 0.0
        %3114 = vmatpush1.xpose.msra.mxu0 %v3081
        %3115 = vmatprep.subr.mxu0 0.0
        %3116 = vmatpush2.xpose.msra.mxu0 0.0
        %3117 = vmatprep.subr.mxu0 0.0
        %3118 = vmatpush2.xpose.msra.mxu0 0.0
        %3119 = vmatprep.subr.mxu0 0.0
        %3120 = vmatpush2.xpose.msra.mxu0 0.0
        %3121 = vmatprep.subr.mxu0 0.0
        %3122 = vmatpush2.xpose.msra.mxu0 0.0
        %3123 = vmatprep.subr.mxu0 0.0
        %3124 = vmatpush2.xpose.msra.mxu0 0.0
        %3125 = vmatprep.subr.mxu0 0.0
        %3126 = vmatpush2.xpose.msra.mxu0 0.0
        %3127 = vmatprep.subr.mxu0 0.0
        %3128 = vmatpush2.xpose.msra.mxu0 0.0
        %3129 = vmatprep.subr.mxu0 0.0
        %3130 = vmatpush2.xpose.msra.mxu0 0.0
        %3131 = vmatprep.subr.mxu0 0.0
        %3132 = vmatpush2.xpose.msra.mxu0 0.0
        %3133 = vmatprep.subr.mxu0 0.0
        %3134 = vmatpush2.xpose.msra.mxu0 0.0
        %3135 = vmatprep.subr.mxu0 0.0
        %3136 = vmatpush2.xpose.msra.mxu0 0.0
        %3137 = vmatprep.subr.mxu0 0.0
        %3138 = vmatpush2.xpose.msra.mxu0 0.0
        %3139 = vmatprep.subr.mxu0 0.0
        %3140 = vmatpush2.xpose.msra.mxu0 0.0
        %3141 = vmatprep.subr.mxu0 0.0
        %3142 = vmatpush2.xpose.msra.mxu0 0.0
        %3143 = vmatprep.subr.mxu0 0.0
        %3144 = vmatpush2.xpose.msra.mxu0 0.0
        %3145 = vmatprep.subr.mxu0 0.0
        %3146 = vmatpush2.xpose.msra.mxu0 0.0
        %3147 = vmatprep.mubr.f32.mxu0 0.0
        %3148 = vmatmul.mubr.f32.gmra.mxu0 %v3079
        %v3149 = vpop.f32.mrf.mxu0
        %v3150 = vadd.f32 %v2990, %v3149
        %v3151 = vpop.f32.mrf.mxu0
        %3152 = vdwg.mxu0
        %3154 = vrot.lane.b32.xlu0 %v2843, 124
        %v3155 = vpop.permute.xlu0 %3154
        %3157 = vrot.lane.b32.xlu0 %v2975, 124
        %v3158 = vpop.permute.xlu0 %3157
        %v3159 = vsel %vm2998, %v3155, 0
        %v3161 = vsel %vm2998, %v3158, 0
        %3163 = vmatprep.subr.mxu0 0.0
        %3164 = vmatpush1.xpose.msra.mxu0 0.0
        %3165 = vmatprep.subr.mxu0 0.0
        %3166 = vmatpush1.xpose.msra.mxu0 0.0
        %3167 = vmatprep.subr.mxu0 0.0
        %3168 = vmatpush1.xpose.msra.mxu0 0.0
        %3169 = vmatprep.subr.mxu0 0.0
        %3170 = vmatpush1.xpose.msra.mxu0 0.0
        %3171 = vmatprep.subr.mxu0 0.0
        %3172 = vmatpush1.xpose.msra.mxu0 0.0
        %3173 = vmatprep.subr.mxu0 0.0
        %3174 = vmatpush1.xpose.msra.mxu0 0.0
        %3175 = vmatprep.subr.mxu0 0.0
        %3176 = vmatpush1.xpose.msra.mxu0 0.0
        %3177 = vmatprep.subr.mxu0 0.0
        %3178 = vmatpush1.xpose.msra.mxu0 0.0
        %3179 = vmatprep.subr.mxu0 0.0
        %3180 = vmatpush1.xpose.msra.mxu0 0.0
        %3181 = vmatprep.subr.mxu0 0.0
        %3182 = vmatpush1.xpose.msra.mxu0 0.0
        %3183 = vmatprep.subr.mxu0 0.0
        %3184 = vmatpush1.xpose.msra.mxu0 0.0
        %3185 = vmatprep.subr.mxu0 0.0
        %3186 = vmatpush1.xpose.msra.mxu0 0.0
        %3187 = vmatprep.subr.mxu0 0.0
        %3188 = vmatpush1.xpose.msra.mxu0 0.0
        %3189 = vmatprep.subr.mxu0 0.0
        %3190 = vmatpush1.xpose.msra.mxu0 0.0
        %3191 = vmatprep.subr.mxu0 0.0
        %3192 = vmatpush1.xpose.msra.mxu0 0.0
        %3193 = vmatprep.subr.mxu0 0.0
        %3194 = vmatpush1.xpose.msra.mxu0 %v3161
        %3195 = vmatprep.subr.mxu0 0.0
        %3196 = vmatpush2.xpose.msra.mxu0 0.0
        %3197 = vmatprep.subr.mxu0 0.0
        %3198 = vmatpush2.xpose.msra.mxu0 0.0
        %3199 = vmatprep.subr.mxu0 0.0
        %3200 = vmatpush2.xpose.msra.mxu0 0.0
        %3201 = vmatprep.subr.mxu0 0.0
        %3202 = vmatpush2.xpose.msra.mxu0 0.0
        %3203 = vmatprep.subr.mxu0 0.0
        %3204 = vmatpush2.xpose.msra.mxu0 0.0
        %3205 = vmatprep.subr.mxu0 0.0
        %3206 = vmatpush2.xpose.msra.mxu0 0.0
        %3207 = vmatprep.subr.mxu0 0.0
        %3208 = vmatpush2.xpose.msra.mxu0 0.0
        %3209 = vmatprep.subr.mxu0 0.0
        %3210 = vmatpush2.xpose.msra.mxu0 0.0
        %3211 = vmatprep.subr.mxu0 0.0
        %3212 = vmatpush2.xpose.msra.mxu0 0.0
        %3213 = vmatprep.subr.mxu0 0.0
        %3214 = vmatpush2.xpose.msra.mxu0 0.0
        %3215 = vmatprep.subr.mxu0 0.0
        %3216 = vmatpush2.xpose.msra.mxu0 0.0
        %3217 = vmatprep.subr.mxu0 0.0
        %3218 = vmatpush2.xpose.msra.mxu0 0.0
        %3219 = vmatprep.subr.mxu0 0.0
        %3220 = vmatpush2.xpose.msra.mxu0 0.0
        %3221 = vmatprep.subr.mxu0 0.0
        %3222 = vmatpush2.xpose.msra.mxu0 0.0
        %3223 = vmatprep.subr.mxu0 0.0
        %3224 = vmatpush2.xpose.msra.mxu0 0.0
        %3225 = vmatprep.subr.mxu0 0.0
        %3226 = vmatpush2.xpose.msra.mxu0 0.0
        %3227 = vmatprep.mubr.f32.mxu0 0.0
        %3228 = vmatmul.mubr.f32.gmra.mxu0 %v3159
        %v3229 = vpop.f32.mrf.mxu0
        %v3230 = vadd.f32 %v2990, %v3229
        %v3231 = vpop.f32.mrf.mxu0
        %3232 = vdwg.mxu0
        %3234 = vrot.lane.b32.xlu0 %v2844, 124
        %v3235 = vpop.permute.xlu0 %3234
        %3237 = vrot.lane.b32.xlu0 %v2976, 124
        %v3238 = vpop.permute.xlu0 %3237
        %v3239 = vsel %vm2998, %v3235, 0
        %v3241 = vsel %vm2998, %v3238, 0
        %3243 = vmatprep.subr.mxu0 0.0
        %3244 = vmatpush1.xpose.msra.mxu0 0.0
        %3245 = vmatprep.subr.mxu0 0.0
        %3246 = vmatpush1.xpose.msra.mxu0 0.0
        %3247 = vmatprep.subr.mxu0 0.0
        %3248 = vmatpush1.xpose.msra.mxu0 0.0
        %3249 = vmatprep.subr.mxu0 0.0
        %3250 = vmatpush1.xpose.msra.mxu0 0.0
        %3251 = vmatprep.subr.mxu0 0.0
        %3252 = vmatpush1.xpose.msra.mxu0 0.0
        %3253 = vmatprep.subr.mxu0 0.0
        %3254 = vmatpush1.xpose.msra.mxu0 0.0
        %3255 = vmatprep.subr.mxu0 0.0
        %3256 = vmatpush1.xpose.msra.mxu0 0.0
        %3257 = vmatprep.subr.mxu0 0.0
        %3258 = vmatpush1.xpose.msra.mxu0 0.0
        %3259 = vmatprep.subr.mxu0 0.0
        %3260 = vmatpush1.xpose.msra.mxu0 0.0
        %3261 = vmatprep.subr.mxu0 0.0
        %3262 = vmatpush1.xpose.msra.mxu0 0.0
        %3263 = vmatprep.subr.mxu0 0.0
        %3264 = vmatpush1.xpose.msra.mxu0 0.0
        %3265 = vmatprep.subr.mxu0 0.0
        %3266 = vmatpush1.xpose.msra.mxu0 0.0
        %3267 = vmatprep.subr.mxu0 0.0
        %3268 = vmatpush1.xpose.msra.mxu0 0.0
        %3269 = vmatprep.subr.mxu0 0.0
        %3270 = vmatpush1.xpose.msra.mxu0 0.0
        %3271 = vmatprep.subr.mxu0 0.0
        %3272 = vmatpush1.xpose.msra.mxu0 0.0
        %3273 = vmatprep.subr.mxu0 0.0
        %3274 = vmatpush1.xpose.msra.mxu0 %v3241
        %3275 = vmatprep.subr.mxu0 0.0
        %3276 = vmatpush2.xpose.msra.mxu0 0.0
        %3277 = vmatprep.subr.mxu0 0.0
        %3278 = vmatpush2.xpose.msra.mxu0 0.0
        %3279 = vmatprep.subr.mxu0 0.0
        %3280 = vmatpush2.xpose.msra.mxu0 0.0
        %3281 = vmatprep.subr.mxu0 0.0
        %3282 = vmatpush2.xpose.msra.mxu0 0.0
        %3283 = vmatprep.subr.mxu0 0.0
        %3284 = vmatpush2.xpose.msra.mxu0 0.0
        %3285 = vmatprep.subr.mxu0 0.0
        %3286 = vmatpush2.xpose.msra.mxu0 0.0
        %3287 = vmatprep.subr.mxu0 0.0
        %3288 = vmatpush2.xpose.msra.mxu0 0.0
        %3289 = vmatprep.subr.mxu0 0.0
        %3290 = vmatpush2.xpose.msra.mxu0 0.0
        %3291 = vmatprep.subr.mxu0 0.0
        %3292 = vmatpush2.xpose.msra.mxu0 0.0
        %3293 = vmatprep.subr.mxu0 0.0
        %3294 = vmatpush2.xpose.msra.mxu0 0.0
        %3295 = vmatprep.subr.mxu0 0.0
        %3296 = vmatpush2.xpose.msra.mxu0 0.0
        %3297 = vmatprep.subr.mxu0 0.0
        %3298 = vmatpush2.xpose.msra.mxu0 0.0
        %3299 = vmatprep.subr.mxu0 0.0
        %3300 = vmatpush2.xpose.msra.mxu0 0.0
        %3301 = vmatprep.subr.mxu0 0.0
        %3302 = vmatpush2.xpose.msra.mxu0 0.0
        %3303 = vmatprep.subr.mxu0 0.0
        %3304 = vmatpush2.xpose.msra.mxu0 0.0
        %3305 = vmatprep.subr.mxu0 0.0
        %3306 = vmatpush2.xpose.msra.mxu0 0.0
        %3307 = vmatprep.mubr.f32.mxu0 0.0
        %3308 = vmatmul.mubr.f32.gmra.mxu0 %v3239
        %v3309 = vpop.f32.mrf.mxu0
        %v3310 = vadd.f32 %v2990, %v3309
        %v3311 = vpop.f32.mrf.mxu0
        %3312 = vdwg.mxu0
        %3314 = vrot.lane.b32.xlu0 %v2845, 124
        %v3315 = vpop.permute.xlu0 %3314
        %3317 = vrot.lane.b32.xlu0 %v2977, 124
        %v3318 = vpop.permute.xlu0 %3317
        %v3319 = vsel %vm2998, %v3315, 0
        %v3321 = vsel %vm2998, %v3318, 0
        %3323 = vmatprep.subr.mxu0 0.0
        %3324 = vmatpush1.xpose.msra.mxu0 0.0
        %3325 = vmatprep.subr.mxu0 0.0
        %3326 = vmatpush1.xpose.msra.mxu0 0.0
        %3327 = vmatprep.subr.mxu0 0.0
        %3328 = vmatpush1.xpose.msra.mxu0 0.0
        %3329 = vmatprep.subr.mxu0 0.0
        %3330 = vmatpush1.xpose.msra.mxu0 0.0
        %3331 = vmatprep.subr.mxu0 0.0
        %3332 = vmatpush1.xpose.msra.mxu0 0.0
        %3333 = vmatprep.subr.mxu0 0.0
        %3334 = vmatpush1.xpose.msra.mxu0 0.0
        %3335 = vmatprep.subr.mxu0 0.0
        %3336 = vmatpush1.xpose.msra.mxu0 0.0
        %3337 = vmatprep.subr.mxu0 0.0
        %3338 = vmatpush1.xpose.msra.mxu0 0.0
        %3339 = vmatprep.subr.mxu0 0.0
        %3340 = vmatpush1.xpose.msra.mxu0 0.0
        %3341 = vmatprep.subr.mxu0 0.0
        %3342 = vmatpush1.xpose.msra.mxu0 0.0
        %3343 = vmatprep.subr.mxu0 0.0
        %3344 = vmatpush1.xpose.msra.mxu0 0.0
        %3345 = vmatprep.subr.mxu0 0.0
        %3346 = vmatpush1.xpose.msra.mxu0 0.0
        %3347 = vmatprep.subr.mxu0 0.0
        %3348 = vmatpush1.xpose.msra.mxu0 0.0
        %3349 = vmatprep.subr.mxu0 0.0
        %3350 = vmatpush1.xpose.msra.mxu0 0.0
        %3351 = vmatprep.subr.mxu0 0.0
        %3352 = vmatpush1.xpose.msra.mxu0 0.0
        %3353 = vmatprep.subr.mxu0 0.0
        %3354 = vmatpush1.xpose.msra.mxu0 %v3321
        %3355 = vmatprep.subr.mxu0 0.0
        %3356 = vmatpush2.xpose.msra.mxu0 0.0
        %3357 = vmatprep.subr.mxu0 0.0
        %3358 = vmatpush2.xpose.msra.mxu0 0.0
        %3359 = vmatprep.subr.mxu0 0.0
        %3360 = vmatpush2.xpose.msra.mxu0 0.0
        %3361 = vmatprep.subr.mxu0 0.0
        %3362 = vmatpush2.xpose.msra.mxu0 0.0
        %3363 = vmatprep.subr.mxu0 0.0
        %3364 = vmatpush2.xpose.msra.mxu0 0.0
        %3365 = vmatprep.subr.mxu0 0.0
        %3366 = vmatpush2.xpose.msra.mxu0 0.0
        %3367 = vmatprep.subr.mxu0 0.0
        %3368 = vmatpush2.xpose.msra.mxu0 0.0
        %3369 = vmatprep.subr.mxu0 0.0
        %3370 = vmatpush2.xpose.msra.mxu0 0.0
        %3371 = vmatprep.subr.mxu0 0.0
        %3372 = vmatpush2.xpose.msra.mxu0 0.0
        %3373 = vmatprep.subr.mxu0 0.0
        %3374 = vmatpush2.xpose.msra.mxu0 0.0
        %3375 = vmatprep.subr.mxu0 0.0
        %3376 = vmatpush2.xpose.msra.mxu0 0.0
        %3377 = vmatprep.subr.mxu0 0.0
        %3378 = vmatpush2.xpose.msra.mxu0 0.0
        %3379 = vmatprep.subr.mxu0 0.0
        %3380 = vmatpush2.xpose.msra.mxu0 0.0
        %3381 = vmatprep.subr.mxu0 0.0
        %3382 = vmatpush2.xpose.msra.mxu0 0.0
        %3383 = vmatprep.subr.mxu0 0.0
        %3384 = vmatpush2.xpose.msra.mxu0 0.0
        %3385 = vmatprep.subr.mxu0 0.0
        %3386 = vmatpush2.xpose.msra.mxu0 0.0
        %3387 = vmatprep.mubr.f32.mxu0 0.0
        %3388 = vmatmul.mubr.f32.gmra.mxu0 %v3319
        %v3389 = vpop.f32.mrf.mxu0
        %v3390 = vadd.f32 %v2990, %v3389
        %v3391 = vpop.f32.mrf.mxu0
        %3392 = vdwg.mxu0
        %3394 = vrot.lane.b32.xlu0 %v2846, 124
        %v3395 = vpop.permute.xlu0 %3394
        %3397 = vrot.lane.b32.xlu0 %v2978, 124
        %v3398 = vpop.permute.xlu0 %3397
        %v3399 = vsel %vm2998, %v3395, 0
        %v3401 = vsel %vm2998, %v3398, 0
        %3403 = vmatprep.subr.mxu0 0.0
        %3404 = vmatpush1.xpose.msra.mxu0 0.0
        %3405 = vmatprep.subr.mxu0 0.0
        %3406 = vmatpush1.xpose.msra.mxu0 0.0
        %3407 = vmatprep.subr.mxu0 0.0
        %3408 = vmatpush1.xpose.msra.mxu0 0.0
        %3409 = vmatprep.subr.mxu0 0.0
        %3410 = vmatpush1.xpose.msra.mxu0 0.0
        %3411 = vmatprep.subr.mxu0 0.0
        %3412 = vmatpush1.xpose.msra.mxu0 0.0
        %3413 = vmatprep.subr.mxu0 0.0
        %3414 = vmatpush1.xpose.msra.mxu0 0.0
        %3415 = vmatprep.subr.mxu0 0.0
        %3416 = vmatpush1.xpose.msra.mxu0 0.0
        %3417 = vmatprep.subr.mxu0 0.0
        %3418 = vmatpush1.xpose.msra.mxu0 0.0
        %3419 = vmatprep.subr.mxu0 0.0
        %3420 = vmatpush1.xpose.msra.mxu0 0.0
        %3421 = vmatprep.subr.mxu0 0.0
        %3422 = vmatpush1.xpose.msra.mxu0 0.0
        %3423 = vmatprep.subr.mxu0 0.0
        %3424 = vmatpush1.xpose.msra.mxu0 0.0
        %3425 = vmatprep.subr.mxu0 0.0
        %3426 = vmatpush1.xpose.msra.mxu0 0.0
        %3427 = vmatprep.subr.mxu0 0.0
        %3428 = vmatpush1.xpose.msra.mxu0 0.0
        %3429 = vmatprep.subr.mxu0 0.0
        %3430 = vmatpush1.xpose.msra.mxu0 0.0
        %3431 = vmatprep.subr.mxu0 0.0
        %3432 = vmatpush1.xpose.msra.mxu0 0.0
        %3433 = vmatprep.subr.mxu0 0.0
        %3434 = vmatpush1.xpose.msra.mxu0 %v3401
        %3435 = vmatprep.subr.mxu0 0.0
        %3436 = vmatpush2.xpose.msra.mxu0 0.0
        %3437 = vmatprep.subr.mxu0 0.0
        %3438 = vmatpush2.xpose.msra.mxu0 0.0
        %3439 = vmatprep.subr.mxu0 0.0
        %3440 = vmatpush2.xpose.msra.mxu0 0.0
        %3441 = vmatprep.subr.mxu0 0.0
        %3442 = vmatpush2.xpose.msra.mxu0 0.0
        %3443 = vmatprep.subr.mxu0 0.0
        %3444 = vmatpush2.xpose.msra.mxu0 0.0
        %3445 = vmatprep.subr.mxu0 0.0
        %3446 = vmatpush2.xpose.msra.mxu0 0.0
        %3447 = vmatprep.subr.mxu0 0.0
        %3448 = vmatpush2.xpose.msra.mxu0 0.0
        %3449 = vmatprep.subr.mxu0 0.0
        %3450 = vmatpush2.xpose.msra.mxu0 0.0
        %3451 = vmatprep.subr.mxu0 0.0
        %3452 = vmatpush2.xpose.msra.mxu0 0.0
        %3453 = vmatprep.subr.mxu0 0.0
        %3454 = vmatpush2.xpose.msra.mxu0 0.0
        %3455 = vmatprep.subr.mxu0 0.0
        %3456 = vmatpush2.xpose.msra.mxu0 0.0
        %3457 = vmatprep.subr.mxu0 0.0
        %3458 = vmatpush2.xpose.msra.mxu0 0.0
        %3459 = vmatprep.subr.mxu0 0.0
        %3460 = vmatpush2.xpose.msra.mxu0 0.0
        %3461 = vmatprep.subr.mxu0 0.0
        %3462 = vmatpush2.xpose.msra.mxu0 0.0
        %3463 = vmatprep.subr.mxu0 0.0
        %3464 = vmatpush2.xpose.msra.mxu0 0.0
        %3465 = vmatprep.subr.mxu0 0.0
        %3466 = vmatpush2.xpose.msra.mxu0 0.0
        %3467 = vmatprep.mubr.f32.mxu0 0.0
        %3468 = vmatmul.mubr.f32.gmra.mxu0 %v3399
        %v3469 = vpop.f32.mrf.mxu0
        %v3470 = vadd.f32 %v2990, %v3469
        %v3471 = vpop.f32.mrf.mxu0
        %3472 = vdwg.mxu0
        %3474 = vrot.lane.b32.xlu0 %v2847, 124
        %v3475 = vpop.permute.xlu0 %3474
        %3477 = vrot.lane.b32.xlu0 %v2979, 124
        %v3478 = vpop.permute.xlu0 %3477
        %v3479 = vsel %vm2998, %v3475, 0
        %v3481 = vsel %vm2998, %v3478, 0
        %3483 = vmatprep.subr.mxu0 0.0
        %3484 = vmatpush1.xpose.msra.mxu0 0.0
        %3485 = vmatprep.subr.mxu0 0.0
        %3486 = vmatpush1.xpose.msra.mxu0 0.0
        %3487 = vmatprep.subr.mxu0 0.0
        %3488 = vmatpush1.xpose.msra.mxu0 0.0
        %3489 = vmatprep.subr.mxu0 0.0
        %3490 = vmatpush1.xpose.msra.mxu0 0.0
        %3491 = vmatprep.subr.mxu0 0.0
        %3492 = vmatpush1.xpose.msra.mxu0 0.0
        %3493 = vmatprep.subr.mxu0 0.0
        %3494 = vmatpush1.xpose.msra.mxu0 0.0
        %3495 = vmatprep.subr.mxu0 0.0
        %3496 = vmatpush1.xpose.msra.mxu0 0.0
        %3497 = vmatprep.subr.mxu0 0.0
        %3498 = vmatpush1.xpose.msra.mxu0 0.0
        %3499 = vmatprep.subr.mxu0 0.0
        %3500 = vmatpush1.xpose.msra.mxu0 0.0
        %3501 = vmatprep.subr.mxu0 0.0
        %3502 = vmatpush1.xpose.msra.mxu0 0.0
        %3503 = vmatprep.subr.mxu0 0.0
        %3504 = vmatpush1.xpose.msra.mxu0 0.0
        %3505 = vmatprep.subr.mxu0 0.0
        %3506 = vmatpush1.xpose.msra.mxu0 0.0
        %3507 = vmatprep.subr.mxu0 0.0
        %3508 = vmatpush1.xpose.msra.mxu0 0.0
        %3509 = vmatprep.subr.mxu0 0.0
        %3510 = vmatpush1.xpose.msra.mxu0 0.0
        %3511 = vmatprep.subr.mxu0 0.0
        %3512 = vmatpush1.xpose.msra.mxu0 0.0
        %3513 = vmatprep.subr.mxu0 0.0
        %3514 = vmatpush1.xpose.msra.mxu0 %v3481
        %3515 = vmatprep.subr.mxu0 0.0
        %3516 = vmatpush2.xpose.msra.mxu0 0.0
        %3517 = vmatprep.subr.mxu0 0.0
        %3518 = vmatpush2.xpose.msra.mxu0 0.0
        %3519 = vmatprep.subr.mxu0 0.0
        %3520 = vmatpush2.xpose.msra.mxu0 0.0
        %3521 = vmatprep.subr.mxu0 0.0
        %3522 = vmatpush2.xpose.msra.mxu0 0.0
        %3523 = vmatprep.subr.mxu0 0.0
        %3524 = vmatpush2.xpose.msra.mxu0 0.0
        %3525 = vmatprep.subr.mxu0 0.0
        %3526 = vmatpush2.xpose.msra.mxu0 0.0
        %3527 = vmatprep.subr.mxu0 0.0
        %3528 = vmatpush2.xpose.msra.mxu0 0.0
        %3529 = vmatprep.subr.mxu0 0.0
        %3530 = vmatpush2.xpose.msra.mxu0 0.0
        %3531 = vmatprep.subr.mxu0 0.0
        %3532 = vmatpush2.xpose.msra.mxu0 0.0
        %3533 = vmatprep.subr.mxu0 0.0
        %3534 = vmatpush2.xpose.msra.mxu0 0.0
        %3535 = vmatprep.subr.mxu0 0.0
        %3536 = vmatpush2.xpose.msra.mxu0 0.0
        %3537 = vmatprep.subr.mxu0 0.0
        %3538 = vmatpush2.xpose.msra.mxu0 0.0
        %3539 = vmatprep.subr.mxu0 0.0
        %3540 = vmatpush2.xpose.msra.mxu0 0.0
        %3541 = vmatprep.subr.mxu0 0.0
        %3542 = vmatpush2.xpose.msra.mxu0 0.0
        %3543 = vmatprep.subr.mxu0 0.0
        %3544 = vmatpush2.xpose.msra.mxu0 0.0
        %3545 = vmatprep.subr.mxu0 0.0
        %3546 = vmatpush2.xpose.msra.mxu0 0.0
        %3547 = vmatprep.mubr.f32.mxu0 0.0
        %3548 = vmatmul.mubr.f32.gmra.mxu0 %v3479
        %v3549 = vpop.f32.mrf.mxu0
        %v3550 = vadd.f32 %v2990, %v3549
        %v3551 = vpop.f32.mrf.mxu0
        %3552 = vdwg.mxu0
        %3554 = vrot.lane.b32.xlu0 %v2848, 124
        %v3555 = vpop.permute.xlu0 %3554
        %3557 = vrot.lane.b32.xlu0 %v2980, 124
        %v3558 = vpop.permute.xlu0 %3557
        %v3559 = vsel %vm2998, %v3555, 0
        %v3561 = vsel %vm2998, %v3558, 0
        %3563 = vmatprep.subr.mxu0 0.0
        %3564 = vmatpush1.xpose.msra.mxu0 0.0
        %3565 = vmatprep.subr.mxu0 0.0
        %3566 = vmatpush1.xpose.msra.mxu0 0.0
        %3567 = vmatprep.subr.mxu0 0.0
        %3568 = vmatpush1.xpose.msra.mxu0 0.0
        %3569 = vmatprep.subr.mxu0 0.0
        %3570 = vmatpush1.xpose.msra.mxu0 0.0
        %3571 = vmatprep.subr.mxu0 0.0
        %3572 = vmatpush1.xpose.msra.mxu0 0.0
        %3573 = vmatprep.subr.mxu0 0.0
        %3574 = vmatpush1.xpose.msra.mxu0 0.0
        %3575 = vmatprep.subr.mxu0 0.0
        %3576 = vmatpush1.xpose.msra.mxu0 0.0
        %3577 = vmatprep.subr.mxu0 0.0
        %3578 = vmatpush1.xpose.msra.mxu0 0.0
        %3579 = vmatprep.subr.mxu0 0.0
        %3580 = vmatpush1.xpose.msra.mxu0 0.0
        %3581 = vmatprep.subr.mxu0 0.0
        %3582 = vmatpush1.xpose.msra.mxu0 0.0
        %3583 = vmatprep.subr.mxu0 0.0
        %3584 = vmatpush1.xpose.msra.mxu0 0.0
        %3585 = vmatprep.subr.mxu0 0.0
        %3586 = vmatpush1.xpose.msra.mxu0 0.0
        %3587 = vmatprep.subr.mxu0 0.0
        %3588 = vmatpush1.xpose.msra.mxu0 0.0
        %3589 = vmatprep.subr.mxu0 0.0
        %3590 = vmatpush1.xpose.msra.mxu0 0.0
        %3591 = vmatprep.subr.mxu0 0.0
        %3592 = vmatpush1.xpose.msra.mxu0 0.0
        %3593 = vmatprep.subr.mxu0 0.0
        %3594 = vmatpush1.xpose.msra.mxu0 %v3561
        %3595 = vmatprep.subr.mxu0 0.0
        %3596 = vmatpush2.xpose.msra.mxu0 0.0
        %3597 = vmatprep.subr.mxu0 0.0
        %3598 = vmatpush2.xpose.msra.mxu0 0.0
        %3599 = vmatprep.subr.mxu0 0.0
        %3600 = vmatpush2.xpose.msra.mxu0 0.0
        %3601 = vmatprep.subr.mxu0 0.0
        %3602 = vmatpush2.xpose.msra.mxu0 0.0
        %3603 = vmatprep.subr.mxu0 0.0
        %3604 = vmatpush2.xpose.msra.mxu0 0.0
        %3605 = vmatprep.subr.mxu0 0.0
        %3606 = vmatpush2.xpose.msra.mxu0 0.0
        %3607 = vmatprep.subr.mxu0 0.0
        %3608 = vmatpush2.xpose.msra.mxu0 0.0
        %3609 = vmatprep.subr.mxu0 0.0
        %3610 = vmatpush2.xpose.msra.mxu0 0.0
        %3611 = vmatprep.subr.mxu0 0.0
        %3612 = vmatpush2.xpose.msra.mxu0 0.0
        %3613 = vmatprep.subr.mxu0 0.0
        %3614 = vmatpush2.xpose.msra.mxu0 0.0
        %3615 = vmatprep.subr.mxu0 0.0
        %3616 = vmatpush2.xpose.msra.mxu0 0.0
        %3617 = vmatprep.subr.mxu0 0.0
        %3618 = vmatpush2.xpose.msra.mxu0 0.0
        %3619 = vmatprep.subr.mxu0 0.0
        %3620 = vmatpush2.xpose.msra.mxu0 0.0
        %3621 = vmatprep.subr.mxu0 0.0
        %3622 = vmatpush2.xpose.msra.mxu0 0.0
        %3623 = vmatprep.subr.mxu0 0.0
        %3624 = vmatpush2.xpose.msra.mxu0 0.0
        %3625 = vmatprep.subr.mxu0 0.0
        %3626 = vmatpush2.xpose.msra.mxu0 0.0
        %3627 = vmatprep.mubr.f32.mxu0 0.0
        %3628 = vmatmul.mubr.f32.gmra.mxu0 %v3559
        %v3629 = vpop.f32.mrf.mxu0
        %v3630 = vadd.f32 %v2990, %v3629
        %v3631 = vpop.f32.mrf.mxu0
        %3632 = vdwg.mxu0
        %3634 = vrot.lane.b32.xlu0 %v2849, 124
        %v3635 = vpop.permute.xlu0 %3634
        %3637 = vrot.lane.b32.xlu0 %v2981, 124
        %v3638 = vpop.permute.xlu0 %3637
        %v3639 = vsel %vm2998, %v3635, 0
        %v3641 = vsel %vm2998, %v3638, 0
        %3643 = vmatprep.subr.mxu0 0.0
        %3644 = vmatpush1.xpose.msra.mxu0 0.0
        %3645 = vmatprep.subr.mxu0 0.0
        %3646 = vmatpush1.xpose.msra.mxu0 0.0
        %3647 = vmatprep.subr.mxu0 0.0
        %3648 = vmatpush1.xpose.msra.mxu0 0.0
        %3649 = vmatprep.subr.mxu0 0.0
        %3650 = vmatpush1.xpose.msra.mxu0 0.0
        %3651 = vmatprep.subr.mxu0 0.0
        %3652 = vmatpush1.xpose.msra.mxu0 0.0
        %3653 = vmatprep.subr.mxu0 0.0
        %3654 = vmatpush1.xpose.msra.mxu0 0.0
        %3655 = vmatprep.subr.mxu0 0.0
        %3656 = vmatpush1.xpose.msra.mxu0 0.0
        %3657 = vmatprep.subr.mxu0 0.0
        %3658 = vmatpush1.xpose.msra.mxu0 0.0
        %3659 = vmatprep.subr.mxu0 0.0
        %3660 = vmatpush1.xpose.msra.mxu0 0.0
        %3661 = vmatprep.subr.mxu0 0.0
        %3662 = vmatpush1.xpose.msra.mxu0 0.0
        %3663 = vmatprep.subr.mxu0 0.0
        %3664 = vmatpush1.xpose.msra.mxu0 0.0
        %3665 = vmatprep.subr.mxu0 0.0
        %3666 = vmatpush1.xpose.msra.mxu0 0.0
        %3667 = vmatprep.subr.mxu0 0.0
        %3668 = vmatpush1.xpose.msra.mxu0 0.0
        %3669 = vmatprep.subr.mxu0 0.0
        %3670 = vmatpush1.xpose.msra.mxu0 0.0
        %3671 = vmatprep.subr.mxu0 0.0
        %3672 = vmatpush1.xpose.msra.mxu0 0.0
        %3673 = vmatprep.subr.mxu0 0.0
        %3674 = vmatpush1.xpose.msra.mxu0 %v3641
        %3675 = vmatprep.subr.mxu0 0.0
        %3676 = vmatpush2.xpose.msra.mxu0 0.0
        %3677 = vmatprep.subr.mxu0 0.0
        %3678 = vmatpush2.xpose.msra.mxu0 0.0
        %3679 = vmatprep.subr.mxu0 0.0
        %3680 = vmatpush2.xpose.msra.mxu0 0.0
        %3681 = vmatprep.subr.mxu0 0.0
        %3682 = vmatpush2.xpose.msra.mxu0 0.0
        %3683 = vmatprep.subr.mxu0 0.0
        %3684 = vmatpush2.xpose.msra.mxu0 0.0
        %3685 = vmatprep.subr.mxu0 0.0
        %3686 = vmatpush2.xpose.msra.mxu0 0.0
        %3687 = vmatprep.subr.mxu0 0.0
        %3688 = vmatpush2.xpose.msra.mxu0 0.0
        %3689 = vmatprep.subr.mxu0 0.0
        %3690 = vmatpush2.xpose.msra.mxu0 0.0
        %3691 = vmatprep.subr.mxu0 0.0
        %3692 = vmatpush2.xpose.msra.mxu0 0.0
        %3693 = vmatprep.subr.mxu0 0.0
        %3694 = vmatpush2.xpose.msra.mxu0 0.0
        %3695 = vmatprep.subr.mxu0 0.0
        %3696 = vmatpush2.xpose.msra.mxu0 0.0
        %3697 = vmatprep.subr.mxu0 0.0
        %3698 = vmatpush2.xpose.msra.mxu0 0.0
        %3699 = vmatprep.subr.mxu0 0.0
        %3700 = vmatpush2.xpose.msra.mxu0 0.0
        %3701 = vmatprep.subr.mxu0 0.0
        %3702 = vmatpush2.xpose.msra.mxu0 0.0
        %3703 = vmatprep.subr.mxu0 0.0
        %3704 = vmatpush2.xpose.msra.mxu0 0.0
        %3705 = vmatprep.subr.mxu0 0.0
        %3706 = vmatpush2.xpose.msra.mxu0 0.0
        %3707 = vmatprep.mubr.f32.mxu0 0.0
        %3708 = vmatmul.mubr.f32.gmra.mxu0 %v3639
        %v3709 = vpop.f32.mrf.mxu0
        %v3710 = vadd.f32 %v2990, %v3709
        %v3711 = vpop.f32.mrf.mxu0
        %3712 = vdwg.mxu0
        %3714 = vrot.lane.b32.xlu0 %v2850, 124
        %v3715 = vpop.permute.xlu0 %3714
        %3717 = vrot.lane.b32.xlu0 %v2982, 124
        %v3718 = vpop.permute.xlu0 %3717
        %v3719 = vsel %vm2998, %v3715, 0
        %v3721 = vsel %vm2998, %v3718, 0
        %3723 = vmatprep.subr.mxu0 0.0
        %3724 = vmatpush1.xpose.msra.mxu0 0.0
        %3725 = vmatprep.subr.mxu0 0.0
        %3726 = vmatpush1.xpose.msra.mxu0 0.0
        %3727 = vmatprep.subr.mxu0 0.0
        %3728 = vmatpush1.xpose.msra.mxu0 0.0
        %3729 = vmatprep.subr.mxu0 0.0
        %3730 = vmatpush1.xpose.msra.mxu0 0.0
        %3731 = vmatprep.subr.mxu0 0.0
        %3732 = vmatpush1.xpose.msra.mxu0 0.0
        %3733 = vmatprep.subr.mxu0 0.0
        %3734 = vmatpush1.xpose.msra.mxu0 0.0
        %3735 = vmatprep.subr.mxu0 0.0
        %3736 = vmatpush1.xpose.msra.mxu0 0.0
        %3737 = vmatprep.subr.mxu0 0.0
        %3738 = vmatpush1.xpose.msra.mxu0 0.0
        %3739 = vmatprep.subr.mxu0 0.0
        %3740 = vmatpush1.xpose.msra.mxu0 0.0
        %3741 = vmatprep.subr.mxu0 0.0
        %3742 = vmatpush1.xpose.msra.mxu0 0.0
        %3743 = vmatprep.subr.mxu0 0.0
        %3744 = vmatpush1.xpose.msra.mxu0 0.0
        %3745 = vmatprep.subr.mxu0 0.0
        %3746 = vmatpush1.xpose.msra.mxu0 0.0
        %3747 = vmatprep.subr.mxu0 0.0
        %3748 = vmatpush1.xpose.msra.mxu0 0.0
        %3749 = vmatprep.subr.mxu0 0.0
        %3750 = vmatpush1.xpose.msra.mxu0 0.0
        %3751 = vmatprep.subr.mxu0 0.0
        %3752 = vmatpush1.xpose.msra.mxu0 0.0
        %3753 = vmatprep.subr.mxu0 0.0
        %3754 = vmatpush1.xpose.msra.mxu0 %v3721
        %3755 = vmatprep.subr.mxu0 0.0
        %3756 = vmatpush2.xpose.msra.mxu0 0.0
        %3757 = vmatprep.subr.mxu0 0.0
        %3758 = vmatpush2.xpose.msra.mxu0 0.0
        %3759 = vmatprep.subr.mxu0 0.0
        %3760 = vmatpush2.xpose.msra.mxu0 0.0
        %3761 = vmatprep.subr.mxu0 0.0
        %3762 = vmatpush2.xpose.msra.mxu0 0.0
        %3763 = vmatprep.subr.mxu0 0.0
        %3764 = vmatpush2.xpose.msra.mxu0 0.0
        %3765 = vmatprep.subr.mxu0 0.0
        %3766 = vmatpush2.xpose.msra.mxu0 0.0
        %3767 = vmatprep.subr.mxu0 0.0
        %3768 = vmatpush2.xpose.msra.mxu0 0.0
        %3769 = vmatprep.subr.mxu0 0.0
        %3770 = vmatpush2.xpose.msra.mxu0 0.0
        %3771 = vmatprep.subr.mxu0 0.0
        %3772 = vmatpush2.xpose.msra.mxu0 0.0
        %3773 = vmatprep.subr.mxu0 0.0
        %3774 = vmatpush2.xpose.msra.mxu0 0.0
        %3775 = vmatprep.subr.mxu0 0.0
        %3776 = vmatpush2.xpose.msra.mxu0 0.0
        %3777 = vmatprep.subr.mxu0 0.0
        %3778 = vmatpush2.xpose.msra.mxu0 0.0
        %3779 = vmatprep.subr.mxu0 0.0
        %3780 = vmatpush2.xpose.msra.mxu0 0.0
        %3781 = vmatprep.subr.mxu0 0.0
        %3782 = vmatpush2.xpose.msra.mxu0 0.0
        %3783 = vmatprep.subr.mxu0 0.0
        %3784 = vmatpush2.xpose.msra.mxu0 0.0
        %3785 = vmatprep.subr.mxu0 0.0
        %3786 = vmatpush2.xpose.msra.mxu0 0.0
        %3787 = vmatprep.mubr.f32.mxu0 0.0
        %3788 = vmatmul.mubr.f32.gmra.mxu0 %v3719
        %v3789 = vpop.f32.mrf.mxu0
        %v3790 = vadd.f32 %v2990, %v3789
        %v3791 = vpop.f32.mrf.mxu0
        %3792 = vdwg.mxu0
        %3794 = vrot.lane.b32.xlu0 %v2851, 124
        %v3795 = vpop.permute.xlu0 %3794
        %3797 = vrot.lane.b32.xlu0 %v2983, 124
        %v3798 = vpop.permute.xlu0 %3797
        %v3799 = vsel %vm2998, %v3795, 0
        %v3801 = vsel %vm2998, %v3798, 0
        %3803 = vmatprep.subr.mxu0 0.0
        %3804 = vmatpush1.xpose.msra.mxu0 0.0
        %3805 = vmatprep.subr.mxu0 0.0
        %3806 = vmatpush1.xpose.msra.mxu0 0.0
        %3807 = vmatprep.subr.mxu0 0.0
        %3808 = vmatpush1.xpose.msra.mxu0 0.0
        %3809 = vmatprep.subr.mxu0 0.0
        %3810 = vmatpush1.xpose.msra.mxu0 0.0
        %3811 = vmatprep.subr.mxu0 0.0
        %3812 = vmatpush1.xpose.msra.mxu0 0.0
        %3813 = vmatprep.subr.mxu0 0.0
        %3814 = vmatpush1.xpose.msra.mxu0 0.0
        %3815 = vmatprep.subr.mxu0 0.0
        %3816 = vmatpush1.xpose.msra.mxu0 0.0
        %3817 = vmatprep.subr.mxu0 0.0
        %3818 = vmatpush1.xpose.msra.mxu0 0.0
        %3819 = vmatprep.subr.mxu0 0.0
        %3820 = vmatpush1.xpose.msra.mxu0 0.0
        %3821 = vmatprep.subr.mxu0 0.0
        %3822 = vmatpush1.xpose.msra.mxu0 0.0
        %3823 = vmatprep.subr.mxu0 0.0
        %3824 = vmatpush1.xpose.msra.mxu0 0.0
        %3825 = vmatprep.subr.mxu0 0.0
        %3826 = vmatpush1.xpose.msra.mxu0 0.0
        %3827 = vmatprep.subr.mxu0 0.0
        %3828 = vmatpush1.xpose.msra.mxu0 0.0
        %3829 = vmatprep.subr.mxu0 0.0
        %3830 = vmatpush1.xpose.msra.mxu0 0.0
        %3831 = vmatprep.subr.mxu0 0.0
        %3832 = vmatpush1.xpose.msra.mxu0 0.0
        %3833 = vmatprep.subr.mxu0 0.0
        %3834 = vmatpush1.xpose.msra.mxu0 %v3801
        %3835 = vmatprep.subr.mxu0 0.0
        %3836 = vmatpush2.xpose.msra.mxu0 0.0
        %3837 = vmatprep.subr.mxu0 0.0
        %3838 = vmatpush2.xpose.msra.mxu0 0.0
        %3839 = vmatprep.subr.mxu0 0.0
        %3840 = vmatpush2.xpose.msra.mxu0 0.0
        %3841 = vmatprep.subr.mxu0 0.0
        %3842 = vmatpush2.xpose.msra.mxu0 0.0
        %3843 = vmatprep.subr.mxu0 0.0
        %3844 = vmatpush2.xpose.msra.mxu0 0.0
        %3845 = vmatprep.subr.mxu0 0.0
        %3846 = vmatpush2.xpose.msra.mxu0 0.0
        %3847 = vmatprep.subr.mxu0 0.0
        %3848 = vmatpush2.xpose.msra.mxu0 0.0
        %3849 = vmatprep.subr.mxu0 0.0
        %3850 = vmatpush2.xpose.msra.mxu0 0.0
        %3851 = vmatprep.subr.mxu0 0.0
        %3852 = vmatpush2.xpose.msra.mxu0 0.0
        %3853 = vmatprep.subr.mxu0 0.0
        %3854 = vmatpush2.xpose.msra.mxu0 0.0
        %3855 = vmatprep.subr.mxu0 0.0
        %3856 = vmatpush2.xpose.msra.mxu0 0.0
        %3857 = vmatprep.subr.mxu0 0.0
        %3858 = vmatpush2.xpose.msra.mxu0 0.0
        %3859 = vmatprep.subr.mxu0 0.0
        %3860 = vmatpush2.xpose.msra.mxu0 0.0
        %3861 = vmatprep.subr.mxu0 0.0
        %3862 = vmatpush2.xpose.msra.mxu0 0.0
        %3863 = vmatprep.subr.mxu0 0.0
        %3864 = vmatpush2.xpose.msra.mxu0 0.0
        %3865 = vmatprep.subr.mxu0 0.0
        %3866 = vmatpush2.xpose.msra.mxu0 0.0
        %3867 = vmatprep.mubr.f32.mxu0 0.0
        %3868 = vmatmul.mubr.f32.gmra.mxu0 %v3799
        %v3869 = vpop.f32.mrf.mxu0
        %v3870 = vadd.f32 %v2990, %v3869
        %v3871 = vpop.f32.mrf.mxu0
        %3872 = vdwg.mxu0
        %3874 = vrot.lane.b32.xlu0 %v2852, 124
        %v3875 = vpop.permute.xlu0 %3874
        %3877 = vrot.lane.b32.xlu0 %v2984, 124
        %v3878 = vpop.permute.xlu0 %3877
        %v3879 = vsel %vm2998, %v3875, 0
        %v3881 = vsel %vm2998, %v3878, 0
        %3883 = vmatprep.subr.mxu0 0.0
        %3884 = vmatpush1.xpose.msra.mxu0 0.0
        %3885 = vmatprep.subr.mxu0 0.0
        %3886 = vmatpush1.xpose.msra.mxu0 0.0
        %3887 = vmatprep.subr.mxu0 0.0
        %3888 = vmatpush1.xpose.msra.mxu0 0.0
        %3889 = vmatprep.subr.mxu0 0.0
        %3890 = vmatpush1.xpose.msra.mxu0 0.0
        %3891 = vmatprep.subr.mxu0 0.0
        %3892 = vmatpush1.xpose.msra.mxu0 0.0
        %3893 = vmatprep.subr.mxu0 0.0
        %3894 = vmatpush1.xpose.msra.mxu0 0.0
        %3895 = vmatprep.subr.mxu0 0.0
        %3896 = vmatpush1.xpose.msra.mxu0 0.0
        %3897 = vmatprep.subr.mxu0 0.0
        %3898 = vmatpush1.xpose.msra.mxu0 0.0
        %3899 = vmatprep.subr.mxu0 0.0
        %3900 = vmatpush1.xpose.msra.mxu0 0.0
        %3901 = vmatprep.subr.mxu0 0.0
        %3902 = vmatpush1.xpose.msra.mxu0 0.0
        %3903 = vmatprep.subr.mxu0 0.0
        %3904 = vmatpush1.xpose.msra.mxu0 0.0
        %3905 = vmatprep.subr.mxu0 0.0
        %3906 = vmatpush1.xpose.msra.mxu0 0.0
        %3907 = vmatprep.subr.mxu0 0.0
        %3908 = vmatpush1.xpose.msra.mxu0 0.0
        %3909 = vmatprep.subr.mxu0 0.0
        %3910 = vmatpush1.xpose.msra.mxu0 0.0
        %3911 = vmatprep.subr.mxu0 0.0
        %3912 = vmatpush1.xpose.msra.mxu0 0.0
        %3913 = vmatprep.subr.mxu0 0.0
        %3914 = vmatpush1.xpose.msra.mxu0 %v3881
        %3915 = vmatprep.subr.mxu0 0.0
        %3916 = vmatpush2.xpose.msra.mxu0 0.0
        %3917 = vmatprep.subr.mxu0 0.0
        %3918 = vmatpush2.xpose.msra.mxu0 0.0
        %3919 = vmatprep.subr.mxu0 0.0
        %3920 = vmatpush2.xpose.msra.mxu0 0.0
        %3921 = vmatprep.subr.mxu0 0.0
        %3922 = vmatpush2.xpose.msra.mxu0 0.0
        %3923 = vmatprep.subr.mxu0 0.0
        %3924 = vmatpush2.xpose.msra.mxu0 0.0
        %3925 = vmatprep.subr.mxu0 0.0
        %3926 = vmatpush2.xpose.msra.mxu0 0.0
        %3927 = vmatprep.subr.mxu0 0.0
        %3928 = vmatpush2.xpose.msra.mxu0 0.0
        %3929 = vmatprep.subr.mxu0 0.0
        %3930 = vmatpush2.xpose.msra.mxu0 0.0
        %3931 = vmatprep.subr.mxu0 0.0
        %3932 = vmatpush2.xpose.msra.mxu0 0.0
        %3933 = vmatprep.subr.mxu0 0.0
        %3934 = vmatpush2.xpose.msra.mxu0 0.0
        %3935 = vmatprep.subr.mxu0 0.0
        %3936 = vmatpush2.xpose.msra.mxu0 0.0
        %3937 = vmatprep.subr.mxu0 0.0
        %3938 = vmatpush2.xpose.msra.mxu0 0.0
        %3939 = vmatprep.subr.mxu0 0.0
        %3940 = vmatpush2.xpose.msra.mxu0 0.0
        %3941 = vmatprep.subr.mxu0 0.0
        %3942 = vmatpush2.xpose.msra.mxu0 0.0
        %3943 = vmatprep.subr.mxu0 0.0
        %3944 = vmatpush2.xpose.msra.mxu0 0.0
        %3945 = vmatprep.subr.mxu0 0.0
        %3946 = vmatpush2.xpose.msra.mxu0 0.0
        %3947 = vmatprep.mubr.f32.mxu0 0.0
        %3948 = vmatmul.mubr.f32.gmra.mxu0 %v3879
        %v3949 = vpop.f32.mrf.mxu0
        %v3950 = vadd.f32 %v2990, %v3949
        %v3951 = vpop.f32.mrf.mxu0
        %3952 = vdwg.mxu0
        %vm3953 = vcmask 64512
        %v3954 = vsel %vm3953, %v3070, -inf
        %3955 = vmax.xlane.f32.xlu0 %v3954
        %v3956 = vpop.xlane.xlu0 %3955
        %v3957 = vsel %vm3953, %v3150, -inf
        %3958 = vmax.xlane.f32.xlu0 %v3957
        %v3959 = vpop.xlane.xlu0 %3958
        %v3960 = vsel %vm3953, %v3230, -inf
        %3961 = vmax.xlane.f32.xlu0 %v3960
        %v3962 = vpop.xlane.xlu0 %3961
        %v3963 = vsel %vm3953, %v3310, -inf
        %3964 = vmax.xlane.f32.xlu0 %v3963
        %v3965 = vpop.xlane.xlu0 %3964
        %v3966 = vsel %vm3953, %v3390, -inf
        %3967 = vmax.xlane.f32.xlu0 %v3966
        %v3968 = vpop.xlane.xlu0 %3967
        %v3969 = vsel %vm3953, %v3470, -inf
        %3970 = vmax.xlane.f32.xlu0 %v3969
        %v3971 = vpop.xlane.xlu0 %3970
        %v3972 = vsel %vm3953, %v3550, -inf
        %3973 = vmax.xlane.f32.xlu0 %v3972
        %v3974 = vpop.xlane.xlu0 %3973
        %v3975 = vsel %vm3953, %v3630, -inf
        %3976 = vmax.xlane.f32.xlu0 %v3975
        %v3977 = vpop.xlane.xlu0 %3976
        %v3978 = vsel %vm3953, %v3710, -inf
        %3979 = vmax.xlane.f32.xlu0 %v3978
        %v3980 = vpop.xlane.xlu0 %3979
        %v3981 = vsel %vm3953, %v3790, -inf
        %3982 = vmax.xlane.f32.xlu0 %v3981
        %v3983 = vpop.xlane.xlu0 %3982
        %v3984 = vsel %vm3953, %v3870, -inf
        %3985 = vmax.xlane.f32.xlu0 %v3984
        %v3986 = vpop.xlane.xlu0 %3985
        %v3987 = vsel %vm3953, %v3950, -inf
        %3988 = vmax.xlane.f32.xlu0 %v3987
        %v3989 = vpop.xlane.xlu0 %3988
        %v3990 = vsub.f32 %v3070, %v3956
        %v3991 = vsub.f32 %v3150, %v3959
        %v3992 = vsub.f32 %v3230, %v3962
        %v3993 = vsub.f32 %v3310, %v3965
        %v3994 = vsub.f32 %v3390, %v3968
        %v3995 = vsub.f32 %v3470, %v3971
        %v3996 = vsub.f32 %v3550, %v3974
        %v3997 = vsub.f32 %v3630, %v3977
        %v3998 = vsub.f32 %v3710, %v3980
        %v3999 = vsub.f32 %v3790, %v3983
        %v4000 = vsub.f32 %v3870, %v3986
        %v4001 = vsub.f32 %v3950, %v3989
        %v4002 = vmul.f32 %v3990, 1.442695
        %v4003 = vpow.pop %v4002
        %v4004 = vmul.f32 %v3991, 1.442695
        %v4005 = vpow.pop %v4004
        %v4006 = vmul.f32 %v3992, 1.442695
        %v4007 = vpow.pop %v4006
        %v4008 = vmul.f32 %v3993, 1.442695
        %v4009 = vpow.pop %v4008
        %v4010 = vmul.f32 %v3994, 1.442695
        %v4011 = vpow.pop %v4010
        %v4012 = vmul.f32 %v3995, 1.442695
        %v4013 = vpow.pop %v4012
        %v4014 = vmul.f32 %v3996, 1.442695
        %v4015 = vpow.pop %v4014
        %v4016 = vmul.f32 %v3997, 1.442695
        %v4017 = vpow.pop %v4016
        %v4018 = vmul.f32 %v3998, 1.442695
        %v4019 = vpow.pop %v4018
        %v4020 = vmul.f32 %v3999, 1.442695
        %v4021 = vpow.pop %v4020
        %v4022 = vmul.f32 %v4000, 1.442695
        %v4023 = vpow.pop %v4022
        %v4024 = vmul.f32 %v4001, 1.442695
        %v4025 = vpow.pop %v4024
        %v4026 = vsel %vm3953, %v4003, 0.0
        %4027 = vadd.xlane.f32.xlu0 %v4026
        %v4028 = vpop.xlane.xlu0 %4027
        %v4029 = vsel %vm3953, %v4005, 0.0
        %4030 = vadd.xlane.f32.xlu0 %v4029
        %v4031 = vpop.xlane.xlu0 %4030
        %v4032 = vsel %vm3953, %v4007, 0.0
        %4033 = vadd.xlane.f32.xlu0 %v4032
        %v4034 = vpop.xlane.xlu0 %4033
        %v4035 = vsel %vm3953, %v4009, 0.0
        %4036 = vadd.xlane.f32.xlu0 %v4035
        %v4037 = vpop.xlane.xlu0 %4036
        %v4038 = vsel %vm3953, %v4011, 0.0
        %4039 = vadd.xlane.f32.xlu0 %v4038
        %v4040 = vpop.xlane.xlu0 %4039
        %v4041 = vsel %vm3953, %v4013, 0.0
        %4042 = vadd.xlane.f32.xlu0 %v4041
        %v4043 = vpop.xlane.xlu0 %4042
        %v4044 = vsel %vm3953, %v4015, 0.0
        %4045 = vadd.xlane.f32.xlu0 %v4044
        %v4046 = vpop.xlane.xlu0 %4045
        %v4047 = vsel %vm3953, %v4017, 0.0
        %4048 = vadd.xlane.f32.xlu0 %v4047
        %v4049 = vpop.xlane.xlu0 %4048
        %v4050 = vsel %vm3953, %v4019, 0.0
        %4051 = vadd.xlane.f32.xlu0 %v4050
        %v4052 = vpop.xlane.xlu0 %4051
        %v4053 = vsel %vm3953, %v4021, 0.0
        %4054 = vadd.xlane.f32.xlu0 %v4053
        %v4055 = vpop.xlane.xlu0 %4054
        %v4056 = vsel %vm3953, %v4023, 0.0
        %4057 = vadd.xlane.f32.xlu0 %v4056
        %v4058 = vpop.xlane.xlu0 %4057
        %v4059 = vsel %vm3953, %v4025, 0.0
        %4060 = vadd.xlane.f32.xlu0 %v4059
        %v4061 = vpop.xlane.xlu0 %4060
        %v4062 = vrcp.pop %v4028
        %v4063 = vrcp.pop %v4031
        %v4064 = vrcp.pop %v4034
        %v4065 = vrcp.pop %v4037
        %v4066 = vrcp.pop %v4040
        %v4067 = vrcp.pop %v4043
        %v4068 = vrcp.pop %v4046
        %v4069 = vrcp.pop %v4049
        %v4070 = vrcp.pop %v4052
        %v4071 = vrcp.pop %v4055
        %v4072 = vrcp.pop %v4058
        %v4073 = vrcp.pop %v4061
        %v4074 = vmul.f32 %v4003, %v4062
        %v4075 = vmul.f32 %v4005, %v4063
        %v4076 = vmul.f32 %v4007, %v4064
        %v4077 = vmul.f32 %v4009, %v4065
        %v4078 = vmul.f32 %v4011, %v4066
        %v4079 = vmul.f32 %v4013, %v4067
        %v4080 = vmul.f32 %v4015, %v4068
        %v4081 = vmul.f32 %v4017, %v4069
        %v4082 = vmul.f32 %v4019, %v4070
        %v4083 = vmul.f32 %v4021, %v4071
        %v4084 = vmul.f32 %v4023, %v4072
        %v4085 = vmul.f32 %v4025, %v4073
        %4086 = vrot.lane.b32.xlu0 %v702, 120
        %v4087 = vpop.permute.xlu0 %4086
        %v4090 = vsel %vm3953, %v4074, 0
        %4092 = vmatprep.subr.mxu0 0.0
        %4093 = vmatpush1.msra.mxu0 0.0
        %4094 = vmatprep.subr.mxu0 0.0
        %4095 = vmatpush1.msra.mxu0 0.0
        %4096 = vmatprep.subr.mxu0 0.0
        %4097 = vmatpush1.msra.mxu0 0.0
        %4098 = vmatprep.subr.mxu0 0.0
        %4099 = vmatpush1.msra.mxu0 0.0
        %4100 = vmatprep.subr.mxu0 0.0
        %4101 = vmatpush1.msra.mxu0 0.0
        %4102 = vmatprep.subr.mxu0 0.0
        %4103 = vmatpush1.msra.mxu0 0.0
        %4104 = vmatprep.subr.mxu0 0.0
        %4105 = vmatpush1.msra.mxu0 0.0
        %4106 = vmatprep.subr.mxu0 0.0
        %4107 = vmatpush1.msra.mxu0 0.0
        %4108 = vmatprep.subr.mxu0 0.0
        %4109 = vmatpush1.msra.mxu0 0.0
        %4110 = vmatprep.subr.mxu0 0.0
        %4111 = vmatpush1.msra.mxu0 0.0
        %4112 = vmatprep.subr.mxu0 0.0
        %4113 = vmatpush1.msra.mxu0 0.0
        %4114 = vmatprep.subr.mxu0 0.0
        %4115 = vmatpush1.msra.mxu0 0.0
        %4116 = vmatprep.subr.mxu0 0.0
        %4117 = vmatpush1.msra.mxu0 0.0
        %4118 = vmatprep.subr.mxu0 0.0
        %4119 = vmatpush1.msra.mxu0 0.0
        %4120 = vmatprep.subr.mxu0 0.0
        %4121 = vmatpush1.msra.mxu0 0.0
        %4122 = vmatprep.subr.mxu0 0.0
        %4123 = vmatpush1.msra.mxu0 %v4087
        %4124 = vmatprep.subr.mxu0 0.0
        %4125 = vmatpush2.msra.mxu0 0.0
        %4126 = vmatprep.subr.mxu0 0.0
        %4127 = vmatpush2.msra.mxu0 0.0
        %4128 = vmatprep.subr.mxu0 0.0
        %4129 = vmatpush2.msra.mxu0 0.0
        %4130 = vmatprep.subr.mxu0 0.0
        %4131 = vmatpush2.msra.mxu0 0.0
        %4132 = vmatprep.subr.mxu0 0.0
        %4133 = vmatpush2.msra.mxu0 0.0
        %4134 = vmatprep.subr.mxu0 0.0
        %4135 = vmatpush2.msra.mxu0 0.0
        %4136 = vmatprep.subr.mxu0 0.0
        %4137 = vmatpush2.msra.mxu0 0.0
        %4138 = vmatprep.subr.mxu0 0.0
        %4139 = vmatpush2.msra.mxu0 0.0
        %4140 = vmatprep.subr.mxu0 0.0
        %4141 = vmatpush2.msra.mxu0 0.0
        %4142 = vmatprep.subr.mxu0 0.0
        %4143 = vmatpush2.msra.mxu0 0.0
        %4144 = vmatprep.subr.mxu0 0.0
        %4145 = vmatpush2.msra.mxu0 0.0
        %4146 = vmatprep.subr.mxu0 0.0
        %4147 = vmatpush2.msra.mxu0 0.0
        %4148 = vmatprep.subr.mxu0 0.0
        %4149 = vmatpush2.msra.mxu0 0.0
        %4150 = vmatprep.subr.mxu0 0.0
        %4151 = vmatpush2.msra.mxu0 0.0
        %4152 = vmatprep.subr.mxu0 0.0
        %4153 = vmatpush2.msra.mxu0 0.0
        %4154 = vmatprep.subr.mxu0 0.0
        %4155 = vmatpush2.msra.mxu0 0.0
        %4156 = vmatprep.mubr.f32.mxu0 0.0
        %4157 = vmatmul.mubr.f32.gmra.mxu0 %v4090
        %v4158 = vpop.f32.mrf.mxu0
        %v4159 = vadd.f32 0.0, %v4158
        %v4160 = vpop.f32.mrf.mxu0
        %4161 = vdwg.mxu0
        %4162 = vrot.lane.b32.xlu0 %v772, 120
        %v4163 = vpop.permute.xlu0 %4162
        %v4166 = vsel %vm3953, %v4075, 0
        %4168 = vmatprep.subr.mxu0 0.0
        %4169 = vmatpush1.msra.mxu0 0.0
        %4170 = vmatprep.subr.mxu0 0.0
        %4171 = vmatpush1.msra.mxu0 0.0
        %4172 = vmatprep.subr.mxu0 0.0
        %4173 = vmatpush1.msra.mxu0 0.0
        %4174 = vmatprep.subr.mxu0 0.0
        %4175 = vmatpush1.msra.mxu0 0.0
        %4176 = vmatprep.subr.mxu0 0.0
        %4177 = vmatpush1.msra.mxu0 0.0
        %4178 = vmatprep.subr.mxu0 0.0
        %4179 = vmatpush1.msra.mxu0 0.0
        %4180 = vmatprep.subr.mxu0 0.0
        %4181 = vmatpush1.msra.mxu0 0.0
        %4182 = vmatprep.subr.mxu0 0.0
        %4183 = vmatpush1.msra.mxu0 0.0
        %4184 = vmatprep.subr.mxu0 0.0
        %4185 = vmatpush1.msra.mxu0 0.0
        %4186 = vmatprep.subr.mxu0 0.0
        %4187 = vmatpush1.msra.mxu0 0.0
        %4188 = vmatprep.subr.mxu0 0.0
        %4189 = vmatpush1.msra.mxu0 0.0
        %4190 = vmatprep.subr.mxu0 0.0
        %4191 = vmatpush1.msra.mxu0 0.0
        %4192 = vmatprep.subr.mxu0 0.0
        %4193 = vmatpush1.msra.mxu0 0.0
        %4194 = vmatprep.subr.mxu0 0.0
        %4195 = vmatpush1.msra.mxu0 0.0
        %4196 = vmatprep.subr.mxu0 0.0
        %4197 = vmatpush1.msra.mxu0 0.0
        %4198 = vmatprep.subr.mxu0 0.0
        %4199 = vmatpush1.msra.mxu0 %v4163
        %4200 = vmatprep.subr.mxu0 0.0
        %4201 = vmatpush2.msra.mxu0 0.0
        %4202 = vmatprep.subr.mxu0 0.0
        %4203 = vmatpush2.msra.mxu0 0.0
        %4204 = vmatprep.subr.mxu0 0.0
        %4205 = vmatpush2.msra.mxu0 0.0
        %4206 = vmatprep.subr.mxu0 0.0
        %4207 = vmatpush2.msra.mxu0 0.0
        %4208 = vmatprep.subr.mxu0 0.0
        %4209 = vmatpush2.msra.mxu0 0.0
        %4210 = vmatprep.subr.mxu0 0.0
        %4211 = vmatpush2.msra.mxu0 0.0
        %4212 = vmatprep.subr.mxu0 0.0
        %4213 = vmatpush2.msra.mxu0 0.0
        %4214 = vmatprep.subr.mxu0 0.0
        %4215 = vmatpush2.msra.mxu0 0.0
        %4216 = vmatprep.subr.mxu0 0.0
        %4217 = vmatpush2.msra.mxu0 0.0
        %4218 = vmatprep.subr.mxu0 0.0
        %4219 = vmatpush2.msra.mxu0 0.0
        %4220 = vmatprep.subr.mxu0 0.0
        %4221 = vmatpush2.msra.mxu0 0.0
        %4222 = vmatprep.subr.mxu0 0.0
        %4223 = vmatpush2.msra.mxu0 0.0
        %4224 = vmatprep.subr.mxu0 0.0
        %4225 = vmatpush2.msra.mxu0 0.0
        %4226 = vmatprep.subr.mxu0 0.0
        %4227 = vmatpush2.msra.mxu0 0.0
        %4228 = vmatprep.subr.mxu0 0.0
        %4229 = vmatpush2.msra.mxu0 0.0
        %4230 = vmatprep.subr.mxu0 0.0
        %4231 = vmatpush2.msra.mxu0 0.0
        %4232 = vmatprep.mubr.f32.mxu0 0.0
        %4233 = vmatmul.mubr.f32.gmra.mxu0 %v4166
        %v4234 = vpop.f32.mrf.mxu0
        %v4235 = vadd.f32 0.0, %v4234
        %v4236 = vpop.f32.mrf.mxu0
        %4237 = vdwg.mxu0
        %4238 = vrot.lane.b32.xlu0 %v842, 120
        %v4239 = vpop.permute.xlu0 %4238
        %v4242 = vsel %vm3953, %v4076, 0
        %4244 = vmatprep.subr.mxu0 0.0
        %4245 = vmatpush1.msra.mxu0 0.0
        %4246 = vmatprep.subr.mxu0 0.0
        %4247 = vmatpush1.msra.mxu0 0.0
        %4248 = vmatprep.subr.mxu0 0.0
        %4249 = vmatpush1.msra.mxu0 0.0
        %4250 = vmatprep.subr.mxu0 0.0
        %4251 = vmatpush1.msra.mxu0 0.0
        %4252 = vmatprep.subr.mxu0 0.0
        %4253 = vmatpush1.msra.mxu0 0.0
        %4254 = vmatprep.subr.mxu0 0.0
        %4255 = vmatpush1.msra.mxu0 0.0
        %4256 = vmatprep.subr.mxu0 0.0
        %4257 = vmatpush1.msra.mxu0 0.0
        %4258 = vmatprep.subr.mxu0 0.0
        %4259 = vmatpush1.msra.mxu0 0.0
        %4260 = vmatprep.subr.mxu0 0.0
        %4261 = vmatpush1.msra.mxu0 0.0
        %4262 = vmatprep.subr.mxu0 0.0
        %4263 = vmatpush1.msra.mxu0 0.0
        %4264 = vmatprep.subr.mxu0 0.0
        %4265 = vmatpush1.msra.mxu0 0.0
        %4266 = vmatprep.subr.mxu0 0.0
        %4267 = vmatpush1.msra.mxu0 0.0
        %4268 = vmatprep.subr.mxu0 0.0
        %4269 = vmatpush1.msra.mxu0 0.0
        %4270 = vmatprep.subr.mxu0 0.0
        %4271 = vmatpush1.msra.mxu0 0.0
        %4272 = vmatprep.subr.mxu0 0.0
        %4273 = vmatpush1.msra.mxu0 0.0
        %4274 = vmatprep.subr.mxu0 0.0
        %4275 = vmatpush1.msra.mxu0 %v4239
        %4276 = vmatprep.subr.mxu0 0.0
        %4277 = vmatpush2.msra.mxu0 0.0
        %4278 = vmatprep.subr.mxu0 0.0
        %4279 = vmatpush2.msra.mxu0 0.0
        %4280 = vmatprep.subr.mxu0 0.0
        %4281 = vmatpush2.msra.mxu0 0.0
        %4282 = vmatprep.subr.mxu0 0.0
        %4283 = vmatpush2.msra.mxu0 0.0
        %4284 = vmatprep.subr.mxu0 0.0
        %4285 = vmatpush2.msra.mxu0 0.0
        %4286 = vmatprep.subr.mxu0 0.0
        %4287 = vmatpush2.msra.mxu0 0.0
        %4288 = vmatprep.subr.mxu0 0.0
        %4289 = vmatpush2.msra.mxu0 0.0
        %4290 = vmatprep.subr.mxu0 0.0
        %4291 = vmatpush2.msra.mxu0 0.0
        %4292 = vmatprep.subr.mxu0 0.0
        %4293 = vmatpush2.msra.mxu0 0.0
        %4294 = vmatprep.subr.mxu0 0.0
        %4295 = vmatpush2.msra.mxu0 0.0
        %4296 = vmatprep.subr.mxu0 0.0
        %4297 = vmatpush2.msra.mxu0 0.0
        %4298 = vmatprep.subr.mxu0 0.0
        %4299 = vmatpush2.msra.mxu0 0.0
        %4300 = vmatprep.subr.mxu0 0.0
        %4301 = vmatpush2.msra.mxu0 0.0
        %4302 = vmatprep.subr.mxu0 0.0
        %4303 = vmatpush2.msra.mxu0 0.0
        %4304 = vmatprep.subr.mxu0 0.0
        %4305 = vmatpush2.msra.mxu0 0.0
        %4306 = vmatprep.subr.mxu0 0.0
        %4307 = vmatpush2.msra.mxu0 0.0
        %4308 = vmatprep.mubr.f32.mxu0 0.0
        %4309 = vmatmul.mubr.f32.gmra.mxu0 %v4242
        %v4310 = vpop.f32.mrf.mxu0
        %v4311 = vadd.f32 0.0, %v4310
        %v4312 = vpop.f32.mrf.mxu0
        %4313 = vdwg.mxu0
        %4314 = vrot.lane.b32.xlu0 %v912, 120
        %v4315 = vpop.permute.xlu0 %4314
        %v4318 = vsel %vm3953, %v4077, 0
        %4320 = vmatprep.subr.mxu0 0.0
        %4321 = vmatpush1.msra.mxu0 0.0
        %4322 = vmatprep.subr.mxu0 0.0
        %4323 = vmatpush1.msra.mxu0 0.0
        %4324 = vmatprep.subr.mxu0 0.0
        %4325 = vmatpush1.msra.mxu0 0.0
        %4326 = vmatprep.subr.mxu0 0.0
        %4327 = vmatpush1.msra.mxu0 0.0
        %4328 = vmatprep.subr.mxu0 0.0
        %4329 = vmatpush1.msra.mxu0 0.0
        %4330 = vmatprep.subr.mxu0 0.0
        %4331 = vmatpush1.msra.mxu0 0.0
        %4332 = vmatprep.subr.mxu0 0.0
        %4333 = vmatpush1.msra.mxu0 0.0
        %4334 = vmatprep.subr.mxu0 0.0
        %4335 = vmatpush1.msra.mxu0 0.0
        %4336 = vmatprep.subr.mxu0 0.0
        %4337 = vmatpush1.msra.mxu0 0.0
        %4338 = vmatprep.subr.mxu0 0.0
        %4339 = vmatpush1.msra.mxu0 0.0
        %4340 = vmatprep.subr.mxu0 0.0
        %4341 = vmatpush1.msra.mxu0 0.0
        %4342 = vmatprep.subr.mxu0 0.0
        %4343 = vmatpush1.msra.mxu0 0.0
        %4344 = vmatprep.subr.mxu0 0.0
        %4345 = vmatpush1.msra.mxu0 0.0
        %4346 = vmatprep.subr.mxu0 0.0
        %4347 = vmatpush1.msra.mxu0 0.0
        %4348 = vmatprep.subr.mxu0 0.0
        %4349 = vmatpush1.msra.mxu0 0.0
        %4350 = vmatprep.subr.mxu0 0.0
        %4351 = vmatpush1.msra.mxu0 %v4315
        %4352 = vmatprep.subr.mxu0 0.0
        %4353 = vmatpush2.msra.mxu0 0.0
        %4354 = vmatprep.subr.mxu0 0.0
        %4355 = vmatpush2.msra.mxu0 0.0
        %4356 = vmatprep.subr.mxu0 0.0
        %4357 = vmatpush2.msra.mxu0 0.0
        %4358 = vmatprep.subr.mxu0 0.0
        %4359 = vmatpush2.msra.mxu0 0.0
        %4360 = vmatprep.subr.mxu0 0.0
        %4361 = vmatpush2.msra.mxu0 0.0
        %4362 = vmatprep.subr.mxu0 0.0
        %4363 = vmatpush2.msra.mxu0 0.0
        %4364 = vmatprep.subr.mxu0 0.0
        %4365 = vmatpush2.msra.mxu0 0.0
        %4366 = vmatprep.subr.mxu0 0.0
        %4367 = vmatpush2.msra.mxu0 0.0
        %4368 = vmatprep.subr.mxu0 0.0
        %4369 = vmatpush2.msra.mxu0 0.0
        %4370 = vmatprep.subr.mxu0 0.0
        %4371 = vmatpush2.msra.mxu0 0.0
        %4372 = vmatprep.subr.mxu0 0.0
        %4373 = vmatpush2.msra.mxu0 0.0
        %4374 = vmatprep.subr.mxu0 0.0
        %4375 = vmatpush2.msra.mxu0 0.0
        %4376 = vmatprep.subr.mxu0 0.0
        %4377 = vmatpush2.msra.mxu0 0.0
        %4378 = vmatprep.subr.mxu0 0.0
        %4379 = vmatpush2.msra.mxu0 0.0
        %4380 = vmatprep.subr.mxu0 0.0
        %4381 = vmatpush2.msra.mxu0 0.0
        %4382 = vmatprep.subr.mxu0 0.0
        %4383 = vmatpush2.msra.mxu0 0.0
        %4384 = vmatprep.mubr.f32.mxu0 0.0
        %4385 = vmatmul.mubr.f32.gmra.mxu0 %v4318
        %v4386 = vpop.f32.mrf.mxu0
        %v4387 = vadd.f32 0.0, %v4386
        %v4388 = vpop.f32.mrf.mxu0
        %4389 = vdwg.mxu0
        %4390 = vrot.lane.b32.xlu0 %v982, 120
        %v4391 = vpop.permute.xlu0 %4390
        %v4394 = vsel %vm3953, %v4078, 0
        %4396 = vmatprep.subr.mxu0 0.0
        %4397 = vmatpush1.msra.mxu0 0.0
        %4398 = vmatprep.subr.mxu0 0.0
        %4399 = vmatpush1.msra.mxu0 0.0
        %4400 = vmatprep.subr.mxu0 0.0
        %4401 = vmatpush1.msra.mxu0 0.0
        %4402 = vmatprep.subr.mxu0 0.0
        %4403 = vmatpush1.msra.mxu0 0.0
        %4404 = vmatprep.subr.mxu0 0.0
        %4405 = vmatpush1.msra.mxu0 0.0
        %4406 = vmatprep.subr.mxu0 0.0
        %4407 = vmatpush1.msra.mxu0 0.0
        %4408 = vmatprep.subr.mxu0 0.0
        %4409 = vmatpush1.msra.mxu0 0.0
        %4410 = vmatprep.subr.mxu0 0.0
        %4411 = vmatpush1.msra.mxu0 0.0
        %4412 = vmatprep.subr.mxu0 0.0
        %4413 = vmatpush1.msra.mxu0 0.0
        %4414 = vmatprep.subr.mxu0 0.0
        %4415 = vmatpush1.msra.mxu0 0.0
        %4416 = vmatprep.subr.mxu0 0.0
        %4417 = vmatpush1.msra.mxu0 0.0
        %4418 = vmatprep.subr.mxu0 0.0
        %4419 = vmatpush1.msra.mxu0 0.0
        %4420 = vmatprep.subr.mxu0 0.0
        %4421 = vmatpush1.msra.mxu0 0.0
        %4422 = vmatprep.subr.mxu0 0.0
        %4423 = vmatpush1.msra.mxu0 0.0
        %4424 = vmatprep.subr.mxu0 0.0
        %4425 = vmatpush1.msra.mxu0 0.0
        %4426 = vmatprep.subr.mxu0 0.0
        %4427 = vmatpush1.msra.mxu0 %v4391
        %4428 = vmatprep.subr.mxu0 0.0
        %4429 = vmatpush2.msra.mxu0 0.0
        %4430 = vmatprep.subr.mxu0 0.0
        %4431 = vmatpush2.msra.mxu0 0.0
        %4432 = vmatprep.subr.mxu0 0.0
        %4433 = vmatpush2.msra.mxu0 0.0
        %4434 = vmatprep.subr.mxu0 0.0
        %4435 = vmatpush2.msra.mxu0 0.0
        %4436 = vmatprep.subr.mxu0 0.0
        %4437 = vmatpush2.msra.mxu0 0.0
        %4438 = vmatprep.subr.mxu0 0.0
        %4439 = vmatpush2.msra.mxu0 0.0
        %4440 = vmatprep.subr.mxu0 0.0
        %4441 = vmatpush2.msra.mxu0 0.0
        %4442 = vmatprep.subr.mxu0 0.0
        %4443 = vmatpush2.msra.mxu0 0.0
        %4444 = vmatprep.subr.mxu0 0.0
        %4445 = vmatpush2.msra.mxu0 0.0
        %4446 = vmatprep.subr.mxu0 0.0
        %4447 = vmatpush2.msra.mxu0 0.0
        %4448 = vmatprep.subr.mxu0 0.0
        %4449 = vmatpush2.msra.mxu0 0.0
        %4450 = vmatprep.subr.mxu0 0.0
        %4451 = vmatpush2.msra.mxu0 0.0
        %4452 = vmatprep.subr.mxu0 0.0
        %4453 = vmatpush2.msra.mxu0 0.0
        %4454 = vmatprep.subr.mxu0 0.0
        %4455 = vmatpush2.msra.mxu0 0.0
        %4456 = vmatprep.subr.mxu0 0.0
        %4457 = vmatpush2.msra.mxu0 0.0
        %4458 = vmatprep.subr.mxu0 0.0
        %4459 = vmatpush2.msra.mxu0 0.0
        %4460 = vmatprep.mubr.f32.mxu0 0.0
        %4461 = vmatmul.mubr.f32.gmra.mxu0 %v4394
        %v4462 = vpop.f32.mrf.mxu0
        %v4463 = vadd.f32 0.0, %v4462
        %v4464 = vpop.f32.mrf.mxu0
        %4465 = vdwg.mxu0
        %4466 = vrot.lane.b32.xlu0 %v1052, 120
        %v4467 = vpop.permute.xlu0 %4466
        %v4470 = vsel %vm3953, %v4079, 0
        %4472 = vmatprep.subr.mxu0 0.0
        %4473 = vmatpush1.msra.mxu0 0.0
        %4474 = vmatprep.subr.mxu0 0.0
        %4475 = vmatpush1.msra.mxu0 0.0
        %4476 = vmatprep.subr.mxu0 0.0
        %4477 = vmatpush1.msra.mxu0 0.0
        %4478 = vmatprep.subr.mxu0 0.0
        %4479 = vmatpush1.msra.mxu0 0.0
        %4480 = vmatprep.subr.mxu0 0.0
        %4481 = vmatpush1.msra.mxu0 0.0
        %4482 = vmatprep.subr.mxu0 0.0
        %4483 = vmatpush1.msra.mxu0 0.0
        %4484 = vmatprep.subr.mxu0 0.0
        %4485 = vmatpush1.msra.mxu0 0.0
        %4486 = vmatprep.subr.mxu0 0.0
        %4487 = vmatpush1.msra.mxu0 0.0
        %4488 = vmatprep.subr.mxu0 0.0
        %4489 = vmatpush1.msra.mxu0 0.0
        %4490 = vmatprep.subr.mxu0 0.0
        %4491 = vmatpush1.msra.mxu0 0.0
        %4492 = vmatprep.subr.mxu0 0.0
        %4493 = vmatpush1.msra.mxu0 0.0
        %4494 = vmatprep.subr.mxu0 0.0
        %4495 = vmatpush1.msra.mxu0 0.0
        %4496 = vmatprep.subr.mxu0 0.0
        %4497 = vmatpush1.msra.mxu0 0.0
        %4498 = vmatprep.subr.mxu0 0.0
        %4499 = vmatpush1.msra.mxu0 0.0
        %4500 = vmatprep.subr.mxu0 0.0
        %4501 = vmatpush1.msra.mxu0 0.0
        %4502 = vmatprep.subr.mxu0 0.0
        %4503 = vmatpush1.msra.mxu0 %v4467
        %4504 = vmatprep.subr.mxu0 0.0
        %4505 = vmatpush2.msra.mxu0 0.0
        %4506 = vmatprep.subr.mxu0 0.0
        %4507 = vmatpush2.msra.mxu0 0.0
        %4508 = vmatprep.subr.mxu0 0.0
        %4509 = vmatpush2.msra.mxu0 0.0
        %4510 = vmatprep.subr.mxu0 0.0
        %4511 = vmatpush2.msra.mxu0 0.0
        %4512 = vmatprep.subr.mxu0 0.0
        %4513 = vmatpush2.msra.mxu0 0.0
        %4514 = vmatprep.subr.mxu0 0.0
        %4515 = vmatpush2.msra.mxu0 0.0
        %4516 = vmatprep.subr.mxu0 0.0
        %4517 = vmatpush2.msra.mxu0 0.0
        %4518 = vmatprep.subr.mxu0 0.0
        %4519 = vmatpush2.msra.mxu0 0.0
        %4520 = vmatprep.subr.mxu0 0.0
        %4521 = vmatpush2.msra.mxu0 0.0
        %4522 = vmatprep.subr.mxu0 0.0
        %4523 = vmatpush2.msra.mxu0 0.0
        %4524 = vmatprep.subr.mxu0 0.0
        %4525 = vmatpush2.msra.mxu0 0.0
        %4526 = vmatprep.subr.mxu0 0.0
        %4527 = vmatpush2.msra.mxu0 0.0
        %4528 = vmatprep.subr.mxu0 0.0
        %4529 = vmatpush2.msra.mxu0 0.0
        %4530 = vmatprep.subr.mxu0 0.0
        %4531 = vmatpush2.msra.mxu0 0.0
        %4532 = vmatprep.subr.mxu0 0.0
        %4533 = vmatpush2.msra.mxu0 0.0
        %4534 = vmatprep.subr.mxu0 0.0
        %4535 = vmatpush2.msra.mxu0 0.0
        %4536 = vmatprep.mubr.f32.mxu0 0.0
        %4537 = vmatmul.mubr.f32.gmra.mxu0 %v4470
        %v4538 = vpop.f32.mrf.mxu0
        %v4539 = vadd.f32 0.0, %v4538
        %v4540 = vpop.f32.mrf.mxu0
        %4541 = vdwg.mxu0
        %4542 = vrot.lane.b32.xlu0 %v1122, 120
        %v4543 = vpop.permute.xlu0 %4542
        %v4546 = vsel %vm3953, %v4080, 0
        %4548 = vmatprep.subr.mxu0 0.0
        %4549 = vmatpush1.msra.mxu0 0.0
        %4550 = vmatprep.subr.mxu0 0.0
        %4551 = vmatpush1.msra.mxu0 0.0
        %4552 = vmatprep.subr.mxu0 0.0
        %4553 = vmatpush1.msra.mxu0 0.0
        %4554 = vmatprep.subr.mxu0 0.0
        %4555 = vmatpush1.msra.mxu0 0.0
        %4556 = vmatprep.subr.mxu0 0.0
        %4557 = vmatpush1.msra.mxu0 0.0
        %4558 = vmatprep.subr.mxu0 0.0
        %4559 = vmatpush1.msra.mxu0 0.0
        %4560 = vmatprep.subr.mxu0 0.0
        %4561 = vmatpush1.msra.mxu0 0.0
        %4562 = vmatprep.subr.mxu0 0.0
        %4563 = vmatpush1.msra.mxu0 0.0
        %4564 = vmatprep.subr.mxu0 0.0
        %4565 = vmatpush1.msra.mxu0 0.0
        %4566 = vmatprep.subr.mxu0 0.0
        %4567 = vmatpush1.msra.mxu0 0.0
        %4568 = vmatprep.subr.mxu0 0.0
        %4569 = vmatpush1.msra.mxu0 0.0
        %4570 = vmatprep.subr.mxu0 0.0
        %4571 = vmatpush1.msra.mxu0 0.0
        %4572 = vmatprep.subr.mxu0 0.0
        %4573 = vmatpush1.msra.mxu0 0.0
        %4574 = vmatprep.subr.mxu0 0.0
        %4575 = vmatpush1.msra.mxu0 0.0
        %4576 = vmatprep.subr.mxu0 0.0
        %4577 = vmatpush1.msra.mxu0 0.0
        %4578 = vmatprep.subr.mxu0 0.0
        %4579 = vmatpush1.msra.mxu0 %v4543
        %4580 = vmatprep.subr.mxu0 0.0
        %4581 = vmatpush2.msra.mxu0 0.0
        %4582 = vmatprep.subr.mxu0 0.0
        %4583 = vmatpush2.msra.mxu0 0.0
        %4584 = vmatprep.subr.mxu0 0.0
        %4585 = vmatpush2.msra.mxu0 0.0
        %4586 = vmatprep.subr.mxu0 0.0
        %4587 = vmatpush2.msra.mxu0 0.0
        %4588 = vmatprep.subr.mxu0 0.0
        %4589 = vmatpush2.msra.mxu0 0.0
        %4590 = vmatprep.subr.mxu0 0.0
        %4591 = vmatpush2.msra.mxu0 0.0
        %4592 = vmatprep.subr.mxu0 0.0
        %4593 = vmatpush2.msra.mxu0 0.0
        %4594 = vmatprep.subr.mxu0 0.0
        %4595 = vmatpush2.msra.mxu0 0.0
        %4596 = vmatprep.subr.mxu0 0.0
        %4597 = vmatpush2.msra.mxu0 0.0
        %4598 = vmatprep.subr.mxu0 0.0
        %4599 = vmatpush2.msra.mxu0 0.0
        %4600 = vmatprep.subr.mxu0 0.0
        %4601 = vmatpush2.msra.mxu0 0.0
        %4602 = vmatprep.subr.mxu0 0.0
        %4603 = vmatpush2.msra.mxu0 0.0
        %4604 = vmatprep.subr.mxu0 0.0
        %4605 = vmatpush2.msra.mxu0 0.0
        %4606 = vmatprep.subr.mxu0 0.0
        %4607 = vmatpush2.msra.mxu0 0.0
        %4608 = vmatprep.subr.mxu0 0.0
        %4609 = vmatpush2.msra.mxu0 0.0
        %4610 = vmatprep.subr.mxu0 0.0
        %4611 = vmatpush2.msra.mxu0 0.0
        %4612 = vmatprep.mubr.f32.mxu0 0.0
        %4613 = vmatmul.mubr.f32.gmra.mxu0 %v4546
        %v4614 = vpop.f32.mrf.mxu0
        %v4615 = vadd.f32 0.0, %v4614
        %v4616 = vpop.f32.mrf.mxu0
        %4617 = vdwg.mxu0
        %4618 = vrot.lane.b32.xlu0 %v1192, 120
        %v4619 = vpop.permute.xlu0 %4618
        %v4622 = vsel %vm3953, %v4081, 0
        %4624 = vmatprep.subr.mxu0 0.0
        %4625 = vmatpush1.msra.mxu0 0.0
        %4626 = vmatprep.subr.mxu0 0.0
        %4627 = vmatpush1.msra.mxu0 0.0
        %4628 = vmatprep.subr.mxu0 0.0
        %4629 = vmatpush1.msra.mxu0 0.0
        %4630 = vmatprep.subr.mxu0 0.0
        %4631 = vmatpush1.msra.mxu0 0.0
        %4632 = vmatprep.subr.mxu0 0.0
        %4633 = vmatpush1.msra.mxu0 0.0
        %4634 = vmatprep.subr.mxu0 0.0
        %4635 = vmatpush1.msra.mxu0 0.0
        %4636 = vmatprep.subr.mxu0 0.0
        %4637 = vmatpush1.msra.mxu0 0.0
        %4638 = vmatprep.subr.mxu0 0.0
        %4639 = vmatpush1.msra.mxu0 0.0
        %4640 = vmatprep.subr.mxu0 0.0
        %4641 = vmatpush1.msra.mxu0 0.0
        %4642 = vmatprep.subr.mxu0 0.0
        %4643 = vmatpush1.msra.mxu0 0.0
        %4644 = vmatprep.subr.mxu0 0.0
        %4645 = vmatpush1.msra.mxu0 0.0
        %4646 = vmatprep.subr.mxu0 0.0
        %4647 = vmatpush1.msra.mxu0 0.0
        %4648 = vmatprep.subr.mxu0 0.0
        %4649 = vmatpush1.msra.mxu0 0.0
        %4650 = vmatprep.subr.mxu0 0.0
        %4651 = vmatpush1.msra.mxu0 0.0
        %4652 = vmatprep.subr.mxu0 0.0
        %4653 = vmatpush1.msra.mxu0 0.0
        %4654 = vmatprep.subr.mxu0 0.0
        %4655 = vmatpush1.msra.mxu0 %v4619
        %4656 = vmatprep.subr.mxu0 0.0
        %4657 = vmatpush2.msra.mxu0 0.0
        %4658 = vmatprep.subr.mxu0 0.0
        %4659 = vmatpush2.msra.mxu0 0.0
        %4660 = vmatprep.subr.mxu0 0.0
        %4661 = vmatpush2.msra.mxu0 0.0
        %4662 = vmatprep.subr.mxu0 0.0
        %4663 = vmatpush2.msra.mxu0 0.0
        %4664 = vmatprep.subr.mxu0 0.0
        %4665 = vmatpush2.msra.mxu0 0.0
        %4666 = vmatprep.subr.mxu0 0.0
        %4667 = vmatpush2.msra.mxu0 0.0
        %4668 = vmatprep.subr.mxu0 0.0
        %4669 = vmatpush2.msra.mxu0 0.0
        %4670 = vmatprep.subr.mxu0 0.0
        %4671 = vmatpush2.msra.mxu0 0.0
        %4672 = vmatprep.subr.mxu0 0.0
        %4673 = vmatpush2.msra.mxu0 0.0
        %4674 = vmatprep.subr.mxu0 0.0
        %4675 = vmatpush2.msra.mxu0 0.0
        %4676 = vmatprep.subr.mxu0 0.0
        %4677 = vmatpush2.msra.mxu0 0.0
        %4678 = vmatprep.subr.mxu0 0.0
        %4679 = vmatpush2.msra.mxu0 0.0
        %4680 = vmatprep.subr.mxu0 0.0
        %4681 = vmatpush2.msra.mxu0 0.0
        %4682 = vmatprep.subr.mxu0 0.0
        %4683 = vmatpush2.msra.mxu0 0.0
        %4684 = vmatprep.subr.mxu0 0.0
        %4685 = vmatpush2.msra.mxu0 0.0
        %4686 = vmatprep.subr.mxu0 0.0
        %4687 = vmatpush2.msra.mxu0 0.0
        %4688 = vmatprep.mubr.f32.mxu0 0.0
        %4689 = vmatmul.mubr.f32.gmra.mxu0 %v4622
        %v4690 = vpop.f32.mrf.mxu0
        %v4691 = vadd.f32 0.0, %v4690
        %v4692 = vpop.f32.mrf.mxu0
        %4693 = vdwg.mxu0
        %4694 = vrot.lane.b32.xlu0 %v1262, 120
        %v4695 = vpop.permute.xlu0 %4694
        %v4698 = vsel %vm3953, %v4082, 0
        %4700 = vmatprep.subr.mxu0 0.0
        %4701 = vmatpush1.msra.mxu0 0.0
        %4702 = vmatprep.subr.mxu0 0.0
        %4703 = vmatpush1.msra.mxu0 0.0
        %4704 = vmatprep.subr.mxu0 0.0
        %4705 = vmatpush1.msra.mxu0 0.0
        %4706 = vmatprep.subr.mxu0 0.0
        %4707 = vmatpush1.msra.mxu0 0.0
        %4708 = vmatprep.subr.mxu0 0.0
        %4709 = vmatpush1.msra.mxu0 0.0
        %4710 = vmatprep.subr.mxu0 0.0
        %4711 = vmatpush1.msra.mxu0 0.0
        %4712 = vmatprep.subr.mxu0 0.0
        %4713 = vmatpush1.msra.mxu0 0.0
        %4714 = vmatprep.subr.mxu0 0.0
        %4715 = vmatpush1.msra.mxu0 0.0
        %4716 = vmatprep.subr.mxu0 0.0
        %4717 = vmatpush1.msra.mxu0 0.0
        %4718 = vmatprep.subr.mxu0 0.0
        %4719 = vmatpush1.msra.mxu0 0.0
        %4720 = vmatprep.subr.mxu0 0.0
        %4721 = vmatpush1.msra.mxu0 0.0
        %4722 = vmatprep.subr.mxu0 0.0
        %4723 = vmatpush1.msra.mxu0 0.0
        %4724 = vmatprep.subr.mxu0 0.0
        %4725 = vmatpush1.msra.mxu0 0.0
        %4726 = vmatprep.subr.mxu0 0.0
        %4727 = vmatpush1.msra.mxu0 0.0
        %4728 = vmatprep.subr.mxu0 0.0
        %4729 = vmatpush1.msra.mxu0 0.0
        %4730 = vmatprep.subr.mxu0 0.0
        %4731 = vmatpush1.msra.mxu0 %v4695
        %4732 = vmatprep.subr.mxu0 0.0
        %4733 = vmatpush2.msra.mxu0 0.0
        %4734 = vmatprep.subr.mxu0 0.0
        %4735 = vmatpush2.msra.mxu0 0.0
        %4736 = vmatprep.subr.mxu0 0.0
        %4737 = vmatpush2.msra.mxu0 0.0
        %4738 = vmatprep.subr.mxu0 0.0
        %4739 = vmatpush2.msra.mxu0 0.0
        %4740 = vmatprep.subr.mxu0 0.0
        %4741 = vmatpush2.msra.mxu0 0.0
        %4742 = vmatprep.subr.mxu0 0.0
        %4743 = vmatpush2.msra.mxu0 0.0
        %4744 = vmatprep.subr.mxu0 0.0
        %4745 = vmatpush2.msra.mxu0 0.0
        %4746 = vmatprep.subr.mxu0 0.0
        %4747 = vmatpush2.msra.mxu0 0.0
        %4748 = vmatprep.subr.mxu0 0.0
        %4749 = vmatpush2.msra.mxu0 0.0
        %4750 = vmatprep.subr.mxu0 0.0
        %4751 = vmatpush2.msra.mxu0 0.0
        %4752 = vmatprep.subr.mxu0 0.0
        %4753 = vmatpush2.msra.mxu0 0.0
        %4754 = vmatprep.subr.mxu0 0.0
        %4755 = vmatpush2.msra.mxu0 0.0
        %4756 = vmatprep.subr.mxu0 0.0
        %4757 = vmatpush2.msra.mxu0 0.0
        %4758 = vmatprep.subr.mxu0 0.0
        %4759 = vmatpush2.msra.mxu0 0.0
        %4760 = vmatprep.subr.mxu0 0.0
        %4761 = vmatpush2.msra.mxu0 0.0
        %4762 = vmatprep.subr.mxu0 0.0
        %4763 = vmatpush2.msra.mxu0 0.0
        %4764 = vmatprep.mubr.f32.mxu0 0.0
        %4765 = vmatmul.mubr.f32.gmra.mxu0 %v4698
        %v4766 = vpop.f32.mrf.mxu0
        %v4767 = vadd.f32 0.0, %v4766
        %v4768 = vpop.f32.mrf.mxu0
        %4769 = vdwg.mxu0
        %4770 = vrot.lane.b32.xlu0 %v1332, 120
        %v4771 = vpop.permute.xlu0 %4770
        %v4774 = vsel %vm3953, %v4083, 0
        %4776 = vmatprep.subr.mxu0 0.0
        %4777 = vmatpush1.msra.mxu0 0.0
        %4778 = vmatprep.subr.mxu0 0.0
        %4779 = vmatpush1.msra.mxu0 0.0
        %4780 = vmatprep.subr.mxu0 0.0
        %4781 = vmatpush1.msra.mxu0 0.0
        %4782 = vmatprep.subr.mxu0 0.0
        %4783 = vmatpush1.msra.mxu0 0.0
        %4784 = vmatprep.subr.mxu0 0.0
        %4785 = vmatpush1.msra.mxu0 0.0
        %4786 = vmatprep.subr.mxu0 0.0
        %4787 = vmatpush1.msra.mxu0 0.0
        %4788 = vmatprep.subr.mxu0 0.0
        %4789 = vmatpush1.msra.mxu0 0.0
        %4790 = vmatprep.subr.mxu0 0.0
        %4791 = vmatpush1.msra.mxu0 0.0
        %4792 = vmatprep.subr.mxu0 0.0
        %4793 = vmatpush1.msra.mxu0 0.0
        %4794 = vmatprep.subr.mxu0 0.0
        %4795 = vmatpush1.msra.mxu0 0.0
        %4796 = vmatprep.subr.mxu0 0.0
        %4797 = vmatpush1.msra.mxu0 0.0
        %4798 = vmatprep.subr.mxu0 0.0
        %4799 = vmatpush1.msra.mxu0 0.0
        %4800 = vmatprep.subr.mxu0 0.0
        %4801 = vmatpush1.msra.mxu0 0.0
        %4802 = vmatprep.subr.mxu0 0.0
        %4803 = vmatpush1.msra.mxu0 0.0
        %4804 = vmatprep.subr.mxu0 0.0
        %4805 = vmatpush1.msra.mxu0 0.0
        %4806 = vmatprep.subr.mxu0 0.0
        %4807 = vmatpush1.msra.mxu0 %v4771
        %4808 = vmatprep.subr.mxu0 0.0
        %4809 = vmatpush2.msra.mxu0 0.0
        %4810 = vmatprep.subr.mxu0 0.0
        %4811 = vmatpush2.msra.mxu0 0.0
        %4812 = vmatprep.subr.mxu0 0.0
        %4813 = vmatpush2.msra.mxu0 0.0
        %4814 = vmatprep.subr.mxu0 0.0
        %4815 = vmatpush2.msra.mxu0 0.0
        %4816 = vmatprep.subr.mxu0 0.0
        %4817 = vmatpush2.msra.mxu0 0.0
        %4818 = vmatprep.subr.mxu0 0.0
        %4819 = vmatpush2.msra.mxu0 0.0
        %4820 = vmatprep.subr.mxu0 0.0
        %4821 = vmatpush2.msra.mxu0 0.0
        %4822 = vmatprep.subr.mxu0 0.0
        %4823 = vmatpush2.msra.mxu0 0.0
        %4824 = vmatprep.subr.mxu0 0.0
        %4825 = vmatpush2.msra.mxu0 0.0
        %4826 = vmatprep.subr.mxu0 0.0
        %4827 = vmatpush2.msra.mxu0 0.0
        %4828 = vmatprep.subr.mxu0 0.0
        %4829 = vmatpush2.msra.mxu0 0.0
        %4830 = vmatprep.subr.mxu0 0.0
        %4831 = vmatpush2.msra.mxu0 0.0
        %4832 = vmatprep.subr.mxu0 0.0
        %4833 = vmatpush2.msra.mxu0 0.0
        %4834 = vmatprep.subr.mxu0 0.0
        %4835 = vmatpush2.msra.mxu0 0.0
        %4836 = vmatprep.subr.mxu0 0.0
        %4837 = vmatpush2.msra.mxu0 0.0
        %4838 = vmatprep.subr.mxu0 0.0
        %4839 = vmatpush2.msra.mxu0 0.0
        %4840 = vmatprep.mubr.f32.mxu0 0.0
        %4841 = vmatmul.mubr.f32.gmra.mxu0 %v4774
        %v4842 = vpop.f32.mrf.mxu0
        %v4843 = vadd.f32 0.0, %v4842
        %v4844 = vpop.f32.mrf.mxu0
        %4845 = vdwg.mxu0
        %4846 = vrot.lane.b32.xlu0 %v1402, 120
        %v4847 = vpop.permute.xlu0 %4846
        %v4850 = vsel %vm3953, %v4084, 0
        %4852 = vmatprep.subr.mxu0 0.0
        %4853 = vmatpush1.msra.mxu0 0.0
        %4854 = vmatprep.subr.mxu0 0.0
        %4855 = vmatpush1.msra.mxu0 0.0
        %4856 = vmatprep.subr.mxu0 0.0
        %4857 = vmatpush1.msra.mxu0 0.0
        %4858 = vmatprep.subr.mxu0 0.0
        %4859 = vmatpush1.msra.mxu0 0.0
        %4860 = vmatprep.subr.mxu0 0.0
        %4861 = vmatpush1.msra.mxu0 0.0
        %4862 = vmatprep.subr.mxu0 0.0
        %4863 = vmatpush1.msra.mxu0 0.0
        %4864 = vmatprep.subr.mxu0 0.0
        %4865 = vmatpush1.msra.mxu0 0.0
        %4866 = vmatprep.subr.mxu0 0.0
        %4867 = vmatpush1.msra.mxu0 0.0
        %4868 = vmatprep.subr.mxu0 0.0
        %4869 = vmatpush1.msra.mxu0 0.0
        %4870 = vmatprep.subr.mxu0 0.0
        %4871 = vmatpush1.msra.mxu0 0.0
        %4872 = vmatprep.subr.mxu0 0.0
        %4873 = vmatpush1.msra.mxu0 0.0
        %4874 = vmatprep.subr.mxu0 0.0
        %4875 = vmatpush1.msra.mxu0 0.0
        %4876 = vmatprep.subr.mxu0 0.0
        %4877 = vmatpush1.msra.mxu0 0.0
        %4878 = vmatprep.subr.mxu0 0.0
        %4879 = vmatpush1.msra.mxu0 0.0
        %4880 = vmatprep.subr.mxu0 0.0
        %4881 = vmatpush1.msra.mxu0 0.0
        %4882 = vmatprep.subr.mxu0 0.0
        %4883 = vmatpush1.msra.mxu0 %v4847
        %4884 = vmatprep.subr.mxu0 0.0
        %4885 = vmatpush2.msra.mxu0 0.0
        %4886 = vmatprep.subr.mxu0 0.0
        %4887 = vmatpush2.msra.mxu0 0.0
        %4888 = vmatprep.subr.mxu0 0.0
        %4889 = vmatpush2.msra.mxu0 0.0
        %4890 = vmatprep.subr.mxu0 0.0
        %4891 = vmatpush2.msra.mxu0 0.0
        %4892 = vmatprep.subr.mxu0 0.0
        %4893 = vmatpush2.msra.mxu0 0.0
        %4894 = vmatprep.subr.mxu0 0.0
        %4895 = vmatpush2.msra.mxu0 0.0
        %4896 = vmatprep.subr.mxu0 0.0
        %4897 = vmatpush2.msra.mxu0 0.0
        %4898 = vmatprep.subr.mxu0 0.0
        %4899 = vmatpush2.msra.mxu0 0.0
        %4900 = vmatprep.subr.mxu0 0.0
        %4901 = vmatpush2.msra.mxu0 0.0
        %4902 = vmatprep.subr.mxu0 0.0
        %4903 = vmatpush2.msra.mxu0 0.0
        %4904 = vmatprep.subr.mxu0 0.0
        %4905 = vmatpush2.msra.mxu0 0.0
        %4906 = vmatprep.subr.mxu0 0.0
        %4907 = vmatpush2.msra.mxu0 0.0
        %4908 = vmatprep.subr.mxu0 0.0
        %4909 = vmatpush2.msra.mxu0 0.0
        %4910 = vmatprep.subr.mxu0 0.0
        %4911 = vmatpush2.msra.mxu0 0.0
        %4912 = vmatprep.subr.mxu0 0.0
        %4913 = vmatpush2.msra.mxu0 0.0
        %4914 = vmatprep.subr.mxu0 0.0
        %4915 = vmatpush2.msra.mxu0 0.0
        %4916 = vmatprep.mubr.f32.mxu0 0.0
        %4917 = vmatmul.mubr.f32.gmra.mxu0 %v4850
        %v4918 = vpop.f32.mrf.mxu0
        %v4919 = vadd.f32 0.0, %v4918
        %v4920 = vpop.f32.mrf.mxu0
        %4921 = vdwg.mxu0
        %4922 = vrot.lane.b32.xlu0 %v1472, 120
        %v4923 = vpop.permute.xlu0 %4922
        %v4926 = vsel %vm3953, %v4085, 0
        %4928 = vmatprep.subr.mxu0 0.0
        %4929 = vmatpush1.msra.mxu0 0.0
        %4930 = vmatprep.subr.mxu0 0.0
        %4931 = vmatpush1.msra.mxu0 0.0
        %4932 = vmatprep.subr.mxu0 0.0
        %4933 = vmatpush1.msra.mxu0 0.0
        %4934 = vmatprep.subr.mxu0 0.0
        %4935 = vmatpush1.msra.mxu0 0.0
        %4936 = vmatprep.subr.mxu0 0.0
        %4937 = vmatpush1.msra.mxu0 0.0
        %4938 = vmatprep.subr.mxu0 0.0
        %4939 = vmatpush1.msra.mxu0 0.0
        %4940 = vmatprep.subr.mxu0 0.0
        %4941 = vmatpush1.msra.mxu0 0.0
        %4942 = vmatprep.subr.mxu0 0.0
        %4943 = vmatpush1.msra.mxu0 0.0
        %4944 = vmatprep.subr.mxu0 0.0
        %4945 = vmatpush1.msra.mxu0 0.0
        %4946 = vmatprep.subr.mxu0 0.0
        %4947 = vmatpush1.msra.mxu0 0.0
        %4948 = vmatprep.subr.mxu0 0.0
        %4949 = vmatpush1.msra.mxu0 0.0
        %4950 = vmatprep.subr.mxu0 0.0
        %4951 = vmatpush1.msra.mxu0 0.0
        %4952 = vmatprep.subr.mxu0 0.0
        %4953 = vmatpush1.msra.mxu0 0.0
        %4954 = vmatprep.subr.mxu0 0.0
        %4955 = vmatpush1.msra.mxu0 0.0
        %4956 = vmatprep.subr.mxu0 0.0
        %4957 = vmatpush1.msra.mxu0 0.0
        %4958 = vmatprep.subr.mxu0 0.0
        %4959 = vmatpush1.msra.mxu0 %v4923
        %4960 = vmatprep.subr.mxu0 0.0
        %4961 = vmatpush2.msra.mxu0 0.0
        %4962 = vmatprep.subr.mxu0 0.0
        %4963 = vmatpush2.msra.mxu0 0.0
        %4964 = vmatprep.subr.mxu0 0.0
        %4965 = vmatpush2.msra.mxu0 0.0
        %4966 = vmatprep.subr.mxu0 0.0
        %4967 = vmatpush2.msra.mxu0 0.0
        %4968 = vmatprep.subr.mxu0 0.0
        %4969 = vmatpush2.msra.mxu0 0.0
        %4970 = vmatprep.subr.mxu0 0.0
        %4971 = vmatpush2.msra.mxu0 0.0
        %4972 = vmatprep.subr.mxu0 0.0
        %4973 = vmatpush2.msra.mxu0 0.0
        %4974 = vmatprep.subr.mxu0 0.0
        %4975 = vmatpush2.msra.mxu0 0.0
        %4976 = vmatprep.subr.mxu0 0.0
        %4977 = vmatpush2.msra.mxu0 0.0
        %4978 = vmatprep.subr.mxu0 0.0
        %4979 = vmatpush2.msra.mxu0 0.0
        %4980 = vmatprep.subr.mxu0 0.0
        %4981 = vmatpush2.msra.mxu0 0.0
        %4982 = vmatprep.subr.mxu0 0.0
        %4983 = vmatpush2.msra.mxu0 0.0
        %4984 = vmatprep.subr.mxu0 0.0
        %4985 = vmatpush2.msra.mxu0 0.0
        %4986 = vmatprep.subr.mxu0 0.0
        %4987 = vmatpush2.msra.mxu0 0.0
        %4988 = vmatprep.subr.mxu0 0.0
        %4989 = vmatpush2.msra.mxu0 0.0
        %4990 = vmatprep.subr.mxu0 0.0
        %4991 = vmatpush2.msra.mxu0 0.0
        %4992 = vmatprep.mubr.f32.mxu0 0.0
        %4993 = vmatmul.mubr.f32.gmra.mxu0 %v4926
        %v4994 = vpop.f32.mrf.mxu0
        %v4995 = vadd.f32 0.0, %v4994
        %v4996 = vpop.f32.mrf.mxu0
        %4997 = vdwg.mxu0
        %4998 = vst.msk [vmem:[%s491] sm:$0xff] %vm2998, %v4159
        %4999 = vst.msk [vmem:[%s491 + $0x8] sm:$0xff] %vm2998, %v4235
        %5000 = vst.msk [vmem:[%s491 + $0x10] sm:$0xff] %vm2998, %v4311
        %5001 = vst.msk [vmem:[%s491 + $0x18] sm:$0xff] %vm2998, %v4387
        %5002 = vst.msk [vmem:[%s491 + $0x20] sm:$0xff] %vm2998, %v4463
        %5003 = vst.msk [vmem:[%s491 + $0x28] sm:$0xff] %vm2998, %v4539
        %5004 = vst.msk [vmem:[%s491 + $0x30] sm:$0xff] %vm2998, %v4615
        %5005 = vst.msk [vmem:[%s491 + $0x38] sm:$0xff] %vm2998, %v4691
        %5006 = vst.msk [vmem:[%s491 + $0x40] sm:$0xff] %vm2998, %v4767
        %5007 = vst.msk [vmem:[%s491 + $0x48] sm:$0xff] %vm2998, %v4843
        %5008 = vst.msk [vmem:[%s491 + $0x50] sm:$0xff] %vm2998, %v4919
        %5009 = vst.msk [vmem:[%s491 + $0x58] sm:$0xff] %vm2998, %v4995
        %v5011 = vsel %vm2998, %v2573, 0
        %v5014 = vsel %vm2998, %v2705, 0
        %5016 = vmatprep.subr.mxu0 0.0
        %5017 = vmatpush1.xpose.msra.mxu0 0.0
        %5018 = vmatprep.subr.mxu0 0.0
        %5019 = vmatpush1.xpose.msra.mxu0 0.0
        %5020 = vmatprep.subr.mxu0 0.0
        %5021 = vmatpush1.xpose.msra.mxu0 0.0
        %5022 = vmatprep.subr.mxu0 0.0
        %5023 = vmatpush1.xpose.msra.mxu0 0.0
        %5024 = vmatprep.subr.mxu0 0.0
        %5025 = vmatpush1.xpose.msra.mxu0 0.0
        %5026 = vmatprep.subr.mxu0 0.0
        %5027 = vmatpush1.xpose.msra.mxu0 0.0
        %5028 = vmatprep.subr.mxu0 0.0
        %5029 = vmatpush1.xpose.msra.mxu0 0.0
        %5030 = vmatprep.subr.mxu0 0.0
        %5031 = vmatpush1.xpose.msra.mxu0 0.0
        %5032 = vmatprep.subr.mxu0 0.0
        %5033 = vmatpush1.xpose.msra.mxu0 0.0
        %5034 = vmatprep.subr.mxu0 0.0
        %5035 = vmatpush1.xpose.msra.mxu0 0.0
        %5036 = vmatprep.subr.mxu0 0.0
        %5037 = vmatpush1.xpose.msra.mxu0 0.0
        %5038 = vmatprep.subr.mxu0 0.0
        %5039 = vmatpush1.xpose.msra.mxu0 0.0
        %5040 = vmatprep.subr.mxu0 0.0
        %5041 = vmatpush1.xpose.msra.mxu0 0.0
        %5042 = vmatprep.subr.mxu0 0.0
        %5043 = vmatpush1.xpose.msra.mxu0 0.0
        %5044 = vmatprep.subr.mxu0 0.0
        %5045 = vmatpush1.xpose.msra.mxu0 0.0
        %5046 = vmatprep.subr.mxu0 0.0
        %5047 = vmatpush1.xpose.msra.mxu0 %v5014
        %5048 = vmatprep.subr.mxu0 0.0
        %5049 = vmatpush2.xpose.msra.mxu0 0.0
        %5050 = vmatprep.subr.mxu0 0.0
        %5051 = vmatpush2.xpose.msra.mxu0 0.0
        %5052 = vmatprep.subr.mxu0 0.0
        %5053 = vmatpush2.xpose.msra.mxu0 0.0
        %5054 = vmatprep.subr.mxu0 0.0
        %5055 = vmatpush2.xpose.msra.mxu0 0.0
        %5056 = vmatprep.subr.mxu0 0.0
        %5057 = vmatpush2.xpose.msra.mxu0 0.0
        %5058 = vmatprep.subr.mxu0 0.0
        %5059 = vmatpush2.xpose.msra.mxu0 0.0
        %5060 = vmatprep.subr.mxu0 0.0
        %5061 = vmatpush2.xpose.msra.mxu0 0.0
        %5062 = vmatprep.subr.mxu0 0.0
        %5063 = vmatpush2.xpose.msra.mxu0 0.0
        %5064 = vmatprep.subr.mxu0 0.0
        %5065 = vmatpush2.xpose.msra.mxu0 0.0
        %5066 = vmatprep.subr.mxu0 0.0
        %5067 = vmatpush2.xpose.msra.mxu0 0.0
        %5068 = vmatprep.subr.mxu0 0.0
        %5069 = vmatpush2.xpose.msra.mxu0 0.0
        %5070 = vmatprep.subr.mxu0 0.0
        %5071 = vmatpush2.xpose.msra.mxu0 0.0
        %5072 = vmatprep.subr.mxu0 0.0
        %5073 = vmatpush2.xpose.msra.mxu0 0.0
        %5074 = vmatprep.subr.mxu0 0.0
        %5075 = vmatpush2.xpose.msra.mxu0 0.0
        %5076 = vmatprep.subr.mxu0 0.0
        %5077 = vmatpush2.xpose.msra.mxu0 0.0
        %5078 = vmatprep.subr.mxu0 0.0
        %5079 = vmatpush2.xpose.msra.mxu0 0.0
        %5080 = vmatprep.mubr.f32.mxu0 0.0
        %5081 = vmatmul.mubr.f32.gmra.mxu0 %v5011
        %v5082 = vpop.f32.mrf.mxu0
        %v5083 = vadd.f32 %v2990, %v5082
        %v5084 = vpop.f32.mrf.mxu0
        %5085 = vdwg.mxu0
        %v5087 = vsel %vm2998, %v2574, 0
        %v5090 = vsel %vm2998, %v2706, 0
        %5092 = vmatprep.subr.mxu0 0.0
        %5093 = vmatpush1.xpose.msra.mxu0 0.0
        %5094 = vmatprep.subr.mxu0 0.0
        %5095 = vmatpush1.xpose.msra.mxu0 0.0
        %5096 = vmatprep.subr.mxu0 0.0
        %5097 = vmatpush1.xpose.msra.mxu0 0.0
        %5098 = vmatprep.subr.mxu0 0.0
        %5099 = vmatpush1.xpose.msra.mxu0 0.0
        %5100 = vmatprep.subr.mxu0 0.0
        %5101 = vmatpush1.xpose.msra.mxu0 0.0
        %5102 = vmatprep.subr.mxu0 0.0
        %5103 = vmatpush1.xpose.msra.mxu0 0.0
        %5104 = vmatprep.subr.mxu0 0.0
        %5105 = vmatpush1.xpose.msra.mxu0 0.0
        %5106 = vmatprep.subr.mxu0 0.0
        %5107 = vmatpush1.xpose.msra.mxu0 0.0
        %5108 = vmatprep.subr.mxu0 0.0
        %5109 = vmatpush1.xpose.msra.mxu0 0.0
        %5110 = vmatprep.subr.mxu0 0.0
        %5111 = vmatpush1.xpose.msra.mxu0 0.0
        %5112 = vmatprep.subr.mxu0 0.0
        %5113 = vmatpush1.xpose.msra.mxu0 0.0
        %5114 = vmatprep.subr.mxu0 0.0
        %5115 = vmatpush1.xpose.msra.mxu0 0.0
        %5116 = vmatprep.subr.mxu0 0.0
        %5117 = vmatpush1.xpose.msra.mxu0 0.0
        %5118 = vmatprep.subr.mxu0 0.0
        %5119 = vmatpush1.xpose.msra.mxu0 0.0
        %5120 = vmatprep.subr.mxu0 0.0
        %5121 = vmatpush1.xpose.msra.mxu0 0.0
        %5122 = vmatprep.subr.mxu0 0.0
        %5123 = vmatpush1.xpose.msra.mxu0 %v5090
        %5124 = vmatprep.subr.mxu0 0.0
        %5125 = vmatpush2.xpose.msra.mxu0 0.0
        %5126 = vmatprep.subr.mxu0 0.0
        %5127 = vmatpush2.xpose.msra.mxu0 0.0
        %5128 = vmatprep.subr.mxu0 0.0
        %5129 = vmatpush2.xpose.msra.mxu0 0.0
        %5130 = vmatprep.subr.mxu0 0.0
        %5131 = vmatpush2.xpose.msra.mxu0 0.0
        %5132 = vmatprep.subr.mxu0 0.0
        %5133 = vmatpush2.xpose.msra.mxu0 0.0
        %5134 = vmatprep.subr.mxu0 0.0
        %5135 = vmatpush2.xpose.msra.mxu0 0.0
        %5136 = vmatprep.subr.mxu0 0.0
        %5137 = vmatpush2.xpose.msra.mxu0 0.0
        %5138 = vmatprep.subr.mxu0 0.0
        %5139 = vmatpush2.xpose.msra.mxu0 0.0
        %5140 = vmatprep.subr.mxu0 0.0
        %5141 = vmatpush2.xpose.msra.mxu0 0.0
        %5142 = vmatprep.subr.mxu0 0.0
        %5143 = vmatpush2.xpose.msra.mxu0 0.0
        %5144 = vmatprep.subr.mxu0 0.0
        %5145 = vmatpush2.xpose.msra.mxu0 0.0
        %5146 = vmatprep.subr.mxu0 0.0
        %5147 = vmatpush2.xpose.msra.mxu0 0.0
        %5148 = vmatprep.subr.mxu0 0.0
        %5149 = vmatpush2.xpose.msra.mxu0 0.0
        %5150 = vmatprep.subr.mxu0 0.0
        %5151 = vmatpush2.xpose.msra.mxu0 0.0
        %5152 = vmatprep.subr.mxu0 0.0
        %5153 = vmatpush2.xpose.msra.mxu0 0.0
        %5154 = vmatprep.subr.mxu0 0.0
        %5155 = vmatpush2.xpose.msra.mxu0 0.0
        %5156 = vmatprep.mubr.f32.mxu0 0.0
        %5157 = vmatmul.mubr.f32.gmra.mxu0 %v5087
        %v5158 = vpop.f32.mrf.mxu0
        %v5159 = vadd.f32 %v2990, %v5158
        %v5160 = vpop.f32.mrf.mxu0
        %5161 = vdwg.mxu0
        %v5163 = vsel %vm2998, %v2575, 0
        %v5166 = vsel %vm2998, %v2707, 0
        %5168 = vmatprep.subr.mxu0 0.0
        %5169 = vmatpush1.xpose.msra.mxu0 0.0
        %5170 = vmatprep.subr.mxu0 0.0
        %5171 = vmatpush1.xpose.msra.mxu0 0.0
        %5172 = vmatprep.subr.mxu0 0.0
        %5173 = vmatpush1.xpose.msra.mxu0 0.0
        %5174 = vmatprep.subr.mxu0 0.0
        %5175 = vmatpush1.xpose.msra.mxu0 0.0
        %5176 = vmatprep.subr.mxu0 0.0
        %5177 = vmatpush1.xpose.msra.mxu0 0.0
        %5178 = vmatprep.subr.mxu0 0.0
        %5179 = vmatpush1.xpose.msra.mxu0 0.0
        %5180 = vmatprep.subr.mxu0 0.0
        %5181 = vmatpush1.xpose.msra.mxu0 0.0
        %5182 = vmatprep.subr.mxu0 0.0
        %5183 = vmatpush1.xpose.msra.mxu0 0.0
        %5184 = vmatprep.subr.mxu0 0.0
        %5185 = vmatpush1.xpose.msra.mxu0 0.0
        %5186 = vmatprep.subr.mxu0 0.0
        %5187 = vmatpush1.xpose.msra.mxu0 0.0
        %5188 = vmatprep.subr.mxu0 0.0
        %5189 = vmatpush1.xpose.msra.mxu0 0.0
        %5190 = vmatprep.subr.mxu0 0.0
        %5191 = vmatpush1.xpose.msra.mxu0 0.0
        %5192 = vmatprep.subr.mxu0 0.0
        %5193 = vmatpush1.xpose.msra.mxu0 0.0
        %5194 = vmatprep.subr.mxu0 0.0
        %5195 = vmatpush1.xpose.msra.mxu0 0.0
        %5196 = vmatprep.subr.mxu0 0.0
        %5197 = vmatpush1.xpose.msra.mxu0 0.0
        %5198 = vmatprep.subr.mxu0 0.0
        %5199 = vmatpush1.xpose.msra.mxu0 %v5166
        %5200 = vmatprep.subr.mxu0 0.0
        %5201 = vmatpush2.xpose.msra.mxu0 0.0
        %5202 = vmatprep.subr.mxu0 0.0
        %5203 = vmatpush2.xpose.msra.mxu0 0.0
        %5204 = vmatprep.subr.mxu0 0.0
        %5205 = vmatpush2.xpose.msra.mxu0 0.0
        %5206 = vmatprep.subr.mxu0 0.0
        %5207 = vmatpush2.xpose.msra.mxu0 0.0
        %5208 = vmatprep.subr.mxu0 0.0
        %5209 = vmatpush2.xpose.msra.mxu0 0.0
        %5210 = vmatprep.subr.mxu0 0.0
        %5211 = vmatpush2.xpose.msra.mxu0 0.0
        %5212 = vmatprep.subr.mxu0 0.0
        %5213 = vmatpush2.xpose.msra.mxu0 0.0
        %5214 = vmatprep.subr.mxu0 0.0
        %5215 = vmatpush2.xpose.msra.mxu0 0.0
        %5216 = vmatprep.subr.mxu0 0.0
        %5217 = vmatpush2.xpose.msra.mxu0 0.0
        %5218 = vmatprep.subr.mxu0 0.0
        %5219 = vmatpush2.xpose.msra.mxu0 0.0
        %5220 = vmatprep.subr.mxu0 0.0
        %5221 = vmatpush2.xpose.msra.mxu0 0.0
        %5222 = vmatprep.subr.mxu0 0.0
        %5223 = vmatpush2.xpose.msra.mxu0 0.0
        %5224 = vmatprep.subr.mxu0 0.0
        %5225 = vmatpush2.xpose.msra.mxu0 0.0
        %5226 = vmatprep.subr.mxu0 0.0
        %5227 = vmatpush2.xpose.msra.mxu0 0.0
        %5228 = vmatprep.subr.mxu0 0.0
        %5229 = vmatpush2.xpose.msra.mxu0 0.0
        %5230 = vmatprep.subr.mxu0 0.0
        %5231 = vmatpush2.xpose.msra.mxu0 0.0
        %5232 = vmatprep.mubr.f32.mxu0 0.0
        %5233 = vmatmul.mubr.f32.gmra.mxu0 %v5163
        %v5234 = vpop.f32.mrf.mxu0
        %v5235 = vadd.f32 %v2990, %v5234
        %v5236 = vpop.f32.mrf.mxu0
        %5237 = vdwg.mxu0
        %v5239 = vsel %vm2998, %v2576, 0
        %v5242 = vsel %vm2998, %v2708, 0
        %5244 = vmatprep.subr.mxu0 0.0
        %5245 = vmatpush1.xpose.msra.mxu0 0.0
        %5246 = vmatprep.subr.mxu0 0.0
        %5247 = vmatpush1.xpose.msra.mxu0 0.0
        %5248 = vmatprep.subr.mxu0 0.0
        %5249 = vmatpush1.xpose.msra.mxu0 0.0
        %5250 = vmatprep.subr.mxu0 0.0
        %5251 = vmatpush1.xpose.msra.mxu0 0.0
        %5252 = vmatprep.subr.mxu0 0.0
        %5253 = vmatpush1.xpose.msra.mxu0 0.0
        %5254 = vmatprep.subr.mxu0 0.0
        %5255 = vmatpush1.xpose.msra.mxu0 0.0
        %5256 = vmatprep.subr.mxu0 0.0
        %5257 = vmatpush1.xpose.msra.mxu0 0.0
        %5258 = vmatprep.subr.mxu0 0.0
        %5259 = vmatpush1.xpose.msra.mxu0 0.0
        %5260 = vmatprep.subr.mxu0 0.0
        %5261 = vmatpush1.xpose.msra.mxu0 0.0
        %5262 = vmatprep.subr.mxu0 0.0
        %5263 = vmatpush1.xpose.msra.mxu0 0.0
        %5264 = vmatprep.subr.mxu0 0.0
        %5265 = vmatpush1.xpose.msra.mxu0 0.0
        %5266 = vmatprep.subr.mxu0 0.0
        %5267 = vmatpush1.xpose.msra.mxu0 0.0
        %5268 = vmatprep.subr.mxu0 0.0
        %5269 = vmatpush1.xpose.msra.mxu0 0.0
        %5270 = vmatprep.subr.mxu0 0.0
        %5271 = vmatpush1.xpose.msra.mxu0 0.0
        %5272 = vmatprep.subr.mxu0 0.0
        %5273 = vmatpush1.xpose.msra.mxu0 0.0
        %5274 = vmatprep.subr.mxu0 0.0
        %5275 = vmatpush1.xpose.msra.mxu0 %v5242
        %5276 = vmatprep.subr.mxu0 0.0
        %5277 = vmatpush2.xpose.msra.mxu0 0.0
        %5278 = vmatprep.subr.mxu0 0.0
        %5279 = vmatpush2.xpose.msra.mxu0 0.0
        %5280 = vmatprep.subr.mxu0 0.0
        %5281 = vmatpush2.xpose.msra.mxu0 0.0
        %5282 = vmatprep.subr.mxu0 0.0
        %5283 = vmatpush2.xpose.msra.mxu0 0.0
        %5284 = vmatprep.subr.mxu0 0.0
        %5285 = vmatpush2.xpose.msra.mxu0 0.0
        %5286 = vmatprep.subr.mxu0 0.0
        %5287 = vmatpush2.xpose.msra.mxu0 0.0
        %5288 = vmatprep.subr.mxu0 0.0
        %5289 = vmatpush2.xpose.msra.mxu0 0.0
        %5290 = vmatprep.subr.mxu0 0.0
        %5291 = vmatpush2.xpose.msra.mxu0 0.0
        %5292 = vmatprep.subr.mxu0 0.0
        %5293 = vmatpush2.xpose.msra.mxu0 0.0
        %5294 = vmatprep.subr.mxu0 0.0
        %5295 = vmatpush2.xpose.msra.mxu0 0.0
        %5296 = vmatprep.subr.mxu0 0.0
        %5297 = vmatpush2.xpose.msra.mxu0 0.0
        %5298 = vmatprep.subr.mxu0 0.0
        %5299 = vmatpush2.xpose.msra.mxu0 0.0
        %5300 = vmatprep.subr.mxu0 0.0
        %5301 = vmatpush2.xpose.msra.mxu0 0.0
        %5302 = vmatprep.subr.mxu0 0.0
        %5303 = vmatpush2.xpose.msra.mxu0 0.0
        %5304 = vmatprep.subr.mxu0 0.0
        %5305 = vmatpush2.xpose.msra.mxu0 0.0
        %5306 = vmatprep.subr.mxu0 0.0
        %5307 = vmatpush2.xpose.msra.mxu0 0.0
        %5308 = vmatprep.mubr.f32.mxu0 0.0
        %5309 = vmatmul.mubr.f32.gmra.mxu0 %v5239
        %v5310 = vpop.f32.mrf.mxu0
        %v5311 = vadd.f32 %v2990, %v5310
        %v5312 = vpop.f32.mrf.mxu0
        %5313 = vdwg.mxu0
        %v5315 = vsel %vm2998, %v2577, 0
        %v5318 = vsel %vm2998, %v2709, 0
        %5320 = vmatprep.subr.mxu0 0.0
        %5321 = vmatpush1.xpose.msra.mxu0 0.0
        %5322 = vmatprep.subr.mxu0 0.0
        %5323 = vmatpush1.xpose.msra.mxu0 0.0
        %5324 = vmatprep.subr.mxu0 0.0
        %5325 = vmatpush1.xpose.msra.mxu0 0.0
        %5326 = vmatprep.subr.mxu0 0.0
        %5327 = vmatpush1.xpose.msra.mxu0 0.0
        %5328 = vmatprep.subr.mxu0 0.0
        %5329 = vmatpush1.xpose.msra.mxu0 0.0
        %5330 = vmatprep.subr.mxu0 0.0
        %5331 = vmatpush1.xpose.msra.mxu0 0.0
        %5332 = vmatprep.subr.mxu0 0.0
        %5333 = vmatpush1.xpose.msra.mxu0 0.0
        %5334 = vmatprep.subr.mxu0 0.0
        %5335 = vmatpush1.xpose.msra.mxu0 0.0
        %5336 = vmatprep.subr.mxu0 0.0
        %5337 = vmatpush1.xpose.msra.mxu0 0.0
        %5338 = vmatprep.subr.mxu0 0.0
        %5339 = vmatpush1.xpose.msra.mxu0 0.0
        %5340 = vmatprep.subr.mxu0 0.0
        %5341 = vmatpush1.xpose.msra.mxu0 0.0
        %5342 = vmatprep.subr.mxu0 0.0
        %5343 = vmatpush1.xpose.msra.mxu0 0.0
        %5344 = vmatprep.subr.mxu0 0.0
        %5345 = vmatpush1.xpose.msra.mxu0 0.0
        %5346 = vmatprep.subr.mxu0 0.0
        %5347 = vmatpush1.xpose.msra.mxu0 0.0
        %5348 = vmatprep.subr.mxu0 0.0
        %5349 = vmatpush1.xpose.msra.mxu0 0.0
        %5350 = vmatprep.subr.mxu0 0.0
        %5351 = vmatpush1.xpose.msra.mxu0 %v5318
        %5352 = vmatprep.subr.mxu0 0.0
        %5353 = vmatpush2.xpose.msra.mxu0 0.0
        %5354 = vmatprep.subr.mxu0 0.0
        %5355 = vmatpush2.xpose.msra.mxu0 0.0
        %5356 = vmatprep.subr.mxu0 0.0
        %5357 = vmatpush2.xpose.msra.mxu0 0.0
        %5358 = vmatprep.subr.mxu0 0.0
        %5359 = vmatpush2.xpose.msra.mxu0 0.0
        %5360 = vmatprep.subr.mxu0 0.0
        %5361 = vmatpush2.xpose.msra.mxu0 0.0
        %5362 = vmatprep.subr.mxu0 0.0
        %5363 = vmatpush2.xpose.msra.mxu0 0.0
        %5364 = vmatprep.subr.mxu0 0.0
        %5365 = vmatpush2.xpose.msra.mxu0 0.0
        %5366 = vmatprep.subr.mxu0 0.0
        %5367 = vmatpush2.xpose.msra.mxu0 0.0
        %5368 = vmatprep.subr.mxu0 0.0
        %5369 = vmatpush2.xpose.msra.mxu0 0.0
        %5370 = vmatprep.subr.mxu0 0.0
        %5371 = vmatpush2.xpose.msra.mxu0 0.0
        %5372 = vmatprep.subr.mxu0 0.0
        %5373 = vmatpush2.xpose.msra.mxu0 0.0
        %5374 = vmatprep.subr.mxu0 0.0
        %5375 = vmatpush2.xpose.msra.mxu0 0.0
        %5376 = vmatprep.subr.mxu0 0.0
        %5377 = vmatpush2.xpose.msra.mxu0 0.0
        %5378 = vmatprep.subr.mxu0 0.0
        %5379 = vmatpush2.xpose.msra.mxu0 0.0
        %5380 = vmatprep.subr.mxu0 0.0
        %5381 = vmatpush2.xpose.msra.mxu0 0.0
        %5382 = vmatprep.subr.mxu0 0.0
        %5383 = vmatpush2.xpose.msra.mxu0 0.0
        %5384 = vmatprep.mubr.f32.mxu0 0.0
        %5385 = vmatmul.mubr.f32.gmra.mxu0 %v5315
        %v5386 = vpop.f32.mrf.mxu0
        %v5387 = vadd.f32 %v2990, %v5386
        %v5388 = vpop.f32.mrf.mxu0
        %5389 = vdwg.mxu0
        %v5391 = vsel %vm2998, %v2578, 0
        %v5394 = vsel %vm2998, %v2710, 0
        %5396 = vmatprep.subr.mxu0 0.0
        %5397 = vmatpush1.xpose.msra.mxu0 0.0
        %5398 = vmatprep.subr.mxu0 0.0
        %5399 = vmatpush1.xpose.msra.mxu0 0.0
        %5400 = vmatprep.subr.mxu0 0.0
        %5401 = vmatpush1.xpose.msra.mxu0 0.0
        %5402 = vmatprep.subr.mxu0 0.0
        %5403 = vmatpush1.xpose.msra.mxu0 0.0
        %5404 = vmatprep.subr.mxu0 0.0
        %5405 = vmatpush1.xpose.msra.mxu0 0.0
        %5406 = vmatprep.subr.mxu0 0.0
        %5407 = vmatpush1.xpose.msra.mxu0 0.0
        %5408 = vmatprep.subr.mxu0 0.0
        %5409 = vmatpush1.xpose.msra.mxu0 0.0
        %5410 = vmatprep.subr.mxu0 0.0
        %5411 = vmatpush1.xpose.msra.mxu0 0.0
        %5412 = vmatprep.subr.mxu0 0.0
        %5413 = vmatpush1.xpose.msra.mxu0 0.0
        %5414 = vmatprep.subr.mxu0 0.0
        %5415 = vmatpush1.xpose.msra.mxu0 0.0
        %5416 = vmatprep.subr.mxu0 0.0
        %5417 = vmatpush1.xpose.msra.mxu0 0.0
        %5418 = vmatprep.subr.mxu0 0.0
        %5419 = vmatpush1.xpose.msra.mxu0 0.0
        %5420 = vmatprep.subr.mxu0 0.0
        %5421 = vmatpush1.xpose.msra.mxu0 0.0
        %5422 = vmatprep.subr.mxu0 0.0
        %5423 = vmatpush1.xpose.msra.mxu0 0.0
        %5424 = vmatprep.subr.mxu0 0.0
        %5425 = vmatpush1.xpose.msra.mxu0 0.0
        %5426 = vmatprep.subr.mxu0 0.0
        %5427 = vmatpush1.xpose.msra.mxu0 %v5394
        %5428 = vmatprep.subr.mxu0 0.0
        %5429 = vmatpush2.xpose.msra.mxu0 0.0
        %5430 = vmatprep.subr.mxu0 0.0
        %5431 = vmatpush2.xpose.msra.mxu0 0.0
        %5432 = vmatprep.subr.mxu0 0.0
        %5433 = vmatpush2.xpose.msra.mxu0 0.0
        %5434 = vmatprep.subr.mxu0 0.0
        %5435 = vmatpush2.xpose.msra.mxu0 0.0
        %5436 = vmatprep.subr.mxu0 0.0
        %5437 = vmatpush2.xpose.msra.mxu0 0.0
        %5438 = vmatprep.subr.mxu0 0.0
        %5439 = vmatpush2.xpose.msra.mxu0 0.0
        %5440 = vmatprep.subr.mxu0 0.0
        %5441 = vmatpush2.xpose.msra.mxu0 0.0
        %5442 = vmatprep.subr.mxu0 0.0
        %5443 = vmatpush2.xpose.msra.mxu0 0.0
        %5444 = vmatprep.subr.mxu0 0.0
        %5445 = vmatpush2.xpose.msra.mxu0 0.0
        %5446 = vmatprep.subr.mxu0 0.0
        %5447 = vmatpush2.xpose.msra.mxu0 0.0
        %5448 = vmatprep.subr.mxu0 0.0
        %5449 = vmatpush2.xpose.msra.mxu0 0.0
        %5450 = vmatprep.subr.mxu0 0.0
        %5451 = vmatpush2.xpose.msra.mxu0 0.0
        %5452 = vmatprep.subr.mxu0 0.0
        %5453 = vmatpush2.xpose.msra.mxu0 0.0
        %5454 = vmatprep.subr.mxu0 0.0
        %5455 = vmatpush2.xpose.msra.mxu0 0.0
        %5456 = vmatprep.subr.mxu0 0.0
        %5457 = vmatpush2.xpose.msra.mxu0 0.0
        %5458 = vmatprep.subr.mxu0 0.0
        %5459 = vmatpush2.xpose.msra.mxu0 0.0
        %5460 = vmatprep.mubr.f32.mxu0 0.0
        %5461 = vmatmul.mubr.f32.gmra.mxu0 %v5391
        %v5462 = vpop.f32.mrf.mxu0
        %v5463 = vadd.f32 %v2990, %v5462
        %v5464 = vpop.f32.mrf.mxu0
        %5465 = vdwg.mxu0
        %v5467 = vsel %vm2998, %v2579, 0
        %v5470 = vsel %vm2998, %v2711, 0
        %5472 = vmatprep.subr.mxu0 0.0
        %5473 = vmatpush1.xpose.msra.mxu0 0.0
        %5474 = vmatprep.subr.mxu0 0.0
        %5475 = vmatpush1.xpose.msra.mxu0 0.0
        %5476 = vmatprep.subr.mxu0 0.0
        %5477 = vmatpush1.xpose.msra.mxu0 0.0
        %5478 = vmatprep.subr.mxu0 0.0
        %5479 = vmatpush1.xpose.msra.mxu0 0.0
        %5480 = vmatprep.subr.mxu0 0.0
        %5481 = vmatpush1.xpose.msra.mxu0 0.0
        %5482 = vmatprep.subr.mxu0 0.0
        %5483 = vmatpush1.xpose.msra.mxu0 0.0
        %5484 = vmatprep.subr.mxu0 0.0
        %5485 = vmatpush1.xpose.msra.mxu0 0.0
        %5486 = vmatprep.subr.mxu0 0.0
        %5487 = vmatpush1.xpose.msra.mxu0 0.0
        %5488 = vmatprep.subr.mxu0 0.0
        %5489 = vmatpush1.xpose.msra.mxu0 0.0
        %5490 = vmatprep.subr.mxu0 0.0
        %5491 = vmatpush1.xpose.msra.mxu0 0.0
        %5492 = vmatprep.subr.mxu0 0.0
        %5493 = vmatpush1.xpose.msra.mxu0 0.0
        %5494 = vmatprep.subr.mxu0 0.0
        %5495 = vmatpush1.xpose.msra.mxu0 0.0
        %5496 = vmatprep.subr.mxu0 0.0
        %5497 = vmatpush1.xpose.msra.mxu0 0.0
        %5498 = vmatprep.subr.mxu0 0.0
        %5499 = vmatpush1.xpose.msra.mxu0 0.0
        %5500 = vmatprep.subr.mxu0 0.0
        %5501 = vmatpush1.xpose.msra.mxu0 0.0
        %5502 = vmatprep.subr.mxu0 0.0
        %5503 = vmatpush1.xpose.msra.mxu0 %v5470
        %5504 = vmatprep.subr.mxu0 0.0
        %5505 = vmatpush2.xpose.msra.mxu0 0.0
        %5506 = vmatprep.subr.mxu0 0.0
        %5507 = vmatpush2.xpose.msra.mxu0 0.0
        %5508 = vmatprep.subr.mxu0 0.0
        %5509 = vmatpush2.xpose.msra.mxu0 0.0
        %5510 = vmatprep.subr.mxu0 0.0
        %5511 = vmatpush2.xpose.msra.mxu0 0.0
        %5512 = vmatprep.subr.mxu0 0.0
        %5513 = vmatpush2.xpose.msra.mxu0 0.0
        %5514 = vmatprep.subr.mxu0 0.0
        %5515 = vmatpush2.xpose.msra.mxu0 0.0
        %5516 = vmatprep.subr.mxu0 0.0
        %5517 = vmatpush2.xpose.msra.mxu0 0.0
        %5518 = vmatprep.subr.mxu0 0.0
        %5519 = vmatpush2.xpose.msra.mxu0 0.0
        %5520 = vmatprep.subr.mxu0 0.0
        %5521 = vmatpush2.xpose.msra.mxu0 0.0
        %5522 = vmatprep.subr.mxu0 0.0
        %5523 = vmatpush2.xpose.msra.mxu0 0.0
        %5524 = vmatprep.subr.mxu0 0.0
        %5525 = vmatpush2.xpose.msra.mxu0 0.0
        %5526 = vmatprep.subr.mxu0 0.0
        %5527 = vmatpush2.xpose.msra.mxu0 0.0
        %5528 = vmatprep.subr.mxu0 0.0
        %5529 = vmatpush2.xpose.msra.mxu0 0.0
        %5530 = vmatprep.subr.mxu0 0.0
        %5531 = vmatpush2.xpose.msra.mxu0 0.0
        %5532 = vmatprep.subr.mxu0 0.0
        %5533 = vmatpush2.xpose.msra.mxu0 0.0
        %5534 = vmatprep.subr.mxu0 0.0
        %5535 = vmatpush2.xpose.msra.mxu0 0.0
        %5536 = vmatprep.mubr.f32.mxu0 0.0
        %5537 = vmatmul.mubr.f32.gmra.mxu0 %v5467
        %v5538 = vpop.f32.mrf.mxu0
        %v5539 = vadd.f32 %v2990, %v5538
        %v5540 = vpop.f32.mrf.mxu0
        %5541 = vdwg.mxu0
        %v5543 = vsel %vm2998, %v2580, 0
        %v5546 = vsel %vm2998, %v2712, 0
        %5548 = vmatprep.subr.mxu0 0.0
        %5549 = vmatpush1.xpose.msra.mxu0 0.0
        %5550 = vmatprep.subr.mxu0 0.0
        %5551 = vmatpush1.xpose.msra.mxu0 0.0
        %5552 = vmatprep.subr.mxu0 0.0
        %5553 = vmatpush1.xpose.msra.mxu0 0.0
        %5554 = vmatprep.subr.mxu0 0.0
        %5555 = vmatpush1.xpose.msra.mxu0 0.0
        %5556 = vmatprep.subr.mxu0 0.0
        %5557 = vmatpush1.xpose.msra.mxu0 0.0
        %5558 = vmatprep.subr.mxu0 0.0
        %5559 = vmatpush1.xpose.msra.mxu0 0.0
        %5560 = vmatprep.subr.mxu0 0.0
        %5561 = vmatpush1.xpose.msra.mxu0 0.0
        %5562 = vmatprep.subr.mxu0 0.0
        %5563 = vmatpush1.xpose.msra.mxu0 0.0
        %5564 = vmatprep.subr.mxu0 0.0
        %5565 = vmatpush1.xpose.msra.mxu0 0.0
        %5566 = vmatprep.subr.mxu0 0.0
        %5567 = vmatpush1.xpose.msra.mxu0 0.0
        %5568 = vmatprep.subr.mxu0 0.0
        %5569 = vmatpush1.xpose.msra.mxu0 0.0
        %5570 = vmatprep.subr.mxu0 0.0
        %5571 = vmatpush1.xpose.msra.mxu0 0.0
        %5572 = vmatprep.subr.mxu0 0.0
        %5573 = vmatpush1.xpose.msra.mxu0 0.0
        %5574 = vmatprep.subr.mxu0 0.0
        %5575 = vmatpush1.xpose.msra.mxu0 0.0
        %5576 = vmatprep.subr.mxu0 0.0
        %5577 = vmatpush1.xpose.msra.mxu0 0.0
        %5578 = vmatprep.subr.mxu0 0.0
        %5579 = vmatpush1.xpose.msra.mxu0 %v5546
        %5580 = vmatprep.subr.mxu0 0.0
        %5581 = vmatpush2.xpose.msra.mxu0 0.0
        %5582 = vmatprep.subr.mxu0 0.0
        %5583 = vmatpush2.xpose.msra.mxu0 0.0
        %5584 = vmatprep.subr.mxu0 0.0
        %5585 = vmatpush2.xpose.msra.mxu0 0.0
        %5586 = vmatprep.subr.mxu0 0.0
        %5587 = vmatpush2.xpose.msra.mxu0 0.0
        %5588 = vmatprep.subr.mxu0 0.0
        %5589 = vmatpush2.xpose.msra.mxu0 0.0
        %5590 = vmatprep.subr.mxu0 0.0
        %5591 = vmatpush2.xpose.msra.mxu0 0.0
        %5592 = vmatprep.subr.mxu0 0.0
        %5593 = vmatpush2.xpose.msra.mxu0 0.0
        %5594 = vmatprep.subr.mxu0 0.0
        %5595 = vmatpush2.xpose.msra.mxu0 0.0
        %5596 = vmatprep.subr.mxu0 0.0
        %5597 = vmatpush2.xpose.msra.mxu0 0.0
        %5598 = vmatprep.subr.mxu0 0.0
        %5599 = vmatpush2.xpose.msra.mxu0 0.0
        %5600 = vmatprep.subr.mxu0 0.0
        %5601 = vmatpush2.xpose.msra.mxu0 0.0
        %5602 = vmatprep.subr.mxu0 0.0
        %5603 = vmatpush2.xpose.msra.mxu0 0.0
        %5604 = vmatprep.subr.mxu0 0.0
        %5605 = vmatpush2.xpose.msra.mxu0 0.0
        %5606 = vmatprep.subr.mxu0 0.0
        %5607 = vmatpush2.xpose.msra.mxu0 0.0
        %5608 = vmatprep.subr.mxu0 0.0
        %5609 = vmatpush2.xpose.msra.mxu0 0.0
        %5610 = vmatprep.subr.mxu0 0.0
        %5611 = vmatpush2.xpose.msra.mxu0 0.0
        %5612 = vmatprep.mubr.f32.mxu0 0.0
        %5613 = vmatmul.mubr.f32.gmra.mxu0 %v5543
        %v5614 = vpop.f32.mrf.mxu0
        %v5615 = vadd.f32 %v2990, %v5614
        %v5616 = vpop.f32.mrf.mxu0
        %5617 = vdwg.mxu0
        %v5619 = vsel %vm2998, %v2581, 0
        %v5622 = vsel %vm2998, %v2713, 0
        %5624 = vmatprep.subr.mxu0 0.0
        %5625 = vmatpush1.xpose.msra.mxu0 0.0
        %5626 = vmatprep.subr.mxu0 0.0
        %5627 = vmatpush1.xpose.msra.mxu0 0.0
        %5628 = vmatprep.subr.mxu0 0.0
        %5629 = vmatpush1.xpose.msra.mxu0 0.0
        %5630 = vmatprep.subr.mxu0 0.0
        %5631 = vmatpush1.xpose.msra.mxu0 0.0
        %5632 = vmatprep.subr.mxu0 0.0
        %5633 = vmatpush1.xpose.msra.mxu0 0.0
        %5634 = vmatprep.subr.mxu0 0.0
        %5635 = vmatpush1.xpose.msra.mxu0 0.0
        %5636 = vmatprep.subr.mxu0 0.0
        %5637 = vmatpush1.xpose.msra.mxu0 0.0
        %5638 = vmatprep.subr.mxu0 0.0
        %5639 = vmatpush1.xpose.msra.mxu0 0.0
        %5640 = vmatprep.subr.mxu0 0.0
        %5641 = vmatpush1.xpose.msra.mxu0 0.0
        %5642 = vmatprep.subr.mxu0 0.0
        %5643 = vmatpush1.xpose.msra.mxu0 0.0
        %5644 = vmatprep.subr.mxu0 0.0
        %5645 = vmatpush1.xpose.msra.mxu0 0.0
        %5646 = vmatprep.subr.mxu0 0.0
        %5647 = vmatpush1.xpose.msra.mxu0 0.0
        %5648 = vmatprep.subr.mxu0 0.0
        %5649 = vmatpush1.xpose.msra.mxu0 0.0
        %5650 = vmatprep.subr.mxu0 0.0
        %5651 = vmatpush1.xpose.msra.mxu0 0.0
        %5652 = vmatprep.subr.mxu0 0.0
        %5653 = vmatpush1.xpose.msra.mxu0 0.0
        %5654 = vmatprep.subr.mxu0 0.0
        %5655 = vmatpush1.xpose.msra.mxu0 %v5622
        %5656 = vmatprep.subr.mxu0 0.0
        %5657 = vmatpush2.xpose.msra.mxu0 0.0
        %5658 = vmatprep.subr.mxu0 0.0
        %5659 = vmatpush2.xpose.msra.mxu0 0.0
        %5660 = vmatprep.subr.mxu0 0.0
        %5661 = vmatpush2.xpose.msra.mxu0 0.0
        %5662 = vmatprep.subr.mxu0 0.0
        %5663 = vmatpush2.xpose.msra.mxu0 0.0
        %5664 = vmatprep.subr.mxu0 0.0
        %5665 = vmatpush2.xpose.msra.mxu0 0.0
        %5666 = vmatprep.subr.mxu0 0.0
        %5667 = vmatpush2.xpose.msra.mxu0 0.0
        %5668 = vmatprep.subr.mxu0 0.0
        %5669 = vmatpush2.xpose.msra.mxu0 0.0
        %5670 = vmatprep.subr.mxu0 0.0
        %5671 = vmatpush2.xpose.msra.mxu0 0.0
        %5672 = vmatprep.subr.mxu0 0.0
        %5673 = vmatpush2.xpose.msra.mxu0 0.0
        %5674 = vmatprep.subr.mxu0 0.0
        %5675 = vmatpush2.xpose.msra.mxu0 0.0
        %5676 = vmatprep.subr.mxu0 0.0
        %5677 = vmatpush2.xpose.msra.mxu0 0.0
        %5678 = vmatprep.subr.mxu0 0.0
        %5679 = vmatpush2.xpose.msra.mxu0 0.0
        %5680 = vmatprep.subr.mxu0 0.0
        %5681 = vmatpush2.xpose.msra.mxu0 0.0
        %5682 = vmatprep.subr.mxu0 0.0
        %5683 = vmatpush2.xpose.msra.mxu0 0.0
        %5684 = vmatprep.subr.mxu0 0.0
        %5685 = vmatpush2.xpose.msra.mxu0 0.0
        %5686 = vmatprep.subr.mxu0 0.0
        %5687 = vmatpush2.xpose.msra.mxu0 0.0
        %5688 = vmatprep.mubr.f32.mxu0 0.0
        %5689 = vmatmul.mubr.f32.gmra.mxu0 %v5619
        %v5690 = vpop.f32.mrf.mxu0
        %v5691 = vadd.f32 %v2990, %v5690
        %v5692 = vpop.f32.mrf.mxu0
        %5693 = vdwg.mxu0
        %v5695 = vsel %vm2998, %v2582, 0
        %v5698 = vsel %vm2998, %v2714, 0
        %5700 = vmatprep.subr.mxu0 0.0
        %5701 = vmatpush1.xpose.msra.mxu0 0.0
        %5702 = vmatprep.subr.mxu0 0.0
        %5703 = vmatpush1.xpose.msra.mxu0 0.0
        %5704 = vmatprep.subr.mxu0 0.0
        %5705 = vmatpush1.xpose.msra.mxu0 0.0
        %5706 = vmatprep.subr.mxu0 0.0
        %5707 = vmatpush1.xpose.msra.mxu0 0.0
        %5708 = vmatprep.subr.mxu0 0.0
        %5709 = vmatpush1.xpose.msra.mxu0 0.0
        %5710 = vmatprep.subr.mxu0 0.0
        %5711 = vmatpush1.xpose.msra.mxu0 0.0
        %5712 = vmatprep.subr.mxu0 0.0
        %5713 = vmatpush1.xpose.msra.mxu0 0.0
        %5714 = vmatprep.subr.mxu0 0.0
        %5715 = vmatpush1.xpose.msra.mxu0 0.0
        %5716 = vmatprep.subr.mxu0 0.0
        %5717 = vmatpush1.xpose.msra.mxu0 0.0
        %5718 = vmatprep.subr.mxu0 0.0
        %5719 = vmatpush1.xpose.msra.mxu0 0.0
        %5720 = vmatprep.subr.mxu0 0.0
        %5721 = vmatpush1.xpose.msra.mxu0 0.0
        %5722 = vmatprep.subr.mxu0 0.0
        %5723 = vmatpush1.xpose.msra.mxu0 0.0
        %5724 = vmatprep.subr.mxu0 0.0
        %5725 = vmatpush1.xpose.msra.mxu0 0.0
        %5726 = vmatprep.subr.mxu0 0.0
        %5727 = vmatpush1.xpose.msra.mxu0 0.0
        %5728 = vmatprep.subr.mxu0 0.0
        %5729 = vmatpush1.xpose.msra.mxu0 0.0
        %5730 = vmatprep.subr.mxu0 0.0
        %5731 = vmatpush1.xpose.msra.mxu0 %v5698
        %5732 = vmatprep.subr.mxu0 0.0
        %5733 = vmatpush2.xpose.msra.mxu0 0.0
        %5734 = vmatprep.subr.mxu0 0.0
        %5735 = vmatpush2.xpose.msra.mxu0 0.0
        %5736 = vmatprep.subr.mxu0 0.0
        %5737 = vmatpush2.xpose.msra.mxu0 0.0
        %5738 = vmatprep.subr.mxu0 0.0
        %5739 = vmatpush2.xpose.msra.mxu0 0.0
        %5740 = vmatprep.subr.mxu0 0.0
        %5741 = vmatpush2.xpose.msra.mxu0 0.0
        %5742 = vmatprep.subr.mxu0 0.0
        %5743 = vmatpush2.xpose.msra.mxu0 0.0
        %5744 = vmatprep.subr.mxu0 0.0
        %5745 = vmatpush2.xpose.msra.mxu0 0.0
        %5746 = vmatprep.subr.mxu0 0.0
        %5747 = vmatpush2.xpose.msra.mxu0 0.0
        %5748 = vmatprep.subr.mxu0 0.0
        %5749 = vmatpush2.xpose.msra.mxu0 0.0
        %5750 = vmatprep.subr.mxu0 0.0
        %5751 = vmatpush2.xpose.msra.mxu0 0.0
        %5752 = vmatprep.subr.mxu0 0.0
        %5753 = vmatpush2.xpose.msra.mxu0 0.0
        %5754 = vmatprep.subr.mxu0 0.0
        %5755 = vmatpush2.xpose.msra.mxu0 0.0
        %5756 = vmatprep.subr.mxu0 0.0
        %5757 = vmatpush2.xpose.msra.mxu0 0.0
        %5758 = vmatprep.subr.mxu0 0.0
        %5759 = vmatpush2.xpose.msra.mxu0 0.0
        %5760 = vmatprep.subr.mxu0 0.0
        %5761 = vmatpush2.xpose.msra.mxu0 0.0
        %5762 = vmatprep.subr.mxu0 0.0
        %5763 = vmatpush2.xpose.msra.mxu0 0.0
        %5764 = vmatprep.mubr.f32.mxu0 0.0
        %5765 = vmatmul.mubr.f32.gmra.mxu0 %v5695
        %v5766 = vpop.f32.mrf.mxu0
        %v5767 = vadd.f32 %v2990, %v5766
        %v5768 = vpop.f32.mrf.mxu0
        %5769 = vdwg.mxu0
        %v5771 = vsel %vm2998, %v2583, 0
        %v5774 = vsel %vm2998, %v2715, 0
        %5776 = vmatprep.subr.mxu0 0.0
        %5777 = vmatpush1.xpose.msra.mxu0 0.0
        %5778 = vmatprep.subr.mxu0 0.0
        %5779 = vmatpush1.xpose.msra.mxu0 0.0
        %5780 = vmatprep.subr.mxu0 0.0
        %5781 = vmatpush1.xpose.msra.mxu0 0.0
        %5782 = vmatprep.subr.mxu0 0.0
        %5783 = vmatpush1.xpose.msra.mxu0 0.0
        %5784 = vmatprep.subr.mxu0 0.0
        %5785 = vmatpush1.xpose.msra.mxu0 0.0
        %5786 = vmatprep.subr.mxu0 0.0
        %5787 = vmatpush1.xpose.msra.mxu0 0.0
        %5788 = vmatprep.subr.mxu0 0.0
        %5789 = vmatpush1.xpose.msra.mxu0 0.0
        %5790 = vmatprep.subr.mxu0 0.0
        %5791 = vmatpush1.xpose.msra.mxu0 0.0
        %5792 = vmatprep.subr.mxu0 0.0
        %5793 = vmatpush1.xpose.msra.mxu0 0.0
        %5794 = vmatprep.subr.mxu0 0.0
        %5795 = vmatpush1.xpose.msra.mxu0 0.0
        %5796 = vmatprep.subr.mxu0 0.0
        %5797 = vmatpush1.xpose.msra.mxu0 0.0
        %5798 = vmatprep.subr.mxu0 0.0
        %5799 = vmatpush1.xpose.msra.mxu0 0.0
        %5800 = vmatprep.subr.mxu0 0.0
        %5801 = vmatpush1.xpose.msra.mxu0 0.0
        %5802 = vmatprep.subr.mxu0 0.0
        %5803 = vmatpush1.xpose.msra.mxu0 0.0
        %5804 = vmatprep.subr.mxu0 0.0
        %5805 = vmatpush1.xpose.msra.mxu0 0.0
        %5806 = vmatprep.subr.mxu0 0.0
        %5807 = vmatpush1.xpose.msra.mxu0 %v5774
        %5808 = vmatprep.subr.mxu0 0.0
        %5809 = vmatpush2.xpose.msra.mxu0 0.0
        %5810 = vmatprep.subr.mxu0 0.0
        %5811 = vmatpush2.xpose.msra.mxu0 0.0
        %5812 = vmatprep.subr.mxu0 0.0
        %5813 = vmatpush2.xpose.msra.mxu0 0.0
        %5814 = vmatprep.subr.mxu0 0.0
        %5815 = vmatpush2.xpose.msra.mxu0 0.0
        %5816 = vmatprep.subr.mxu0 0.0
        %5817 = vmatpush2.xpose.msra.mxu0 0.0
        %5818 = vmatprep.subr.mxu0 0.0
        %5819 = vmatpush2.xpose.msra.mxu0 0.0
        %5820 = vmatprep.subr.mxu0 0.0
        %5821 = vmatpush2.xpose.msra.mxu0 0.0
        %5822 = vmatprep.subr.mxu0 0.0
        %5823 = vmatpush2.xpose.msra.mxu0 0.0
        %5824 = vmatprep.subr.mxu0 0.0
        %5825 = vmatpush2.xpose.msra.mxu0 0.0
        %5826 = vmatprep.subr.mxu0 0.0
        %5827 = vmatpush2.xpose.msra.mxu0 0.0
        %5828 = vmatprep.subr.mxu0 0.0
        %5829 = vmatpush2.xpose.msra.mxu0 0.0
        %5830 = vmatprep.subr.mxu0 0.0
        %5831 = vmatpush2.xpose.msra.mxu0 0.0
        %5832 = vmatprep.subr.mxu0 0.0
        %5833 = vmatpush2.xpose.msra.mxu0 0.0
        %5834 = vmatprep.subr.mxu0 0.0
        %5835 = vmatpush2.xpose.msra.mxu0 0.0
        %5836 = vmatprep.subr.mxu0 0.0
        %5837 = vmatpush2.xpose.msra.mxu0 0.0
        %5838 = vmatprep.subr.mxu0 0.0
        %5839 = vmatpush2.xpose.msra.mxu0 0.0
        %5840 = vmatprep.mubr.f32.mxu0 0.0
        %5841 = vmatmul.mubr.f32.gmra.mxu0 %v5771
        %v5842 = vpop.f32.mrf.mxu0
        %v5843 = vadd.f32 %v2990, %v5842
        %v5844 = vpop.f32.mrf.mxu0
        %5845 = vdwg.mxu0
        %v5847 = vsel %vm2998, %v2584, 0
        %v5850 = vsel %vm2998, %v2716, 0
        %5852 = vmatprep.subr.mxu0 0.0
        %5853 = vmatpush1.xpose.msra.mxu0 0.0
        %5854 = vmatprep.subr.mxu0 0.0
        %5855 = vmatpush1.xpose.msra.mxu0 0.0
        %5856 = vmatprep.subr.mxu0 0.0
        %5857 = vmatpush1.xpose.msra.mxu0 0.0
        %5858 = vmatprep.subr.mxu0 0.0
        %5859 = vmatpush1.xpose.msra.mxu0 0.0
        %5860 = vmatprep.subr.mxu0 0.0
        %5861 = vmatpush1.xpose.msra.mxu0 0.0
        %5862 = vmatprep.subr.mxu0 0.0
        %5863 = vmatpush1.xpose.msra.mxu0 0.0
        %5864 = vmatprep.subr.mxu0 0.0
        %5865 = vmatpush1.xpose.msra.mxu0 0.0
        %5866 = vmatprep.subr.mxu0 0.0
        %5867 = vmatpush1.xpose.msra.mxu0 0.0
        %5868 = vmatprep.subr.mxu0 0.0
        %5869 = vmatpush1.xpose.msra.mxu0 0.0
        %5870 = vmatprep.subr.mxu0 0.0
        %5871 = vmatpush1.xpose.msra.mxu0 0.0
        %5872 = vmatprep.subr.mxu0 0.0
        %5873 = vmatpush1.xpose.msra.mxu0 0.0
        %5874 = vmatprep.subr.mxu0 0.0
        %5875 = vmatpush1.xpose.msra.mxu0 0.0
        %5876 = vmatprep.subr.mxu0 0.0
        %5877 = vmatpush1.xpose.msra.mxu0 0.0
        %5878 = vmatprep.subr.mxu0 0.0
        %5879 = vmatpush1.xpose.msra.mxu0 0.0
        %5880 = vmatprep.subr.mxu0 0.0
        %5881 = vmatpush1.xpose.msra.mxu0 0.0
        %5882 = vmatprep.subr.mxu0 0.0
        %5883 = vmatpush1.xpose.msra.mxu0 %v5850
        %5884 = vmatprep.subr.mxu0 0.0
        %5885 = vmatpush2.xpose.msra.mxu0 0.0
        %5886 = vmatprep.subr.mxu0 0.0
        %5887 = vmatpush2.xpose.msra.mxu0 0.0
        %5888 = vmatprep.subr.mxu0 0.0
        %5889 = vmatpush2.xpose.msra.mxu0 0.0
        %5890 = vmatprep.subr.mxu0 0.0
        %5891 = vmatpush2.xpose.msra.mxu0 0.0
        %5892 = vmatprep.subr.mxu0 0.0
        %5893 = vmatpush2.xpose.msra.mxu0 0.0
        %5894 = vmatprep.subr.mxu0 0.0
        %5895 = vmatpush2.xpose.msra.mxu0 0.0
        %5896 = vmatprep.subr.mxu0 0.0
        %5897 = vmatpush2.xpose.msra.mxu0 0.0
        %5898 = vmatprep.subr.mxu0 0.0
        %5899 = vmatpush2.xpose.msra.mxu0 0.0
        %5900 = vmatprep.subr.mxu0 0.0
        %5901 = vmatpush2.xpose.msra.mxu0 0.0
        %5902 = vmatprep.subr.mxu0 0.0
        %5903 = vmatpush2.xpose.msra.mxu0 0.0
        %5904 = vmatprep.subr.mxu0 0.0
        %5905 = vmatpush2.xpose.msra.mxu0 0.0
        %5906 = vmatprep.subr.mxu0 0.0
        %5907 = vmatpush2.xpose.msra.mxu0 0.0
        %5908 = vmatprep.subr.mxu0 0.0
        %5909 = vmatpush2.xpose.msra.mxu0 0.0
        %5910 = vmatprep.subr.mxu0 0.0
        %5911 = vmatpush2.xpose.msra.mxu0 0.0
        %5912 = vmatprep.subr.mxu0 0.0
        %5913 = vmatpush2.xpose.msra.mxu0 0.0
        %5914 = vmatprep.subr.mxu0 0.0
        %5915 = vmatpush2.xpose.msra.mxu0 0.0
        %5916 = vmatprep.mubr.f32.mxu0 0.0
        %5917 = vmatmul.mubr.f32.gmra.mxu0 %v5847
        %v5918 = vpop.f32.mrf.mxu0
        %v5919 = vadd.f32 %v2990, %v5918
        %v5920 = vpop.f32.mrf.mxu0
        %5921 = vdwg.mxu0
        %v5922 = vsel %vm3953, %v5083, -inf
        %5923 = vmax.xlane.f32.xlu0 %v5922
        %v5924 = vpop.xlane.xlu0 %5923
        %v5925 = vsel %vm3953, %v5159, -inf
        %5926 = vmax.xlane.f32.xlu0 %v5925
        %v5927 = vpop.xlane.xlu0 %5926
        %v5928 = vsel %vm3953, %v5235, -inf
        %5929 = vmax.xlane.f32.xlu0 %v5928
        %v5930 = vpop.xlane.xlu0 %5929
        %v5931 = vsel %vm3953, %v5311, -inf
        %5932 = vmax.xlane.f32.xlu0 %v5931
        %v5933 = vpop.xlane.xlu0 %5932
        %v5934 = vsel %vm3953, %v5387, -inf
        %5935 = vmax.xlane.f32.xlu0 %v5934
        %v5936 = vpop.xlane.xlu0 %5935
        %v5937 = vsel %vm3953, %v5463, -inf
        %5938 = vmax.xlane.f32.xlu0 %v5937
        %v5939 = vpop.xlane.xlu0 %5938
        %v5940 = vsel %vm3953, %v5539, -inf
        %5941 = vmax.xlane.f32.xlu0 %v5940
        %v5942 = vpop.xlane.xlu0 %5941
        %v5943 = vsel %vm3953, %v5615, -inf
        %5944 = vmax.xlane.f32.xlu0 %v5943
        %v5945 = vpop.xlane.xlu0 %5944
        %v5946 = vsel %vm3953, %v5691, -inf
        %5947 = vmax.xlane.f32.xlu0 %v5946
        %v5948 = vpop.xlane.xlu0 %5947
        %v5949 = vsel %vm3953, %v5767, -inf
        %5950 = vmax.xlane.f32.xlu0 %v5949
        %v5951 = vpop.xlane.xlu0 %5950
        %v5952 = vsel %vm3953, %v5843, -inf
        %5953 = vmax.xlane.f32.xlu0 %v5952
        %v5954 = vpop.xlane.xlu0 %5953
        %v5955 = vsel %vm3953, %v5919, -inf
        %5956 = vmax.xlane.f32.xlu0 %v5955
        %v5957 = vpop.xlane.xlu0 %5956
        %v5958 = vsub.f32 %v5083, %v5924
        %v5959 = vsub.f32 %v5159, %v5927
        %v5960 = vsub.f32 %v5235, %v5930
        %v5961 = vsub.f32 %v5311, %v5933
        %v5962 = vsub.f32 %v5387, %v5936
        %v5963 = vsub.f32 %v5463, %v5939
        %v5964 = vsub.f32 %v5539, %v5942
        %v5965 = vsub.f32 %v5615, %v5945
        %v5966 = vsub.f32 %v5691, %v5948
        %v5967 = vsub.f32 %v5767, %v5951
        %v5968 = vsub.f32 %v5843, %v5954
        %v5969 = vsub.f32 %v5919, %v5957
        %v5970 = vmul.f32 %v5958, 1.442695
        %v5971 = vpow.pop %v5970
        %v5972 = vmul.f32 %v5959, 1.442695
        %v5973 = vpow.pop %v5972
        %v5974 = vmul.f32 %v5960, 1.442695
        %v5975 = vpow.pop %v5974
        %v5976 = vmul.f32 %v5961, 1.442695
        %v5977 = vpow.pop %v5976
        %v5978 = vmul.f32 %v5962, 1.442695
        %v5979 = vpow.pop %v5978
        %v5980 = vmul.f32 %v5963, 1.442695
        %v5981 = vpow.pop %v5980
        %v5982 = vmul.f32 %v5964, 1.442695
        %v5983 = vpow.pop %v5982
        %v5984 = vmul.f32 %v5965, 1.442695
        %v5985 = vpow.pop %v5984
        %v5986 = vmul.f32 %v5966, 1.442695
        %v5987 = vpow.pop %v5986
        %v5988 = vmul.f32 %v5967, 1.442695
        %v5989 = vpow.pop %v5988
        %v5990 = vmul.f32 %v5968, 1.442695
        %v5991 = vpow.pop %v5990
        %v5992 = vmul.f32 %v5969, 1.442695
        %v5993 = vpow.pop %v5992
        %v5994 = vsel %vm3953, %v5971, 0.0
        %5995 = vadd.xlane.f32.xlu0 %v5994
        %v5996 = vpop.xlane.xlu0 %5995
        %v5997 = vsel %vm3953, %v5973, 0.0
        %5998 = vadd.xlane.f32.xlu0 %v5997
        %v5999 = vpop.xlane.xlu0 %5998
        %v6000 = vsel %vm3953, %v5975, 0.0
        %6001 = vadd.xlane.f32.xlu0 %v6000
        %v6002 = vpop.xlane.xlu0 %6001
        %v6003 = vsel %vm3953, %v5977, 0.0
        %6004 = vadd.xlane.f32.xlu0 %v6003
        %v6005 = vpop.xlane.xlu0 %6004
        %v6006 = vsel %vm3953, %v5979, 0.0
        %6007 = vadd.xlane.f32.xlu0 %v6006
        %v6008 = vpop.xlane.xlu0 %6007
        %v6009 = vsel %vm3953, %v5981, 0.0
        %6010 = vadd.xlane.f32.xlu0 %v6009
        %v6011 = vpop.xlane.xlu0 %6010
        %v6012 = vsel %vm3953, %v5983, 0.0
        %6013 = vadd.xlane.f32.xlu0 %v6012
        %v6014 = vpop.xlane.xlu0 %6013
        %v6015 = vsel %vm3953, %v5985, 0.0
        %6016 = vadd.xlane.f32.xlu0 %v6015
        %v6017 = vpop.xlane.xlu0 %6016
        %v6018 = vsel %vm3953, %v5987, 0.0
        %6019 = vadd.xlane.f32.xlu0 %v6018
        %v6020 = vpop.xlane.xlu0 %6019
        %v6021 = vsel %vm3953, %v5989, 0.0
        %6022 = vadd.xlane.f32.xlu0 %v6021
        %v6023 = vpop.xlane.xlu0 %6022
        %v6024 = vsel %vm3953, %v5991, 0.0
        %6025 = vadd.xlane.f32.xlu0 %v6024
        %v6026 = vpop.xlane.xlu0 %6025
        %v6027 = vsel %vm3953, %v5993, 0.0
        %6028 = vadd.xlane.f32.xlu0 %v6027
        %v6029 = vpop.xlane.xlu0 %6028
        %v6030 = vrcp.pop %v5996
        %v6031 = vrcp.pop %v5999
        %v6032 = vrcp.pop %v6002
        %v6033 = vrcp.pop %v6005
        %v6034 = vrcp.pop %v6008
        %v6035 = vrcp.pop %v6011
        %v6036 = vrcp.pop %v6014
        %v6037 = vrcp.pop %v6017
        %v6038 = vrcp.pop %v6020
        %v6039 = vrcp.pop %v6023
        %v6040 = vrcp.pop %v6026
        %v6041 = vrcp.pop %v6029
        %v6042 = vmul.f32 %v5971, %v6030
        %v6043 = vmul.f32 %v5973, %v6031
        %v6044 = vmul.f32 %v5975, %v6032
        %v6045 = vmul.f32 %v5977, %v6033
        %v6046 = vmul.f32 %v5979, %v6034
        %v6047 = vmul.f32 %v5981, %v6035
        %v6048 = vmul.f32 %v5983, %v6036
        %v6049 = vmul.f32 %v5985, %v6037
        %v6050 = vmul.f32 %v5987, %v6038
        %v6051 = vmul.f32 %v5989, %v6039
        %v6052 = vmul.f32 %v5991, %v6040
        %v6053 = vmul.f32 %v5993, %v6041
        %6054 = vrot.lane.b32.xlu0 %v1677, 120
        %v6055 = vpop.permute.xlu0 %6054
        %v6058 = vsel %vm3953, %v6042, 0
        %6060 = vmatprep.subr.mxu0 0.0
        %6061 = vmatpush1.msra.mxu0 0.0
        %6062 = vmatprep.subr.mxu0 0.0
        %6063 = vmatpush1.msra.mxu0 0.0
        %6064 = vmatprep.subr.mxu0 0.0
        %6065 = vmatpush1.msra.mxu0 0.0
        %6066 = vmatprep.subr.mxu0 0.0
        %6067 = vmatpush1.msra.mxu0 0.0
        %6068 = vmatprep.subr.mxu0 0.0
        %6069 = vmatpush1.msra.mxu0 0.0
        %6070 = vmatprep.subr.mxu0 0.0
        %6071 = vmatpush1.msra.mxu0 0.0
        %6072 = vmatprep.subr.mxu0 0.0
        %6073 = vmatpush1.msra.mxu0 0.0
        %6074 = vmatprep.subr.mxu0 0.0
        %6075 = vmatpush1.msra.mxu0 0.0
        %6076 = vmatprep.subr.mxu0 0.0
        %6077 = vmatpush1.msra.mxu0 0.0
        %6078 = vmatprep.subr.mxu0 0.0
        %6079 = vmatpush1.msra.mxu0 0.0
        %6080 = vmatprep.subr.mxu0 0.0
        %6081 = vmatpush1.msra.mxu0 0.0
        %6082 = vmatprep.subr.mxu0 0.0
        %6083 = vmatpush1.msra.mxu0 0.0
        %6084 = vmatprep.subr.mxu0 0.0
        %6085 = vmatpush1.msra.mxu0 0.0
        %6086 = vmatprep.subr.mxu0 0.0
        %6087 = vmatpush1.msra.mxu0 0.0
        %6088 = vmatprep.subr.mxu0 0.0
        %6089 = vmatpush1.msra.mxu0 0.0
        %6090 = vmatprep.subr.mxu0 0.0
        %6091 = vmatpush1.msra.mxu0 %v6055
        %6092 = vmatprep.subr.mxu0 0.0
        %6093 = vmatpush2.msra.mxu0 0.0
        %6094 = vmatprep.subr.mxu0 0.0
        %6095 = vmatpush2.msra.mxu0 0.0
        %6096 = vmatprep.subr.mxu0 0.0
        %6097 = vmatpush2.msra.mxu0 0.0
        %6098 = vmatprep.subr.mxu0 0.0
        %6099 = vmatpush2.msra.mxu0 0.0
        %6100 = vmatprep.subr.mxu0 0.0
        %6101 = vmatpush2.msra.mxu0 0.0
        %6102 = vmatprep.subr.mxu0 0.0
        %6103 = vmatpush2.msra.mxu0 0.0
        %6104 = vmatprep.subr.mxu0 0.0
        %6105 = vmatpush2.msra.mxu0 0.0
        %6106 = vmatprep.subr.mxu0 0.0
        %6107 = vmatpush2.msra.mxu0 0.0
        %6108 = vmatprep.subr.mxu0 0.0
        %6109 = vmatpush2.msra.mxu0 0.0
        %6110 = vmatprep.subr.mxu0 0.0
        %6111 = vmatpush2.msra.mxu0 0.0
        %6112 = vmatprep.subr.mxu0 0.0
        %6113 = vmatpush2.msra.mxu0 0.0
        %6114 = vmatprep.subr.mxu0 0.0
        %6115 = vmatpush2.msra.mxu0 0.0
        %6116 = vmatprep.subr.mxu0 0.0
        %6117 = vmatpush2.msra.mxu0 0.0
        %6118 = vmatprep.subr.mxu0 0.0
        %6119 = vmatpush2.msra.mxu0 0.0
        %6120 = vmatprep.subr.mxu0 0.0
        %6121 = vmatpush2.msra.mxu0 0.0
        %6122 = vmatprep.subr.mxu0 0.0
        %6123 = vmatpush2.msra.mxu0 0.0
        %6124 = vmatprep.mubr.f32.mxu0 0.0
        %6125 = vmatmul.mubr.f32.gmra.mxu0 %v6058
        %v6126 = vpop.f32.mrf.mxu0
        %v6127 = vadd.f32 0.0, %v6126
        %v6128 = vpop.f32.mrf.mxu0
        %6129 = vdwg.mxu0
        %6130 = vrot.lane.b32.xlu0 %v1747, 120
        %v6131 = vpop.permute.xlu0 %6130
        %v6134 = vsel %vm3953, %v6043, 0
        %6136 = vmatprep.subr.mxu0 0.0
        %6137 = vmatpush1.msra.mxu0 0.0
        %6138 = vmatprep.subr.mxu0 0.0
        %6139 = vmatpush1.msra.mxu0 0.0
        %6140 = vmatprep.subr.mxu0 0.0
        %6141 = vmatpush1.msra.mxu0 0.0
        %6142 = vmatprep.subr.mxu0 0.0
        %6143 = vmatpush1.msra.mxu0 0.0
        %6144 = vmatprep.subr.mxu0 0.0
        %6145 = vmatpush1.msra.mxu0 0.0
        %6146 = vmatprep.subr.mxu0 0.0
        %6147 = vmatpush1.msra.mxu0 0.0
        %6148 = vmatprep.subr.mxu0 0.0
        %6149 = vmatpush1.msra.mxu0 0.0
        %6150 = vmatprep.subr.mxu0 0.0
        %6151 = vmatpush1.msra.mxu0 0.0
        %6152 = vmatprep.subr.mxu0 0.0
        %6153 = vmatpush1.msra.mxu0 0.0
        %6154 = vmatprep.subr.mxu0 0.0
        %6155 = vmatpush1.msra.mxu0 0.0
        %6156 = vmatprep.subr.mxu0 0.0
        %6157 = vmatpush1.msra.mxu0 0.0
        %6158 = vmatprep.subr.mxu0 0.0
        %6159 = vmatpush1.msra.mxu0 0.0
        %6160 = vmatprep.subr.mxu0 0.0
        %6161 = vmatpush1.msra.mxu0 0.0
        %6162 = vmatprep.subr.mxu0 0.0
        %6163 = vmatpush1.msra.mxu0 0.0
        %6164 = vmatprep.subr.mxu0 0.0
        %6165 = vmatpush1.msra.mxu0 0.0
        %6166 = vmatprep.subr.mxu0 0.0
        %6167 = vmatpush1.msra.mxu0 %v6131
        %6168 = vmatprep.subr.mxu0 0.0
        %6169 = vmatpush2.msra.mxu0 0.0
        %6170 = vmatprep.subr.mxu0 0.0
        %6171 = vmatpush2.msra.mxu0 0.0
        %6172 = vmatprep.subr.mxu0 0.0
        %6173 = vmatpush2.msra.mxu0 0.0
        %6174 = vmatprep.subr.mxu0 0.0
        %6175 = vmatpush2.msra.mxu0 0.0
        %6176 = vmatprep.subr.mxu0 0.0
        %6177 = vmatpush2.msra.mxu0 0.0
        %6178 = vmatprep.subr.mxu0 0.0
        %6179 = vmatpush2.msra.mxu0 0.0
        %6180 = vmatprep.subr.mxu0 0.0
        %6181 = vmatpush2.msra.mxu0 0.0
        %6182 = vmatprep.subr.mxu0 0.0
        %6183 = vmatpush2.msra.mxu0 0.0
        %6184 = vmatprep.subr.mxu0 0.0
        %6185 = vmatpush2.msra.mxu0 0.0
        %6186 = vmatprep.subr.mxu0 0.0
        %6187 = vmatpush2.msra.mxu0 0.0
        %6188 = vmatprep.subr.mxu0 0.0
        %6189 = vmatpush2.msra.mxu0 0.0
        %6190 = vmatprep.subr.mxu0 0.0
        %6191 = vmatpush2.msra.mxu0 0.0
        %6192 = vmatprep.subr.mxu0 0.0
        %6193 = vmatpush2.msra.mxu0 0.0
        %6194 = vmatprep.subr.mxu0 0.0
        %6195 = vmatpush2.msra.mxu0 0.0
        %6196 = vmatprep.subr.mxu0 0.0
        %6197 = vmatpush2.msra.mxu0 0.0
        %6198 = vmatprep.subr.mxu0 0.0
        %6199 = vmatpush2.msra.mxu0 0.0
        %6200 = vmatprep.mubr.f32.mxu0 0.0
        %6201 = vmatmul.mubr.f32.gmra.mxu0 %v6134
        %v6202 = vpop.f32.mrf.mxu0
        %v6203 = vadd.f32 0.0, %v6202
        %v6204 = vpop.f32.mrf.mxu0
        %6205 = vdwg.mxu0
        %6206 = vrot.lane.b32.xlu0 %v1817, 120
        %v6207 = vpop.permute.xlu0 %6206
        %v6210 = vsel %vm3953, %v6044, 0
        %6212 = vmatprep.subr.mxu0 0.0
        %6213 = vmatpush1.msra.mxu0 0.0
        %6214 = vmatprep.subr.mxu0 0.0
        %6215 = vmatpush1.msra.mxu0 0.0
        %6216 = vmatprep.subr.mxu0 0.0
        %6217 = vmatpush1.msra.mxu0 0.0
        %6218 = vmatprep.subr.mxu0 0.0
        %6219 = vmatpush1.msra.mxu0 0.0
        %6220 = vmatprep.subr.mxu0 0.0
        %6221 = vmatpush1.msra.mxu0 0.0
        %6222 = vmatprep.subr.mxu0 0.0
        %6223 = vmatpush1.msra.mxu0 0.0
        %6224 = vmatprep.subr.mxu0 0.0
        %6225 = vmatpush1.msra.mxu0 0.0
        %6226 = vmatprep.subr.mxu0 0.0
        %6227 = vmatpush1.msra.mxu0 0.0
        %6228 = vmatprep.subr.mxu0 0.0
        %6229 = vmatpush1.msra.mxu0 0.0
        %6230 = vmatprep.subr.mxu0 0.0
        %6231 = vmatpush1.msra.mxu0 0.0
        %6232 = vmatprep.subr.mxu0 0.0
        %6233 = vmatpush1.msra.mxu0 0.0
        %6234 = vmatprep.subr.mxu0 0.0
        %6235 = vmatpush1.msra.mxu0 0.0
        %6236 = vmatprep.subr.mxu0 0.0
        %6237 = vmatpush1.msra.mxu0 0.0
        %6238 = vmatprep.subr.mxu0 0.0
        %6239 = vmatpush1.msra.mxu0 0.0
        %6240 = vmatprep.subr.mxu0 0.0
        %6241 = vmatpush1.msra.mxu0 0.0
        %6242 = vmatprep.subr.mxu0 0.0
        %6243 = vmatpush1.msra.mxu0 %v6207
        %6244 = vmatprep.subr.mxu0 0.0
        %6245 = vmatpush2.msra.mxu0 0.0
        %6246 = vmatprep.subr.mxu0 0.0
        %6247 = vmatpush2.msra.mxu0 0.0
        %6248 = vmatprep.subr.mxu0 0.0
        %6249 = vmatpush2.msra.mxu0 0.0
        %6250 = vmatprep.subr.mxu0 0.0
        %6251 = vmatpush2.msra.mxu0 0.0
        %6252 = vmatprep.subr.mxu0 0.0
        %6253 = vmatpush2.msra.mxu0 0.0
        %6254 = vmatprep.subr.mxu0 0.0
        %6255 = vmatpush2.msra.mxu0 0.0
        %6256 = vmatprep.subr.mxu0 0.0
        %6257 = vmatpush2.msra.mxu0 0.0
        %6258 = vmatprep.subr.mxu0 0.0
        %6259 = vmatpush2.msra.mxu0 0.0
        %6260 = vmatprep.subr.mxu0 0.0
        %6261 = vmatpush2.msra.mxu0 0.0
        %6262 = vmatprep.subr.mxu0 0.0
        %6263 = vmatpush2.msra.mxu0 0.0
        %6264 = vmatprep.subr.mxu0 0.0
        %6265 = vmatpush2.msra.mxu0 0.0
        %6266 = vmatprep.subr.mxu0 0.0
        %6267 = vmatpush2.msra.mxu0 0.0
        %6268 = vmatprep.subr.mxu0 0.0
        %6269 = vmatpush2.msra.mxu0 0.0
        %6270 = vmatprep.subr.mxu0 0.0
        %6271 = vmatpush2.msra.mxu0 0.0
        %6272 = vmatprep.subr.mxu0 0.0
        %6273 = vmatpush2.msra.mxu0 0.0
        %6274 = vmatprep.subr.mxu0 0.0
        %6275 = vmatpush2.msra.mxu0 0.0
        %6276 = vmatprep.mubr.f32.mxu0 0.0
        %6277 = vmatmul.mubr.f32.gmra.mxu0 %v6210
        %v6278 = vpop.f32.mrf.mxu0
        %v6279 = vadd.f32 0.0, %v6278
        %v6280 = vpop.f32.mrf.mxu0
        %6281 = vdwg.mxu0
        %6282 = vrot.lane.b32.xlu0 %v1887, 120
        %v6283 = vpop.permute.xlu0 %6282
        %v6286 = vsel %vm3953, %v6045, 0
        %6288 = vmatprep.subr.mxu0 0.0
        %6289 = vmatpush1.msra.mxu0 0.0
        %6290 = vmatprep.subr.mxu0 0.0
        %6291 = vmatpush1.msra.mxu0 0.0
        %6292 = vmatprep.subr.mxu0 0.0
        %6293 = vmatpush1.msra.mxu0 0.0
        %6294 = vmatprep.subr.mxu0 0.0
        %6295 = vmatpush1.msra.mxu0 0.0
        %6296 = vmatprep.subr.mxu0 0.0
        %6297 = vmatpush1.msra.mxu0 0.0
        %6298 = vmatprep.subr.mxu0 0.0
        %6299 = vmatpush1.msra.mxu0 0.0
        %6300 = vmatprep.subr.mxu0 0.0
        %6301 = vmatpush1.msra.mxu0 0.0
        %6302 = vmatprep.subr.mxu0 0.0
        %6303 = vmatpush1.msra.mxu0 0.0
        %6304 = vmatprep.subr.mxu0 0.0
        %6305 = vmatpush1.msra.mxu0 0.0
        %6306 = vmatprep.subr.mxu0 0.0
        %6307 = vmatpush1.msra.mxu0 0.0
        %6308 = vmatprep.subr.mxu0 0.0
        %6309 = vmatpush1.msra.mxu0 0.0
        %6310 = vmatprep.subr.mxu0 0.0
        %6311 = vmatpush1.msra.mxu0 0.0
        %6312 = vmatprep.subr.mxu0 0.0
        %6313 = vmatpush1.msra.mxu0 0.0
        %6314 = vmatprep.subr.mxu0 0.0
        %6315 = vmatpush1.msra.mxu0 0.0
        %6316 = vmatprep.subr.mxu0 0.0
        %6317 = vmatpush1.msra.mxu0 0.0
        %6318 = vmatprep.subr.mxu0 0.0
        %6319 = vmatpush1.msra.mxu0 %v6283
        %6320 = vmatprep.subr.mxu0 0.0
        %6321 = vmatpush2.msra.mxu0 0.0
        %6322 = vmatprep.subr.mxu0 0.0
        %6323 = vmatpush2.msra.mxu0 0.0
        %6324 = vmatprep.subr.mxu0 0.0
        %6325 = vmatpush2.msra.mxu0 0.0
        %6326 = vmatprep.subr.mxu0 0.0
        %6327 = vmatpush2.msra.mxu0 0.0
        %6328 = vmatprep.subr.mxu0 0.0
        %6329 = vmatpush2.msra.mxu0 0.0
        %6330 = vmatprep.subr.mxu0 0.0
        %6331 = vmatpush2.msra.mxu0 0.0
        %6332 = vmatprep.subr.mxu0 0.0
        %6333 = vmatpush2.msra.mxu0 0.0
        %6334 = vmatprep.subr.mxu0 0.0
        %6335 = vmatpush2.msra.mxu0 0.0
        %6336 = vmatprep.subr.mxu0 0.0
        %6337 = vmatpush2.msra.mxu0 0.0
        %6338 = vmatprep.subr.mxu0 0.0
        %6339 = vmatpush2.msra.mxu0 0.0
        %6340 = vmatprep.subr.mxu0 0.0
        %6341 = vmatpush2.msra.mxu0 0.0
        %6342 = vmatprep.subr.mxu0 0.0
        %6343 = vmatpush2.msra.mxu0 0.0
        %6344 = vmatprep.subr.mxu0 0.0
        %6345 = vmatpush2.msra.mxu0 0.0
        %6346 = vmatprep.subr.mxu0 0.0
        %6347 = vmatpush2.msra.mxu0 0.0
        %6348 = vmatprep.subr.mxu0 0.0
        %6349 = vmatpush2.msra.mxu0 0.0
        %6350 = vmatprep.subr.mxu0 0.0
        %6351 = vmatpush2.msra.mxu0 0.0
        %6352 = vmatprep.mubr.f32.mxu0 0.0
        %6353 = vmatmul.mubr.f32.gmra.mxu0 %v6286
        %v6354 = vpop.f32.mrf.mxu0
        %v6355 = vadd.f32 0.0, %v6354
        %v6356 = vpop.f32.mrf.mxu0
        %6357 = vdwg.mxu0
        %6358 = vrot.lane.b32.xlu0 %v1957, 120
        %v6359 = vpop.permute.xlu0 %6358
        %v6362 = vsel %vm3953, %v6046, 0
        %6364 = vmatprep.subr.mxu0 0.0
        %6365 = vmatpush1.msra.mxu0 0.0
        %6366 = vmatprep.subr.mxu0 0.0
        %6367 = vmatpush1.msra.mxu0 0.0
        %6368 = vmatprep.subr.mxu0 0.0
        %6369 = vmatpush1.msra.mxu0 0.0
        %6370 = vmatprep.subr.mxu0 0.0
        %6371 = vmatpush1.msra.mxu0 0.0
        %6372 = vmatprep.subr.mxu0 0.0
        %6373 = vmatpush1.msra.mxu0 0.0
        %6374 = vmatprep.subr.mxu0 0.0
        %6375 = vmatpush1.msra.mxu0 0.0
        %6376 = vmatprep.subr.mxu0 0.0
        %6377 = vmatpush1.msra.mxu0 0.0
        %6378 = vmatprep.subr.mxu0 0.0
        %6379 = vmatpush1.msra.mxu0 0.0
        %6380 = vmatprep.subr.mxu0 0.0
        %6381 = vmatpush1.msra.mxu0 0.0
        %6382 = vmatprep.subr.mxu0 0.0
        %6383 = vmatpush1.msra.mxu0 0.0
        %6384 = vmatprep.subr.mxu0 0.0
        %6385 = vmatpush1.msra.mxu0 0.0
        %6386 = vmatprep.subr.mxu0 0.0
        %6387 = vmatpush1.msra.mxu0 0.0
        %6388 = vmatprep.subr.mxu0 0.0
        %6389 = vmatpush1.msra.mxu0 0.0
        %6390 = vmatprep.subr.mxu0 0.0
        %6391 = vmatpush1.msra.mxu0 0.0
        %6392 = vmatprep.subr.mxu0 0.0
        %6393 = vmatpush1.msra.mxu0 0.0
        %6394 = vmatprep.subr.mxu0 0.0
        %6395 = vmatpush1.msra.mxu0 %v6359
        %6396 = vmatprep.subr.mxu0 0.0
        %6397 = vmatpush2.msra.mxu0 0.0
        %6398 = vmatprep.subr.mxu0 0.0
        %6399 = vmatpush2.msra.mxu0 0.0
        %6400 = vmatprep.subr.mxu0 0.0
        %6401 = vmatpush2.msra.mxu0 0.0
        %6402 = vmatprep.subr.mxu0 0.0
        %6403 = vmatpush2.msra.mxu0 0.0
        %6404 = vmatprep.subr.mxu0 0.0
        %6405 = vmatpush2.msra.mxu0 0.0
        %6406 = vmatprep.subr.mxu0 0.0
        %6407 = vmatpush2.msra.mxu0 0.0
        %6408 = vmatprep.subr.mxu0 0.0
        %6409 = vmatpush2.msra.mxu0 0.0
        %6410 = vmatprep.subr.mxu0 0.0
        %6411 = vmatpush2.msra.mxu0 0.0
        %6412 = vmatprep.subr.mxu0 0.0
        %6413 = vmatpush2.msra.mxu0 0.0
        %6414 = vmatprep.subr.mxu0 0.0
        %6415 = vmatpush2.msra.mxu0 0.0
        %6416 = vmatprep.subr.mxu0 0.0
        %6417 = vmatpush2.msra.mxu0 0.0
        %6418 = vmatprep.subr.mxu0 0.0
        %6419 = vmatpush2.msra.mxu0 0.0
        %6420 = vmatprep.subr.mxu0 0.0
        %6421 = vmatpush2.msra.mxu0 0.0
        %6422 = vmatprep.subr.mxu0 0.0
        %6423 = vmatpush2.msra.mxu0 0.0
        %6424 = vmatprep.subr.mxu0 0.0
        %6425 = vmatpush2.msra.mxu0 0.0
        %6426 = vmatprep.subr.mxu0 0.0
        %6427 = vmatpush2.msra.mxu0 0.0
        %6428 = vmatprep.mubr.f32.mxu0 0.0
        %6429 = vmatmul.mubr.f32.gmra.mxu0 %v6362
        %v6430 = vpop.f32.mrf.mxu0
        %v6431 = vadd.f32 0.0, %v6430
        %v6432 = vpop.f32.mrf.mxu0
        %6433 = vdwg.mxu0
        %6434 = vrot.lane.b32.xlu0 %v2027, 120
        %v6435 = vpop.permute.xlu0 %6434
        %v6438 = vsel %vm3953, %v6047, 0
        %6440 = vmatprep.subr.mxu0 0.0
        %6441 = vmatpush1.msra.mxu0 0.0
        %6442 = vmatprep.subr.mxu0 0.0
        %6443 = vmatpush1.msra.mxu0 0.0
        %6444 = vmatprep.subr.mxu0 0.0
        %6445 = vmatpush1.msra.mxu0 0.0
        %6446 = vmatprep.subr.mxu0 0.0
        %6447 = vmatpush1.msra.mxu0 0.0
        %6448 = vmatprep.subr.mxu0 0.0
        %6449 = vmatpush1.msra.mxu0 0.0
        %6450 = vmatprep.subr.mxu0 0.0
        %6451 = vmatpush1.msra.mxu0 0.0
        %6452 = vmatprep.subr.mxu0 0.0
        %6453 = vmatpush1.msra.mxu0 0.0
        %6454 = vmatprep.subr.mxu0 0.0
        %6455 = vmatpush1.msra.mxu0 0.0
        %6456 = vmatprep.subr.mxu0 0.0
        %6457 = vmatpush1.msra.mxu0 0.0
        %6458 = vmatprep.subr.mxu0 0.0
        %6459 = vmatpush1.msra.mxu0 0.0
        %6460 = vmatprep.subr.mxu0 0.0
        %6461 = vmatpush1.msra.mxu0 0.0
        %6462 = vmatprep.subr.mxu0 0.0
        %6463 = vmatpush1.msra.mxu0 0.0
        %6464 = vmatprep.subr.mxu0 0.0
        %6465 = vmatpush1.msra.mxu0 0.0
        %6466 = vmatprep.subr.mxu0 0.0
        %6467 = vmatpush1.msra.mxu0 0.0
        %6468 = vmatprep.subr.mxu0 0.0
        %6469 = vmatpush1.msra.mxu0 0.0
        %6470 = vmatprep.subr.mxu0 0.0
        %6471 = vmatpush1.msra.mxu0 %v6435
        %6472 = vmatprep.subr.mxu0 0.0
        %6473 = vmatpush2.msra.mxu0 0.0
        %6474 = vmatprep.subr.mxu0 0.0
        %6475 = vmatpush2.msra.mxu0 0.0
        %6476 = vmatprep.subr.mxu0 0.0
        %6477 = vmatpush2.msra.mxu0 0.0
        %6478 = vmatprep.subr.mxu0 0.0
        %6479 = vmatpush2.msra.mxu0 0.0
        %6480 = vmatprep.subr.mxu0 0.0
        %6481 = vmatpush2.msra.mxu0 0.0
        %6482 = vmatprep.subr.mxu0 0.0
        %6483 = vmatpush2.msra.mxu0 0.0
        %6484 = vmatprep.subr.mxu0 0.0
        %6485 = vmatpush2.msra.mxu0 0.0
        %6486 = vmatprep.subr.mxu0 0.0
        %6487 = vmatpush2.msra.mxu0 0.0
        %6488 = vmatprep.subr.mxu0 0.0
        %6489 = vmatpush2.msra.mxu0 0.0
        %6490 = vmatprep.subr.mxu0 0.0
        %6491 = vmatpush2.msra.mxu0 0.0
        %6492 = vmatprep.subr.mxu0 0.0
        %6493 = vmatpush2.msra.mxu0 0.0
        %6494 = vmatprep.subr.mxu0 0.0
        %6495 = vmatpush2.msra.mxu0 0.0
        %6496 = vmatprep.subr.mxu0 0.0
        %6497 = vmatpush2.msra.mxu0 0.0
        %6498 = vmatprep.subr.mxu0 0.0
        %6499 = vmatpush2.msra.mxu0 0.0
        %6500 = vmatprep.subr.mxu0 0.0
        %6501 = vmatpush2.msra.mxu0 0.0
        %6502 = vmatprep.subr.mxu0 0.0
        %6503 = vmatpush2.msra.mxu0 0.0
        %6504 = vmatprep.mubr.f32.mxu0 0.0
        %6505 = vmatmul.mubr.f32.gmra.mxu0 %v6438
        %v6506 = vpop.f32.mrf.mxu0
        %v6507 = vadd.f32 0.0, %v6506
        %v6508 = vpop.f32.mrf.mxu0
        %6509 = vdwg.mxu0
        %6510 = vrot.lane.b32.xlu0 %v2097, 120
        %v6511 = vpop.permute.xlu0 %6510
        %v6514 = vsel %vm3953, %v6048, 0
        %6516 = vmatprep.subr.mxu0 0.0
        %6517 = vmatpush1.msra.mxu0 0.0
        %6518 = vmatprep.subr.mxu0 0.0
        %6519 = vmatpush1.msra.mxu0 0.0
        %6520 = vmatprep.subr.mxu0 0.0
        %6521 = vmatpush1.msra.mxu0 0.0
        %6522 = vmatprep.subr.mxu0 0.0
        %6523 = vmatpush1.msra.mxu0 0.0
        %6524 = vmatprep.subr.mxu0 0.0
        %6525 = vmatpush1.msra.mxu0 0.0
        %6526 = vmatprep.subr.mxu0 0.0
        %6527 = vmatpush1.msra.mxu0 0.0
        %6528 = vmatprep.subr.mxu0 0.0
        %6529 = vmatpush1.msra.mxu0 0.0
        %6530 = vmatprep.subr.mxu0 0.0
        %6531 = vmatpush1.msra.mxu0 0.0
        %6532 = vmatprep.subr.mxu0 0.0
        %6533 = vmatpush1.msra.mxu0 0.0
        %6534 = vmatprep.subr.mxu0 0.0
        %6535 = vmatpush1.msra.mxu0 0.0
        %6536 = vmatprep.subr.mxu0 0.0
        %6537 = vmatpush1.msra.mxu0 0.0
        %6538 = vmatprep.subr.mxu0 0.0
        %6539 = vmatpush1.msra.mxu0 0.0
        %6540 = vmatprep.subr.mxu0 0.0
        %6541 = vmatpush1.msra.mxu0 0.0
        %6542 = vmatprep.subr.mxu0 0.0
        %6543 = vmatpush1.msra.mxu0 0.0
        %6544 = vmatprep.subr.mxu0 0.0
        %6545 = vmatpush1.msra.mxu0 0.0
        %6546 = vmatprep.subr.mxu0 0.0
        %6547 = vmatpush1.msra.mxu0 %v6511
        %6548 = vmatprep.subr.mxu0 0.0
        %6549 = vmatpush2.msra.mxu0 0.0
        %6550 = vmatprep.subr.mxu0 0.0
        %6551 = vmatpush2.msra.mxu0 0.0
        %6552 = vmatprep.subr.mxu0 0.0
        %6553 = vmatpush2.msra.mxu0 0.0
        %6554 = vmatprep.subr.mxu0 0.0
        %6555 = vmatpush2.msra.mxu0 0.0
        %6556 = vmatprep.subr.mxu0 0.0
        %6557 = vmatpush2.msra.mxu0 0.0
        %6558 = vmatprep.subr.mxu0 0.0
        %6559 = vmatpush2.msra.mxu0 0.0
        %6560 = vmatprep.subr.mxu0 0.0
        %6561 = vmatpush2.msra.mxu0 0.0
        %6562 = vmatprep.subr.mxu0 0.0
        %6563 = vmatpush2.msra.mxu0 0.0
        %6564 = vmatprep.subr.mxu0 0.0
        %6565 = vmatpush2.msra.mxu0 0.0
        %6566 = vmatprep.subr.mxu0 0.0
        %6567 = vmatpush2.msra.mxu0 0.0
        %6568 = vmatprep.subr.mxu0 0.0
        %6569 = vmatpush2.msra.mxu0 0.0
        %6570 = vmatprep.subr.mxu0 0.0
        %6571 = vmatpush2.msra.mxu0 0.0
        %6572 = vmatprep.subr.mxu0 0.0
        %6573 = vmatpush2.msra.mxu0 0.0
        %6574 = vmatprep.subr.mxu0 0.0
        %6575 = vmatpush2.msra.mxu0 0.0
        %6576 = vmatprep.subr.mxu0 0.0
        %6577 = vmatpush2.msra.mxu0 0.0
        %6578 = vmatprep.subr.mxu0 0.0
        %6579 = vmatpush2.msra.mxu0 0.0
        %6580 = vmatprep.mubr.f32.mxu0 0.0
        %6581 = vmatmul.mubr.f32.gmra.mxu0 %v6514
        %v6582 = vpop.f32.mrf.mxu0
        %v6583 = vadd.f32 0.0, %v6582
        %v6584 = vpop.f32.mrf.mxu0
        %6585 = vdwg.mxu0
        %6586 = vrot.lane.b32.xlu0 %v2167, 120
        %v6587 = vpop.permute.xlu0 %6586
        %v6590 = vsel %vm3953, %v6049, 0
        %6592 = vmatprep.subr.mxu0 0.0
        %6593 = vmatpush1.msra.mxu0 0.0
        %6594 = vmatprep.subr.mxu0 0.0
        %6595 = vmatpush1.msra.mxu0 0.0
        %6596 = vmatprep.subr.mxu0 0.0
        %6597 = vmatpush1.msra.mxu0 0.0
        %6598 = vmatprep.subr.mxu0 0.0
        %6599 = vmatpush1.msra.mxu0 0.0
        %6600 = vmatprep.subr.mxu0 0.0
        %6601 = vmatpush1.msra.mxu0 0.0
        %6602 = vmatprep.subr.mxu0 0.0
        %6603 = vmatpush1.msra.mxu0 0.0
        %6604 = vmatprep.subr.mxu0 0.0
        %6605 = vmatpush1.msra.mxu0 0.0
        %6606 = vmatprep.subr.mxu0 0.0
        %6607 = vmatpush1.msra.mxu0 0.0
        %6608 = vmatprep.subr.mxu0 0.0
        %6609 = vmatpush1.msra.mxu0 0.0
        %6610 = vmatprep.subr.mxu0 0.0
        %6611 = vmatpush1.msra.mxu0 0.0
        %6612 = vmatprep.subr.mxu0 0.0
        %6613 = vmatpush1.msra.mxu0 0.0
        %6614 = vmatprep.subr.mxu0 0.0
        %6615 = vmatpush1.msra.mxu0 0.0
        %6616 = vmatprep.subr.mxu0 0.0
        %6617 = vmatpush1.msra.mxu0 0.0
        %6618 = vmatprep.subr.mxu0 0.0
        %6619 = vmatpush1.msra.mxu0 0.0
        %6620 = vmatprep.subr.mxu0 0.0
        %6621 = vmatpush1.msra.mxu0 0.0
        %6622 = vmatprep.subr.mxu0 0.0
        %6623 = vmatpush1.msra.mxu0 %v6587
        %6624 = vmatprep.subr.mxu0 0.0
        %6625 = vmatpush2.msra.mxu0 0.0
        %6626 = vmatprep.subr.mxu0 0.0
        %6627 = vmatpush2.msra.mxu0 0.0
        %6628 = vmatprep.subr.mxu0 0.0
        %6629 = vmatpush2.msra.mxu0 0.0
        %6630 = vmatprep.subr.mxu0 0.0
        %6631 = vmatpush2.msra.mxu0 0.0
        %6632 = vmatprep.subr.mxu0 0.0
        %6633 = vmatpush2.msra.mxu0 0.0
        %6634 = vmatprep.subr.mxu0 0.0
        %6635 = vmatpush2.msra.mxu0 0.0
        %6636 = vmatprep.subr.mxu0 0.0
        %6637 = vmatpush2.msra.mxu0 0.0
        %6638 = vmatprep.subr.mxu0 0.0
        %6639 = vmatpush2.msra.mxu0 0.0
        %6640 = vmatprep.subr.mxu0 0.0
        %6641 = vmatpush2.msra.mxu0 0.0
        %6642 = vmatprep.subr.mxu0 0.0
        %6643 = vmatpush2.msra.mxu0 0.0
        %6644 = vmatprep.subr.mxu0 0.0
        %6645 = vmatpush2.msra.mxu0 0.0
        %6646 = vmatprep.subr.mxu0 0.0
        %6647 = vmatpush2.msra.mxu0 0.0
        %6648 = vmatprep.subr.mxu0 0.0
        %6649 = vmatpush2.msra.mxu0 0.0
        %6650 = vmatprep.subr.mxu0 0.0
        %6651 = vmatpush2.msra.mxu0 0.0
        %6652 = vmatprep.subr.mxu0 0.0
        %6653 = vmatpush2.msra.mxu0 0.0
        %6654 = vmatprep.subr.mxu0 0.0
        %6655 = vmatpush2.msra.mxu0 0.0
        %6656 = vmatprep.mubr.f32.mxu0 0.0
        %6657 = vmatmul.mubr.f32.gmra.mxu0 %v6590
        %v6658 = vpop.f32.mrf.mxu0
        %v6659 = vadd.f32 0.0, %v6658
        %v6660 = vpop.f32.mrf.mxu0
        %6661 = vdwg.mxu0
        %6662 = vrot.lane.b32.xlu0 %v2237, 120
        %v6663 = vpop.permute.xlu0 %6662
        %v6666 = vsel %vm3953, %v6050, 0
        %6668 = vmatprep.subr.mxu0 0.0
        %6669 = vmatpush1.msra.mxu0 0.0
        %6670 = vmatprep.subr.mxu0 0.0
        %6671 = vmatpush1.msra.mxu0 0.0
        %6672 = vmatprep.subr.mxu0 0.0
        %6673 = vmatpush1.msra.mxu0 0.0
        %6674 = vmatprep.subr.mxu0 0.0
        %6675 = vmatpush1.msra.mxu0 0.0
        %6676 = vmatprep.subr.mxu0 0.0
        %6677 = vmatpush1.msra.mxu0 0.0
        %6678 = vmatprep.subr.mxu0 0.0
        %6679 = vmatpush1.msra.mxu0 0.0
        %6680 = vmatprep.subr.mxu0 0.0
        %6681 = vmatpush1.msra.mxu0 0.0
        %6682 = vmatprep.subr.mxu0 0.0
        %6683 = vmatpush1.msra.mxu0 0.0
        %6684 = vmatprep.subr.mxu0 0.0
        %6685 = vmatpush1.msra.mxu0 0.0
        %6686 = vmatprep.subr.mxu0 0.0
        %6687 = vmatpush1.msra.mxu0 0.0
        %6688 = vmatprep.subr.mxu0 0.0
        %6689 = vmatpush1.msra.mxu0 0.0
        %6690 = vmatprep.subr.mxu0 0.0
        %6691 = vmatpush1.msra.mxu0 0.0
        %6692 = vmatprep.subr.mxu0 0.0
        %6693 = vmatpush1.msra.mxu0 0.0
        %6694 = vmatprep.subr.mxu0 0.0
        %6695 = vmatpush1.msra.mxu0 0.0
        %6696 = vmatprep.subr.mxu0 0.0
        %6697 = vmatpush1.msra.mxu0 0.0
        %6698 = vmatprep.subr.mxu0 0.0
        %6699 = vmatpush1.msra.mxu0 %v6663
        %6700 = vmatprep.subr.mxu0 0.0
        %6701 = vmatpush2.msra.mxu0 0.0
        %6702 = vmatprep.subr.mxu0 0.0
        %6703 = vmatpush2.msra.mxu0 0.0
        %6704 = vmatprep.subr.mxu0 0.0
        %6705 = vmatpush2.msra.mxu0 0.0
        %6706 = vmatprep.subr.mxu0 0.0
        %6707 = vmatpush2.msra.mxu0 0.0
        %6708 = vmatprep.subr.mxu0 0.0
        %6709 = vmatpush2.msra.mxu0 0.0
        %6710 = vmatprep.subr.mxu0 0.0
        %6711 = vmatpush2.msra.mxu0 0.0
        %6712 = vmatprep.subr.mxu0 0.0
        %6713 = vmatpush2.msra.mxu0 0.0
        %6714 = vmatprep.subr.mxu0 0.0
        %6715 = vmatpush2.msra.mxu0 0.0
        %6716 = vmatprep.subr.mxu0 0.0
        %6717 = vmatpush2.msra.mxu0 0.0
        %6718 = vmatprep.subr.mxu0 0.0
        %6719 = vmatpush2.msra.mxu0 0.0
        %6720 = vmatprep.subr.mxu0 0.0
        %6721 = vmatpush2.msra.mxu0 0.0
        %6722 = vmatprep.subr.mxu0 0.0
        %6723 = vmatpush2.msra.mxu0 0.0
        %6724 = vmatprep.subr.mxu0 0.0
        %6725 = vmatpush2.msra.mxu0 0.0
        %6726 = vmatprep.subr.mxu0 0.0
        %6727 = vmatpush2.msra.mxu0 0.0
        %6728 = vmatprep.subr.mxu0 0.0
        %6729 = vmatpush2.msra.mxu0 0.0
        %6730 = vmatprep.subr.mxu0 0.0
        %6731 = vmatpush2.msra.mxu0 0.0
        %6732 = vmatprep.mubr.f32.mxu0 0.0
        %6733 = vmatmul.mubr.f32.gmra.mxu0 %v6666
        %v6734 = vpop.f32.mrf.mxu0
        %v6735 = vadd.f32 0.0, %v6734
        %v6736 = vpop.f32.mrf.mxu0
        %6737 = vdwg.mxu0
        %6738 = vrot.lane.b32.xlu0 %v2307, 120
        %v6739 = vpop.permute.xlu0 %6738
        %v6742 = vsel %vm3953, %v6051, 0
        %6744 = vmatprep.subr.mxu0 0.0
        %6745 = vmatpush1.msra.mxu0 0.0
        %6746 = vmatprep.subr.mxu0 0.0
        %6747 = vmatpush1.msra.mxu0 0.0
        %6748 = vmatprep.subr.mxu0 0.0
        %6749 = vmatpush1.msra.mxu0 0.0
        %6750 = vmatprep.subr.mxu0 0.0
        %6751 = vmatpush1.msra.mxu0 0.0
        %6752 = vmatprep.subr.mxu0 0.0
        %6753 = vmatpush1.msra.mxu0 0.0
        %6754 = vmatprep.subr.mxu0 0.0
        %6755 = vmatpush1.msra.mxu0 0.0
        %6756 = vmatprep.subr.mxu0 0.0
        %6757 = vmatpush1.msra.mxu0 0.0
        %6758 = vmatprep.subr.mxu0 0.0
        %6759 = vmatpush1.msra.mxu0 0.0
        %6760 = vmatprep.subr.mxu0 0.0
        %6761 = vmatpush1.msra.mxu0 0.0
        %6762 = vmatprep.subr.mxu0 0.0
        %6763 = vmatpush1.msra.mxu0 0.0
        %6764 = vmatprep.subr.mxu0 0.0
        %6765 = vmatpush1.msra.mxu0 0.0
        %6766 = vmatprep.subr.mxu0 0.0
        %6767 = vmatpush1.msra.mxu0 0.0
        %6768 = vmatprep.subr.mxu0 0.0
        %6769 = vmatpush1.msra.mxu0 0.0
        %6770 = vmatprep.subr.mxu0 0.0
        %6771 = vmatpush1.msra.mxu0 0.0
        %6772 = vmatprep.subr.mxu0 0.0
        %6773 = vmatpush1.msra.mxu0 0.0
        %6774 = vmatprep.subr.mxu0 0.0
        %6775 = vmatpush1.msra.mxu0 %v6739
        %6776 = vmatprep.subr.mxu0 0.0
        %6777 = vmatpush2.msra.mxu0 0.0
        %6778 = vmatprep.subr.mxu0 0.0
        %6779 = vmatpush2.msra.mxu0 0.0
        %6780 = vmatprep.subr.mxu0 0.0
        %6781 = vmatpush2.msra.mxu0 0.0
        %6782 = vmatprep.subr.mxu0 0.0
        %6783 = vmatpush2.msra.mxu0 0.0
        %6784 = vmatprep.subr.mxu0 0.0
        %6785 = vmatpush2.msra.mxu0 0.0
        %6786 = vmatprep.subr.mxu0 0.0
        %6787 = vmatpush2.msra.mxu0 0.0
        %6788 = vmatprep.subr.mxu0 0.0
        %6789 = vmatpush2.msra.mxu0 0.0
        %6790 = vmatprep.subr.mxu0 0.0
        %6791 = vmatpush2.msra.mxu0 0.0
        %6792 = vmatprep.subr.mxu0 0.0
        %6793 = vmatpush2.msra.mxu0 0.0
        %6794 = vmatprep.subr.mxu0 0.0
        %6795 = vmatpush2.msra.mxu0 0.0
        %6796 = vmatprep.subr.mxu0 0.0
        %6797 = vmatpush2.msra.mxu0 0.0
        %6798 = vmatprep.subr.mxu0 0.0
        %6799 = vmatpush2.msra.mxu0 0.0
        %6800 = vmatprep.subr.mxu0 0.0
        %6801 = vmatpush2.msra.mxu0 0.0
        %6802 = vmatprep.subr.mxu0 0.0
        %6803 = vmatpush2.msra.mxu0 0.0
        %6804 = vmatprep.subr.mxu0 0.0
        %6805 = vmatpush2.msra.mxu0 0.0
        %6806 = vmatprep.subr.mxu0 0.0
        %6807 = vmatpush2.msra.mxu0 0.0
        %6808 = vmatprep.mubr.f32.mxu0 0.0
        %6809 = vmatmul.mubr.f32.gmra.mxu0 %v6742
        %v6810 = vpop.f32.mrf.mxu0
        %v6811 = vadd.f32 0.0, %v6810
        %v6812 = vpop.f32.mrf.mxu0
        %6813 = vdwg.mxu0
        %6814 = vrot.lane.b32.xlu0 %v2377, 120
        %v6815 = vpop.permute.xlu0 %6814
        %v6818 = vsel %vm3953, %v6052, 0
        %6820 = vmatprep.subr.mxu0 0.0
        %6821 = vmatpush1.msra.mxu0 0.0
        %6822 = vmatprep.subr.mxu0 0.0
        %6823 = vmatpush1.msra.mxu0 0.0
        %6824 = vmatprep.subr.mxu0 0.0
        %6825 = vmatpush1.msra.mxu0 0.0
        %6826 = vmatprep.subr.mxu0 0.0
        %6827 = vmatpush1.msra.mxu0 0.0
        %6828 = vmatprep.subr.mxu0 0.0
        %6829 = vmatpush1.msra.mxu0 0.0
        %6830 = vmatprep.subr.mxu0 0.0
        %6831 = vmatpush1.msra.mxu0 0.0
        %6832 = vmatprep.subr.mxu0 0.0
        %6833 = vmatpush1.msra.mxu0 0.0
        %6834 = vmatprep.subr.mxu0 0.0
        %6835 = vmatpush1.msra.mxu0 0.0
        %6836 = vmatprep.subr.mxu0 0.0
        %6837 = vmatpush1.msra.mxu0 0.0
        %6838 = vmatprep.subr.mxu0 0.0
        %6839 = vmatpush1.msra.mxu0 0.0
        %6840 = vmatprep.subr.mxu0 0.0
        %6841 = vmatpush1.msra.mxu0 0.0
        %6842 = vmatprep.subr.mxu0 0.0
        %6843 = vmatpush1.msra.mxu0 0.0
        %6844 = vmatprep.subr.mxu0 0.0
        %6845 = vmatpush1.msra.mxu0 0.0
        %6846 = vmatprep.subr.mxu0 0.0
        %6847 = vmatpush1.msra.mxu0 0.0
        %6848 = vmatprep.subr.mxu0 0.0
        %6849 = vmatpush1.msra.mxu0 0.0
        %6850 = vmatprep.subr.mxu0 0.0
        %6851 = vmatpush1.msra.mxu0 %v6815
        %6852 = vmatprep.subr.mxu0 0.0
        %6853 = vmatpush2.msra.mxu0 0.0
        %6854 = vmatprep.subr.mxu0 0.0
        %6855 = vmatpush2.msra.mxu0 0.0
        %6856 = vmatprep.subr.mxu0 0.0
        %6857 = vmatpush2.msra.mxu0 0.0
        %6858 = vmatprep.subr.mxu0 0.0
        %6859 = vmatpush2.msra.mxu0 0.0
        %6860 = vmatprep.subr.mxu0 0.0
        %6861 = vmatpush2.msra.mxu0 0.0
        %6862 = vmatprep.subr.mxu0 0.0
        %6863 = vmatpush2.msra.mxu0 0.0
        %6864 = vmatprep.subr.mxu0 0.0
        %6865 = vmatpush2.msra.mxu0 0.0
        %6866 = vmatprep.subr.mxu0 0.0
        %6867 = vmatpush2.msra.mxu0 0.0
        %6868 = vmatprep.subr.mxu0 0.0
        %6869 = vmatpush2.msra.mxu0 0.0
        %6870 = vmatprep.subr.mxu0 0.0
        %6871 = vmatpush2.msra.mxu0 0.0
        %6872 = vmatprep.subr.mxu0 0.0
        %6873 = vmatpush2.msra.mxu0 0.0
        %6874 = vmatprep.subr.mxu0 0.0
        %6875 = vmatpush2.msra.mxu0 0.0
        %6876 = vmatprep.subr.mxu0 0.0
        %6877 = vmatpush2.msra.mxu0 0.0
        %6878 = vmatprep.subr.mxu0 0.0
        %6879 = vmatpush2.msra.mxu0 0.0
        %6880 = vmatprep.subr.mxu0 0.0
        %6881 = vmatpush2.msra.mxu0 0.0
        %6882 = vmatprep.subr.mxu0 0.0
        %6883 = vmatpush2.msra.mxu0 0.0
        %6884 = vmatprep.mubr.f32.mxu0 0.0
        %6885 = vmatmul.mubr.f32.gmra.mxu0 %v6818
        %v6886 = vpop.f32.mrf.mxu0
        %v6887 = vadd.f32 0.0, %v6886
        %v6888 = vpop.f32.mrf.mxu0
        %6889 = vdwg.mxu0
        %6890 = vrot.lane.b32.xlu0 %v2447, 120
        %v6891 = vpop.permute.xlu0 %6890
        %v6894 = vsel %vm3953, %v6053, 0
        %6896 = vmatprep.subr.mxu0 0.0
        %6897 = vmatpush1.msra.mxu0 0.0
        %6898 = vmatprep.subr.mxu0 0.0
        %6899 = vmatpush1.msra.mxu0 0.0
        %6900 = vmatprep.subr.mxu0 0.0
        %6901 = vmatpush1.msra.mxu0 0.0
        %6902 = vmatprep.subr.mxu0 0.0
        %6903 = vmatpush1.msra.mxu0 0.0
        %6904 = vmatprep.subr.mxu0 0.0
        %6905 = vmatpush1.msra.mxu0 0.0
        %6906 = vmatprep.subr.mxu0 0.0
        %6907 = vmatpush1.msra.mxu0 0.0
        %6908 = vmatprep.subr.mxu0 0.0
        %6909 = vmatpush1.msra.mxu0 0.0
        %6910 = vmatprep.subr.mxu0 0.0
        %6911 = vmatpush1.msra.mxu0 0.0
        %6912 = vmatprep.subr.mxu0 0.0
        %6913 = vmatpush1.msra.mxu0 0.0
        %6914 = vmatprep.subr.mxu0 0.0
        %6915 = vmatpush1.msra.mxu0 0.0
        %6916 = vmatprep.subr.mxu0 0.0
        %6917 = vmatpush1.msra.mxu0 0.0
        %6918 = vmatprep.subr.mxu0 0.0
        %6919 = vmatpush1.msra.mxu0 0.0
        %6920 = vmatprep.subr.mxu0 0.0
        %6921 = vmatpush1.msra.mxu0 0.0
        %6922 = vmatprep.subr.mxu0 0.0
        %6923 = vmatpush1.msra.mxu0 0.0
        %6924 = vmatprep.subr.mxu0 0.0
        %6925 = vmatpush1.msra.mxu0 0.0
        %6926 = vmatprep.subr.mxu0 0.0
        %6927 = vmatpush1.msra.mxu0 %v6891
        %6928 = vmatprep.subr.mxu0 0.0
        %6929 = vmatpush2.msra.mxu0 0.0
        %6930 = vmatprep.subr.mxu0 0.0
        %6931 = vmatpush2.msra.mxu0 0.0
        %6932 = vmatprep.subr.mxu0 0.0
        %6933 = vmatpush2.msra.mxu0 0.0
        %6934 = vmatprep.subr.mxu0 0.0
        %6935 = vmatpush2.msra.mxu0 0.0
        %6936 = vmatprep.subr.mxu0 0.0
        %6937 = vmatpush2.msra.mxu0 0.0
        %6938 = vmatprep.subr.mxu0 0.0
        %6939 = vmatpush2.msra.mxu0 0.0
        %6940 = vmatprep.subr.mxu0 0.0
        %6941 = vmatpush2.msra.mxu0 0.0
        %6942 = vmatprep.subr.mxu0 0.0
        %6943 = vmatpush2.msra.mxu0 0.0
        %6944 = vmatprep.subr.mxu0 0.0
        %6945 = vmatpush2.msra.mxu0 0.0
        %6946 = vmatprep.subr.mxu0 0.0
        %6947 = vmatpush2.msra.mxu0 0.0
        %6948 = vmatprep.subr.mxu0 0.0
        %6949 = vmatpush2.msra.mxu0 0.0
        %6950 = vmatprep.subr.mxu0 0.0
        %6951 = vmatpush2.msra.mxu0 0.0
        %6952 = vmatprep.subr.mxu0 0.0
        %6953 = vmatpush2.msra.mxu0 0.0
        %6954 = vmatprep.subr.mxu0 0.0
        %6955 = vmatpush2.msra.mxu0 0.0
        %6956 = vmatprep.subr.mxu0 0.0
        %6957 = vmatpush2.msra.mxu0 0.0
        %6958 = vmatprep.subr.mxu0 0.0
        %6959 = vmatpush2.msra.mxu0 0.0
        %6960 = vmatprep.mubr.f32.mxu0 0.0
        %6961 = vmatmul.mubr.f32.gmra.mxu0 %v6894
        %v6962 = vpop.f32.mrf.mxu0
        %v6963 = vadd.f32 0.0, %v6962
        %v6964 = vpop.f32.mrf.mxu0
        %6965 = vdwg.mxu0
        %6966 = vst.msk [vmem:[%s496] sm:$0xff] %vm2998, %v6127
        %6967 = vst.msk [vmem:[%s496 + $0x8] sm:$0xff] %vm2998, %v6203
        %6968 = vst.msk [vmem:[%s496 + $0x10] sm:$0xff] %vm2998, %v6279
        %6969 = vst.msk [vmem:[%s496 + $0x18] sm:$0xff] %vm2998, %v6355
        %6970 = vst.msk [vmem:[%s496 + $0x20] sm:$0xff] %vm2998, %v6431
        %6971 = vst.msk [vmem:[%s496 + $0x28] sm:$0xff] %vm2998, %v6507
        %6972 = vst.msk [vmem:[%s496 + $0x30] sm:$0xff] %vm2998, %v6583
        %6973 = vst.msk [vmem:[%s496 + $0x38] sm:$0xff] %vm2998, %v6659
        %6974 = vst.msk [vmem:[%s496 + $0x40] sm:$0xff] %vm2998, %v6735
        %6975 = vst.msk [vmem:[%s496 + $0x48] sm:$0xff] %vm2998, %v6811
        %6976 = vst.msk [vmem:[%s496 + $0x50] sm:$0xff] %vm2998, %v6887
        %6977 = vst.msk [vmem:[%s496 + $0x58] sm:$0xff] %vm2998, %v6963
        %p6978 = scmp.lt.s32.totalorder %s30, 1
        %s6979 = scalar_select %p6978, %s30, 1
        %s6980 = smul.addr %s6979, 12
        %s6981 = smul.addr %s6980, 8
        %s6982 = scalar_lea.vmem %s9, %s6981
        %p6983 = scmp.lt.s32.totalorder %s30, 1
        %s6984 = scalar_select %p6983, %s30, 1
        %s6985 = smul.addr %s6984, 12
        %s6986 = smul.addr %s6985, 8
        %s6987 = scalar_lea.vmem %s10, %s6986
        // Predicated region
        $region81: #{_forward.1} parent=55 // pred_check
          %p6988 = pneg %p252
        $region82: #{_forward.1} parent=55 // pred_check_branch
          %6990 = sbr.rel (%p6988) target = $region84
        $region83: #{_forward.1} parent=55 // pred_region
          _
        $region84: #{_forward.1} parent=55 // pred_fallthru
          _
        // Predicated region
        $region85: #{_forward.1} parent=55 // pred_check
          %p6991 = pneg %p278
        $region86: #{_forward.1} parent=55 // pred_check_branch
          %6993 = sbr.rel (%p6991) target = $region88
        $region87: #{_forward.1} parent=55 // pred_region
          _
        $region88: #{_forward.1} parent=55 // pred_fallthru
          _
      $region56: #{_forward.1} parent=5 // pred_fallthru
        _
      %p6994 = scmp.le.s32.totalorder 2, %s25
      // Predicated region
      $region89: #{_forward.1} parent=5 // pred_check
        %p6995 = pneg %p6994
      $region90: #{_forward.1} parent=5 // pred_check_branch
        %6997 = sbr.rel (%p6995) target = $region92
      $region91: #{_forward.1} parent=5 // pred_region
        %s6998 = ssub.s32 %s25, 2
        // Predicated region
        $region93: #{_forward.1} parent=91 // pred_check
          %p6999 = pneg %p258
        $region94: #{_forward.1} parent=91 // pred_check_branch
          %7001 = sbr.rel (%p6999) target = $region96
        $region95: #{_forward.1} parent=91 // pred_region
          %p7002 = scmp.lt.s32.totalorder %s31, 1
          %s7003 = scalar_select %p7002, %s31, 1
          %s7004 = smul.addr %s7003, 12
          %s7005 = smul.addr %s7004, 8
          %s7006 = scalar_lea.vmem %s9, %s7005
        $region96: #{_forward.1} parent=91 // pred_fallthru
          _
        // Predicated region
        $region97: #{_forward.1} parent=91 // pred_check
          %p7007 = pneg %p284
        $region98: #{_forward.1} parent=91 // pred_check_branch
          %7009 = sbr.rel (%p7007) target = $region100
        $region99: #{_forward.1} parent=91 // pred_region
          %p7010 = scmp.lt.s32.totalorder %s31, 1
          %s7011 = scalar_select %p7010, %s31, 1
          %s7012 = smul.addr %s7011, 12
          %s7013 = smul.addr %s7012, 8
          %s7014 = scalar_lea.vmem %s10, %s7013
        $region100: #{_forward.1} parent=91 // pred_fallthru
          _
      $region92: #{_forward.1} parent=5 // pred_fallthru
        _
    $region6: #{_forward.1} parent=1 // loop_footer
      %s29 = sadd.s32 1, %s25
    $region7: #{_forward.1} parent=1 // loop_footer_branch
      %24 = sbr.rel target = $region3
    $region8: #{_forward.1} parent=1 // loop_exit
      _
    %7015 = vsyncpa [#allocation3], 1
    %s7016 = scalar_lea.sflag [#allocation3], 1
    %7017 = vsyncpa %s7016, 1
    %7018 = vsyncpa [#allocation5], 1
    %s7019 = scalar_lea.sflag [#allocation5], 1
    %7020 = vsyncpa %s7019, 1
    %7021 = vsyncpa [#allocation8], 1
    %7022 = vsyncpa [#allocation11], 1

</llo_original>
